<compile_context>
chip_gen: v6e
topology: v6e:2x2x1
jax: 0.10.0
libtpu: 0.0.40
codegen_flags: <defaults>
</compile_context>

<pallas_src>
import functools

import jax
import jax.numpy as jnp
from jax.experimental import pallas as pl
from jax.experimental.pallas import tpu as pltpu

LANE = 128
SUBLANE = 8


def _round_up(x, m):
    return ((x + m - 1) // m) * m


# -----------------------------------------------------------------------------
# Fused DoubleConv kernel: one grid step == one sample.
#   x_ref   : ((h+3)*wp, cin_pad)  bf16 flat halo'd input slab
#   mask_ref: (m1, 1) f32          1.0 for valid output pixels, 0.0 for the
#                                  wp-w alignment-slack ("junk") columns
#   w*_ref  : (9, Cin_pad, Cout_pad) bf16 per-tap weights
#   b/g/be  : (1, C_pad) f32 (zero-padded)
#   o_ref   : (m1, cout_pad) f32   lane-dense store; junk cols sliced in wrapper
#   mid_ref : ((h+3)*wp, cmid_pad) bf16 VMEM scratch (stage-1 output + zero halo)
# -----------------------------------------------------------------------------
def _double_conv_kernel(x_ref, mask_ref, w1_ref, b1_ref, g1_ref, be1_ref,
                        w2_ref, b2_ref, g2_ref, be2_ref,
                        o_ref, mid_ref, *,
                        h, w, wp, m1, cmid, cmid_pad, cout, cout_pad,
                        groups1, groups2, eps):
    mask = mask_ref[...]                                     # (m1, 1) f32

    def conv_relu_gn(src_ref, w_ref, b_ref, g_ref, be_ref, c_real, c_pad, groups):
        # --- 3x3 conv as 9 shifted-slab matmuls, f32 accumulation (no im2col) --
        acc = None
        for t in range(9):
            off = (t // 3) * wp + (t % 3)                    # static sublane offset
            part = jnp.dot(src_ref[pl.ds(off, m1), :], w_ref[t],
                           preferred_element_type=jnp.float32)
            acc = part if acc is None else acc + part
        acc = jnp.maximum(acc + b_ref[...], 0.0)             # bias + ReLU (f32)

        # --- GroupNorm over valid pixels only ---------------------------------
        cg = c_real // groups
        cnt = float(h * w * cg)
        am = acc * mask                                      # kill junk columns
        s1 = jnp.sum(am, axis=0, keepdims=True)              # (1, c_pad)
        s2 = jnp.sum(am * acc, axis=0, keepdims=True)        # masked sum of squares
        ch = jax.lax.broadcasted_iota(jnp.int32, (1, c_pad), 1)
        mean_c = jnp.zeros((1, c_pad), jnp.float32)
        scale_c = jnp.zeros((1, c_pad), jnp.float32)
        # cg (e.g. 32) is not lane-sized, so keep the tiny masked per-group
        # reduce (groups <= 4 here) rather than a (groups, cg) reshape.
        for g in range(groups):                              # static, small unroll
            in_g = (ch >= g * cg) & (ch < (g + 1) * cg)
            mu = jnp.sum(jnp.where(in_g, s1, 0.0)) / cnt
            var = jnp.maximum(jnp.sum(jnp.where(in_g, s2, 0.0)) / cnt - mu * mu, 0.0)
            mean_c = jnp.where(in_g, mu, mean_c)
            scale_c = jnp.where(in_g, jax.lax.rsqrt(var + eps), scale_c)
        # Padded channels have gamma = beta = 0  ->  output is exactly 0 there.
        return (acc - mean_c) * (scale_c * g_ref[...]) + be_ref[...]

    # ---- stage 1: conv3x3 + bias + ReLU + GroupNorm --------------------------
    y1 = conv_relu_gn(x_ref, w1_ref, b1_ref, g1_ref, be1_ref,
                      cmid, cmid_pad, groups1)

    # Re-zero only the halo/guard rows (~3*wp rows), not the whole scratch; the
    # interior is fully overwritten by the masked store below.
    head = wp + 1
    mid_ref[pl.ds(0, head), :] = jnp.zeros((head, cmid_pad), mid_ref.dtype)
    tail = (h + 1) * wp + 1
    tail_len = (h + 3) * wp - tail
    mid_ref[pl.ds(tail, tail_len), :] = jnp.zeros((tail_len, cmid_pad),
                                                  mid_ref.dtype)
    # Masked interior store: the flat offset wp+1 re-inserts the 1-px halo, and
    # the mask writes exact zeros into the left/right halo columns.
    # TODO(synk): keep the mid scratch in f32 if accuracy ever matters (2x VMEM).
    mid_ref[pl.ds(head, m1), :] = (y1 * mask).astype(mid_ref.dtype)

    # ---- stage 2: conv3x3 + bias + ReLU + GroupNorm --------------------------
    y2 = conv_relu_gn(mid_ref, w2_ref, b2_ref, g2_ref, be2_ref,
                      cout, cout_pad, groups2)
    # Lane-dense f32 store; junk columns are finite and sliced off in the wrapper.
    # (Could be bf16 on v5e to halve HBM writeback if downstream allows.)
    o_ref[...] = y2.astype(o_ref.dtype)


def double_conv_fused(x_nhwc, p, *, compute_dtype=jnp.bfloat16, eps=1e-5):
    """x_nhwc: (N, H, W, Cin) f32.  Returns (N, H, W, Cout) f32."""
    n, h, w, cin = x_nhwc.shape
    cmid = p["w1"].shape[-1]
    cout = p["w2"].shape[-1]
    groups1, groups2 = p["groups1"], p["groups2"]
    assert cmid % groups1 == 0 and cout % groups2 == 0, "GroupNorm needs C % G == 0"

    cin_pad = _round_up(cin, LANE)
    cmid_pad = _round_up(cmid, LANE)
    cout_pad = _round_up(cout, LANE)

    wp = _round_up(w + 2, SUBLANE)   # padded row stride (sublane aligned)
    rows = (h + 3) * wp              # top halo + bottom halo + 1 guard row
    m1 = h * wp                      # matmul M (valid pixels + wp-w junk cols/row)

    # Single pad + cast producing the flat, channels-last, halo'd input slab
    # (bf16 halves DMA bytes).  Valid pixel (y, x) lives at flat row (y+1)*wp+(x+1).
    xp = jnp.pad(x_nhwc, ((0, 0), (1, 2), (1, wp - w - 1), (0, cin_pad - cin)))
    xp = xp.astype(compute_dtype).reshape(n, rows, cin_pad)

    # Valid-pixel row mask for output flat rows r = y*wp + x (valid iff x < w).
    row_mask = ((jnp.arange(m1, dtype=jnp.int32) % wp) < w)
    row_mask = row_mask.astype(jnp.float32).reshape(m1, 1)

    def taps(wt, ci, ci_pad, co, co_pad):
        # (3, 3, ci, co) -> (9, ci_pad, co_pad) bf16; tap index t = dy*3 + dx.
        wt = jnp.pad(wt, ((0, 0), (0, 0), (0, ci_pad - ci), (0, co_pad - co)))
        return wt.reshape(9, ci_pad, co_pad).astype(compute_dtype)

    w1 = taps(p["w1"], cin, cin_pad, cmid, cmid_pad)
    w2 = taps(p["w2"], cmid, cmid_pad, cout, cout_pad)

    def cvec(v, cpad):   # (C,) -> zero-padded (1, Cpad) f32 row
        return jnp.pad(v, (0, cpad - v.shape[0])).reshape(1, cpad).astype(jnp.float32)

    b1, g1, be1 = cvec(p["b1"], cmid_pad), cvec(p["g1"], cmid_pad), cvec(p["be1"], cmid_pad)
    b2, g2, be2 = cvec(p["b2"], cout_pad), cvec(p["g2"], cout_pad), cvec(p["be2"], cout_pad)

    kern = functools.partial(
        _double_conv_kernel, h=h, w=w, wp=wp, m1=m1, cmid=cmid,
        cmid_pad=cmid_pad, cout=cout, cout_pad=cout_pad,
        groups1=groups1, groups2=groups2, eps=eps)

    # M = h*wp (>= 384 here) already amortizes the MXU weight push; batching
    # multiple samples per grid step is only worth it for tiny H*W.
    out = pl.pallas_call(
        kern,
        out_shape=jax.ShapeDtypeStruct((n, m1, cout_pad), jnp.float32),
        grid=(n,),
        in_specs=[
            pl.BlockSpec((None, rows, cin_pad), lambda i: (i, 0, 0)),
            pl.BlockSpec((m1, 1), lambda i: (0, 0)),
            pl.BlockSpec((9, cin_pad, cmid_pad), lambda i: (0, 0, 0)),
            pl.BlockSpec((1, cmid_pad), lambda i: (0, 0)),
            pl.BlockSpec((1, cmid_pad), lambda i: (0, 0)),
            pl.BlockSpec((1, cmid_pad), lambda i: (0, 0)),
            pl.BlockSpec((9, cmid_pad, cout_pad), lambda i: (0, 0, 0)),
            pl.BlockSpec((1, cout_pad), lambda i: (0, 0)),
            pl.BlockSpec((1, cout_pad), lambda i: (0, 0)),
            pl.BlockSpec((1, cout_pad), lambda i: (0, 0)),
        ],
        out_specs=pl.BlockSpec((None, m1, cout_pad), lambda i: (i, 0, 0)),
        scratch_shapes=[pltpu.VMEM((rows, cmid_pad), compute_dtype)],
        compiler_params=pltpu.CompilerParams(
            dimension_semantics=("parallel",),
            vmem_limit_bytes=32 * 1024 * 1024),
    )(xp, row_mask, w1, b1, g1, be1, w2, b2, g2, be2)

    return out.reshape(n, h, wp, cout_pad)[:, :, :w, :cout]


# -----------------------------------------------------------------------------
# Glue (plain JAX, channels-last): bilinear 2x upsample, pad, concat
# -----------------------------------------------------------------------------
def bilinear_upsample_2x_align_corners_nhwc(x):
    """nn.Upsample(scale_factor=2, mode='bilinear', align_corners=True), NHWC."""
    n, h, w, c = x.shape
    oh, ow = 2 * h, 2 * w

    def coords(in_sz, out_sz):
        if out_sz == 1:
            return jnp.zeros((1,), jnp.float32)
        return jnp.arange(out_sz, dtype=jnp.float32) * (in_sz - 1) / (out_sz - 1)

    ys, xs = coords(h, oh), coords(w, ow)
    y0 = jnp.floor(ys).astype(jnp.int32)
    y1 = jnp.minimum(y0 + 1, h - 1)
    wy = ys - y0
    x0 = jnp.floor(xs).astype(jnp.int32)
    x1 = jnp.minimum(x0 + 1, w - 1)
    wx = xs - x0

    r0 = jnp.take(x, y0, axis=1)
    r1 = jnp.take(x, y1, axis=1)

    def interp_w(r):
        c0 = jnp.take(r, x0, axis=2)
        c1 = jnp.take(r, x1, axis=2)
        return c0 * (1.0 - wx)[None, None, :, None] + c1 * wx[None, None, :, None]

    top, bot = interp_w(r0), interp_w(r1)
    return top * (1.0 - wy)[None, :, None, None] + bot * wy[None, :, None, None]


def _merge_nhwc(x1_nhwc, x2_nhwc):
    x1u = bilinear_upsample_2x_align_corners_nhwc(x1_nhwc)
    dy = x2_nhwc.shape[1] - x1u.shape[1]
    dx = x2_nhwc.shape[2] - x1u.shape[2]
    # F.pad([dx//2, dx-dx//2, dy//2, dy-dy//2]); non-negative diffs assumed.
    x1u = jnp.pad(x1u, ((0, 0), (dy // 2, dy - dy // 2),
                        (dx // 2, dx - dx // 2), (0, 0)))
    return jnp.concatenate([x2_nhwc, x1u], axis=-1)


# -----------------------------------------------------------------------------
# `Up` module: parameters + forward
# -----------------------------------------------------------------------------
def init_up_params(key, in_channels, out_channels):
    # bilinear=True branch: DoubleConv(in_channels, out_channels // 2, in_channels // 2)
    mid = in_channels // 2
    outc = out_channels // 2
    ks = jax.random.split(key, 8)
    return {
        "w1": 0.1 * jax.random.normal(ks[0], (3, 3, in_channels, mid), jnp.float32),
        "b1": 0.05 * jax.random.normal(ks[1], (mid,), jnp.float32),
        "g1": 1.0 + 0.1 * jax.random.normal(ks[2], (mid,), jnp.float32),
        "be1": 0.05 * jax.random.normal(ks[3], (mid,), jnp.float32),
        "w2": 0.1 * jax.random.normal(ks[4], (3, 3, mid, outc), jnp.float32),
        "b2": 0.05 * jax.random.normal(ks[5], (outc,), jnp.float32),
        "g2": 1.0 + 0.1 * jax.random.normal(ks[6], (outc,), jnp.float32),
        "be2": 0.05 * jax.random.normal(ks[7], (outc,), jnp.float32),
        "groups1": max(1, mid // 32),
        "groups2": max(1, outc // 32),
    }


def up_forward(params, x1, x2, *, compute_dtype=jnp.bfloat16):
    """x1: (N, C/2, H, W), x2: (N, C/2, 2H, 2W) NCHW.  Returns NCHW."""
    # NCHW only at the module boundary; everything else runs channels-last.
    x = _merge_nhwc(jnp.transpose(x1, (0, 2, 3, 1)),
                    jnp.transpose(x2, (0, 2, 3, 1)))
    y = double_conv_fused(x, params, compute_dtype=compute_dtype)
    return jnp.transpose(y, (0, 3, 1, 2))


# -----------------------------------------------------------------------------
# Pure-JAX f32 reference (correctness check only)
# -----------------------------------------------------------------------------
def _ref_conv_relu_gn_nhwc(x, w, b, gamma, beta, groups, eps=1e-5):
    y = jax.lax.conv_general_dilated(
        x, w, (1, 1), "SAME",
        dimension_numbers=("NHWC", "HWIO", "NHWC"),
        precision=jax.lax.Precision.HIGHEST)
    y = y + b[None, None, None, :]
    y = jnp.maximum(y, 0.0)
    n, h, wdt, c = y.shape
    yg = y.reshape(n, h, wdt, groups, c // groups)
    m = yg.mean(axis=(1, 2, 4), keepdims=True)
    v = ((yg - m) ** 2).mean(axis=(1, 2, 4), keepdims=True)
    yn = ((yg - m) / jnp.sqrt(v + eps)).reshape(n, h, wdt, c)
    return yn * gamma[None, None, None, :] + beta[None, None, None, :]


def ref_up(params, x1, x2):
    x = _merge_nhwc(jnp.transpose(x1, (0, 2, 3, 1)),
                    jnp.transpose(x2, (0, 2, 3, 1)))
    y = _ref_conv_relu_gn_nhwc(x, params["w1"], params["b1"], params["g1"],
                               params["be1"], params["groups1"])
    y = _ref_conv_relu_gn_nhwc(y, params["w2"], params["b2"], params["g2"],
                               params["be2"], params["groups2"])
    return jnp.transpose(y, (0, 3, 1, 2))


if __name__ == "__main__":
    key = jax.random.PRNGKey(0)
    # (in_channels, out_channels, N, H1, W1):
    #   cfg 0: tiny channels -> 1 GroupNorm group, heavy lane padding (8 -> 128)
    #   cfg 1: 2 GroupNorm groups per stage, concat channels already lane-sized
    configs = [(8, 8, 2, 8, 8), (128, 128, 2, 8, 8)]
    for in_c, out_c, n, h1, w1 in configs:
        key, k1, k2, kp = jax.random.split(key, 4)
        x1 = jax.random.normal(k1, (n, in_c // 2, h1, w1), jnp.float32)
        x2 = jax.random.normal(k2, (n, in_c // 2, 2 * h1, 2 * w1), jnp.float32)
        params = init_up_params(kp, in_c, out_c)

        y = jax.block_until_ready(up_forward(params, x1, x2))
        assert y.shape == (n, out_c // 2, 2 * h1, 2 * w1), y.shape

        y_ref = ref_up(params, x1, x2)
        err = float(jnp.max(jnp.abs(y - y_ref)))
        # bf16 MXU operands + bf16 mid vs f32 HIGHEST-precision reference ->
        # relative-ish tolerance; real bugs (tap misalignment, halo leakage,
        # wrong group stats) give O(1) errors.
        tol = 5e-2 * float(jnp.max(jnp.abs(y_ref))) + 5e-2
        assert err < tol, f"cfg {(in_c, out_c)}: max abs err {err} > tol {tol}"

    print("KERNEL_OK")
</pallas_src>

<mosaic_0001>
module attributes {stable_mosaic.version = 11 : i64} {
  func.func @_double_conv_kernel(%arg0: i32, %arg1: memref<1x456x128xbf16, #tpu.memory_space<vmem>>, %arg2: memref<384x1xf32, #tpu.memory_space<vmem>>, %arg3: memref<9x128x128xbf16, #tpu.memory_space<vmem>>, %arg4: memref<1x128xf32, #tpu.memory_space<vmem>>, %arg5: memref<1x128xf32, #tpu.memory_space<vmem>>, %arg6: memref<1x128xf32, #tpu.memory_space<vmem>>, %arg7: memref<9x128x128xbf16, #tpu.memory_space<vmem>>, %arg8: memref<1x128xf32, #tpu.memory_space<vmem>>, %arg9: memref<1x128xf32, #tpu.memory_space<vmem>>, %arg10: memref<1x128xf32, #tpu.memory_space<vmem>>, %arg11: memref<1x384x128xf32, #tpu.memory_space<vmem>>, %arg12: memref<456x128xbf16, #tpu.memory_space<vmem>>) attributes {dimension_semantics = [#tpu.dimension_semantics<parallel>], iteration_bounds = array<i64: 2>, scalar_prefetch = 0 : i64, scratch_operands = 1 : i64, tpu.core_type = #tpu.core_type<tc>, window_params = [{transform_indices = @transform_0, window_bounds = array<i64: 1, 456, 128>}, {pipeline_mode = #tpu.pipeline_mode<synchronous>, transform_indices = @transform_1, window_bounds = array<i64: 384, 1>}, {pipeline_mode = #tpu.pipeline_mode<synchronous>, transform_indices = @transform_2, window_bounds = array<i64: 9, 128, 128>}, {pipeline_mode = #tpu.pipeline_mode<synchronous>, transform_indices = @transform_3, window_bounds = array<i64: 1, 128>}, {pipeline_mode = #tpu.pipeline_mode<synchronous>, transform_indices = @transform_4, window_bounds = array<i64: 1, 128>}, {pipeline_mode = #tpu.pipeline_mode<synchronous>, transform_indices = @transform_5, window_bounds = array<i64: 1, 128>}, {pipeline_mode = #tpu.pipeline_mode<synchronous>, transform_indices = @transform_6, window_bounds = array<i64: 9, 128, 128>}, {pipeline_mode = #tpu.pipeline_mode<synchronous>, transform_indices = @transform_7, window_bounds = array<i64: 1, 128>}, {pipeline_mode = #tpu.pipeline_mode<synchronous>, transform_indices = @transform_8, window_bounds = array<i64: 1, 128>}, {pipeline_mode = #tpu.pipeline_mode<synchronous>, transform_indices = @transform_9, window_bounds = array<i64: 1, 128>}, {transform_indices = @transform_10, window_bounds = array<i64: 1, 384, 128>}]} {
    %c0 = arith.constant 0 : index
    %c0_0 = arith.constant 0 : index
    %0 = vector.load %arg2[%c0, %c0_0] : memref<384x1xf32, #tpu.memory_space<vmem>>, vector<384x1xf32>
    %c0_1 = arith.constant 0 : index
    %c0_2 = arith.constant 0 : index
    %c0_3 = arith.constant 0 : index
    %1 = vector.load %arg1[%c0_1, %c0_2, %c0_3] : memref<1x456x128xbf16, #tpu.memory_space<vmem>>, vector<1x384x128xbf16>
    %2 = vector.shape_cast %1 : vector<1x384x128xbf16> to vector<384x128xbf16>
    %c0_4 = arith.constant 0 : index
    %c0_5 = arith.constant 0 : index
    %c0_6 = arith.constant 0 : index
    %3 = vector.load %arg3[%c0_4, %c0_5, %c0_6] : memref<9x128x128xbf16, #tpu.memory_space<vmem>>, vector<1x128x128xbf16>
    %4 = vector.shape_cast %3 : vector<1x128x128xbf16> to vector<128x128xbf16>
    %cst = arith.constant dense<0.000000e+00> : vector<384x128xf32>
    %5 = tpu.matmul %2, %4, %cst {dimension_numbers = #tpu.dot_dimension_numbers<[1], [0], [0], [1], [0, 0, 1, 1], [], []>} : vector<384x128xbf16>, vector<128x128xbf16>, vector<384x128xf32> -> vector<384x128xf32>
    %c0_7 = arith.constant 0 : index
    %c1 = arith.constant 1 : index
    %c0_8 = arith.constant 0 : index
    %6 = vector.load %arg1[%c0_7, %c1, %c0_8] : memref<1x456x128xbf16, #tpu.memory_space<vmem>>, vector<1x384x128xbf16>
    %7 = vector.shape_cast %6 : vector<1x384x128xbf16> to vector<384x128xbf16>
    %c1_9 = arith.constant 1 : index
    %c0_10 = arith.constant 0 : index
    %c0_11 = arith.constant 0 : index
    %8 = vector.load %arg3[%c1_9, %c0_10, %c0_11] : memref<9x128x128xbf16, #tpu.memory_space<vmem>>, vector<1x128x128xbf16>
    %9 = vector.shape_cast %8 : vector<1x128x128xbf16> to vector<128x128xbf16>
    %cst_12 = arith.constant dense<0.000000e+00> : vector<384x128xf32>
    %10 = tpu.matmul %7, %9, %cst_12 {dimension_numbers = #tpu.dot_dimension_numbers<[1], [0], [0], [1], [0, 0, 1, 1], [], []>} : vector<384x128xbf16>, vector<128x128xbf16>, vector<384x128xf32> -> vector<384x128xf32>
    %11 = arith.addf %5, %10 : vector<384x128xf32>
    %c0_13 = arith.constant 0 : index
    %c2 = arith.constant 2 : index
    %c0_14 = arith.constant 0 : index
    %12 = vector.load %arg1[%c0_13, %c2, %c0_14] : memref<1x456x128xbf16, #tpu.memory_space<vmem>>, vector<1x384x128xbf16>
    %13 = vector.shape_cast %12 : vector<1x384x128xbf16> to vector<384x128xbf16>
    %c2_15 = arith.constant 2 : index
    %c0_16 = arith.constant 0 : index
    %c0_17 = arith.constant 0 : index
    %14 = vector.load %arg3[%c2_15, %c0_16, %c0_17] : memref<9x128x128xbf16, #tpu.memory_space<vmem>>, vector<1x128x128xbf16>
    %15 = vector.shape_cast %14 : vector<1x128x128xbf16> to vector<128x128xbf16>
    %cst_18 = arith.constant dense<0.000000e+00> : vector<384x128xf32>
    %16 = tpu.matmul %13, %15, %cst_18 {dimension_numbers = #tpu.dot_dimension_numbers<[1], [0], [0], [1], [0, 0, 1, 1], [], []>} : vector<384x128xbf16>, vector<128x128xbf16>, vector<384x128xf32> -> vector<384x128xf32>
    %17 = arith.addf %11, %16 : vector<384x128xf32>
    %c0_19 = arith.constant 0 : index
    %c24 = arith.constant 24 : index
    %c0_20 = arith.constant 0 : index
    %18 = vector.load %arg1[%c0_19, %c24, %c0_20] : memref<1x456x128xbf16, #tpu.memory_space<vmem>>, vector<1x384x128xbf16>
    %19 = vector.shape_cast %18 : vector<1x384x128xbf16> to vector<384x128xbf16>
    %c3 = arith.constant 3 : index
    %c0_21 = arith.constant 0 : index
    %c0_22 = arith.constant 0 : index
    %20 = vector.load %arg3[%c3, %c0_21, %c0_22] : memref<9x128x128xbf16, #tpu.memory_space<vmem>>, vector<1x128x128xbf16>
    %21 = vector.shape_cast %20 : vector<1x128x128xbf16> to vector<128x128xbf16>
    %cst_23 = arith.constant dense<0.000000e+00> : vector<384x128xf32>
    %22 = tpu.matmul %19, %21, %cst_23 {dimension_numbers = #tpu.dot_dimension_numbers<[1], [0], [0], [1], [0, 0, 1, 1], [], []>} : vector<384x128xbf16>, vector<128x128xbf16>, vector<384x128xf32> -> vector<384x128xf32>
    %23 = arith.addf %17, %22 : vector<384x128xf32>
    %c0_24 = arith.constant 0 : index
    %c25 = arith.constant 25 : index
    %c0_25 = arith.constant 0 : index
    %24 = vector.load %arg1[%c0_24, %c25, %c0_25] : memref<1x456x128xbf16, #tpu.memory_space<vmem>>, vector<1x384x128xbf16>
    %25 = vector.shape_cast %24 : vector<1x384x128xbf16> to vector<384x128xbf16>
    %c4 = arith.constant 4 : index
    %c0_26 = arith.constant 0 : index
    %c0_27 = arith.constant 0 : index
    %26 = vector.load %arg3[%c4, %c0_26, %c0_27] : memref<9x128x128xbf16, #tpu.memory_space<vmem>>, vector<1x128x128xbf16>
    %27 = vector.shape_cast %26 : vector<1x128x128xbf16> to vector<128x128xbf16>
    %cst_28 = arith.constant dense<0.000000e+00> : vector<384x128xf32>
    %28 = tpu.matmul %25, %27, %cst_28 {dimension_numbers = #tpu.dot_dimension_numbers<[1], [0], [0], [1], [0, 0, 1, 1], [], []>} : vector<384x128xbf16>, vector<128x128xbf16>, vector<384x128xf32> -> vector<384x128xf32>
    %29 = arith.addf %23, %28 : vector<384x128xf32>
    %c0_29 = arith.constant 0 : index
    %c26 = arith.constant 26 : index
    %c0_30 = arith.constant 0 : index
    %30 = vector.load %arg1[%c0_29, %c26, %c0_30] : memref<1x456x128xbf16, #tpu.memory_space<vmem>>, vector<1x384x128xbf16>
    %31 = vector.shape_cast %30 : vector<1x384x128xbf16> to vector<384x128xbf16>
    %c5 = arith.constant 5 : index
    %c0_31 = arith.constant 0 : index
    %c0_32 = arith.constant 0 : index
    %32 = vector.load %arg3[%c5, %c0_31, %c0_32] : memref<9x128x128xbf16, #tpu.memory_space<vmem>>, vector<1x128x128xbf16>
    %33 = vector.shape_cast %32 : vector<1x128x128xbf16> to vector<128x128xbf16>
    %cst_33 = arith.constant dense<0.000000e+00> : vector<384x128xf32>
    %34 = tpu.matmul %31, %33, %cst_33 {dimension_numbers = #tpu.dot_dimension_numbers<[1], [0], [0], [1], [0, 0, 1, 1], [], []>} : vector<384x128xbf16>, vector<128x128xbf16>, vector<384x128xf32> -> vector<384x128xf32>
    %35 = arith.addf %29, %34 : vector<384x128xf32>
    %c0_34 = arith.constant 0 : index
    %c48 = arith.constant 48 : index
    %c0_35 = arith.constant 0 : index
    %36 = vector.load %arg1[%c0_34, %c48, %c0_35] : memref<1x456x128xbf16, #tpu.memory_space<vmem>>, vector<1x384x128xbf16>
    %37 = vector.shape_cast %36 : vector<1x384x128xbf16> to vector<384x128xbf16>
    %c6 = arith.constant 6 : index
    %c0_36 = arith.constant 0 : index
    %c0_37 = arith.constant 0 : index
    %38 = vector.load %arg3[%c6, %c0_36, %c0_37] : memref<9x128x128xbf16, #tpu.memory_space<vmem>>, vector<1x128x128xbf16>
    %39 = vector.shape_cast %38 : vector<1x128x128xbf16> to vector<128x128xbf16>
    %cst_38 = arith.constant dense<0.000000e+00> : vector<384x128xf32>
    %40 = tpu.matmul %37, %39, %cst_38 {dimension_numbers = #tpu.dot_dimension_numbers<[1], [0], [0], [1], [0, 0, 1, 1], [], []>} : vector<384x128xbf16>, vector<128x128xbf16>, vector<384x128xf32> -> vector<384x128xf32>
    %41 = arith.addf %35, %40 : vector<384x128xf32>
    %c0_39 = arith.constant 0 : index
    %c49 = arith.constant 49 : index
    %c0_40 = arith.constant 0 : index
    %42 = vector.load %arg1[%c0_39, %c49, %c0_40] : memref<1x456x128xbf16, #tpu.memory_space<vmem>>, vector<1x384x128xbf16>
    %43 = vector.shape_cast %42 : vector<1x384x128xbf16> to vector<384x128xbf16>
    %c7 = arith.constant 7 : index
    %c0_41 = arith.constant 0 : index
    %c0_42 = arith.constant 0 : index
    %44 = vector.load %arg3[%c7, %c0_41, %c0_42] : memref<9x128x128xbf16, #tpu.memory_space<vmem>>, vector<1x128x128xbf16>
    %45 = vector.shape_cast %44 : vector<1x128x128xbf16> to vector<128x128xbf16>
    %cst_43 = arith.constant dense<0.000000e+00> : vector<384x128xf32>
    %46 = tpu.matmul %43, %45, %cst_43 {dimension_numbers = #tpu.dot_dimension_numbers<[1], [0], [0], [1], [0, 0, 1, 1], [], []>} : vector<384x128xbf16>, vector<128x128xbf16>, vector<384x128xf32> -> vector<384x128xf32>
    %47 = arith.addf %41, %46 : vector<384x128xf32>
    %c0_44 = arith.constant 0 : index
    %c50 = arith.constant 50 : index
    %c0_45 = arith.constant 0 : index
    %48 = vector.load %arg1[%c0_44, %c50, %c0_45] : memref<1x456x128xbf16, #tpu.memory_space<vmem>>, vector<1x384x128xbf16>
    %49 = vector.shape_cast %48 : vector<1x384x128xbf16> to vector<384x128xbf16>
    %c8 = arith.constant 8 : index
    %c0_46 = arith.constant 0 : index
    %c0_47 = arith.constant 0 : index
    %50 = vector.load %arg3[%c8, %c0_46, %c0_47] : memref<9x128x128xbf16, #tpu.memory_space<vmem>>, vector<1x128x128xbf16>
    %51 = vector.shape_cast %50 : vector<1x128x128xbf16> to vector<128x128xbf16>
    %cst_48 = arith.constant dense<0.000000e+00> : vector<384x128xf32>
    %52 = tpu.matmul %49, %51, %cst_48 {dimension_numbers = #tpu.dot_dimension_numbers<[1], [0], [0], [1], [0, 0, 1, 1], [], []>} : vector<384x128xbf16>, vector<128x128xbf16>, vector<384x128xf32> -> vector<384x128xf32>
    %53 = arith.addf %47, %52 : vector<384x128xf32>
    %c0_49 = arith.constant 0 : index
    %c0_50 = arith.constant 0 : index
    %54 = vector.load %arg4[%c0_49, %c0_50] : memref<1x128xf32, #tpu.memory_space<vmem>>, vector<1x128xf32>
    %55 = vector.broadcast %54 : vector<1x128xf32> to vector<384x128xf32>
    %56 = arith.addf %53, %55 : vector<384x128xf32>
    %cst_51 = arith.constant 0.000000e+00 : f32
    %57 = vector.broadcast %cst_51 : f32 to vector<384x128xf32>
    %58 = arith.maximumf %56, %57 : vector<384x128xf32>
    %59 = vector.broadcast %0 : vector<384x1xf32> to vector<384x128xf32>
    %60 = arith.mulf %58, %59 : vector<384x128xf32>
    %cst_52 = arith.constant dense<0.000000e+00> : vector<128xf32>
    %61 = vector.multi_reduction <add>, %60, %cst_52 [0] : vector<384x128xf32> to vector<128xf32>
    %62 = vector.shape_cast %61 : vector<128xf32> to vector<1x128xf32>
    %63 = arith.mulf %60, %58 : vector<384x128xf32>
    %cst_53 = arith.constant dense<0.000000e+00> : vector<128xf32>
    %64 = vector.multi_reduction <add>, %63, %cst_53 [0] : vector<384x128xf32> to vector<128xf32>
    %65 = vector.shape_cast %64 : vector<128xf32> to vector<1x128xf32>
    %66 = tpu.iota {dimensions = array<i32: 1>} : vector<1x128xi32>
    %cst_54 = arith.constant 0.000000e+00 : f32
    %67 = vector.broadcast %cst_54 : f32 to vector<1x128xf32>
    %cst_55 = arith.constant 0.000000e+00 : f32
    %68 = vector.broadcast %cst_55 : f32 to vector<1x128xf32>
    %c0_i32 = arith.constant 0 : i32
    %69 = vector.broadcast %c0_i32 : i32 to vector<1x128xi32>
    %70 = arith.cmpi sge, %66, %69 : vector<1x128xi32>
    %c4_i32 = arith.constant 4 : i32
    %71 = vector.broadcast %c4_i32 : i32 to vector<1x128xi32>
    %72 = arith.cmpi slt, %66, %71 : vector<1x128xi32>
    %73 = arith.andi %70, %72 : vector<1x128xi1>
    %cst_56 = arith.constant 0.000000e+00 : f32
    %74 = vector.broadcast %cst_56 : f32 to vector<1x128xf32>
    %75 = arith.select %73, %62, %74 : vector<1x128xi1>, vector<1x128xf32>
    %76 = vector.shape_cast %75 : vector<1x128xf32> to vector<1x1x128xf32>
    %cst_57 = arith.constant dense<0.000000e+00> : vector<1xf32>
    %77 = vector.multi_reduction <add>, %76, %cst_57 [1, 2] : vector<1x1x128xf32> to vector<1xf32>
    %78 = vector.shape_cast %77 : vector<1xf32> to vector<1x1x1xf32>
    %79 = vector.extract %78[0, 0, 0] : f32 from vector<1x1x1xf32>
    %cst_58 = arith.constant 1.024000e+03 : f32
    %80 = arith.divf %79, %cst_58 : f32
    %cst_59 = arith.constant 0.000000e+00 : f32
    %81 = vector.broadcast %cst_59 : f32 to vector<1x128xf32>
    %82 = arith.select %73, %65, %81 : vector<1x128xi1>, vector<1x128xf32>
    %83 = vector.shape_cast %82 : vector<1x128xf32> to vector<1x1x128xf32>
    %cst_60 = arith.constant dense<0.000000e+00> : vector<1xf32>
    %84 = vector.multi_reduction <add>, %83, %cst_60 [1, 2] : vector<1x1x128xf32> to vector<1xf32>
    %85 = vector.shape_cast %84 : vector<1xf32> to vector<1x1x1xf32>
    %86 = vector.extract %85[0, 0, 0] : f32 from vector<1x1x1xf32>
    %cst_61 = arith.constant 1.024000e+03 : f32
    %87 = arith.divf %86, %cst_61 : f32
    %88 = arith.mulf %80, %80 : f32
    %89 = arith.subf %87, %88 : f32
    %cst_62 = arith.constant 0.000000e+00 : f32
    %90 = arith.maximumf %89, %cst_62 : f32
    %91 = vector.broadcast %80 : f32 to vector<1x128xf32>
    %92 = arith.select %73, %91, %67 : vector<1x128xi1>, vector<1x128xf32>
    %cst_63 = arith.constant 9.99999974E-6 : f32
    %93 = arith.addf %90, %cst_63 : f32
    %94 = math.rsqrt %93 : f32
    %95 = vector.broadcast %94 : f32 to vector<1x128xf32>
    %96 = arith.select %73, %95, %68 : vector<1x128xi1>, vector<1x128xf32>
    %97 = vector.broadcast %92 : vector<1x128xf32> to vector<384x128xf32>
    %98 = arith.subf %58, %97 : vector<384x128xf32>
    %c0_64 = arith.constant 0 : index
    %c0_65 = arith.constant 0 : index
    %99 = vector.load %arg5[%c0_64, %c0_65] : memref<1x128xf32, #tpu.memory_space<vmem>>, vector<1x128xf32>
    %100 = arith.mulf %96, %99 : vector<1x128xf32>
    %101 = vector.broadcast %100 : vector<1x128xf32> to vector<384x128xf32>
    %102 = arith.mulf %98, %101 : vector<384x128xf32>
    %c0_66 = arith.constant 0 : index
    %c0_67 = arith.constant 0 : index
    %103 = vector.load %arg6[%c0_66, %c0_67] : memref<1x128xf32, #tpu.memory_space<vmem>>, vector<1x128xf32>
    %104 = vector.broadcast %103 : vector<1x128xf32> to vector<384x128xf32>
    %105 = arith.addf %102, %104 : vector<384x128xf32>
    %cst_68 = arith.constant 0.000000e+00 : bf16
    %106 = vector.broadcast %cst_68 : bf16 to vector<25x128xbf16>
    %c0_69 = arith.constant 0 : index
    %c0_70 = arith.constant 0 : index
    %107 = vector.load %arg12[%c0_69, %c0_70] : memref<456x128xbf16, #tpu.memory_space<vmem>>, vector<25x128xbf16>
    tpu.vector_store %arg12[%c0_69, %c0_70], %106 {strides = array<i32>} : memref<456x128xbf16, #tpu.memory_space<vmem>>, vector<25x128xbf16>,
    %cst_71 = arith.constant 0.000000e+00 : bf16
    %108 = vector.broadcast %cst_71 : bf16 to vector<47x128xbf16>
    %c409 = arith.constant 409 : index
    %c0_72 = arith.constant 0 : index
    %109 = vector.load %arg12[%c409, %c0_72] : memref<456x128xbf16, #tpu.memory_space<vmem>>, vector<47x128xbf16>
    tpu.vector_store %arg12[%c409, %c0_72], %108 {strides = array<i32>} : memref<456x128xbf16, #tpu.memory_space<vmem>>, vector<47x128xbf16>,
    %110 = vector.broadcast %0 : vector<384x1xf32> to vector<384x128xf32>
    %111 = arith.mulf %105, %110 : vector<384x128xf32>
    %112 = arith.truncf %111 : vector<384x128xf32> to vector<384x128xbf16>
    %c25_73 = arith.constant 25 : index
    %c0_74 = arith.constant 0 : index
    %113 = vector.load %arg12[%c25_73, %c0_74] : memref<456x128xbf16, #tpu.memory_space<vmem>>, vector<384x128xbf16>
    tpu.vector_store %arg12[%c25_73, %c0_74], %112 {strides = array<i32>} : memref<456x128xbf16, #tpu.memory_space<vmem>>, vector<384x128xbf16>,
    %c0_75 = arith.constant 0 : index
    %c0_76 = arith.constant 0 : index
    %114 = vector.load %arg12[%c0_75, %c0_76] : memref<456x128xbf16, #tpu.memory_space<vmem>>, vector<384x128xbf16>
    %c0_77 = arith.constant 0 : index
    %c0_78 = arith.constant 0 : index
    %c0_79 = arith.constant 0 : index
    %115 = vector.load %arg7[%c0_77, %c0_78, %c0_79] : memref<9x128x128xbf16, #tpu.memory_space<vmem>>, vector<1x128x128xbf16>
    %116 = vector.shape_cast %115 : vector<1x128x128xbf16> to vector<128x128xbf16>
    %cst_80 = arith.constant dense<0.000000e+00> : vector<384x128xf32>
    %117 = tpu.matmul %114, %116, %cst_80 {dimension_numbers = #tpu.dot_dimension_numbers<[1], [0], [0], [1], [0, 0, 1, 1], [], []>} : vector<384x128xbf16>, vector<128x128xbf16>, vector<384x128xf32> -> vector<384x128xf32>
    %c1_81 = arith.constant 1 : index
    %c0_82 = arith.constant 0 : index
    %118 = vector.load %arg12[%c1_81, %c0_82] : memref<456x128xbf16, #tpu.memory_space<vmem>>, vector<384x128xbf16>
    %c1_83 = arith.constant 1 : index
    %c0_84 = arith.constant 0 : index
    %c0_85 = arith.constant 0 : index
    %119 = vector.load %arg7[%c1_83, %c0_84, %c0_85] : memref<9x128x128xbf16, #tpu.memory_space<vmem>>, vector<1x128x128xbf16>
    %120 = vector.shape_cast %119 : vector<1x128x128xbf16> to vector<128x128xbf16>
    %cst_86 = arith.constant dense<0.000000e+00> : vector<384x128xf32>
    %121 = tpu.matmul %118, %120, %cst_86 {dimension_numbers = #tpu.dot_dimension_numbers<[1], [0], [0], [1], [0, 0, 1, 1], [], []>} : vector<384x128xbf16>, vector<128x128xbf16>, vector<384x128xf32> -> vector<384x128xf32>
    %122 = arith.addf %117, %121 : vector<384x128xf32>
    %c2_87 = arith.constant 2 : index
    %c0_88 = arith.constant 0 : index
    %123 = vector.load %arg12[%c2_87, %c0_88] : memref<456x128xbf16, #tpu.memory_space<vmem>>, vector<384x128xbf16>
    %c2_89 = arith.constant 2 : index
    %c0_90 = arith.constant 0 : index
    %c0_91 = arith.constant 0 : index
    %124 = vector.load %arg7[%c2_89, %c0_90, %c0_91] : memref<9x128x128xbf16, #tpu.memory_space<vmem>>, vector<1x128x128xbf16>
    %125 = vector.shape_cast %124 : vector<1x128x128xbf16> to vector<128x128xbf16>
    %cst_92 = arith.constant dense<0.000000e+00> : vector<384x128xf32>
    %126 = tpu.matmul %123, %125, %cst_92 {dimension_numbers = #tpu.dot_dimension_numbers<[1], [0], [0], [1], [0, 0, 1, 1], [], []>} : vector<384x128xbf16>, vector<128x128xbf16>, vector<384x128xf32> -> vector<384x128xf32>
    %127 = arith.addf %122, %126 : vector<384x128xf32>
    %c24_93 = arith.constant 24 : index
    %c0_94 = arith.constant 0 : index
    %128 = vector.load %arg12[%c24_93, %c0_94] : memref<456x128xbf16, #tpu.memory_space<vmem>>, vector<384x128xbf16>
    %c3_95 = arith.constant 3 : index
    %c0_96 = arith.constant 0 : index
    %c0_97 = arith.constant 0 : index
    %129 = vector.load %arg7[%c3_95, %c0_96, %c0_97] : memref<9x128x128xbf16, #tpu.memory_space<vmem>>, vector<1x128x128xbf16>
    %130 = vector.shape_cast %129 : vector<1x128x128xbf16> to vector<128x128xbf16>
    %cst_98 = arith.constant dense<0.000000e+00> : vector<384x128xf32>
    %131 = tpu.matmul %128, %130, %cst_98 {dimension_numbers = #tpu.dot_dimension_numbers<[1], [0], [0], [1], [0, 0, 1, 1], [], []>} : vector<384x128xbf16>, vector<128x128xbf16>, vector<384x128xf32> -> vector<384x128xf32>
    %132 = arith.addf %127, %131 : vector<384x128xf32>
    %c25_99 = arith.constant 25 : index
    %c0_100 = arith.constant 0 : index
    %133 = vector.load %arg12[%c25_99, %c0_100] : memref<456x128xbf16, #tpu.memory_space<vmem>>, vector<384x128xbf16>
    %c4_101 = arith.constant 4 : index
    %c0_102 = arith.constant 0 : index
    %c0_103 = arith.constant 0 : index
    %134 = vector.load %arg7[%c4_101, %c0_102, %c0_103] : memref<9x128x128xbf16, #tpu.memory_space<vmem>>, vector<1x128x128xbf16>
    %135 = vector.shape_cast %134 : vector<1x128x128xbf16> to vector<128x128xbf16>
    %cst_104 = arith.constant dense<0.000000e+00> : vector<384x128xf32>
    %136 = tpu.matmul %133, %135, %cst_104 {dimension_numbers = #tpu.dot_dimension_numbers<[1], [0], [0], [1], [0, 0, 1, 1], [], []>} : vector<384x128xbf16>, vector<128x128xbf16>, vector<384x128xf32> -> vector<384x128xf32>
    %137 = arith.addf %132, %136 : vector<384x128xf32>
    %c26_105 = arith.constant 26 : index
    %c0_106 = arith.constant 0 : index
    %138 = vector.load %arg12[%c26_105, %c0_106] : memref<456x128xbf16, #tpu.memory_space<vmem>>, vector<384x128xbf16>
    %c5_107 = arith.constant 5 : index
    %c0_108 = arith.constant 0 : index
    %c0_109 = arith.constant 0 : index
    %139 = vector.load %arg7[%c5_107, %c0_108, %c0_109] : memref<9x128x128xbf16, #tpu.memory_space<vmem>>, vector<1x128x128xbf16>
    %140 = vector.shape_cast %139 : vector<1x128x128xbf16> to vector<128x128xbf16>
    %cst_110 = arith.constant dense<0.000000e+00> : vector<384x128xf32>
    %141 = tpu.matmul %138, %140, %cst_110 {dimension_numbers = #tpu.dot_dimension_numbers<[1], [0], [0], [1], [0, 0, 1, 1], [], []>} : vector<384x128xbf16>, vector<128x128xbf16>, vector<384x128xf32> -> vector<384x128xf32>
    %142 = arith.addf %137, %141 : vector<384x128xf32>
    %c48_111 = arith.constant 48 : index
    %c0_112 = arith.constant 0 : index
    %143 = vector.load %arg12[%c48_111, %c0_112] : memref<456x128xbf16, #tpu.memory_space<vmem>>, vector<384x128xbf16>
    %c6_113 = arith.constant 6 : index
    %c0_114 = arith.constant 0 : index
    %c0_115 = arith.constant 0 : index
    %144 = vector.load %arg7[%c6_113, %c0_114, %c0_115] : memref<9x128x128xbf16, #tpu.memory_space<vmem>>, vector<1x128x128xbf16>
    %145 = vector.shape_cast %144 : vector<1x128x128xbf16> to vector<128x128xbf16>
    %cst_116 = arith.constant dense<0.000000e+00> : vector<384x128xf32>
    %146 = tpu.matmul %143, %145, %cst_116 {dimension_numbers = #tpu.dot_dimension_numbers<[1], [0], [0], [1], [0, 0, 1, 1], [], []>} : vector<384x128xbf16>, vector<128x128xbf16>, vector<384x128xf32> -> vector<384x128xf32>
    %147 = arith.addf %142, %146 : vector<384x128xf32>
    %c49_117 = arith.constant 49 : index
    %c0_118 = arith.constant 0 : index
    %148 = vector.load %arg12[%c49_117, %c0_118] : memref<456x128xbf16, #tpu.memory_space<vmem>>, vector<384x128xbf16>
    %c7_119 = arith.constant 7 : index
    %c0_120 = arith.constant 0 : index
    %c0_121 = arith.constant 0 : index
    %149 = vector.load %arg7[%c7_119, %c0_120, %c0_121] : memref<9x128x128xbf16, #tpu.memory_space<vmem>>, vector<1x128x128xbf16>
    %150 = vector.shape_cast %149 : vector<1x128x128xbf16> to vector<128x128xbf16>
    %cst_122 = arith.constant dense<0.000000e+00> : vector<384x128xf32>
    %151 = tpu.matmul %148, %150, %cst_122 {dimension_numbers = #tpu.dot_dimension_numbers<[1], [0], [0], [1], [0, 0, 1, 1], [], []>} : vector<384x128xbf16>, vector<128x128xbf16>, vector<384x128xf32> -> vector<384x128xf32>
    %152 = arith.addf %147, %151 : vector<384x128xf32>
    %c50_123 = arith.constant 50 : index
    %c0_124 = arith.constant 0 : index
    %153 = vector.load %arg12[%c50_123, %c0_124] : memref<456x128xbf16, #tpu.memory_space<vmem>>, vector<384x128xbf16>
    %c8_125 = arith.constant 8 : index
    %c0_126 = arith.constant 0 : index
    %c0_127 = arith.constant 0 : index
    %154 = vector.load %arg7[%c8_125, %c0_126, %c0_127] : memref<9x128x128xbf16, #tpu.memory_space<vmem>>, vector<1x128x128xbf16>
    %155 = vector.shape_cast %154 : vector<1x128x128xbf16> to vector<128x128xbf16>
    %cst_128 = arith.constant dense<0.000000e+00> : vector<384x128xf32>
    %156 = tpu.matmul %153, %155, %cst_128 {dimension_numbers = #tpu.dot_dimension_numbers<[1], [0], [0], [1], [0, 0, 1, 1], [], []>} : vector<384x128xbf16>, vector<128x128xbf16>, vector<384x128xf32> -> vector<384x128xf32>
    %157 = arith.addf %152, %156 : vector<384x128xf32>
    %c0_129 = arith.constant 0 : index
    %c0_130 = arith.constant 0 : index
    %158 = vector.load %arg8[%c0_129, %c0_130] : memref<1x128xf32, #tpu.memory_space<vmem>>, vector<1x128xf32>
    %159 = vector.broadcast %158 : vector<1x128xf32> to vector<384x128xf32>
    %160 = arith.addf %157, %159 : vector<384x128xf32>
    %cst_131 = arith.constant 0.000000e+00 : f32
    %161 = vector.broadcast %cst_131 : f32 to vector<384x128xf32>
    %162 = arith.maximumf %160, %161 : vector<384x128xf32>
    %163 = vector.broadcast %0 : vector<384x1xf32> to vector<384x128xf32>
    %164 = arith.mulf %162, %163 : vector<384x128xf32>
    %cst_132 = arith.constant dense<0.000000e+00> : vector<128xf32>
    %165 = vector.multi_reduction <add>, %164, %cst_132 [0] : vector<384x128xf32> to vector<128xf32>
    %166 = vector.shape_cast %165 : vector<128xf32> to vector<1x128xf32>
    %167 = arith.mulf %164, %162 : vector<384x128xf32>
    %cst_133 = arith.constant dense<0.000000e+00> : vector<128xf32>
    %168 = vector.multi_reduction <add>, %167, %cst_133 [0] : vector<384x128xf32> to vector<128xf32>
    %169 = vector.shape_cast %168 : vector<128xf32> to vector<1x128xf32>
    %170 = tpu.iota {dimensions = array<i32: 1>} : vector<1x128xi32>
    %cst_134 = arith.constant 0.000000e+00 : f32
    %171 = vector.broadcast %cst_134 : f32 to vector<1x128xf32>
    %cst_135 = arith.constant 0.000000e+00 : f32
    %172 = vector.broadcast %cst_135 : f32 to vector<1x128xf32>
    %c0_i32_136 = arith.constant 0 : i32
    %173 = vector.broadcast %c0_i32_136 : i32 to vector<1x128xi32>
    %174 = arith.cmpi sge, %170, %173 : vector<1x128xi32>
    %c4_i32_137 = arith.constant 4 : i32
    %175 = vector.broadcast %c4_i32_137 : i32 to vector<1x128xi32>
    %176 = arith.cmpi slt, %170, %175 : vector<1x128xi32>
    %177 = arith.andi %174, %176 : vector<1x128xi1>
    %cst_138 = arith.constant 0.000000e+00 : f32
    %178 = vector.broadcast %cst_138 : f32 to vector<1x128xf32>
    %179 = arith.select %177, %166, %178 : vector<1x128xi1>, vector<1x128xf32>
    %180 = vector.shape_cast %179 : vector<1x128xf32> to vector<1x1x128xf32>
    %cst_139 = arith.constant dense<0.000000e+00> : vector<1xf32>
    %181 = vector.multi_reduction <add>, %180, %cst_139 [1, 2] : vector<1x1x128xf32> to vector<1xf32>
    %182 = vector.shape_cast %181 : vector<1xf32> to vector<1x1x1xf32>
    %183 = vector.extract %182[0, 0, 0] : f32 from vector<1x1x1xf32>
    %cst_140 = arith.constant 1.024000e+03 : f32
    %184 = arith.divf %183, %cst_140 : f32
    %cst_141 = arith.constant 0.000000e+00 : f32
    %185 = vector.broadcast %cst_141 : f32 to vector<1x128xf32>
    %186 = arith.select %177, %169, %185 : vector<1x128xi1>, vector<1x128xf32>
    %187 = vector.shape_cast %186 : vector<1x128xf32> to vector<1x1x128xf32>
    %cst_142 = arith.constant dense<0.000000e+00> : vector<1xf32>
    %188 = vector.multi_reduction <add>, %187, %cst_142 [1, 2] : vector<1x1x128xf32> to vector<1xf32>
    %189 = vector.shape_cast %188 : vector<1xf32> to vector<1x1x1xf32>
    %190 = vector.extract %189[0, 0, 0] : f32 from vector<1x1x1xf32>
    %cst_143 = arith.constant 1.024000e+03 : f32
    %191 = arith.divf %190, %cst_143 : f32
    %192 = arith.mulf %184, %184 : f32
    %193 = arith.subf %191, %192 : f32
    %cst_144 = arith.constant 0.000000e+00 : f32
    %194 = arith.maximumf %193, %cst_144 : f32
    %195 = vector.broadcast %184 : f32 to vector<1x128xf32>
    %196 = arith.select %177, %195, %171 : vector<1x128xi1>, vector<1x128xf32>
    %cst_145 = arith.constant 9.99999974E-6 : f32
    %197 = arith.addf %194, %cst_145 : f32
    %198 = math.rsqrt %197 : f32
    %199 = vector.broadcast %198 : f32 to vector<1x128xf32>
    %200 = arith.select %177, %199, %172 : vector<1x128xi1>, vector<1x128xf32>
    %201 = vector.broadcast %196 : vector<1x128xf32> to vector<384x128xf32>
    %202 = arith.subf %162, %201 : vector<384x128xf32>
    %c0_146 = arith.constant 0 : index
    %c0_147 = arith.constant 0 : index
    %203 = vector.load %arg9[%c0_146, %c0_147] : memref<1x128xf32, #tpu.memory_space<vmem>>, vector<1x128xf32>
    %204 = arith.mulf %200, %203 : vector<1x128xf32>
    %205 = vector.broadcast %204 : vector<1x128xf32> to vector<384x128xf32>
    %206 = arith.mulf %202, %205 : vector<384x128xf32>
    %c0_148 = arith.constant 0 : index
    %c0_149 = arith.constant 0 : index
    %207 = vector.load %arg10[%c0_148, %c0_149] : memref<1x128xf32, #tpu.memory_space<vmem>>, vector<1x128xf32>
    %208 = vector.broadcast %207 : vector<1x128xf32> to vector<384x128xf32>
    %209 = arith.addf %206, %208 : vector<384x128xf32>
    %c0_150 = arith.constant 0 : index
    %c0_151 = arith.constant 0 : index
    %c0_152 = arith.constant 0 : index
    %210 = vector.load %arg11[%c0_150, %c0_151, %c0_152] : memref<1x384x128xf32, #tpu.memory_space<vmem>>, vector<1x384x128xf32>
    %211 = vector.shape_cast %210 : vector<1x384x128xf32> to vector<384x128xf32>
    %212 = vector.shape_cast %209 : vector<384x128xf32> to vector<1x384x128xf32>
    tpu.vector_store %arg11[%c0_150, %c0_151, %c0_152], %212 {strides = array<i32>} : memref<1x384x128xf32, #tpu.memory_space<vmem>>, vector<1x384x128xf32>,
    return
  }
  func.func @transform_0(%arg0: i32) -> (i32, i32, i32) {
    %c0_i32 = arith.constant 0 : i32
    %c0_i32_0 = arith.constant 0 : i32
    %c0_i32_1 = arith.constant 0 : i32
    return %arg0, %c0_i32, %c0_i32_0 : i32, i32, i32
  }
  func.func @transform_1(%arg0: i32) -> (i32, i32) {
    %c0_i32 = arith.constant 0 : i32
    %c0_i32_0 = arith.constant 0 : i32
    %c0_i32_1 = arith.constant 0 : i32
    return %c0_i32, %c0_i32_0 : i32, i32
  }
  func.func @transform_2(%arg0: i32) -> (i32, i32, i32) {
    %c0_i32 = arith.constant 0 : i32
    %c0_i32_0 = arith.constant 0 : i32
    %c0_i32_1 = arith.constant 0 : i32
    %c0_i32_2 = arith.constant 0 : i32
    return %c0_i32, %c0_i32_0, %c0_i32_1 : i32, i32, i32
  }
  func.func @transform_3(%arg0: i32) -> (i32, i32) {
    %c0_i32 = arith.constant 0 : i32
    %c0_i32_0 = arith.constant 0 : i32
    %c0_i32_1 = arith.constant 0 : i32
    return %c0_i32, %c0_i32_0 : i32, i32
  }
  func.func @transform_4(%arg0: i32) -> (i32, i32) {
    %c0_i32 = arith.constant 0 : i32
    %c0_i32_0 = arith.constant 0 : i32
    %c0_i32_1 = arith.constant 0 : i32
    return %c0_i32, %c0_i32_0 : i32, i32
  }
  func.func @transform_5(%arg0: i32) -> (i32, i32) {
    %c0_i32 = arith.constant 0 : i32
    %c0_i32_0 = arith.constant 0 : i32
    %c0_i32_1 = arith.constant 0 : i32
    return %c0_i32, %c0_i32_0 : i32, i32
  }
  func.func @transform_6(%arg0: i32) -> (i32, i32, i32) {
    %c0_i32 = arith.constant 0 : i32
    %c0_i32_0 = arith.constant 0 : i32
    %c0_i32_1 = arith.constant 0 : i32
    %c0_i32_2 = arith.constant 0 : i32
    return %c0_i32, %c0_i32_0, %c0_i32_1 : i32, i32, i32
  }
  func.func @transform_7(%arg0: i32) -> (i32, i32) {
    %c0_i32 = arith.constant 0 : i32
    %c0_i32_0 = arith.constant 0 : i32
    %c0_i32_1 = arith.constant 0 : i32
    return %c0_i32, %c0_i32_0 : i32, i32
  }
  func.func @transform_8(%arg0: i32) -> (i32, i32) {
    %c0_i32 = arith.constant 0 : i32
    %c0_i32_0 = arith.constant 0 : i32
    %c0_i32_1 = arith.constant 0 : i32
    return %c0_i32, %c0_i32_0 : i32, i32
  }
  func.func @transform_9(%arg0: i32) -> (i32, i32) {
    %c0_i32 = arith.constant 0 : i32
    %c0_i32_0 = arith.constant 0 : i32
    %c0_i32_1 = arith.constant 0 : i32
    return %c0_i32, %c0_i32_0 : i32, i32
  }
  func.func @transform_10(%arg0: i32) -> (i32, i32, i32) {
    %c0_i32 = arith.constant 0 : i32
    %c0_i32_0 = arith.constant 0 : i32
    %c0_i32_1 = arith.constant 0 : i32
    return %arg0, %c0_i32, %c0_i32_0 : i32, i32, i32
  }
}

</mosaic_0001>

<llo_original>
// kernel: tpu_custom_call.1
$region0: #{tpu_custom_call.1}
  #allocation0 [shape = 'u32[]', space=smem, size = 0x4, offset = 0x4, fixed_abs, tag = 'smem constant byte address 0x4 - core index']
  #allocation1 [shape = 'u32[144,128]{1,0:T(1,128)}', space=vmem, size = 0x12000, scoped, tag = 'internal scratch']
  #allocation2 [shape = 'bf16[456,128]{1,0:T(8,128)(2,1)}', space=vmem, size = 0x1c800, scoped, tag = 'scratch operand']
  %s0 = inlined_call_operand.hbm [shape: bf16[2,456,128], index: 0, kind: input, shape index: {}]
  %s1 = inlined_call_operand.vmem [shape: f32[384,1], index: 1, kind: input, shape index: {}]
  %s2 = inlined_call_operand.hbm [shape: bf16[9,128,128], index: 2, kind: input, shape index: {}]
  %s3 = inlined_call_operand.vmem [shape: f32[1,128], index: 3, kind: input, shape index: {}]
  %s4 = inlined_call_operand.vmem [shape: f32[1,128], index: 4, kind: input, shape index: {}]
  %s5 = inlined_call_operand.vmem [shape: f32[1,128], index: 5, kind: input, shape index: {}]
  %s6 = inlined_call_operand.hbm [shape: bf16[9,128,128], index: 6, kind: input, shape index: {}]
  %s7 = inlined_call_operand.vmem [shape: f32[1,128], index: 7, kind: input, shape index: {}]
  %s8 = inlined_call_operand.vmem [shape: f32[1,128], index: 8, kind: input, shape index: {}]
  %s9 = inlined_call_operand.vmem [shape: f32[1,128], index: 9, kind: input, shape index: {}]
  %s10 = inlined_call_operand.hbm [shape: f32[2,384,128], index: 10, kind: output, shape index: {}]
  %s11 = sld [smem:[#allocation0]]
  $region85: #{tpu_custom_call.1} parent=0
    _
  %s13 = ssub.s32 1, %s11
  %s14 = scalar_select 0, %s13, %s11
  $region1: #{tpu_custom_call.1} parent=0
    #allocation3 [shape = 'u8[233472]{0}', space=vmem, size = 0x39000, scoped, tag = 'input window, operand 0']
    #allocation4 [shape = 's32[2]{0}', space=sflag, size = 0x8, scoped, tag = 'scoped memory for tpu_custom_call.1']
    #allocation5 [shape = 's32[2]{0}', space=sflag, size = 0x8, scoped, tag = 'scoped memory for tpu_custom_call.1']
    #allocation6 [shape = 'u8[294912]{0}', space=vmem, size = 0x48000, scoped, tag = 'input window, operand 2, single buffered']
    #allocation7 [shape = 's32[1]{0}', space=sflag, size = 0x4, scoped, tag = 'scoped memory for tpu_custom_call.1']
    #allocation8 [shape = 'u8[294912]{0}', space=vmem, size = 0x48000, scoped, tag = 'input window, operand 6, single buffered']
    #allocation9 [shape = 'u8[393216]{0}', space=vmem, size = 0x60000, scoped, tag = 'output window, operand 0']
    %15 = vsyncpa [#allocation4], 0
    %s16 = scalar_lea.sflag [#allocation4], 1
    %17 = vsyncpa %s16, 0
    %18 = vsyncpa [#allocation7], 0
    %19 = vsyncpa [#allocation5], 0
    %s20 = scalar_lea.sflag [#allocation5], 1
    %21 = vsyncpa %s20, 0
    loop: start=0, step=1, limit=4
    $region2: #{tpu_custom_call.1} parent=1 // loop_pre_header
      _
    $region3: #{tpu_custom_call.1} parent=1 // loop_header
      %s23 = sphi 0, %s27
      %p24 = scmp.ge.s32.totalorder %s23, 4
      %s33 = sphi 0, %s35
      %s36 = sphi 0, %s33
      %s37 = sphi 0, %s36
      %s53 = sphi 0, %s37
      %s57 = sphi 0, %s57
      %s59 = sphi 0, %s57
      %s60 = sphi 0, %s59
      %s74 = sphi 0, %s60
      %s78 = sphi 0, %s78
      %s80 = sphi 0, %s78
      %s81 = sphi 0, %s80
      %s95 = sphi 0, %s81
      %s99 = sphi 0, %s99
      %s101 = sphi 0, %s99
      %s102 = sphi 0, %s101
      %s116 = sphi 0, %s102
      %s120 = sphi 0, %s120
      %s122 = sphi 0, %s120
      %s123 = sphi 0, %s122
      %s137 = sphi 0, %s123
      %s141 = sphi 0, %s141
      %s143 = sphi 0, %s141
      %s144 = sphi 0, %s143
      %s158 = sphi 0, %s144
      %s162 = sphi 0, %s162
      %s164 = sphi 0, %s162
      %s165 = sphi 0, %s164
      %s179 = sphi 0, %s165
      %s183 = sphi 0, %s183
      %s185 = sphi 0, %s183
      %s186 = sphi 0, %s185
      %s200 = sphi 0, %s186
      %s204 = sphi 0, %s204
      %s206 = sphi 0, %s204
      %s207 = sphi 0, %s206
      %s221 = sphi 0, %s207
      %s225 = sphi 0, %s225
      %s227 = sphi 0, %s225
      %s228 = sphi 0, %s227
      %s242 = sphi 0, %s228
      %s248 = sphi 0, %s250
      %s251 = sphi 0, %s248
      %s252 = sphi 0, %s251
      %s268 = sphi 0, %s252
    $region4: #{tpu_custom_call.1} parent=1 // loop_header_branch
      %26 = sbr.rel (%p24) target = $region8
    $region5: #{tpu_custom_call.1} parent=1 // loop_body
      %s28 = ssub.s32 %s23, 1
      %s29 = ssub.s32 %s23, 2
      %s30 = sadd.s32 %s23, 1
      %s31 = ssub.s32 %s23, %s30
      %p32 = scmp.eq.s32.totalorder %s31, 0
      %s34 = sadd.s32 %s33, 1
      %s35 = scalar_select %p32, %s33, %s34
      %p38 = pneg %p32
      %p39 = scmp.eq.s32.totalorder %s23, 1
      %p40 = por %p38, %p39
      %p41 = scmp.ne.s32.totalorder %s33, %s36
      %p42 = scmp.eq.s32.totalorder %s23, 0
      %p43 = por %p41, %p42
      %p44 = scmp.ne.s32.totalorder %s33, %s36
      %p45 = scmp.eq.s32.totalorder %s28, 1
      %p46 = por %p44, %p45
      %p47 = scmp.ne.s32.totalorder %s36, %s37
      %p48 = scmp.eq.s32.totalorder %s28, 0
      %p49 = por %p47, %p48
      %p50 = scmp.ne.s32.totalorder %s36, %s37
      %p51 = scmp.eq.s32.totalorder %s29, 1
      %p52 = por %p50, %p51
      %p54 = scmp.ne.s32.totalorder %s37, %s53
      %p55 = scmp.eq.s32.totalorder %s29, 0
      %p56 = por %p54, %p55
      %s58 = sadd.s32 %s57, 1
      %p61 = scmp.eq.s32.totalorder %s23, 1
      %p62 = scmp.ne.s32.totalorder %s57, %s59
      %p63 = scmp.eq.s32.totalorder %s23, 0
      %p64 = por %p62, %p63
      %p65 = scmp.ne.s32.totalorder %s57, %s59
      %p66 = scmp.eq.s32.totalorder %s28, 1
      %p67 = por %p65, %p66
      %p68 = scmp.ne.s32.totalorder %s59, %s60
      %p69 = scmp.eq.s32.totalorder %s28, 0
      %p70 = por %p68, %p69
      %p71 = scmp.ne.s32.totalorder %s59, %s60
      %p72 = scmp.eq.s32.totalorder %s29, 1
      %p73 = por %p71, %p72
      %p75 = scmp.ne.s32.totalorder %s60, %s74
      %p76 = scmp.eq.s32.totalorder %s29, 0
      %p77 = por %p75, %p76
      %s79 = sadd.s32 %s78, 1
      %p82 = scmp.eq.s32.totalorder %s23, 1
      %p83 = scmp.ne.s32.totalorder %s78, %s80
      %p84 = scmp.eq.s32.totalorder %s23, 0
      %p85 = por %p83, %p84
      %p86 = scmp.ne.s32.totalorder %s78, %s80
      %p87 = scmp.eq.s32.totalorder %s28, 1
      %p88 = por %p86, %p87
      %p89 = scmp.ne.s32.totalorder %s80, %s81
      %p90 = scmp.eq.s32.totalorder %s28, 0
      %p91 = por %p89, %p90
      %p92 = scmp.ne.s32.totalorder %s80, %s81
      %p93 = scmp.eq.s32.totalorder %s29, 1
      %p94 = por %p92, %p93
      %p96 = scmp.ne.s32.totalorder %s81, %s95
      %p97 = scmp.eq.s32.totalorder %s29, 0
      %p98 = por %p96, %p97
      %s100 = sadd.s32 %s99, 1
      %p103 = scmp.eq.s32.totalorder %s23, 1
      %p104 = scmp.ne.s32.totalorder %s99, %s101
      %p105 = scmp.eq.s32.totalorder %s23, 0
      %p106 = por %p104, %p105
      %p107 = scmp.ne.s32.totalorder %s99, %s101
      %p108 = scmp.eq.s32.totalorder %s28, 1
      %p109 = por %p107, %p108
      %p110 = scmp.ne.s32.totalorder %s101, %s102
      %p111 = scmp.eq.s32.totalorder %s28, 0
      %p112 = por %p110, %p111
      %p113 = scmp.ne.s32.totalorder %s101, %s102
      %p114 = scmp.eq.s32.totalorder %s29, 1
      %p115 = por %p113, %p114
      %p117 = scmp.ne.s32.totalorder %s102, %s116
      %p118 = scmp.eq.s32.totalorder %s29, 0
      %p119 = por %p117, %p118
      %s121 = sadd.s32 %s120, 1
      %p124 = scmp.eq.s32.totalorder %s23, 1
      %p125 = scmp.ne.s32.totalorder %s120, %s122
      %p126 = scmp.eq.s32.totalorder %s23, 0
      %p127 = por %p125, %p126
      %p128 = scmp.ne.s32.totalorder %s120, %s122
      %p129 = scmp.eq.s32.totalorder %s28, 1
      %p130 = por %p128, %p129
      %p131 = scmp.ne.s32.totalorder %s122, %s123
      %p132 = scmp.eq.s32.totalorder %s28, 0
      %p133 = por %p131, %p132
      %p134 = scmp.ne.s32.totalorder %s122, %s123
      %p135 = scmp.eq.s32.totalorder %s29, 1
      %p136 = por %p134, %p135
      %p138 = scmp.ne.s32.totalorder %s123, %s137
      %p139 = scmp.eq.s32.totalorder %s29, 0
      %p140 = por %p138, %p139
      %s142 = sadd.s32 %s141, 1
      %p145 = scmp.eq.s32.totalorder %s23, 1
      %p146 = scmp.ne.s32.totalorder %s141, %s143
      %p147 = scmp.eq.s32.totalorder %s23, 0
      %p148 = por %p146, %p147
      %p149 = scmp.ne.s32.totalorder %s141, %s143
      %p150 = scmp.eq.s32.totalorder %s28, 1
      %p151 = por %p149, %p150
      %p152 = scmp.ne.s32.totalorder %s143, %s144
      %p153 = scmp.eq.s32.totalorder %s28, 0
      %p154 = por %p152, %p153
      %p155 = scmp.ne.s32.totalorder %s143, %s144
      %p156 = scmp.eq.s32.totalorder %s29, 1
      %p157 = por %p155, %p156
      %p159 = scmp.ne.s32.totalorder %s144, %s158
      %p160 = scmp.eq.s32.totalorder %s29, 0
      %p161 = por %p159, %p160
      %s163 = sadd.s32 %s162, 1
      %p166 = scmp.eq.s32.totalorder %s23, 1
      %p167 = scmp.ne.s32.totalorder %s162, %s164
      %p168 = scmp.eq.s32.totalorder %s23, 0
      %p169 = por %p167, %p168
      %p170 = scmp.ne.s32.totalorder %s162, %s164
      %p171 = scmp.eq.s32.totalorder %s28, 1
      %p172 = por %p170, %p171
      %p173 = scmp.ne.s32.totalorder %s164, %s165
      %p174 = scmp.eq.s32.totalorder %s28, 0
      %p175 = por %p173, %p174
      %p176 = scmp.ne.s32.totalorder %s164, %s165
      %p177 = scmp.eq.s32.totalorder %s29, 1
      %p178 = por %p176, %p177
      %p180 = scmp.ne.s32.totalorder %s165, %s179
      %p181 = scmp.eq.s32.totalorder %s29, 0
      %p182 = por %p180, %p181
      %s184 = sadd.s32 %s183, 1
      %p187 = scmp.eq.s32.totalorder %s23, 1
      %p188 = scmp.ne.s32.totalorder %s183, %s185
      %p189 = scmp.eq.s32.totalorder %s23, 0
      %p190 = por %p188, %p189
      %p191 = scmp.ne.s32.totalorder %s183, %s185
      %p192 = scmp.eq.s32.totalorder %s28, 1
      %p193 = por %p191, %p192
      %p194 = scmp.ne.s32.totalorder %s185, %s186
      %p195 = scmp.eq.s32.totalorder %s28, 0
      %p196 = por %p194, %p195
      %p197 = scmp.ne.s32.totalorder %s185, %s186
      %p198 = scmp.eq.s32.totalorder %s29, 1
      %p199 = por %p197, %p198
      %p201 = scmp.ne.s32.totalorder %s186, %s200
      %p202 = scmp.eq.s32.totalorder %s29, 0
      %p203 = por %p201, %p202
      %s205 = sadd.s32 %s204, 1
      %p208 = scmp.eq.s32.totalorder %s23, 1
      %p209 = scmp.ne.s32.totalorder %s204, %s206
      %p210 = scmp.eq.s32.totalorder %s23, 0
      %p211 = por %p209, %p210
      %p212 = scmp.ne.s32.totalorder %s204, %s206
      %p213 = scmp.eq.s32.totalorder %s28, 1
      %p214 = por %p212, %p213
      %p215 = scmp.ne.s32.totalorder %s206, %s207
      %p216 = scmp.eq.s32.totalorder %s28, 0
      %p217 = por %p215, %p216
      %p218 = scmp.ne.s32.totalorder %s206, %s207
      %p219 = scmp.eq.s32.totalorder %s29, 1
      %p220 = por %p218, %p219
      %p222 = scmp.ne.s32.totalorder %s207, %s221
      %p223 = scmp.eq.s32.totalorder %s29, 0
      %p224 = por %p222, %p223
      %s226 = sadd.s32 %s225, 1
      %p229 = scmp.eq.s32.totalorder %s23, 1
      %p230 = scmp.ne.s32.totalorder %s225, %s227
      %p231 = scmp.eq.s32.totalorder %s23, 0
      %p232 = por %p230, %p231
      %p233 = scmp.ne.s32.totalorder %s225, %s227
      %p234 = scmp.eq.s32.totalorder %s28, 1
      %p235 = por %p233, %p234
      %p236 = scmp.ne.s32.totalorder %s227, %s228
      %p237 = scmp.eq.s32.totalorder %s28, 0
      %p238 = por %p236, %p237
      %p239 = scmp.ne.s32.totalorder %s227, %s228
      %p240 = scmp.eq.s32.totalorder %s29, 1
      %p241 = por %p239, %p240
      %p243 = scmp.ne.s32.totalorder %s228, %s242
      %p244 = scmp.eq.s32.totalorder %s29, 0
      %p245 = por %p243, %p244
      %s246 = ssub.s32 %s23, %s30
      %p247 = scmp.eq.s32.totalorder %s246, 0
      %s249 = sadd.s32 %s248, 1
      %s250 = scalar_select %p247, %s248, %s249
      %p253 = pneg %p247
      %p254 = scmp.eq.s32.totalorder %s23, 1
      %p255 = por %p253, %p254
      %p256 = scmp.ne.s32.totalorder %s248, %s251
      %p257 = scmp.eq.s32.totalorder %s23, 0
      %p258 = por %p256, %p257
      %p259 = scmp.ne.s32.totalorder %s248, %s251
      %p260 = scmp.eq.s32.totalorder %s28, 1
      %p261 = por %p259, %p260
      %p262 = scmp.ne.s32.totalorder %s251, %s252
      %p263 = scmp.eq.s32.totalorder %s28, 0
      %p264 = por %p262, %p263
      %p265 = scmp.ne.s32.totalorder %s251, %s252
      %p266 = scmp.eq.s32.totalorder %s29, 1
      %p267 = por %p265, %p266
      %p269 = scmp.ne.s32.totalorder %s252, %s268
      %p270 = scmp.eq.s32.totalorder %s29, 0
      %p271 = por %p269, %p270
      %p272 = scmp.le.s32.totalorder 1, %s23
      %p273 = scmp.lt.s32.totalorder %s23, 3
      %p274 = pnand %p272, %p273
      %p275 = pneg %p274
      // Predicated region
      $region9: #{tpu_custom_call.1} parent=5 // pred_check
        _
      $region10: #{tpu_custom_call.1} parent=5 // pred_check_branch
        %277 = sbr.rel (%p274) target = $region12
      $region11: #{tpu_custom_call.1} parent=5 // pred_region
        %s278 = ssub.s32 %s23, 1
        // Predicated region
        $region13: #{tpu_custom_call.1} parent=11 // pred_check
          %p279 = pneg %p70
        $region14: #{tpu_custom_call.1} parent=11 // pred_check_branch
          %281 = sbr.rel (%p279) target = $region16
        $region15: #{tpu_custom_call.1} parent=11 // pred_region
          _
        $region16: #{tpu_custom_call.1} parent=11 // pred_fallthru
          _
        // Predicated region
        $region17: #{tpu_custom_call.1} parent=11 // pred_check
          %p282 = pneg %p91
        $region18: #{tpu_custom_call.1} parent=11 // pred_check_branch
          %284 = sbr.rel (%p282) target = $region20
        $region19: #{tpu_custom_call.1} parent=11 // pred_region
          %s286 = ssub.s32 9216, 9216
          %287 = vsyncadd [#allocation7], %s286
          %s288 = sshll.u32 [#allocation6], 4
          %s289 = int_to_ptr.vmem [resolvable:$true] %s288
          %294 = dma.hbm_to_vmem [thread:$0]  %s2, 9216, %s289, [#allocation7], 64, 64, 4
        $region20: #{tpu_custom_call.1} parent=11 // pred_fallthru
          _
        // Predicated region
        $region21: #{tpu_custom_call.1} parent=11 // pred_check
          %p295 = pneg %p112
        $region22: #{tpu_custom_call.1} parent=11 // pred_check_branch
          %297 = sbr.rel (%p295) target = $region24
        $region23: #{tpu_custom_call.1} parent=11 // pred_region
          _
        $region24: #{tpu_custom_call.1} parent=11 // pred_fallthru
          _
        // Predicated region
        $region25: #{tpu_custom_call.1} parent=11 // pred_check
          %p298 = pneg %p133
        $region26: #{tpu_custom_call.1} parent=11 // pred_check_branch
          %300 = sbr.rel (%p298) target = $region28
        $region27: #{tpu_custom_call.1} parent=11 // pred_region
          _
        $region28: #{tpu_custom_call.1} parent=11 // pred_fallthru
          _
        // Predicated region
        $region29: #{tpu_custom_call.1} parent=11 // pred_check
          %p301 = pneg %p154
        $region30: #{tpu_custom_call.1} parent=11 // pred_check_branch
          %303 = sbr.rel (%p301) target = $region32
        $region31: #{tpu_custom_call.1} parent=11 // pred_region
          _
        $region32: #{tpu_custom_call.1} parent=11 // pred_fallthru
          _
        // Predicated region
        $region33: #{tpu_custom_call.1} parent=11 // pred_check
          %p304 = pneg %p175
        $region34: #{tpu_custom_call.1} parent=11 // pred_check_branch
          %306 = sbr.rel (%p304) target = $region36
        $region35: #{tpu_custom_call.1} parent=11 // pred_region
          %s308 = ssub.s32 9216, 9216
          %309 = vsyncadd [#allocation7], %s308
          %s310 = sshll.u32 [#allocation8], 4
          %s311 = int_to_ptr.vmem [resolvable:$true] %s310
          %316 = dma.hbm_to_vmem [thread:$0]  %s6, 9216, %s311, [#allocation7], 64, 64, 4
        $region36: #{tpu_custom_call.1} parent=11 // pred_fallthru
          _
        // Predicated region
        $region37: #{tpu_custom_call.1} parent=11 // pred_check
          %p317 = pneg %p196
        $region38: #{tpu_custom_call.1} parent=11 // pred_check_branch
          %319 = sbr.rel (%p317) target = $region40
        $region39: #{tpu_custom_call.1} parent=11 // pred_region
          _
        $region40: #{tpu_custom_call.1} parent=11 // pred_fallthru
          _
        // Predicated region
        $region41: #{tpu_custom_call.1} parent=11 // pred_check
          %p320 = pneg %p217
        $region42: #{tpu_custom_call.1} parent=11 // pred_check_branch
          %322 = sbr.rel (%p320) target = $region44
        $region43: #{tpu_custom_call.1} parent=11 // pred_region
          _
        $region44: #{tpu_custom_call.1} parent=11 // pred_fallthru
          _
        // Predicated region
        $region45: #{tpu_custom_call.1} parent=11 // pred_check
          %p323 = pneg %p238
        $region46: #{tpu_custom_call.1} parent=11 // pred_check_branch
          %325 = sbr.rel (%p323) target = $region48
        $region47: #{tpu_custom_call.1} parent=11 // pred_region
          _
        $region48: #{tpu_custom_call.1} parent=11 // pred_fallthru
          _
      $region12: #{tpu_custom_call.1} parent=5 // pred_fallthru
        _
      %p326 = scmp.lt.s32.totalorder %s23, 2
      // Predicated region
      $region49: #{tpu_custom_call.1} parent=5 // pred_check
        %p327 = pneg %p326
      $region50: #{tpu_custom_call.1} parent=5 // pred_check_branch
        %329 = sbr.rel (%p327) target = $region52
      $region51: #{tpu_custom_call.1} parent=5 // pred_region
        // Predicated region
        $region53: #{tpu_custom_call.1} parent=51 // pred_check
          %p330 = pneg %p43
        $region54: #{tpu_custom_call.1} parent=51 // pred_check_branch
          %332 = sbr.rel (%p330) target = $region56
        $region55: #{tpu_custom_call.1} parent=51 // pred_region
          %s333 = sand.u32 %s33, 1
          %s334 = scalar_lea.sflag [#allocation4], %s333
          %s335 = sand.u32 %s33, 1
          %s336 = smul.addr %s335, 228
          %s337 = scalar_lea.vmem [#allocation3], %s336
          %s339 = ssub.s32 3648, 3648
          %340 = vsyncadd %s334, %s339
          %s341 = smul.addr %s23, 57
          %s342 = smul.addr %s341, 64
          %s343 = scalar_lea.hbm %s0, %s342
          %s344 = sshll.u32 %s337, 4
          %s345 = int_to_ptr.vmem [resolvable:$true] %s344
          %350 = dma.hbm_to_vmem [thread:$0]  %s343, 3648, %s345, %s334, 64, 64, 4
        $region56: #{tpu_custom_call.1} parent=51 // pred_fallthru
          _
      $region52: #{tpu_custom_call.1} parent=5 // pred_fallthru
        _
      %p351 = scmp.le.s32.totalorder 1, %s23
      %p352 = scmp.lt.s32.totalorder %s23, 3
      %p353 = pnand %p351, %p352
      %p354 = pneg %p353
      // Predicated region
      $region57: #{tpu_custom_call.1} parent=5 // pred_check
        _
      $region58: #{tpu_custom_call.1} parent=5 // pred_check_branch
        %356 = sbr.rel (%p353) target = $region60
      $region59: #{tpu_custom_call.1} parent=5 // pred_region
        %s357 = ssub.s32 %s23, 1
        %s358 = sand.u32 %s36, 1
        %s359 = scalar_lea.sflag [#allocation4], %s358
        %s360 = sand.u32 %s36, 1
        %s361 = smul.addr %s360, 228
        %s362 = scalar_lea.vmem [#allocation3], %s361
        // Predicated region
        $region61: #{tpu_custom_call.1} parent=59 // pred_check
          %p363 = pneg %p49
        $region62: #{tpu_custom_call.1} parent=59 // pred_check_branch
          %365 = sbr.rel (%p363) target = $region64
        $region63: #{tpu_custom_call.1} parent=59 // pred_region
          %366 = dma.done %s359, 3648
        $region64: #{tpu_custom_call.1} parent=59 // pred_fallthru
          _
        // Predicated region
        $region65: #{tpu_custom_call.1} parent=59 // pred_check
          %p367 = pneg %p91
        $region66: #{tpu_custom_call.1} parent=59 // pred_check_branch
          %369 = sbr.rel (%p367) target = $region68
        $region67: #{tpu_custom_call.1} parent=59 // pred_region
          %370 = dma.done [#allocation7], 9216
        $region68: #{tpu_custom_call.1} parent=59 // pred_fallthru
          _
        // Predicated region
        $region69: #{tpu_custom_call.1} parent=59 // pred_check
          %p371 = pneg %p175
        $region70: #{tpu_custom_call.1} parent=59 // pred_check_branch
          %373 = sbr.rel (%p371) target = $region72
        $region71: #{tpu_custom_call.1} parent=59 // pred_region
          %374 = dma.done [#allocation7], 9216
        $region72: #{tpu_custom_call.1} parent=59 // pred_fallthru
          _
        %s375 = sand.u32 %s36, 1
        %s376 = scalar_lea.sflag [#allocation4], %s375
        %s377 = sand.u32 %s36, 1
        %s378 = smul.addr %s377, 228
        %s379 = scalar_lea.vmem [#allocation3], %s378
        %p380 = pneg %p49
        %p381 = pneg %p46
        %p382 = pneg %p70
        %p383 = pneg %p67
        %p384 = pneg %p91
        %p385 = pneg %p88
        %p386 = pneg %p112
        %p387 = pneg %p109
        %p388 = pneg %p133
        %p389 = pneg %p130
        %p390 = pneg %p154
        %p391 = pneg %p151
        %p392 = pneg %p175
        %p393 = pneg %p172
        %p394 = pneg %p196
        %p395 = pneg %p193
        %p396 = pneg %p217
        %p397 = pneg %p214
        %p398 = pneg %p238
        %p399 = pneg %p235
        %p400 = pneg %p264
        %p401 = pneg %p261
        %s402 = sand.u32 %s251, 1
        %s403 = scalar_lea.sflag [#allocation5], %s402
        %s404 = sand.u32 %s251, 1
        %s405 = smul.addr %s404, 384
        %s406 = scalar_lea.vmem [#allocation9], %s405
        %v408 = vld [vmem:[%s1] sm:$0xff]
        %v409 = vld [vmem:[%s1 + $0x8] sm:$0xff]
        %v410 = vld [vmem:[%s1 + $0x10] sm:$0xff]
        %v411 = vld [vmem:[%s1 + $0x18] sm:$0xff]
        %v412 = vld [vmem:[%s1 + $0x20] sm:$0xff]
        %v413 = vld [vmem:[%s1 + $0x28] sm:$0xff]
        %v414 = vld [vmem:[%s1 + $0x30] sm:$0xff]
        %v415 = vld [vmem:[%s1 + $0x38] sm:$0xff]
        %v416 = vld [vmem:[%s1 + $0x40] sm:$0xff]
        %v417 = vld [vmem:[%s1 + $0x48] sm:$0xff]
        %v418 = vld [vmem:[%s1 + $0x50] sm:$0xff]
        %v419 = vld [vmem:[%s1 + $0x58] sm:$0xff]
        %v420 = vld [vmem:[%s1 + $0x60] sm:$0xff]
        %v421 = vld [vmem:[%s1 + $0x68] sm:$0xff]
        %v422 = vld [vmem:[%s1 + $0x70] sm:$0xff]
        %v423 = vld [vmem:[%s1 + $0x78] sm:$0xff]
        %v424 = vld [vmem:[%s1 + $0x80] sm:$0xff]
        %v425 = vld [vmem:[%s1 + $0x88] sm:$0xff]
        %v426 = vld [vmem:[%s1 + $0x90] sm:$0xff]
        %v427 = vld [vmem:[%s1 + $0x98] sm:$0xff]
        %v428 = vld [vmem:[%s1 + $0xa0] sm:$0xff]
        %v429 = vld [vmem:[%s1 + $0xa8] sm:$0xff]
        %v430 = vld [vmem:[%s1 + $0xb0] sm:$0xff]
        %v431 = vld [vmem:[%s1 + $0xb8] sm:$0xff]
        %v432 = vld [vmem:[%s1 + $0xc0] sm:$0xff]
        %v433 = vld [vmem:[%s1 + $0xc8] sm:$0xff]
        %v434 = vld [vmem:[%s1 + $0xd0] sm:$0xff]
        %v435 = vld [vmem:[%s1 + $0xd8] sm:$0xff]
        %v436 = vld [vmem:[%s1 + $0xe0] sm:$0xff]
        %v437 = vld [vmem:[%s1 + $0xe8] sm:$0xff]
        %v438 = vld [vmem:[%s1 + $0xf0] sm:$0xff]
        %v439 = vld [vmem:[%s1 + $0xf8] sm:$0xff]
        %v440 = vld [vmem:[%s1 + $0x100] sm:$0xff]
        %v441 = vld [vmem:[%s1 + $0x108] sm:$0xff]
        %v442 = vld [vmem:[%s1 + $0x110] sm:$0xff]
        %v443 = vld [vmem:[%s1 + $0x118] sm:$0xff]
        %v444 = vld [vmem:[%s1 + $0x120] sm:$0xff]
        %v445 = vld [vmem:[%s1 + $0x128] sm:$0xff]
        %v446 = vld [vmem:[%s1 + $0x130] sm:$0xff]
        %v447 = vld [vmem:[%s1 + $0x138] sm:$0xff]
        %v448 = vld [vmem:[%s1 + $0x140] sm:$0xff]
        %v449 = vld [vmem:[%s1 + $0x148] sm:$0xff]
        %v450 = vld [vmem:[%s1 + $0x150] sm:$0xff]
        %v451 = vld [vmem:[%s1 + $0x158] sm:$0xff]
        %v452 = vld [vmem:[%s1 + $0x160] sm:$0xff]
        %v453 = vld [vmem:[%s1 + $0x168] sm:$0xff]
        %v454 = vld [vmem:[%s1 + $0x170] sm:$0xff]
        %v455 = vld [vmem:[%s1 + $0x178] sm:$0xff]
        %v456 = vld [vmem:[%s362] sm:$0xf]
        %v457 = vld [vmem:[%s362 + $0x4] sm:$0xf]
        %v458 = vld [vmem:[%s362 + $0x8] sm:$0xf]
        %v459 = vld [vmem:[%s362 + $0xc] sm:$0xf]
        %v460 = vld [vmem:[%s362 + $0x10] sm:$0xf]
        %v461 = vld [vmem:[%s362 + $0x14] sm:$0xf]
        %v462 = vld [vmem:[%s362 + $0x18] sm:$0xf]
        %v463 = vld [vmem:[%s362 + $0x1c] sm:$0xf]
        %v464 = vld [vmem:[%s362 + $0x20] sm:$0xf]
        %v465 = vld [vmem:[%s362 + $0x24] sm:$0xf]
        %v466 = vld [vmem:[%s362 + $0x28] sm:$0xf]
        %v467 = vld [vmem:[%s362 + $0x2c] sm:$0xf]
        %v468 = vld [vmem:[%s362 + $0x30] sm:$0xf]
        %v469 = vld [vmem:[%s362 + $0x34] sm:$0xf]
        %v470 = vld [vmem:[%s362 + $0x38] sm:$0xf]
        %v471 = vld [vmem:[%s362 + $0x3c] sm:$0xf]
        %v472 = vld [vmem:[%s362 + $0x40] sm:$0xf]
        %v473 = vld [vmem:[%s362 + $0x44] sm:$0xf]
        %v474 = vld [vmem:[%s362 + $0x48] sm:$0xf]
        %v475 = vld [vmem:[%s362 + $0x4c] sm:$0xf]
        %v476 = vld [vmem:[%s362 + $0x50] sm:$0xf]
        %v477 = vld [vmem:[%s362 + $0x54] sm:$0xf]
        %v478 = vld [vmem:[%s362 + $0x58] sm:$0xf]
        %v479 = vld [vmem:[%s362 + $0x5c] sm:$0xf]
        %v480 = vld [vmem:[%s362 + $0x60] sm:$0xf]
        %v481 = vld [vmem:[%s362 + $0x64] sm:$0xf]
        %v482 = vld [vmem:[%s362 + $0x68] sm:$0xf]
        %v483 = vld [vmem:[%s362 + $0x6c] sm:$0xf]
        %v484 = vld [vmem:[%s362 + $0x70] sm:$0xf]
        %v485 = vld [vmem:[%s362 + $0x74] sm:$0xf]
        %v486 = vld [vmem:[%s362 + $0x78] sm:$0xf]
        %v487 = vld [vmem:[%s362 + $0x7c] sm:$0xf]
        %v488 = vld [vmem:[%s362 + $0x80] sm:$0xf]
        %v489 = vld [vmem:[%s362 + $0x84] sm:$0xf]
        %v490 = vld [vmem:[%s362 + $0x88] sm:$0xf]
        %v491 = vld [vmem:[%s362 + $0x8c] sm:$0xf]
        %v492 = vld [vmem:[%s362 + $0x90] sm:$0xf]
        %v493 = vld [vmem:[%s362 + $0x94] sm:$0xf]
        %v494 = vld [vmem:[%s362 + $0x98] sm:$0xf]
        %v495 = vld [vmem:[%s362 + $0x9c] sm:$0xf]
        %v496 = vld [vmem:[%s362 + $0xa0] sm:$0xf]
        %v497 = vld [vmem:[%s362 + $0xa4] sm:$0xf]
        %v498 = vld [vmem:[%s362 + $0xa8] sm:$0xf]
        %v499 = vld [vmem:[%s362 + $0xac] sm:$0xf]
        %v500 = vld [vmem:[%s362 + $0xb0] sm:$0xf]
        %v501 = vld [vmem:[%s362 + $0xb4] sm:$0xf]
        %v502 = vld [vmem:[%s362 + $0xb8] sm:$0xf]
        %v503 = vld [vmem:[%s362 + $0xbc] sm:$0xf]
        %v504 = vld [vmem:[#allocation6] sm:$0xf]
        %v505 = vld [vmem:[#allocation6 + $0x4] sm:$0xf]
        %v506 = vld [vmem:[#allocation6 + $0x8] sm:$0xf]
        %v507 = vld [vmem:[#allocation6 + $0xc] sm:$0xf]
        %v508 = vld [vmem:[#allocation6 + $0x10] sm:$0xf]
        %v509 = vld [vmem:[#allocation6 + $0x14] sm:$0xf]
        %v510 = vld [vmem:[#allocation6 + $0x18] sm:$0xf]
        %v511 = vld [vmem:[#allocation6 + $0x1c] sm:$0xf]
        %v512 = vld [vmem:[#allocation6 + $0x20] sm:$0xf]
        %v513 = vld [vmem:[#allocation6 + $0x24] sm:$0xf]
        %v514 = vld [vmem:[#allocation6 + $0x28] sm:$0xf]
        %v515 = vld [vmem:[#allocation6 + $0x2c] sm:$0xf]
        %v516 = vld [vmem:[#allocation6 + $0x30] sm:$0xf]
        %v517 = vld [vmem:[#allocation6 + $0x34] sm:$0xf]
        %v518 = vld [vmem:[#allocation6 + $0x38] sm:$0xf]
        %v519 = vld [vmem:[#allocation6 + $0x3c] sm:$0xf]
        %v520 = vld [vmem:[%s362 + $0xc0] sm:$0x1]
        %s521 = scalar_lea.vmem [#allocation6], 64
        %v522 = vld [vmem:[%s521] sm:$0xf]
        %v523 = vld [vmem:[%s521 + $0x4] sm:$0xf]
        %v524 = vld [vmem:[%s521 + $0x8] sm:$0xf]
        %v525 = vld [vmem:[%s521 + $0xc] sm:$0xf]
        %v526 = vld [vmem:[%s521 + $0x10] sm:$0xf]
        %v527 = vld [vmem:[%s521 + $0x14] sm:$0xf]
        %v528 = vld [vmem:[%s521 + $0x18] sm:$0xf]
        %v529 = vld [vmem:[%s521 + $0x1c] sm:$0xf]
        %v530 = vld [vmem:[%s521 + $0x20] sm:$0xf]
        %v531 = vld [vmem:[%s521 + $0x24] sm:$0xf]
        %v532 = vld [vmem:[%s521 + $0x28] sm:$0xf]
        %v533 = vld [vmem:[%s521 + $0x2c] sm:$0xf]
        %v534 = vld [vmem:[%s521 + $0x30] sm:$0xf]
        %v535 = vld [vmem:[%s521 + $0x34] sm:$0xf]
        %v536 = vld [vmem:[%s521 + $0x38] sm:$0xf]
        %v537 = vld [vmem:[%s521 + $0x3c] sm:$0xf]
        %v587 = vunpack.c.l.b16 %v456
        %v588 = vunpack.c.l.b16 %v457
        %v589 = vunpack.c.l.b16 %v458
        %v590 = vunpack.c.l.b16 %v459
        %v591 = vunpack.c.l.b16 %v460
        %v592 = vunpack.c.l.b16 %v461
        %v593 = vunpack.c.l.b16 %v462
        %v594 = vunpack.c.l.b16 %v463
        %v595 = vunpack.c.l.b16 %v464
        %v596 = vunpack.c.l.b16 %v465
        %v597 = vunpack.c.l.b16 %v466
        %v598 = vunpack.c.l.b16 %v467
        %v599 = vunpack.c.l.b16 %v468
        %v600 = vunpack.c.l.b16 %v469
        %v601 = vunpack.c.l.b16 %v470
        %v602 = vunpack.c.l.b16 %v471
        %v603 = vunpack.c.l.b16 %v472
        %v604 = vunpack.c.l.b16 %v473
        %v605 = vunpack.c.l.b16 %v474
        %v606 = vunpack.c.l.b16 %v475
        %v607 = vunpack.c.l.b16 %v476
        %v608 = vunpack.c.l.b16 %v477
        %v609 = vunpack.c.l.b16 %v478
        %v610 = vunpack.c.l.b16 %v479
        %v611 = vunpack.c.l.b16 %v480
        %v612 = vunpack.c.l.b16 %v481
        %v613 = vunpack.c.l.b16 %v482
        %v614 = vunpack.c.l.b16 %v483
        %v615 = vunpack.c.l.b16 %v484
        %v616 = vunpack.c.l.b16 %v485
        %v617 = vunpack.c.l.b16 %v486
        %v618 = vunpack.c.l.b16 %v487
        %v619 = vunpack.c.l.b16 %v488
        %v620 = vunpack.c.l.b16 %v489
        %v621 = vunpack.c.l.b16 %v490
        %v622 = vunpack.c.l.b16 %v491
        %v623 = vunpack.c.l.b16 %v492
        %v624 = vunpack.c.l.b16 %v493
        %v625 = vunpack.c.l.b16 %v494
        %v626 = vunpack.c.l.b16 %v495
        %v627 = vunpack.c.l.b16 %v496
        %v628 = vunpack.c.l.b16 %v497
        %v629 = vunpack.c.l.b16 %v498
        %v630 = vunpack.c.l.b16 %v499
        %v631 = vunpack.c.l.b16 %v500
        %v632 = vunpack.c.l.b16 %v501
        %v633 = vunpack.c.l.b16 %v502
        %v634 = vunpack.c.l.b16 %v503
        %v635 = vunpack.c.l.b16 %v520
        %v636 = vpack.c.b16 %v588, %v587
        %v637 = vpack.c.b16 %v590, %v589
        %v638 = vpack.c.b16 %v592, %v591
        %v639 = vpack.c.b16 %v594, %v593
        %v640 = vpack.c.b16 %v596, %v595
        %v641 = vpack.c.b16 %v598, %v597
        %v642 = vpack.c.b16 %v600, %v599
        %v643 = vpack.c.b16 %v602, %v601
        %v644 = vpack.c.b16 %v604, %v603
        %v645 = vpack.c.b16 %v606, %v605
        %v646 = vpack.c.b16 %v608, %v607
        %v647 = vpack.c.b16 %v610, %v609
        %v648 = vpack.c.b16 %v612, %v611
        %v649 = vpack.c.b16 %v614, %v613
        %v650 = vpack.c.b16 %v616, %v615
        %v651 = vpack.c.b16 %v618, %v617
        %v652 = vpack.c.b16 %v620, %v619
        %v653 = vpack.c.b16 %v622, %v621
        %v654 = vpack.c.b16 %v624, %v623
        %v655 = vpack.c.b16 %v626, %v625
        %v656 = vpack.c.b16 %v628, %v627
        %v657 = vpack.c.b16 %v630, %v629
        %v658 = vpack.c.b16 %v632, %v631
        %v659 = vpack.c.b16 %v634, %v633
        %v660 = vpack.c.b16 %v635, %v635
        %vm661 = vsmask.f32 7424
        %v663 = vshrl.u32 %v636, 16
        %v665 = vshll.u32 %v636, 16
        %v667 = vrot.slane %v665, 1
        %v668 = vor.u32 %v663, %v667
        %v670 = vshll.u32 %v637, 16
        %v672 = vrot.slane %v670, 1
        %v673 = vsel %vm661, %v668, %v672
        %v674 = vshrl.u32 %v637, 16
        %v676 = vor.u32 %v674, %v672
        %v678 = vshll.u32 %v638, 16
        %v680 = vrot.slane %v678, 1
        %v681 = vsel %vm661, %v676, %v680
        %v682 = vshrl.u32 %v638, 16
        %v684 = vor.u32 %v682, %v680
        %v686 = vshll.u32 %v639, 16
        %v688 = vrot.slane %v686, 1
        %v689 = vsel %vm661, %v684, %v688
        %v690 = vshrl.u32 %v639, 16
        %v692 = vor.u32 %v690, %v688
        %v694 = vshll.u32 %v640, 16
        %v696 = vrot.slane %v694, 1
        %v697 = vsel %vm661, %v692, %v696
        %v698 = vshrl.u32 %v640, 16
        %v700 = vor.u32 %v698, %v696
        %v702 = vshll.u32 %v641, 16
        %v704 = vrot.slane %v702, 1
        %v705 = vsel %vm661, %v700, %v704
        %v706 = vshrl.u32 %v641, 16
        %v708 = vor.u32 %v706, %v704
        %v710 = vshll.u32 %v642, 16
        %v712 = vrot.slane %v710, 1
        %v713 = vsel %vm661, %v708, %v712
        %v714 = vshrl.u32 %v642, 16
        %v716 = vor.u32 %v714, %v712
        %v718 = vshll.u32 %v643, 16
        %v720 = vrot.slane %v718, 1
        %v721 = vsel %vm661, %v716, %v720
        %v722 = vshrl.u32 %v643, 16
        %v724 = vor.u32 %v722, %v720
        %v726 = vshll.u32 %v644, 16
        %v728 = vrot.slane %v726, 1
        %v729 = vsel %vm661, %v724, %v728
        %v730 = vshrl.u32 %v644, 16
        %v732 = vor.u32 %v730, %v728
        %v734 = vshll.u32 %v645, 16
        %v736 = vrot.slane %v734, 1
        %v737 = vsel %vm661, %v732, %v736
        %v738 = vshrl.u32 %v645, 16
        %v740 = vor.u32 %v738, %v736
        %v742 = vshll.u32 %v646, 16
        %v744 = vrot.slane %v742, 1
        %v745 = vsel %vm661, %v740, %v744
        %v746 = vshrl.u32 %v646, 16
        %v748 = vor.u32 %v746, %v744
        %v750 = vshll.u32 %v647, 16
        %v752 = vrot.slane %v750, 1
        %v753 = vsel %vm661, %v748, %v752
        %v754 = vshrl.u32 %v647, 16
        %v756 = vor.u32 %v754, %v752
        %v758 = vshll.u32 %v648, 16
        %v760 = vrot.slane %v758, 1
        %v761 = vsel %vm661, %v756, %v760
        %v762 = vshrl.u32 %v648, 16
        %v764 = vor.u32 %v762, %v760
        %v766 = vshll.u32 %v649, 16
        %v768 = vrot.slane %v766, 1
        %v769 = vsel %vm661, %v764, %v768
        %v770 = vshrl.u32 %v649, 16
        %v772 = vor.u32 %v770, %v768
        %v774 = vshll.u32 %v650, 16
        %v776 = vrot.slane %v774, 1
        %v777 = vsel %vm661, %v772, %v776
        %v778 = vshrl.u32 %v650, 16
        %v780 = vor.u32 %v778, %v776
        %v782 = vshll.u32 %v651, 16
        %v784 = vrot.slane %v782, 1
        %v785 = vsel %vm661, %v780, %v784
        %v786 = vshrl.u32 %v651, 16
        %v788 = vor.u32 %v786, %v784
        %v790 = vshll.u32 %v652, 16
        %v792 = vrot.slane %v790, 1
        %v793 = vsel %vm661, %v788, %v792
        %v794 = vshrl.u32 %v652, 16
        %v796 = vor.u32 %v794, %v792
        %v798 = vshll.u32 %v653, 16
        %v800 = vrot.slane %v798, 1
        %v801 = vsel %vm661, %v796, %v800
        %v802 = vshrl.u32 %v653, 16
        %v804 = vor.u32 %v802, %v800
        %v806 = vshll.u32 %v654, 16
        %v808 = vrot.slane %v806, 1
        %v809 = vsel %vm661, %v804, %v808
        %v810 = vshrl.u32 %v654, 16
        %v812 = vor.u32 %v810, %v808
        %v814 = vshll.u32 %v655, 16
        %v816 = vrot.slane %v814, 1
        %v817 = vsel %vm661, %v812, %v816
        %v818 = vshrl.u32 %v655, 16
        %v820 = vor.u32 %v818, %v816
        %v822 = vshll.u32 %v656, 16
        %v824 = vrot.slane %v822, 1
        %v825 = vsel %vm661, %v820, %v824
        %v826 = vshrl.u32 %v656, 16
        %v828 = vor.u32 %v826, %v824
        %v830 = vshll.u32 %v657, 16
        %v832 = vrot.slane %v830, 1
        %v833 = vsel %vm661, %v828, %v832
        %v834 = vshrl.u32 %v657, 16
        %v836 = vor.u32 %v834, %v832
        %v838 = vshll.u32 %v658, 16
        %v840 = vrot.slane %v838, 1
        %v841 = vsel %vm661, %v836, %v840
        %v842 = vshrl.u32 %v658, 16
        %v844 = vor.u32 %v842, %v840
        %v846 = vshll.u32 %v659, 16
        %v848 = vrot.slane %v846, 1
        %v849 = vsel %vm661, %v844, %v848
        %v850 = vshrl.u32 %v659, 16
        %v852 = vor.u32 %v850, %v848
        %v854 = vshll.u32 %v660, 16
        %v856 = vrot.slane %v854, 1
        %v857 = vsel %vm661, %v852, %v856
        %v898 = vunpack.c.l.b16 %v522
        %v899 = vunpack.c.l.b16 %v523
        %v900 = vunpack.c.l.b16 %v524
        %v901 = vunpack.c.l.b16 %v525
        %v902 = vunpack.c.l.b16 %v526
        %v903 = vunpack.c.l.b16 %v527
        %v904 = vunpack.c.l.b16 %v528
        %v905 = vunpack.c.l.b16 %v529
        %v906 = vunpack.c.l.b16 %v530
        %v907 = vunpack.c.l.b16 %v531
        %v908 = vunpack.c.l.b16 %v532
        %v909 = vunpack.c.l.b16 %v533
        %v910 = vunpack.c.l.b16 %v534
        %v911 = vunpack.c.l.b16 %v535
        %v912 = vunpack.c.l.b16 %v536
        %v913 = vunpack.c.l.b16 %v537
        %v914 = vpack.c.b16 %v899, %v898
        %v915 = vpack.c.b16 %v901, %v900
        %v916 = vpack.c.b16 %v903, %v902
        %v917 = vpack.c.b16 %v905, %v904
        %v918 = vpack.c.b16 %v907, %v906
        %v919 = vpack.c.b16 %v909, %v908
        %v920 = vpack.c.b16 %v911, %v910
        %v921 = vpack.c.b16 %v913, %v912
        %930 = vmatprep.subr.bf16.mxu0 0
        %931 = vmatpush1.bf16.msra.mxu0 %v921
        %932 = vmatprep.subr.bf16.mxu0 0
        %933 = vmatpush1.bf16.msra.mxu0 %v920
        %934 = vmatprep.subr.bf16.mxu0 0
        %935 = vmatpush1.bf16.msra.mxu0 %v919
        %936 = vmatprep.subr.bf16.mxu0 0
        %937 = vmatpush1.bf16.msra.mxu0 %v918
        %938 = vmatprep.subr.bf16.mxu0 0
        %939 = vmatpush1.bf16.msra.mxu0 %v917
        %940 = vmatprep.subr.bf16.mxu0 0
        %941 = vmatpush1.bf16.msra.mxu0 %v916
        %942 = vmatprep.subr.bf16.mxu0 0
        %943 = vmatpush1.bf16.msra.mxu0 %v915
        %944 = vmatprep.subr.bf16.mxu0 0
        %945 = vmatpush1.bf16.msra.mxu0 %v914
        %946 = vmatprep.subr.bf16.mxu0 0
        %947 = vmatpush2.bf16.msra.mxu0 0
        %948 = vmatprep.subr.bf16.mxu0 0
        %949 = vmatpush2.bf16.msra.mxu0 0
        %950 = vmatprep.subr.bf16.mxu0 0
        %951 = vmatpush2.bf16.msra.mxu0 0
        %952 = vmatprep.subr.bf16.mxu0 0
        %953 = vmatpush2.bf16.msra.mxu0 0
        %954 = vmatprep.subr.bf16.mxu0 0
        %955 = vmatpush2.bf16.msra.mxu0 0
        %956 = vmatprep.subr.bf16.mxu0 0
        %957 = vmatpush2.bf16.msra.mxu0 0
        %958 = vmatprep.subr.bf16.mxu0 0
        %959 = vmatpush2.bf16.msra.mxu0 0
        %960 = vmatprep.subr.bf16.mxu0 0
        %961 = vmatpush2.bf16.msra.mxu0 0
        %962 = vmatprep.mubr.bf16.mxu0 0
        %963 = vmatmul.mubr.bf16.gmra.mxu0 %v673
        %v964 = vpop.f32.mrf.mxu0
        %v965 = vadd.f32 0.0, %v964
        %v966 = vpop.f32.mrf.mxu0
        %v967 = vpop.f32.mrf.mxu0
        %v968 = vadd.f32 0.0, %v967
        %v969 = vpop.f32.mrf.mxu0
        %970 = vmatprep.mubr.bf16.mxu0 0
        %971 = vmatmul.mubr.bf16.gmra.mxu0 %v681
        %v972 = vpop.f32.mrf.mxu0
        %v973 = vadd.f32 0.0, %v972
        %v974 = vpop.f32.mrf.mxu0
        %v975 = vpop.f32.mrf.mxu0
        %v976 = vadd.f32 0.0, %v975
        %v977 = vpop.f32.mrf.mxu0
        %978 = vmatprep.mubr.bf16.mxu0 0
        %979 = vmatmul.mubr.bf16.gmra.mxu0 %v689
        %v980 = vpop.f32.mrf.mxu0
        %v981 = vadd.f32 0.0, %v980
        %v982 = vpop.f32.mrf.mxu0
        %v983 = vpop.f32.mrf.mxu0
        %v984 = vadd.f32 0.0, %v983
        %v985 = vpop.f32.mrf.mxu0
        %986 = vmatprep.mubr.bf16.mxu0 0
        %987 = vmatmul.mubr.bf16.gmra.mxu0 %v697
        %v988 = vpop.f32.mrf.mxu0
        %v989 = vadd.f32 0.0, %v988
        %v990 = vpop.f32.mrf.mxu0
        %v991 = vpop.f32.mrf.mxu0
        %v992 = vadd.f32 0.0, %v991
        %v993 = vpop.f32.mrf.mxu0
        %994 = vmatprep.mubr.bf16.mxu0 0
        %995 = vmatmul.mubr.bf16.gmra.mxu0 %v705
        %v996 = vpop.f32.mrf.mxu0
        %v997 = vadd.f32 0.0, %v996
        %v998 = vpop.f32.mrf.mxu0
        %v999 = vpop.f32.mrf.mxu0
        %v1000 = vadd.f32 0.0, %v999
        %v1001 = vpop.f32.mrf.mxu0
        %1002 = vmatprep.mubr.bf16.mxu0 0
        %1003 = vmatmul.mubr.bf16.gmra.mxu0 %v713
        %v1004 = vpop.f32.mrf.mxu0
        %v1005 = vadd.f32 0.0, %v1004
        %v1006 = vpop.f32.mrf.mxu0
        %v1007 = vpop.f32.mrf.mxu0
        %v1008 = vadd.f32 0.0, %v1007
        %v1009 = vpop.f32.mrf.mxu0
        %1010 = vmatprep.mubr.bf16.mxu0 0
        %1011 = vmatmul.mubr.bf16.gmra.mxu0 %v721
        %v1012 = vpop.f32.mrf.mxu0
        %v1013 = vadd.f32 0.0, %v1012
        %v1014 = vpop.f32.mrf.mxu0
        %v1015 = vpop.f32.mrf.mxu0
        %v1016 = vadd.f32 0.0, %v1015
        %v1017 = vpop.f32.mrf.mxu0
        %1018 = vmatprep.mubr.bf16.mxu0 0
        %1019 = vmatmul.mubr.bf16.gmra.mxu0 %v729
        %v1020 = vpop.f32.mrf.mxu0
        %v1021 = vadd.f32 0.0, %v1020
        %v1022 = vpop.f32.mrf.mxu0
        %v1023 = vpop.f32.mrf.mxu0
        %v1024 = vadd.f32 0.0, %v1023
        %v1025 = vpop.f32.mrf.mxu0
        %1026 = vmatprep.mubr.bf16.mxu0 0
        %1027 = vmatmul.mubr.bf16.gmra.mxu0 %v737
        %v1028 = vpop.f32.mrf.mxu0
        %v1029 = vadd.f32 0.0, %v1028
        %v1030 = vpop.f32.mrf.mxu0
        %v1031 = vpop.f32.mrf.mxu0
        %v1032 = vadd.f32 0.0, %v1031
        %v1033 = vpop.f32.mrf.mxu0
        %1034 = vmatprep.mubr.bf16.mxu0 0
        %1035 = vmatmul.mubr.bf16.gmra.mxu0 %v745
        %v1036 = vpop.f32.mrf.mxu0
        %v1037 = vadd.f32 0.0, %v1036
        %v1038 = vpop.f32.mrf.mxu0
        %v1039 = vpop.f32.mrf.mxu0
        %v1040 = vadd.f32 0.0, %v1039
        %v1041 = vpop.f32.mrf.mxu0
        %1042 = vmatprep.mubr.bf16.mxu0 0
        %1043 = vmatmul.mubr.bf16.gmra.mxu0 %v753
        %v1044 = vpop.f32.mrf.mxu0
        %v1045 = vadd.f32 0.0, %v1044
        %v1046 = vpop.f32.mrf.mxu0
        %v1047 = vpop.f32.mrf.mxu0
        %v1048 = vadd.f32 0.0, %v1047
        %v1049 = vpop.f32.mrf.mxu0
        %1050 = vmatprep.mubr.bf16.mxu0 0
        %1051 = vmatmul.mubr.bf16.gmra.mxu0 %v761
        %v1052 = vpop.f32.mrf.mxu0
        %v1053 = vadd.f32 0.0, %v1052
        %v1054 = vpop.f32.mrf.mxu0
        %v1055 = vpop.f32.mrf.mxu0
        %v1056 = vadd.f32 0.0, %v1055
        %v1057 = vpop.f32.mrf.mxu0
        %1058 = vmatprep.mubr.bf16.mxu0 0
        %1059 = vmatmul.mubr.bf16.gmra.mxu0 %v769
        %v1060 = vpop.f32.mrf.mxu0
        %v1061 = vadd.f32 0.0, %v1060
        %v1062 = vpop.f32.mrf.mxu0
        %v1063 = vpop.f32.mrf.mxu0
        %v1064 = vadd.f32 0.0, %v1063
        %v1065 = vpop.f32.mrf.mxu0
        %1066 = vmatprep.mubr.bf16.mxu0 0
        %1067 = vmatmul.mubr.bf16.gmra.mxu0 %v777
        %v1068 = vpop.f32.mrf.mxu0
        %v1069 = vadd.f32 0.0, %v1068
        %v1070 = vpop.f32.mrf.mxu0
        %v1071 = vpop.f32.mrf.mxu0
        %v1072 = vadd.f32 0.0, %v1071
        %v1073 = vpop.f32.mrf.mxu0
        %1074 = vmatprep.mubr.bf16.mxu0 0
        %1075 = vmatmul.mubr.bf16.gmra.mxu0 %v785
        %v1076 = vpop.f32.mrf.mxu0
        %v1077 = vadd.f32 0.0, %v1076
        %v1078 = vpop.f32.mrf.mxu0
        %v1079 = vpop.f32.mrf.mxu0
        %v1080 = vadd.f32 0.0, %v1079
        %v1081 = vpop.f32.mrf.mxu0
        %1082 = vmatprep.mubr.bf16.mxu0 0
        %1083 = vmatmul.mubr.bf16.gmra.mxu0 %v793
        %v1084 = vpop.f32.mrf.mxu0
        %v1085 = vadd.f32 0.0, %v1084
        %v1086 = vpop.f32.mrf.mxu0
        %v1087 = vpop.f32.mrf.mxu0
        %v1088 = vadd.f32 0.0, %v1087
        %v1089 = vpop.f32.mrf.mxu0
        %1090 = vmatprep.mubr.bf16.mxu0 0
        %1091 = vmatmul.mubr.bf16.gmra.mxu0 %v801
        %v1092 = vpop.f32.mrf.mxu0
        %v1093 = vadd.f32 0.0, %v1092
        %v1094 = vpop.f32.mrf.mxu0
        %v1095 = vpop.f32.mrf.mxu0
        %v1096 = vadd.f32 0.0, %v1095
        %v1097 = vpop.f32.mrf.mxu0
        %1098 = vmatprep.mubr.bf16.mxu0 0
        %1099 = vmatmul.mubr.bf16.gmra.mxu0 %v809
        %v1100 = vpop.f32.mrf.mxu0
        %v1101 = vadd.f32 0.0, %v1100
        %v1102 = vpop.f32.mrf.mxu0
        %v1103 = vpop.f32.mrf.mxu0
        %v1104 = vadd.f32 0.0, %v1103
        %v1105 = vpop.f32.mrf.mxu0
        %1106 = vmatprep.mubr.bf16.mxu0 0
        %1107 = vmatmul.mubr.bf16.gmra.mxu0 %v817
        %v1108 = vpop.f32.mrf.mxu0
        %v1109 = vadd.f32 0.0, %v1108
        %v1110 = vpop.f32.mrf.mxu0
        %v1111 = vpop.f32.mrf.mxu0
        %v1112 = vadd.f32 0.0, %v1111
        %v1113 = vpop.f32.mrf.mxu0
        %1114 = vmatprep.mubr.bf16.mxu0 0
        %1115 = vmatmul.mubr.bf16.gmra.mxu0 %v825
        %v1116 = vpop.f32.mrf.mxu0
        %v1117 = vadd.f32 0.0, %v1116
        %v1118 = vpop.f32.mrf.mxu0
        %v1119 = vpop.f32.mrf.mxu0
        %v1120 = vadd.f32 0.0, %v1119
        %v1121 = vpop.f32.mrf.mxu0
        %1122 = vmatprep.mubr.bf16.mxu0 0
        %1123 = vmatmul.mubr.bf16.gmra.mxu0 %v833
        %v1124 = vpop.f32.mrf.mxu0
        %v1125 = vadd.f32 0.0, %v1124
        %v1126 = vpop.f32.mrf.mxu0
        %v1127 = vpop.f32.mrf.mxu0
        %v1128 = vadd.f32 0.0, %v1127
        %v1129 = vpop.f32.mrf.mxu0
        %1130 = vmatprep.mubr.bf16.mxu0 0
        %1131 = vmatmul.mubr.bf16.gmra.mxu0 %v841
        %v1132 = vpop.f32.mrf.mxu0
        %v1133 = vadd.f32 0.0, %v1132
        %v1134 = vpop.f32.mrf.mxu0
        %v1135 = vpop.f32.mrf.mxu0
        %v1136 = vadd.f32 0.0, %v1135
        %v1137 = vpop.f32.mrf.mxu0
        %1138 = vmatprep.mubr.bf16.mxu0 0
        %1139 = vmatmul.mubr.bf16.gmra.mxu0 %v849
        %v1140 = vpop.f32.mrf.mxu0
        %v1141 = vadd.f32 0.0, %v1140
        %v1142 = vpop.f32.mrf.mxu0
        %v1143 = vpop.f32.mrf.mxu0
        %v1144 = vadd.f32 0.0, %v1143
        %v1145 = vpop.f32.mrf.mxu0
        %1146 = vmatprep.mubr.bf16.mxu0 0
        %1147 = vmatmul.mubr.bf16.gmra.mxu0 %v857
        %v1148 = vpop.f32.mrf.mxu0
        %v1149 = vadd.f32 0.0, %v1148
        %v1150 = vpop.f32.mrf.mxu0
        %v1151 = vpop.f32.mrf.mxu0
        %v1152 = vadd.f32 0.0, %v1151
        %v1153 = vpop.f32.mrf.mxu0
        %1154 = vdwg.mxu0
        %v1195 = vunpack.c.l.b16 %v504
        %v1196 = vunpack.c.l.b16 %v505
        %v1197 = vunpack.c.l.b16 %v506
        %v1198 = vunpack.c.l.b16 %v507
        %v1199 = vunpack.c.l.b16 %v508
        %v1200 = vunpack.c.l.b16 %v509
        %v1201 = vunpack.c.l.b16 %v510
        %v1202 = vunpack.c.l.b16 %v511
        %v1203 = vunpack.c.l.b16 %v512
        %v1204 = vunpack.c.l.b16 %v513
        %v1205 = vunpack.c.l.b16 %v514
        %v1206 = vunpack.c.l.b16 %v515
        %v1207 = vunpack.c.l.b16 %v516
        %v1208 = vunpack.c.l.b16 %v517
        %v1209 = vunpack.c.l.b16 %v518
        %v1210 = vunpack.c.l.b16 %v519
        %v1211 = vpack.c.b16 %v1196, %v1195
        %v1212 = vpack.c.b16 %v1198, %v1197
        %v1213 = vpack.c.b16 %v1200, %v1199
        %v1214 = vpack.c.b16 %v1202, %v1201
        %v1215 = vpack.c.b16 %v1204, %v1203
        %v1216 = vpack.c.b16 %v1206, %v1205
        %v1217 = vpack.c.b16 %v1208, %v1207
        %v1218 = vpack.c.b16 %v1210, %v1209
        %1227 = vmatprep.subr.bf16.mxu0 0
        %1228 = vmatpush1.bf16.msra.mxu0 %v1218
        %1229 = vmatprep.subr.bf16.mxu0 0
        %1230 = vmatpush1.bf16.msra.mxu0 %v1217
        %1231 = vmatprep.subr.bf16.mxu0 0
        %1232 = vmatpush1.bf16.msra.mxu0 %v1216
        %1233 = vmatprep.subr.bf16.mxu0 0
        %1234 = vmatpush1.bf16.msra.mxu0 %v1215
        %1235 = vmatprep.subr.bf16.mxu0 0
        %1236 = vmatpush1.bf16.msra.mxu0 %v1214
        %1237 = vmatprep.subr.bf16.mxu0 0
        %1238 = vmatpush1.bf16.msra.mxu0 %v1213
        %1239 = vmatprep.subr.bf16.mxu0 0
        %1240 = vmatpush1.bf16.msra.mxu0 %v1212
        %1241 = vmatprep.subr.bf16.mxu0 0
        %1242 = vmatpush1.bf16.msra.mxu0 %v1211
        %1243 = vmatprep.subr.bf16.mxu0 0
        %1244 = vmatpush2.bf16.msra.mxu0 0
        %1245 = vmatprep.subr.bf16.mxu0 0
        %1246 = vmatpush2.bf16.msra.mxu0 0
        %1247 = vmatprep.subr.bf16.mxu0 0
        %1248 = vmatpush2.bf16.msra.mxu0 0
        %1249 = vmatprep.subr.bf16.mxu0 0
        %1250 = vmatpush2.bf16.msra.mxu0 0
        %1251 = vmatprep.subr.bf16.mxu0 0
        %1252 = vmatpush2.bf16.msra.mxu0 0
        %1253 = vmatprep.subr.bf16.mxu0 0
        %1254 = vmatpush2.bf16.msra.mxu0 0
        %1255 = vmatprep.subr.bf16.mxu0 0
        %1256 = vmatpush2.bf16.msra.mxu0 0
        %1257 = vmatprep.subr.bf16.mxu0 0
        %1258 = vmatpush2.bf16.msra.mxu0 0
        %1259 = vmatprep.mubr.bf16.mxu0 0
        %1260 = vmatmul.mubr.bf16.gmra.mxu0 %v636
        %v1261 = vpop.f32.mrf.mxu0
        %v1262 = vadd.f32 %v965, %v1261
        %v1263 = vpop.f32.mrf.mxu0
        %v1264 = vpop.f32.mrf.mxu0
        %v1265 = vadd.f32 %v968, %v1264
        %v1266 = vpop.f32.mrf.mxu0
        %1267 = vmatprep.mubr.bf16.mxu0 0
        %1268 = vmatmul.mubr.bf16.gmra.mxu0 %v637
        %v1269 = vpop.f32.mrf.mxu0
        %v1270 = vadd.f32 %v973, %v1269
        %v1271 = vpop.f32.mrf.mxu0
        %v1272 = vpop.f32.mrf.mxu0
        %v1273 = vadd.f32 %v976, %v1272
        %v1274 = vpop.f32.mrf.mxu0
        %1275 = vmatprep.mubr.bf16.mxu0 0
        %1276 = vmatmul.mubr.bf16.gmra.mxu0 %v638
        %v1277 = vpop.f32.mrf.mxu0
        %v1278 = vadd.f32 %v981, %v1277
        %v1279 = vpop.f32.mrf.mxu0
        %v1280 = vpop.f32.mrf.mxu0
        %v1281 = vadd.f32 %v984, %v1280
        %v1282 = vpop.f32.mrf.mxu0
        %1283 = vmatprep.mubr.bf16.mxu0 0
        %1284 = vmatmul.mubr.bf16.gmra.mxu0 %v639
        %v1285 = vpop.f32.mrf.mxu0
        %v1286 = vadd.f32 %v989, %v1285
        %v1287 = vpop.f32.mrf.mxu0
        %v1288 = vpop.f32.mrf.mxu0
        %v1289 = vadd.f32 %v992, %v1288
        %v1290 = vpop.f32.mrf.mxu0
        %1291 = vmatprep.mubr.bf16.mxu0 0
        %1292 = vmatmul.mubr.bf16.gmra.mxu0 %v640
        %v1293 = vpop.f32.mrf.mxu0
        %v1294 = vadd.f32 %v997, %v1293
        %v1295 = vpop.f32.mrf.mxu0
        %v1296 = vpop.f32.mrf.mxu0
        %v1297 = vadd.f32 %v1000, %v1296
        %v1298 = vpop.f32.mrf.mxu0
        %1299 = vmatprep.mubr.bf16.mxu0 0
        %1300 = vmatmul.mubr.bf16.gmra.mxu0 %v641
        %v1301 = vpop.f32.mrf.mxu0
        %v1302 = vadd.f32 %v1005, %v1301
        %v1303 = vpop.f32.mrf.mxu0
        %v1304 = vpop.f32.mrf.mxu0
        %v1305 = vadd.f32 %v1008, %v1304
        %v1306 = vpop.f32.mrf.mxu0
        %1307 = vmatprep.mubr.bf16.mxu0 0
        %1308 = vmatmul.mubr.bf16.gmra.mxu0 %v642
        %v1309 = vpop.f32.mrf.mxu0
        %v1310 = vadd.f32 %v1013, %v1309
        %v1311 = vpop.f32.mrf.mxu0
        %v1312 = vpop.f32.mrf.mxu0
        %v1313 = vadd.f32 %v1016, %v1312
        %v1314 = vpop.f32.mrf.mxu0
        %1315 = vmatprep.mubr.bf16.mxu0 0
        %1316 = vmatmul.mubr.bf16.gmra.mxu0 %v643
        %v1317 = vpop.f32.mrf.mxu0
        %v1318 = vadd.f32 %v1021, %v1317
        %v1319 = vpop.f32.mrf.mxu0
        %v1320 = vpop.f32.mrf.mxu0
        %v1321 = vadd.f32 %v1024, %v1320
        %v1322 = vpop.f32.mrf.mxu0
        %1323 = vmatprep.mubr.bf16.mxu0 0
        %1324 = vmatmul.mubr.bf16.gmra.mxu0 %v644
        %v1325 = vpop.f32.mrf.mxu0
        %v1326 = vadd.f32 %v1029, %v1325
        %v1327 = vpop.f32.mrf.mxu0
        %v1328 = vpop.f32.mrf.mxu0
        %v1329 = vadd.f32 %v1032, %v1328
        %v1330 = vpop.f32.mrf.mxu0
        %1331 = vmatprep.mubr.bf16.mxu0 0
        %1332 = vmatmul.mubr.bf16.gmra.mxu0 %v645
        %v1333 = vpop.f32.mrf.mxu0
        %v1334 = vadd.f32 %v1037, %v1333
        %v1335 = vpop.f32.mrf.mxu0
        %v1336 = vpop.f32.mrf.mxu0
        %v1337 = vadd.f32 %v1040, %v1336
        %v1338 = vpop.f32.mrf.mxu0
        %1339 = vmatprep.mubr.bf16.mxu0 0
        %1340 = vmatmul.mubr.bf16.gmra.mxu0 %v646
        %v1341 = vpop.f32.mrf.mxu0
        %v1342 = vadd.f32 %v1045, %v1341
        %v1343 = vpop.f32.mrf.mxu0
        %v1344 = vpop.f32.mrf.mxu0
        %v1345 = vadd.f32 %v1048, %v1344
        %v1346 = vpop.f32.mrf.mxu0
        %1347 = vmatprep.mubr.bf16.mxu0 0
        %1348 = vmatmul.mubr.bf16.gmra.mxu0 %v647
        %v1349 = vpop.f32.mrf.mxu0
        %v1350 = vadd.f32 %v1053, %v1349
        %v1351 = vpop.f32.mrf.mxu0
        %v1352 = vpop.f32.mrf.mxu0
        %v1353 = vadd.f32 %v1056, %v1352
        %v1354 = vpop.f32.mrf.mxu0
        %1355 = vmatprep.mubr.bf16.mxu0 0
        %1356 = vmatmul.mubr.bf16.gmra.mxu0 %v648
        %v1357 = vpop.f32.mrf.mxu0
        %v1358 = vadd.f32 %v1061, %v1357
        %v1359 = vpop.f32.mrf.mxu0
        %v1360 = vpop.f32.mrf.mxu0
        %v1361 = vadd.f32 %v1064, %v1360
        %v1362 = vpop.f32.mrf.mxu0
        %1363 = vmatprep.mubr.bf16.mxu0 0
        %1364 = vmatmul.mubr.bf16.gmra.mxu0 %v649
        %v1365 = vpop.f32.mrf.mxu0
        %v1366 = vadd.f32 %v1069, %v1365
        %v1367 = vpop.f32.mrf.mxu0
        %v1368 = vpop.f32.mrf.mxu0
        %v1369 = vadd.f32 %v1072, %v1368
        %v1370 = vpop.f32.mrf.mxu0
        %1371 = vmatprep.mubr.bf16.mxu0 0
        %1372 = vmatmul.mubr.bf16.gmra.mxu0 %v650
        %v1373 = vpop.f32.mrf.mxu0
        %v1374 = vadd.f32 %v1077, %v1373
        %v1375 = vpop.f32.mrf.mxu0
        %v1376 = vpop.f32.mrf.mxu0
        %v1377 = vadd.f32 %v1080, %v1376
        %v1378 = vpop.f32.mrf.mxu0
        %1379 = vmatprep.mubr.bf16.mxu0 0
        %1380 = vmatmul.mubr.bf16.gmra.mxu0 %v651
        %v1381 = vpop.f32.mrf.mxu0
        %v1382 = vadd.f32 %v1085, %v1381
        %v1383 = vpop.f32.mrf.mxu0
        %v1384 = vpop.f32.mrf.mxu0
        %v1385 = vadd.f32 %v1088, %v1384
        %v1386 = vpop.f32.mrf.mxu0
        %1387 = vmatprep.mubr.bf16.mxu0 0
        %1388 = vmatmul.mubr.bf16.gmra.mxu0 %v652
        %v1389 = vpop.f32.mrf.mxu0
        %v1390 = vadd.f32 %v1093, %v1389
        %v1391 = vpop.f32.mrf.mxu0
        %v1392 = vpop.f32.mrf.mxu0
        %v1393 = vadd.f32 %v1096, %v1392
        %v1394 = vpop.f32.mrf.mxu0
        %1395 = vmatprep.mubr.bf16.mxu0 0
        %1396 = vmatmul.mubr.bf16.gmra.mxu0 %v653
        %v1397 = vpop.f32.mrf.mxu0
        %v1398 = vadd.f32 %v1101, %v1397
        %v1399 = vpop.f32.mrf.mxu0
        %v1400 = vpop.f32.mrf.mxu0
        %v1401 = vadd.f32 %v1104, %v1400
        %v1402 = vpop.f32.mrf.mxu0
        %1403 = vmatprep.mubr.bf16.mxu0 0
        %1404 = vmatmul.mubr.bf16.gmra.mxu0 %v654
        %v1405 = vpop.f32.mrf.mxu0
        %v1406 = vadd.f32 %v1109, %v1405
        %v1407 = vpop.f32.mrf.mxu0
        %v1408 = vpop.f32.mrf.mxu0
        %v1409 = vadd.f32 %v1112, %v1408
        %v1410 = vpop.f32.mrf.mxu0
        %1411 = vmatprep.mubr.bf16.mxu0 0
        %1412 = vmatmul.mubr.bf16.gmra.mxu0 %v655
        %v1413 = vpop.f32.mrf.mxu0
        %v1414 = vadd.f32 %v1117, %v1413
        %v1415 = vpop.f32.mrf.mxu0
        %v1416 = vpop.f32.mrf.mxu0
        %v1417 = vadd.f32 %v1120, %v1416
        %v1418 = vpop.f32.mrf.mxu0
        %1419 = vmatprep.mubr.bf16.mxu0 0
        %1420 = vmatmul.mubr.bf16.gmra.mxu0 %v656
        %v1421 = vpop.f32.mrf.mxu0
        %v1422 = vadd.f32 %v1125, %v1421
        %v1423 = vpop.f32.mrf.mxu0
        %v1424 = vpop.f32.mrf.mxu0
        %v1425 = vadd.f32 %v1128, %v1424
        %v1426 = vpop.f32.mrf.mxu0
        %1427 = vmatprep.mubr.bf16.mxu0 0
        %1428 = vmatmul.mubr.bf16.gmra.mxu0 %v657
        %v1429 = vpop.f32.mrf.mxu0
        %v1430 = vadd.f32 %v1133, %v1429
        %v1431 = vpop.f32.mrf.mxu0
        %v1432 = vpop.f32.mrf.mxu0
        %v1433 = vadd.f32 %v1136, %v1432
        %v1434 = vpop.f32.mrf.mxu0
        %1435 = vmatprep.mubr.bf16.mxu0 0
        %1436 = vmatmul.mubr.bf16.gmra.mxu0 %v658
        %v1437 = vpop.f32.mrf.mxu0
        %v1438 = vadd.f32 %v1141, %v1437
        %v1439 = vpop.f32.mrf.mxu0
        %v1440 = vpop.f32.mrf.mxu0
        %v1441 = vadd.f32 %v1144, %v1440
        %v1442 = vpop.f32.mrf.mxu0
        %1443 = vmatprep.mubr.bf16.mxu0 0
        %1444 = vmatmul.mubr.bf16.gmra.mxu0 %v659
        %v1445 = vpop.f32.mrf.mxu0
        %v1446 = vadd.f32 %v1149, %v1445
        %v1447 = vpop.f32.mrf.mxu0
        %v1448 = vpop.f32.mrf.mxu0
        %v1449 = vadd.f32 %v1152, %v1448
        %v1450 = vpop.f32.mrf.mxu0
        %1451 = vdwg.mxu0
        %v1452 = vld [vmem:[%s362] sm:$0xe]
        %s1453 = scalar_lea.vmem [#allocation6], 128
        %v1454 = vld [vmem:[%s1453] sm:$0xf]
        %v1455 = vld [vmem:[%s1453 + $0x4] sm:$0xf]
        %v1456 = vld [vmem:[%s1453 + $0x8] sm:$0xf]
        %v1457 = vld [vmem:[%s1453 + $0xc] sm:$0xf]
        %v1458 = vld [vmem:[%s1453 + $0x10] sm:$0xf]
        %v1459 = vld [vmem:[%s1453 + $0x14] sm:$0xf]
        %v1460 = vld [vmem:[%s1453 + $0x18] sm:$0xf]
        %v1461 = vld [vmem:[%s1453 + $0x1c] sm:$0xf]
        %v1462 = vld [vmem:[%s1453 + $0x20] sm:$0xf]
        %v1463 = vld [vmem:[%s1453 + $0x24] sm:$0xf]
        %v1464 = vld [vmem:[%s1453 + $0x28] sm:$0xf]
        %v1465 = vld [vmem:[%s1453 + $0x2c] sm:$0xf]
        %v1466 = vld [vmem:[%s1453 + $0x30] sm:$0xf]
        %v1467 = vld [vmem:[%s1453 + $0x34] sm:$0xf]
        %v1468 = vld [vmem:[%s1453 + $0x38] sm:$0xf]
        %v1469 = vld [vmem:[%s1453 + $0x3c] sm:$0xf]
        %v1471 = vunpack.c.l.b16 %v1452
        %v1472 = vpack.c.b16 %v588, %v1471
        %vm1473 = vcmask 1046528
        %v1474 = vrot.slane %v1472, 1
        %v1475 = vrot.slane %v637, 1
        %v1476 = vsel %vm1473, %v1474, %v1475
        %v1477 = vrot.slane %v638, 1
        %v1478 = vsel %vm1473, %v1475, %v1477
        %v1479 = vrot.slane %v639, 1
        %v1480 = vsel %vm1473, %v1477, %v1479
        %v1481 = vrot.slane %v640, 1
        %v1482 = vsel %vm1473, %v1479, %v1481
        %v1483 = vrot.slane %v641, 1
        %v1484 = vsel %vm1473, %v1481, %v1483
        %v1485 = vrot.slane %v642, 1
        %v1486 = vsel %vm1473, %v1483, %v1485
        %v1487 = vrot.slane %v643, 1
        %v1488 = vsel %vm1473, %v1485, %v1487
        %v1489 = vrot.slane %v644, 1
        %v1490 = vsel %vm1473, %v1487, %v1489
        %v1491 = vrot.slane %v645, 1
        %v1492 = vsel %vm1473, %v1489, %v1491
        %v1493 = vrot.slane %v646, 1
        %v1494 = vsel %vm1473, %v1491, %v1493
        %v1495 = vrot.slane %v647, 1
        %v1496 = vsel %vm1473, %v1493, %v1495
        %v1497 = vrot.slane %v648, 1
        %v1498 = vsel %vm1473, %v1495, %v1497
        %v1499 = vrot.slane %v649, 1
        %v1500 = vsel %vm1473, %v1497, %v1499
        %v1501 = vrot.slane %v650, 1
        %v1502 = vsel %vm1473, %v1499, %v1501
        %v1503 = vrot.slane %v651, 1
        %v1504 = vsel %vm1473, %v1501, %v1503
        %v1505 = vrot.slane %v652, 1
        %v1506 = vsel %vm1473, %v1503, %v1505
        %v1507 = vrot.slane %v653, 1
        %v1508 = vsel %vm1473, %v1505, %v1507
        %v1509 = vrot.slane %v654, 1
        %v1510 = vsel %vm1473, %v1507, %v1509
        %v1511 = vrot.slane %v655, 1
        %v1512 = vsel %vm1473, %v1509, %v1511
        %v1513 = vrot.slane %v656, 1
        %v1514 = vsel %vm1473, %v1511, %v1513
        %v1515 = vrot.slane %v657, 1
        %v1516 = vsel %vm1473, %v1513, %v1515
        %v1517 = vrot.slane %v658, 1
        %v1518 = vsel %vm1473, %v1515, %v1517
        %v1519 = vrot.slane %v659, 1
        %v1520 = vsel %vm1473, %v1517, %v1519
        %v1521 = vrot.slane %v660, 1
        %v1522 = vsel %vm1473, %v1519, %v1521
        %v1563 = vunpack.c.l.b16 %v1454
        %v1564 = vunpack.c.l.b16 %v1455
        %v1565 = vunpack.c.l.b16 %v1456
        %v1566 = vunpack.c.l.b16 %v1457
        %v1567 = vunpack.c.l.b16 %v1458
        %v1568 = vunpack.c.l.b16 %v1459
        %v1569 = vunpack.c.l.b16 %v1460
        %v1570 = vunpack.c.l.b16 %v1461
        %v1571 = vunpack.c.l.b16 %v1462
        %v1572 = vunpack.c.l.b16 %v1463
        %v1573 = vunpack.c.l.b16 %v1464
        %v1574 = vunpack.c.l.b16 %v1465
        %v1575 = vunpack.c.l.b16 %v1466
        %v1576 = vunpack.c.l.b16 %v1467
        %v1577 = vunpack.c.l.b16 %v1468
        %v1578 = vunpack.c.l.b16 %v1469
        %v1579 = vpack.c.b16 %v1564, %v1563
        %v1580 = vpack.c.b16 %v1566, %v1565
        %v1581 = vpack.c.b16 %v1568, %v1567
        %v1582 = vpack.c.b16 %v1570, %v1569
        %v1583 = vpack.c.b16 %v1572, %v1571
        %v1584 = vpack.c.b16 %v1574, %v1573
        %v1585 = vpack.c.b16 %v1576, %v1575
        %v1586 = vpack.c.b16 %v1578, %v1577
        %1595 = vmatprep.subr.bf16.mxu0 0
        %1596 = vmatpush1.bf16.msra.mxu0 %v1586
        %1597 = vmatprep.subr.bf16.mxu0 0
        %1598 = vmatpush1.bf16.msra.mxu0 %v1585
        %1599 = vmatprep.subr.bf16.mxu0 0
        %1600 = vmatpush1.bf16.msra.mxu0 %v1584
        %1601 = vmatprep.subr.bf16.mxu0 0
        %1602 = vmatpush1.bf16.msra.mxu0 %v1583
        %1603 = vmatprep.subr.bf16.mxu0 0
        %1604 = vmatpush1.bf16.msra.mxu0 %v1582
        %1605 = vmatprep.subr.bf16.mxu0 0
        %1606 = vmatpush1.bf16.msra.mxu0 %v1581
        %1607 = vmatprep.subr.bf16.mxu0 0
        %1608 = vmatpush1.bf16.msra.mxu0 %v1580
        %1609 = vmatprep.subr.bf16.mxu0 0
        %1610 = vmatpush1.bf16.msra.mxu0 %v1579
        %1611 = vmatprep.subr.bf16.mxu0 0
        %1612 = vmatpush2.bf16.msra.mxu0 0
        %1613 = vmatprep.subr.bf16.mxu0 0
        %1614 = vmatpush2.bf16.msra.mxu0 0
        %1615 = vmatprep.subr.bf16.mxu0 0
        %1616 = vmatpush2.bf16.msra.mxu0 0
        %1617 = vmatprep.subr.bf16.mxu0 0
        %1618 = vmatpush2.bf16.msra.mxu0 0
        %1619 = vmatprep.subr.bf16.mxu0 0
        %1620 = vmatpush2.bf16.msra.mxu0 0
        %1621 = vmatprep.subr.bf16.mxu0 0
        %1622 = vmatpush2.bf16.msra.mxu0 0
        %1623 = vmatprep.subr.bf16.mxu0 0
        %1624 = vmatpush2.bf16.msra.mxu0 0
        %1625 = vmatprep.subr.bf16.mxu0 0
        %1626 = vmatpush2.bf16.msra.mxu0 0
        %1627 = vmatprep.mubr.bf16.mxu0 0
        %1628 = vmatmul.mubr.bf16.gmra.mxu0 %v1476
        %v1629 = vpop.f32.mrf.mxu0
        %v1630 = vadd.f32 0.0, %v1629
        %v1631 = vpop.f32.mrf.mxu0
        %v1632 = vpop.f32.mrf.mxu0
        %v1633 = vadd.f32 0.0, %v1632
        %v1634 = vpop.f32.mrf.mxu0
        %1635 = vmatprep.mubr.bf16.mxu0 0
        %1636 = vmatmul.mubr.bf16.gmra.mxu0 %v1478
        %v1637 = vpop.f32.mrf.mxu0
        %v1638 = vadd.f32 0.0, %v1637
        %v1639 = vpop.f32.mrf.mxu0
        %v1640 = vpop.f32.mrf.mxu0
        %v1641 = vadd.f32 0.0, %v1640
        %v1642 = vpop.f32.mrf.mxu0
        %1643 = vmatprep.mubr.bf16.mxu0 0
        %1644 = vmatmul.mubr.bf16.gmra.mxu0 %v1480
        %v1645 = vpop.f32.mrf.mxu0
        %v1646 = vadd.f32 0.0, %v1645
        %v1647 = vpop.f32.mrf.mxu0
        %v1648 = vpop.f32.mrf.mxu0
        %v1649 = vadd.f32 0.0, %v1648
        %v1650 = vpop.f32.mrf.mxu0
        %1651 = vmatprep.mubr.bf16.mxu0 0
        %1652 = vmatmul.mubr.bf16.gmra.mxu0 %v1482
        %v1653 = vpop.f32.mrf.mxu0
        %v1654 = vadd.f32 0.0, %v1653
        %v1655 = vpop.f32.mrf.mxu0
        %v1656 = vpop.f32.mrf.mxu0
        %v1657 = vadd.f32 0.0, %v1656
        %v1658 = vpop.f32.mrf.mxu0
        %1659 = vmatprep.mubr.bf16.mxu0 0
        %1660 = vmatmul.mubr.bf16.gmra.mxu0 %v1484
        %v1661 = vpop.f32.mrf.mxu0
        %v1662 = vadd.f32 0.0, %v1661
        %v1663 = vpop.f32.mrf.mxu0
        %v1664 = vpop.f32.mrf.mxu0
        %v1665 = vadd.f32 0.0, %v1664
        %v1666 = vpop.f32.mrf.mxu0
        %1667 = vmatprep.mubr.bf16.mxu0 0
        %1668 = vmatmul.mubr.bf16.gmra.mxu0 %v1486
        %v1669 = vpop.f32.mrf.mxu0
        %v1670 = vadd.f32 0.0, %v1669
        %v1671 = vpop.f32.mrf.mxu0
        %v1672 = vpop.f32.mrf.mxu0
        %v1673 = vadd.f32 0.0, %v1672
        %v1674 = vpop.f32.mrf.mxu0
        %1675 = vmatprep.mubr.bf16.mxu0 0
        %1676 = vmatmul.mubr.bf16.gmra.mxu0 %v1488
        %v1677 = vpop.f32.mrf.mxu0
        %v1678 = vadd.f32 0.0, %v1677
        %v1679 = vpop.f32.mrf.mxu0
        %v1680 = vpop.f32.mrf.mxu0
        %v1681 = vadd.f32 0.0, %v1680
        %v1682 = vpop.f32.mrf.mxu0
        %1683 = vmatprep.mubr.bf16.mxu0 0
        %1684 = vmatmul.mubr.bf16.gmra.mxu0 %v1490
        %v1685 = vpop.f32.mrf.mxu0
        %v1686 = vadd.f32 0.0, %v1685
        %v1687 = vpop.f32.mrf.mxu0
        %v1688 = vpop.f32.mrf.mxu0
        %v1689 = vadd.f32 0.0, %v1688
        %v1690 = vpop.f32.mrf.mxu0
        %1691 = vmatprep.mubr.bf16.mxu0 0
        %1692 = vmatmul.mubr.bf16.gmra.mxu0 %v1492
        %v1693 = vpop.f32.mrf.mxu0
        %v1694 = vadd.f32 0.0, %v1693
        %v1695 = vpop.f32.mrf.mxu0
        %v1696 = vpop.f32.mrf.mxu0
        %v1697 = vadd.f32 0.0, %v1696
        %v1698 = vpop.f32.mrf.mxu0
        %1699 = vmatprep.mubr.bf16.mxu0 0
        %1700 = vmatmul.mubr.bf16.gmra.mxu0 %v1494
        %v1701 = vpop.f32.mrf.mxu0
        %v1702 = vadd.f32 0.0, %v1701
        %v1703 = vpop.f32.mrf.mxu0
        %v1704 = vpop.f32.mrf.mxu0
        %v1705 = vadd.f32 0.0, %v1704
        %v1706 = vpop.f32.mrf.mxu0
        %1707 = vmatprep.mubr.bf16.mxu0 0
        %1708 = vmatmul.mubr.bf16.gmra.mxu0 %v1496
        %v1709 = vpop.f32.mrf.mxu0
        %v1710 = vadd.f32 0.0, %v1709
        %v1711 = vpop.f32.mrf.mxu0
        %v1712 = vpop.f32.mrf.mxu0
        %v1713 = vadd.f32 0.0, %v1712
        %v1714 = vpop.f32.mrf.mxu0
        %1715 = vmatprep.mubr.bf16.mxu0 0
        %1716 = vmatmul.mubr.bf16.gmra.mxu0 %v1498
        %v1717 = vpop.f32.mrf.mxu0
        %v1718 = vadd.f32 0.0, %v1717
        %v1719 = vpop.f32.mrf.mxu0
        %v1720 = vpop.f32.mrf.mxu0
        %v1721 = vadd.f32 0.0, %v1720
        %v1722 = vpop.f32.mrf.mxu0
        %1723 = vmatprep.mubr.bf16.mxu0 0
        %1724 = vmatmul.mubr.bf16.gmra.mxu0 %v1500
        %v1725 = vpop.f32.mrf.mxu0
        %v1726 = vadd.f32 0.0, %v1725
        %v1727 = vpop.f32.mrf.mxu0
        %v1728 = vpop.f32.mrf.mxu0
        %v1729 = vadd.f32 0.0, %v1728
        %v1730 = vpop.f32.mrf.mxu0
        %1731 = vmatprep.mubr.bf16.mxu0 0
        %1732 = vmatmul.mubr.bf16.gmra.mxu0 %v1502
        %v1733 = vpop.f32.mrf.mxu0
        %v1734 = vadd.f32 0.0, %v1733
        %v1735 = vpop.f32.mrf.mxu0
        %v1736 = vpop.f32.mrf.mxu0
        %v1737 = vadd.f32 0.0, %v1736
        %v1738 = vpop.f32.mrf.mxu0
        %1739 = vmatprep.mubr.bf16.mxu0 0
        %1740 = vmatmul.mubr.bf16.gmra.mxu0 %v1504
        %v1741 = vpop.f32.mrf.mxu0
        %v1742 = vadd.f32 0.0, %v1741
        %v1743 = vpop.f32.mrf.mxu0
        %v1744 = vpop.f32.mrf.mxu0
        %v1745 = vadd.f32 0.0, %v1744
        %v1746 = vpop.f32.mrf.mxu0
        %1747 = vmatprep.mubr.bf16.mxu0 0
        %1748 = vmatmul.mubr.bf16.gmra.mxu0 %v1506
        %v1749 = vpop.f32.mrf.mxu0
        %v1750 = vadd.f32 0.0, %v1749
        %v1751 = vpop.f32.mrf.mxu0
        %v1752 = vpop.f32.mrf.mxu0
        %v1753 = vadd.f32 0.0, %v1752
        %v1754 = vpop.f32.mrf.mxu0
        %1755 = vmatprep.mubr.bf16.mxu0 0
        %1756 = vmatmul.mubr.bf16.gmra.mxu0 %v1508
        %v1757 = vpop.f32.mrf.mxu0
        %v1758 = vadd.f32 0.0, %v1757
        %v1759 = vpop.f32.mrf.mxu0
        %v1760 = vpop.f32.mrf.mxu0
        %v1761 = vadd.f32 0.0, %v1760
        %v1762 = vpop.f32.mrf.mxu0
        %1763 = vmatprep.mubr.bf16.mxu0 0
        %1764 = vmatmul.mubr.bf16.gmra.mxu0 %v1510
        %v1765 = vpop.f32.mrf.mxu0
        %v1766 = vadd.f32 0.0, %v1765
        %v1767 = vpop.f32.mrf.mxu0
        %v1768 = vpop.f32.mrf.mxu0
        %v1769 = vadd.f32 0.0, %v1768
        %v1770 = vpop.f32.mrf.mxu0
        %1771 = vmatprep.mubr.bf16.mxu0 0
        %1772 = vmatmul.mubr.bf16.gmra.mxu0 %v1512
        %v1773 = vpop.f32.mrf.mxu0
        %v1774 = vadd.f32 0.0, %v1773
        %v1775 = vpop.f32.mrf.mxu0
        %v1776 = vpop.f32.mrf.mxu0
        %v1777 = vadd.f32 0.0, %v1776
        %v1778 = vpop.f32.mrf.mxu0
        %1779 = vmatprep.mubr.bf16.mxu0 0
        %1780 = vmatmul.mubr.bf16.gmra.mxu0 %v1514
        %v1781 = vpop.f32.mrf.mxu0
        %v1782 = vadd.f32 0.0, %v1781
        %v1783 = vpop.f32.mrf.mxu0
        %v1784 = vpop.f32.mrf.mxu0
        %v1785 = vadd.f32 0.0, %v1784
        %v1786 = vpop.f32.mrf.mxu0
        %1787 = vmatprep.mubr.bf16.mxu0 0
        %1788 = vmatmul.mubr.bf16.gmra.mxu0 %v1516
        %v1789 = vpop.f32.mrf.mxu0
        %v1790 = vadd.f32 0.0, %v1789
        %v1791 = vpop.f32.mrf.mxu0
        %v1792 = vpop.f32.mrf.mxu0
        %v1793 = vadd.f32 0.0, %v1792
        %v1794 = vpop.f32.mrf.mxu0
        %1795 = vmatprep.mubr.bf16.mxu0 0
        %1796 = vmatmul.mubr.bf16.gmra.mxu0 %v1518
        %v1797 = vpop.f32.mrf.mxu0
        %v1798 = vadd.f32 0.0, %v1797
        %v1799 = vpop.f32.mrf.mxu0
        %v1800 = vpop.f32.mrf.mxu0
        %v1801 = vadd.f32 0.0, %v1800
        %v1802 = vpop.f32.mrf.mxu0
        %1803 = vmatprep.mubr.bf16.mxu0 0
        %1804 = vmatmul.mubr.bf16.gmra.mxu0 %v1520
        %v1805 = vpop.f32.mrf.mxu0
        %v1806 = vadd.f32 0.0, %v1805
        %v1807 = vpop.f32.mrf.mxu0
        %v1808 = vpop.f32.mrf.mxu0
        %v1809 = vadd.f32 0.0, %v1808
        %v1810 = vpop.f32.mrf.mxu0
        %1811 = vmatprep.mubr.bf16.mxu0 0
        %1812 = vmatmul.mubr.bf16.gmra.mxu0 %v1522
        %v1813 = vpop.f32.mrf.mxu0
        %v1814 = vadd.f32 0.0, %v1813
        %v1815 = vpop.f32.mrf.mxu0
        %v1816 = vpop.f32.mrf.mxu0
        %v1817 = vadd.f32 0.0, %v1816
        %v1818 = vpop.f32.mrf.mxu0
        %1819 = vdwg.mxu0
        %v1820 = vadd.f32 %v1262, %v1630
        %v1821 = vadd.f32 %v1265, %v1633
        %v1822 = vadd.f32 %v1270, %v1638
        %v1823 = vadd.f32 %v1273, %v1641
        %v1824 = vadd.f32 %v1278, %v1646
        %v1825 = vadd.f32 %v1281, %v1649
        %v1826 = vadd.f32 %v1286, %v1654
        %v1827 = vadd.f32 %v1289, %v1657
        %v1828 = vadd.f32 %v1294, %v1662
        %v1829 = vadd.f32 %v1297, %v1665
        %v1830 = vadd.f32 %v1302, %v1670
        %v1831 = vadd.f32 %v1305, %v1673
        %v1832 = vadd.f32 %v1310, %v1678
        %v1833 = vadd.f32 %v1313, %v1681
        %v1834 = vadd.f32 %v1318, %v1686
        %v1835 = vadd.f32 %v1321, %v1689
        %v1836 = vadd.f32 %v1326, %v1694
        %v1837 = vadd.f32 %v1329, %v1697
        %v1838 = vadd.f32 %v1334, %v1702
        %v1839 = vadd.f32 %v1337, %v1705
        %v1840 = vadd.f32 %v1342, %v1710
        %v1841 = vadd.f32 %v1345, %v1713
        %v1842 = vadd.f32 %v1350, %v1718
        %v1843 = vadd.f32 %v1353, %v1721
        %v1844 = vadd.f32 %v1358, %v1726
        %v1845 = vadd.f32 %v1361, %v1729
        %v1846 = vadd.f32 %v1366, %v1734
        %v1847 = vadd.f32 %v1369, %v1737
        %v1848 = vadd.f32 %v1374, %v1742
        %v1849 = vadd.f32 %v1377, %v1745
        %v1850 = vadd.f32 %v1382, %v1750
        %v1851 = vadd.f32 %v1385, %v1753
        %v1852 = vadd.f32 %v1390, %v1758
        %v1853 = vadd.f32 %v1393, %v1761
        %v1854 = vadd.f32 %v1398, %v1766
        %v1855 = vadd.f32 %v1401, %v1769
        %v1856 = vadd.f32 %v1406, %v1774
        %v1857 = vadd.f32 %v1409, %v1777
        %v1858 = vadd.f32 %v1414, %v1782
        %v1859 = vadd.f32 %v1417, %v1785
        %v1860 = vadd.f32 %v1422, %v1790
        %v1861 = vadd.f32 %v1425, %v1793
        %v1862 = vadd.f32 %v1430, %v1798
        %v1863 = vadd.f32 %v1433, %v1801
        %v1864 = vadd.f32 %v1438, %v1806
        %v1865 = vadd.f32 %v1441, %v1809
        %v1866 = vadd.f32 %v1446, %v1814
        %v1867 = vadd.f32 %v1449, %v1817
        %v1868 = vld [vmem:[%s362 + $0xc] sm:$0xf]
        %v1869 = vld [vmem:[%s362 + $0x10] sm:$0xf]
        %v1870 = vld [vmem:[%s362 + $0x14] sm:$0xf]
        %v1871 = vld [vmem:[%s362 + $0x18] sm:$0xf]
        %v1872 = vld [vmem:[%s362 + $0x1c] sm:$0xf]
        %v1873 = vld [vmem:[%s362 + $0x20] sm:$0xf]
        %v1874 = vld [vmem:[%s362 + $0x24] sm:$0xf]
        %v1875 = vld [vmem:[%s362 + $0x28] sm:$0xf]
        %v1876 = vld [vmem:[%s362 + $0x2c] sm:$0xf]
        %v1877 = vld [vmem:[%s362 + $0x30] sm:$0xf]
        %v1878 = vld [vmem:[%s362 + $0x34] sm:$0xf]
        %v1879 = vld [vmem:[%s362 + $0x38] sm:$0xf]
        %v1880 = vld [vmem:[%s362 + $0x3c] sm:$0xf]
        %v1881 = vld [vmem:[%s362 + $0x40] sm:$0xf]
        %v1882 = vld [vmem:[%s362 + $0x44] sm:$0xf]
        %v1883 = vld [vmem:[%s362 + $0x48] sm:$0xf]
        %v1884 = vld [vmem:[%s362 + $0x4c] sm:$0xf]
        %v1885 = vld [vmem:[%s362 + $0x50] sm:$0xf]
        %v1886 = vld [vmem:[%s362 + $0x54] sm:$0xf]
        %v1887 = vld [vmem:[%s362 + $0x58] sm:$0xf]
        %v1888 = vld [vmem:[%s362 + $0x5c] sm:$0xf]
        %v1889 = vld [vmem:[%s362 + $0x60] sm:$0xf]
        %v1890 = vld [vmem:[%s362 + $0x64] sm:$0xf]
        %v1891 = vld [vmem:[%s362 + $0x68] sm:$0xf]
        %v1892 = vld [vmem:[%s362 + $0x6c] sm:$0xf]
        %v1893 = vld [vmem:[%s362 + $0x70] sm:$0xf]
        %v1894 = vld [vmem:[%s362 + $0x74] sm:$0xf]
        %v1895 = vld [vmem:[%s362 + $0x78] sm:$0xf]
        %v1896 = vld [vmem:[%s362 + $0x7c] sm:$0xf]
        %v1897 = vld [vmem:[%s362 + $0x80] sm:$0xf]
        %v1898 = vld [vmem:[%s362 + $0x84] sm:$0xf]
        %v1899 = vld [vmem:[%s362 + $0x88] sm:$0xf]
        %v1900 = vld [vmem:[%s362 + $0x8c] sm:$0xf]
        %v1901 = vld [vmem:[%s362 + $0x90] sm:$0xf]
        %v1902 = vld [vmem:[%s362 + $0x94] sm:$0xf]
        %v1903 = vld [vmem:[%s362 + $0x98] sm:$0xf]
        %v1904 = vld [vmem:[%s362 + $0x9c] sm:$0xf]
        %v1905 = vld [vmem:[%s362 + $0xa0] sm:$0xf]
        %v1906 = vld [vmem:[%s362 + $0xa4] sm:$0xf]
        %v1907 = vld [vmem:[%s362 + $0xa8] sm:$0xf]
        %v1908 = vld [vmem:[%s362 + $0xac] sm:$0xf]
        %v1909 = vld [vmem:[%s362 + $0xb0] sm:$0xf]
        %v1910 = vld [vmem:[%s362 + $0xb4] sm:$0xf]
        %v1911 = vld [vmem:[%s362 + $0xb8] sm:$0xf]
        %v1912 = vld [vmem:[%s362 + $0xbc] sm:$0xf]
        %v1913 = vld [vmem:[%s362 + $0xc0] sm:$0xf]
        %v1914 = vld [vmem:[%s362 + $0xc4] sm:$0xf]
        %v1915 = vld [vmem:[%s362 + $0xc8] sm:$0xf]
        %s1916 = scalar_lea.vmem [#allocation6], 192
        %v1917 = vld [vmem:[%s1916] sm:$0xf]
        %v1918 = vld [vmem:[%s1916 + $0x4] sm:$0xf]
        %v1919 = vld [vmem:[%s1916 + $0x8] sm:$0xf]
        %v1920 = vld [vmem:[%s1916 + $0xc] sm:$0xf]
        %v1921 = vld [vmem:[%s1916 + $0x10] sm:$0xf]
        %v1922 = vld [vmem:[%s1916 + $0x14] sm:$0xf]
        %v1923 = vld [vmem:[%s1916 + $0x18] sm:$0xf]
        %v1924 = vld [vmem:[%s1916 + $0x1c] sm:$0xf]
        %v1925 = vld [vmem:[%s1916 + $0x20] sm:$0xf]
        %v1926 = vld [vmem:[%s1916 + $0x24] sm:$0xf]
        %v1927 = vld [vmem:[%s1916 + $0x28] sm:$0xf]
        %v1928 = vld [vmem:[%s1916 + $0x2c] sm:$0xf]
        %v1929 = vld [vmem:[%s1916 + $0x30] sm:$0xf]
        %v1930 = vld [vmem:[%s1916 + $0x34] sm:$0xf]
        %v1931 = vld [vmem:[%s1916 + $0x38] sm:$0xf]
        %v1932 = vld [vmem:[%s1916 + $0x3c] sm:$0xf]
        %v1981 = vunpack.c.l.b16 %v1868
        %v1982 = vunpack.c.l.b16 %v1869
        %v1983 = vunpack.c.l.b16 %v1870
        %v1984 = vunpack.c.l.b16 %v1871
        %v1985 = vunpack.c.l.b16 %v1872
        %v1986 = vunpack.c.l.b16 %v1873
        %v1987 = vunpack.c.l.b16 %v1874
        %v1988 = vunpack.c.l.b16 %v1875
        %v1989 = vunpack.c.l.b16 %v1876
        %v1990 = vunpack.c.l.b16 %v1877
        %v1991 = vunpack.c.l.b16 %v1878
        %v1992 = vunpack.c.l.b16 %v1879
        %v1993 = vunpack.c.l.b16 %v1880
        %v1994 = vunpack.c.l.b16 %v1881
        %v1995 = vunpack.c.l.b16 %v1882
        %v1996 = vunpack.c.l.b16 %v1883
        %v1997 = vunpack.c.l.b16 %v1884
        %v1998 = vunpack.c.l.b16 %v1885
        %v1999 = vunpack.c.l.b16 %v1886
        %v2000 = vunpack.c.l.b16 %v1887
        %v2001 = vunpack.c.l.b16 %v1888
        %v2002 = vunpack.c.l.b16 %v1889
        %v2003 = vunpack.c.l.b16 %v1890
        %v2004 = vunpack.c.l.b16 %v1891
        %v2005 = vunpack.c.l.b16 %v1892
        %v2006 = vunpack.c.l.b16 %v1893
        %v2007 = vunpack.c.l.b16 %v1894
        %v2008 = vunpack.c.l.b16 %v1895
        %v2009 = vunpack.c.l.b16 %v1896
        %v2010 = vunpack.c.l.b16 %v1897
        %v2011 = vunpack.c.l.b16 %v1898
        %v2012 = vunpack.c.l.b16 %v1899
        %v2013 = vunpack.c.l.b16 %v1900
        %v2014 = vunpack.c.l.b16 %v1901
        %v2015 = vunpack.c.l.b16 %v1902
        %v2016 = vunpack.c.l.b16 %v1903
        %v2017 = vunpack.c.l.b16 %v1904
        %v2018 = vunpack.c.l.b16 %v1905
        %v2019 = vunpack.c.l.b16 %v1906
        %v2020 = vunpack.c.l.b16 %v1907
        %v2021 = vunpack.c.l.b16 %v1908
        %v2022 = vunpack.c.l.b16 %v1909
        %v2023 = vunpack.c.l.b16 %v1910
        %v2024 = vunpack.c.l.b16 %v1911
        %v2025 = vunpack.c.l.b16 %v1912
        %v2026 = vunpack.c.l.b16 %v1913
        %v2027 = vunpack.c.l.b16 %v1914
        %v2028 = vunpack.c.l.b16 %v1915
        %v2029 = vpack.c.b16 %v1982, %v1981
        %v2030 = vpack.c.b16 %v1984, %v1983
        %v2031 = vpack.c.b16 %v1986, %v1985
        %v2032 = vpack.c.b16 %v1988, %v1987
        %v2033 = vpack.c.b16 %v1990, %v1989
        %v2034 = vpack.c.b16 %v1992, %v1991
        %v2035 = vpack.c.b16 %v1994, %v1993
        %v2036 = vpack.c.b16 %v1996, %v1995
        %v2037 = vpack.c.b16 %v1998, %v1997
        %v2038 = vpack.c.b16 %v2000, %v1999
        %v2039 = vpack.c.b16 %v2002, %v2001
        %v2040 = vpack.c.b16 %v2004, %v2003
        %v2041 = vpack.c.b16 %v2006, %v2005
        %v2042 = vpack.c.b16 %v2008, %v2007
        %v2043 = vpack.c.b16 %v2010, %v2009
        %v2044 = vpack.c.b16 %v2012, %v2011
        %v2045 = vpack.c.b16 %v2014, %v2013
        %v2046 = vpack.c.b16 %v2016, %v2015
        %v2047 = vpack.c.b16 %v2018, %v2017
        %v2048 = vpack.c.b16 %v2020, %v2019
        %v2049 = vpack.c.b16 %v2022, %v2021
        %v2050 = vpack.c.b16 %v2024, %v2023
        %v2051 = vpack.c.b16 %v2026, %v2025
        %v2052 = vpack.c.b16 %v2028, %v2027
        %v2093 = vunpack.c.l.b16 %v1917
        %v2094 = vunpack.c.l.b16 %v1918
        %v2095 = vunpack.c.l.b16 %v1919
        %v2096 = vunpack.c.l.b16 %v1920
        %v2097 = vunpack.c.l.b16 %v1921
        %v2098 = vunpack.c.l.b16 %v1922
        %v2099 = vunpack.c.l.b16 %v1923
        %v2100 = vunpack.c.l.b16 %v1924
        %v2101 = vunpack.c.l.b16 %v1925
        %v2102 = vunpack.c.l.b16 %v1926
        %v2103 = vunpack.c.l.b16 %v1927
        %v2104 = vunpack.c.l.b16 %v1928
        %v2105 = vunpack.c.l.b16 %v1929
        %v2106 = vunpack.c.l.b16 %v1930
        %v2107 = vunpack.c.l.b16 %v1931
        %v2108 = vunpack.c.l.b16 %v1932
        %v2109 = vpack.c.b16 %v2094, %v2093
        %v2110 = vpack.c.b16 %v2096, %v2095
        %v2111 = vpack.c.b16 %v2098, %v2097
        %v2112 = vpack.c.b16 %v2100, %v2099
        %v2113 = vpack.c.b16 %v2102, %v2101
        %v2114 = vpack.c.b16 %v2104, %v2103
        %v2115 = vpack.c.b16 %v2106, %v2105
        %v2116 = vpack.c.b16 %v2108, %v2107
        %2125 = vmatprep.subr.bf16.mxu0 0
        %2126 = vmatpush1.bf16.msra.mxu0 %v2116
        %2127 = vmatprep.subr.bf16.mxu0 0
        %2128 = vmatpush1.bf16.msra.mxu0 %v2115
        %2129 = vmatprep.subr.bf16.mxu0 0
        %2130 = vmatpush1.bf16.msra.mxu0 %v2114
        %2131 = vmatprep.subr.bf16.mxu0 0
        %2132 = vmatpush1.bf16.msra.mxu0 %v2113
        %2133 = vmatprep.subr.bf16.mxu0 0
        %2134 = vmatpush1.bf16.msra.mxu0 %v2112
        %2135 = vmatprep.subr.bf16.mxu0 0
        %2136 = vmatpush1.bf16.msra.mxu0 %v2111
        %2137 = vmatprep.subr.bf16.mxu0 0
        %2138 = vmatpush1.bf16.msra.mxu0 %v2110
        %2139 = vmatprep.subr.bf16.mxu0 0
        %2140 = vmatpush1.bf16.msra.mxu0 %v2109
        %2141 = vmatprep.subr.bf16.mxu0 0
        %2142 = vmatpush2.bf16.msra.mxu0 0
        %2143 = vmatprep.subr.bf16.mxu0 0
        %2144 = vmatpush2.bf16.msra.mxu0 0
        %2145 = vmatprep.subr.bf16.mxu0 0
        %2146 = vmatpush2.bf16.msra.mxu0 0
        %2147 = vmatprep.subr.bf16.mxu0 0
        %2148 = vmatpush2.bf16.msra.mxu0 0
        %2149 = vmatprep.subr.bf16.mxu0 0
        %2150 = vmatpush2.bf16.msra.mxu0 0
        %2151 = vmatprep.subr.bf16.mxu0 0
        %2152 = vmatpush2.bf16.msra.mxu0 0
        %2153 = vmatprep.subr.bf16.mxu0 0
        %2154 = vmatpush2.bf16.msra.mxu0 0
        %2155 = vmatprep.subr.bf16.mxu0 0
        %2156 = vmatpush2.bf16.msra.mxu0 0
        %2157 = vmatprep.mubr.bf16.mxu0 0
        %2158 = vmatmul.mubr.bf16.gmra.mxu0 %v2029
        %v2159 = vpop.f32.mrf.mxu0
        %v2160 = vadd.f32 0.0, %v2159
        %v2161 = vpop.f32.mrf.mxu0
        %v2162 = vpop.f32.mrf.mxu0
        %v2163 = vadd.f32 0.0, %v2162
        %v2164 = vpop.f32.mrf.mxu0
        %2165 = vmatprep.mubr.bf16.mxu0 0
        %2166 = vmatmul.mubr.bf16.gmra.mxu0 %v2030
        %v2167 = vpop.f32.mrf.mxu0
        %v2168 = vadd.f32 0.0, %v2167
        %v2169 = vpop.f32.mrf.mxu0
        %v2170 = vpop.f32.mrf.mxu0
        %v2171 = vadd.f32 0.0, %v2170
        %v2172 = vpop.f32.mrf.mxu0
        %2173 = vmatprep.mubr.bf16.mxu0 0
        %2174 = vmatmul.mubr.bf16.gmra.mxu0 %v2031
        %v2175 = vpop.f32.mrf.mxu0
        %v2176 = vadd.f32 0.0, %v2175
        %v2177 = vpop.f32.mrf.mxu0
        %v2178 = vpop.f32.mrf.mxu0
        %v2179 = vadd.f32 0.0, %v2178
        %v2180 = vpop.f32.mrf.mxu0
        %2181 = vmatprep.mubr.bf16.mxu0 0
        %2182 = vmatmul.mubr.bf16.gmra.mxu0 %v2032
        %v2183 = vpop.f32.mrf.mxu0
        %v2184 = vadd.f32 0.0, %v2183
        %v2185 = vpop.f32.mrf.mxu0
        %v2186 = vpop.f32.mrf.mxu0
        %v2187 = vadd.f32 0.0, %v2186
        %v2188 = vpop.f32.mrf.mxu0
        %2189 = vmatprep.mubr.bf16.mxu0 0
        %2190 = vmatmul.mubr.bf16.gmra.mxu0 %v2033
        %v2191 = vpop.f32.mrf.mxu0
        %v2192 = vadd.f32 0.0, %v2191
        %v2193 = vpop.f32.mrf.mxu0
        %v2194 = vpop.f32.mrf.mxu0
        %v2195 = vadd.f32 0.0, %v2194
        %v2196 = vpop.f32.mrf.mxu0
        %2197 = vmatprep.mubr.bf16.mxu0 0
        %2198 = vmatmul.mubr.bf16.gmra.mxu0 %v2034
        %v2199 = vpop.f32.mrf.mxu0
        %v2200 = vadd.f32 0.0, %v2199
        %v2201 = vpop.f32.mrf.mxu0
        %v2202 = vpop.f32.mrf.mxu0
        %v2203 = vadd.f32 0.0, %v2202
        %v2204 = vpop.f32.mrf.mxu0
        %2205 = vmatprep.mubr.bf16.mxu0 0
        %2206 = vmatmul.mubr.bf16.gmra.mxu0 %v2035
        %v2207 = vpop.f32.mrf.mxu0
        %v2208 = vadd.f32 0.0, %v2207
        %v2209 = vpop.f32.mrf.mxu0
        %v2210 = vpop.f32.mrf.mxu0
        %v2211 = vadd.f32 0.0, %v2210
        %v2212 = vpop.f32.mrf.mxu0
        %2213 = vmatprep.mubr.bf16.mxu0 0
        %2214 = vmatmul.mubr.bf16.gmra.mxu0 %v2036
        %v2215 = vpop.f32.mrf.mxu0
        %v2216 = vadd.f32 0.0, %v2215
        %v2217 = vpop.f32.mrf.mxu0
        %v2218 = vpop.f32.mrf.mxu0
        %v2219 = vadd.f32 0.0, %v2218
        %v2220 = vpop.f32.mrf.mxu0
        %2221 = vmatprep.mubr.bf16.mxu0 0
        %2222 = vmatmul.mubr.bf16.gmra.mxu0 %v2037
        %v2223 = vpop.f32.mrf.mxu0
        %v2224 = vadd.f32 0.0, %v2223
        %v2225 = vpop.f32.mrf.mxu0
        %v2226 = vpop.f32.mrf.mxu0
        %v2227 = vadd.f32 0.0, %v2226
        %v2228 = vpop.f32.mrf.mxu0
        %2229 = vmatprep.mubr.bf16.mxu0 0
        %2230 = vmatmul.mubr.bf16.gmra.mxu0 %v2038
        %v2231 = vpop.f32.mrf.mxu0
        %v2232 = vadd.f32 0.0, %v2231
        %v2233 = vpop.f32.mrf.mxu0
        %v2234 = vpop.f32.mrf.mxu0
        %v2235 = vadd.f32 0.0, %v2234
        %v2236 = vpop.f32.mrf.mxu0
        %2237 = vmatprep.mubr.bf16.mxu0 0
        %2238 = vmatmul.mubr.bf16.gmra.mxu0 %v2039
        %v2239 = vpop.f32.mrf.mxu0
        %v2240 = vadd.f32 0.0, %v2239
        %v2241 = vpop.f32.mrf.mxu0
        %v2242 = vpop.f32.mrf.mxu0
        %v2243 = vadd.f32 0.0, %v2242
        %v2244 = vpop.f32.mrf.mxu0
        %2245 = vmatprep.mubr.bf16.mxu0 0
        %2246 = vmatmul.mubr.bf16.gmra.mxu0 %v2040
        %v2247 = vpop.f32.mrf.mxu0
        %v2248 = vadd.f32 0.0, %v2247
        %v2249 = vpop.f32.mrf.mxu0
        %v2250 = vpop.f32.mrf.mxu0
        %v2251 = vadd.f32 0.0, %v2250
        %v2252 = vpop.f32.mrf.mxu0
        %2253 = vmatprep.mubr.bf16.mxu0 0
        %2254 = vmatmul.mubr.bf16.gmra.mxu0 %v2041
        %v2255 = vpop.f32.mrf.mxu0
        %v2256 = vadd.f32 0.0, %v2255
        %v2257 = vpop.f32.mrf.mxu0
        %v2258 = vpop.f32.mrf.mxu0
        %v2259 = vadd.f32 0.0, %v2258
        %v2260 = vpop.f32.mrf.mxu0
        %2261 = vmatprep.mubr.bf16.mxu0 0
        %2262 = vmatmul.mubr.bf16.gmra.mxu0 %v2042
        %v2263 = vpop.f32.mrf.mxu0
        %v2264 = vadd.f32 0.0, %v2263
        %v2265 = vpop.f32.mrf.mxu0
        %v2266 = vpop.f32.mrf.mxu0
        %v2267 = vadd.f32 0.0, %v2266
        %v2268 = vpop.f32.mrf.mxu0
        %2269 = vmatprep.mubr.bf16.mxu0 0
        %2270 = vmatmul.mubr.bf16.gmra.mxu0 %v2043
        %v2271 = vpop.f32.mrf.mxu0
        %v2272 = vadd.f32 0.0, %v2271
        %v2273 = vpop.f32.mrf.mxu0
        %v2274 = vpop.f32.mrf.mxu0
        %v2275 = vadd.f32 0.0, %v2274
        %v2276 = vpop.f32.mrf.mxu0
        %2277 = vmatprep.mubr.bf16.mxu0 0
        %2278 = vmatmul.mubr.bf16.gmra.mxu0 %v2044
        %v2279 = vpop.f32.mrf.mxu0
        %v2280 = vadd.f32 0.0, %v2279
        %v2281 = vpop.f32.mrf.mxu0
        %v2282 = vpop.f32.mrf.mxu0
        %v2283 = vadd.f32 0.0, %v2282
        %v2284 = vpop.f32.mrf.mxu0
        %2285 = vmatprep.mubr.bf16.mxu0 0
        %2286 = vmatmul.mubr.bf16.gmra.mxu0 %v2045
        %v2287 = vpop.f32.mrf.mxu0
        %v2288 = vadd.f32 0.0, %v2287
        %v2289 = vpop.f32.mrf.mxu0
        %v2290 = vpop.f32.mrf.mxu0
        %v2291 = vadd.f32 0.0, %v2290
        %v2292 = vpop.f32.mrf.mxu0
        %2293 = vmatprep.mubr.bf16.mxu0 0
        %2294 = vmatmul.mubr.bf16.gmra.mxu0 %v2046
        %v2295 = vpop.f32.mrf.mxu0
        %v2296 = vadd.f32 0.0, %v2295
        %v2297 = vpop.f32.mrf.mxu0
        %v2298 = vpop.f32.mrf.mxu0
        %v2299 = vadd.f32 0.0, %v2298
        %v2300 = vpop.f32.mrf.mxu0
        %2301 = vmatprep.mubr.bf16.mxu0 0
        %2302 = vmatmul.mubr.bf16.gmra.mxu0 %v2047
        %v2303 = vpop.f32.mrf.mxu0
        %v2304 = vadd.f32 0.0, %v2303
        %v2305 = vpop.f32.mrf.mxu0
        %v2306 = vpop.f32.mrf.mxu0
        %v2307 = vadd.f32 0.0, %v2306
        %v2308 = vpop.f32.mrf.mxu0
        %2309 = vmatprep.mubr.bf16.mxu0 0
        %2310 = vmatmul.mubr.bf16.gmra.mxu0 %v2048
        %v2311 = vpop.f32.mrf.mxu0
        %v2312 = vadd.f32 0.0, %v2311
        %v2313 = vpop.f32.mrf.mxu0
        %v2314 = vpop.f32.mrf.mxu0
        %v2315 = vadd.f32 0.0, %v2314
        %v2316 = vpop.f32.mrf.mxu0
        %2317 = vmatprep.mubr.bf16.mxu0 0
        %2318 = vmatmul.mubr.bf16.gmra.mxu0 %v2049
        %v2319 = vpop.f32.mrf.mxu0
        %v2320 = vadd.f32 0.0, %v2319
        %v2321 = vpop.f32.mrf.mxu0
        %v2322 = vpop.f32.mrf.mxu0
        %v2323 = vadd.f32 0.0, %v2322
        %v2324 = vpop.f32.mrf.mxu0
        %2325 = vmatprep.mubr.bf16.mxu0 0
        %2326 = vmatmul.mubr.bf16.gmra.mxu0 %v2050
        %v2327 = vpop.f32.mrf.mxu0
        %v2328 = vadd.f32 0.0, %v2327
        %v2329 = vpop.f32.mrf.mxu0
        %v2330 = vpop.f32.mrf.mxu0
        %v2331 = vadd.f32 0.0, %v2330
        %v2332 = vpop.f32.mrf.mxu0
        %2333 = vmatprep.mubr.bf16.mxu0 0
        %2334 = vmatmul.mubr.bf16.gmra.mxu0 %v2051
        %v2335 = vpop.f32.mrf.mxu0
        %v2336 = vadd.f32 0.0, %v2335
        %v2337 = vpop.f32.mrf.mxu0
        %v2338 = vpop.f32.mrf.mxu0
        %v2339 = vadd.f32 0.0, %v2338
        %v2340 = vpop.f32.mrf.mxu0
        %2341 = vmatprep.mubr.bf16.mxu0 0
        %2342 = vmatmul.mubr.bf16.gmra.mxu0 %v2052
        %v2343 = vpop.f32.mrf.mxu0
        %v2344 = vadd.f32 0.0, %v2343
        %v2345 = vpop.f32.mrf.mxu0
        %v2346 = vpop.f32.mrf.mxu0
        %v2347 = vadd.f32 0.0, %v2346
        %v2348 = vpop.f32.mrf.mxu0
        %2349 = vdwg.mxu0
        %v2350 = vadd.f32 %v1820, %v2160
        %v2351 = vadd.f32 %v1821, %v2163
        %v2352 = vadd.f32 %v1822, %v2168
        %v2353 = vadd.f32 %v1823, %v2171
        %v2354 = vadd.f32 %v1824, %v2176
        %v2355 = vadd.f32 %v1825, %v2179
        %v2356 = vadd.f32 %v1826, %v2184
        %v2357 = vadd.f32 %v1827, %v2187
        %v2358 = vadd.f32 %v1828, %v2192
        %v2359 = vadd.f32 %v1829, %v2195
        %v2360 = vadd.f32 %v1830, %v2200
        %v2361 = vadd.f32 %v1831, %v2203
        %v2362 = vadd.f32 %v1832, %v2208
        %v2363 = vadd.f32 %v1833, %v2211
        %v2364 = vadd.f32 %v1834, %v2216
        %v2365 = vadd.f32 %v1835, %v2219
        %v2366 = vadd.f32 %v1836, %v2224
        %v2367 = vadd.f32 %v1837, %v2227
        %v2368 = vadd.f32 %v1838, %v2232
        %v2369 = vadd.f32 %v1839, %v2235
        %v2370 = vadd.f32 %v1840, %v2240
        %v2371 = vadd.f32 %v1841, %v2243
        %v2372 = vadd.f32 %v1842, %v2248
        %v2373 = vadd.f32 %v1843, %v2251
        %v2374 = vadd.f32 %v1844, %v2256
        %v2375 = vadd.f32 %v1845, %v2259
        %v2376 = vadd.f32 %v1846, %v2264
        %v2377 = vadd.f32 %v1847, %v2267
        %v2378 = vadd.f32 %v1848, %v2272
        %v2379 = vadd.f32 %v1849, %v2275
        %v2380 = vadd.f32 %v1850, %v2280
        %v2381 = vadd.f32 %v1851, %v2283
        %v2382 = vadd.f32 %v1852, %v2288
        %v2383 = vadd.f32 %v1853, %v2291
        %v2384 = vadd.f32 %v1854, %v2296
        %v2385 = vadd.f32 %v1855, %v2299
        %v2386 = vadd.f32 %v1856, %v2304
        %v2387 = vadd.f32 %v1857, %v2307
        %v2388 = vadd.f32 %v1858, %v2312
        %v2389 = vadd.f32 %v1859, %v2315
        %v2390 = vadd.f32 %v1860, %v2320
        %v2391 = vadd.f32 %v1861, %v2323
        %v2392 = vadd.f32 %v1862, %v2328
        %v2393 = vadd.f32 %v1863, %v2331
        %v2394 = vadd.f32 %v1864, %v2336
        %v2395 = vadd.f32 %v1865, %v2339
        %v2396 = vadd.f32 %v1866, %v2344
        %v2397 = vadd.f32 %v1867, %v2347
        %v2398 = vld [vmem:[%s362 + $0xc] sm:$0xf]
        %v2399 = vld [vmem:[%s362 + $0x10] sm:$0xf]
        %v2400 = vld [vmem:[%s362 + $0x14] sm:$0xf]
        %v2401 = vld [vmem:[%s362 + $0x18] sm:$0xf]
        %v2402 = vld [vmem:[%s362 + $0x1c] sm:$0xf]
        %v2403 = vld [vmem:[%s362 + $0x20] sm:$0xf]
        %v2404 = vld [vmem:[%s362 + $0x24] sm:$0xf]
        %v2405 = vld [vmem:[%s362 + $0x28] sm:$0xf]
        %v2406 = vld [vmem:[%s362 + $0x2c] sm:$0xf]
        %v2407 = vld [vmem:[%s362 + $0x30] sm:$0xf]
        %v2408 = vld [vmem:[%s362 + $0x34] sm:$0xf]
        %v2409 = vld [vmem:[%s362 + $0x38] sm:$0xf]
        %v2410 = vld [vmem:[%s362 + $0x3c] sm:$0xf]
        %v2411 = vld [vmem:[%s362 + $0x40] sm:$0xf]
        %v2412 = vld [vmem:[%s362 + $0x44] sm:$0xf]
        %v2413 = vld [vmem:[%s362 + $0x48] sm:$0xf]
        %v2414 = vld [vmem:[%s362 + $0x4c] sm:$0xf]
        %v2415 = vld [vmem:[%s362 + $0x50] sm:$0xf]
        %v2416 = vld [vmem:[%s362 + $0x54] sm:$0xf]
        %v2417 = vld [vmem:[%s362 + $0x58] sm:$0xf]
        %v2418 = vld [vmem:[%s362 + $0x5c] sm:$0xf]
        %v2419 = vld [vmem:[%s362 + $0x60] sm:$0xf]
        %v2420 = vld [vmem:[%s362 + $0x64] sm:$0xf]
        %v2421 = vld [vmem:[%s362 + $0x68] sm:$0xf]
        %v2422 = vld [vmem:[%s362 + $0x6c] sm:$0xf]
        %v2423 = vld [vmem:[%s362 + $0x70] sm:$0xf]
        %v2424 = vld [vmem:[%s362 + $0x74] sm:$0xf]
        %v2425 = vld [vmem:[%s362 + $0x78] sm:$0xf]
        %v2426 = vld [vmem:[%s362 + $0x7c] sm:$0xf]
        %v2427 = vld [vmem:[%s362 + $0x80] sm:$0xf]
        %v2428 = vld [vmem:[%s362 + $0x84] sm:$0xf]
        %v2429 = vld [vmem:[%s362 + $0x88] sm:$0xf]
        %v2430 = vld [vmem:[%s362 + $0x8c] sm:$0xf]
        %v2431 = vld [vmem:[%s362 + $0x90] sm:$0xf]
        %v2432 = vld [vmem:[%s362 + $0x94] sm:$0xf]
        %v2433 = vld [vmem:[%s362 + $0x98] sm:$0xf]
        %v2434 = vld [vmem:[%s362 + $0x9c] sm:$0xf]
        %v2435 = vld [vmem:[%s362 + $0xa0] sm:$0xf]
        %v2436 = vld [vmem:[%s362 + $0xa4] sm:$0xf]
        %v2437 = vld [vmem:[%s362 + $0xa8] sm:$0xf]
        %v2438 = vld [vmem:[%s362 + $0xac] sm:$0xf]
        %v2439 = vld [vmem:[%s362 + $0xb0] sm:$0xf]
        %v2440 = vld [vmem:[%s362 + $0xb4] sm:$0xf]
        %v2441 = vld [vmem:[%s362 + $0xb8] sm:$0xf]
        %v2442 = vld [vmem:[%s362 + $0xbc] sm:$0xf]
        %v2443 = vld [vmem:[%s362 + $0xc0] sm:$0xf]
        %v2444 = vld [vmem:[%s362 + $0xc4] sm:$0xf]
        %v2445 = vld [vmem:[%s362 + $0xc8] sm:$0xf]
        %v2446 = vld [vmem:[%s362 + $0xcc] sm:$0x1]
        %s2447 = scalar_lea.vmem [#allocation6], 256
        %v2448 = vld [vmem:[%s2447] sm:$0xf]
        %v2449 = vld [vmem:[%s2447 + $0x4] sm:$0xf]
        %v2450 = vld [vmem:[%s2447 + $0x8] sm:$0xf]
        %v2451 = vld [vmem:[%s2447 + $0xc] sm:$0xf]
        %v2452 = vld [vmem:[%s2447 + $0x10] sm:$0xf]
        %v2453 = vld [vmem:[%s2447 + $0x14] sm:$0xf]
        %v2454 = vld [vmem:[%s2447 + $0x18] sm:$0xf]
        %v2455 = vld [vmem:[%s2447 + $0x1c] sm:$0xf]
        %v2456 = vld [vmem:[%s2447 + $0x20] sm:$0xf]
        %v2457 = vld [vmem:[%s2447 + $0x24] sm:$0xf]
        %v2458 = vld [vmem:[%s2447 + $0x28] sm:$0xf]
        %v2459 = vld [vmem:[%s2447 + $0x2c] sm:$0xf]
        %v2460 = vld [vmem:[%s2447 + $0x30] sm:$0xf]
        %v2461 = vld [vmem:[%s2447 + $0x34] sm:$0xf]
        %v2462 = vld [vmem:[%s2447 + $0x38] sm:$0xf]
        %v2463 = vld [vmem:[%s2447 + $0x3c] sm:$0xf]
        %v2513 = vunpack.c.l.b16 %v2398
        %v2514 = vunpack.c.l.b16 %v2399
        %v2515 = vunpack.c.l.b16 %v2400
        %v2516 = vunpack.c.l.b16 %v2401
        %v2517 = vunpack.c.l.b16 %v2402
        %v2518 = vunpack.c.l.b16 %v2403
        %v2519 = vunpack.c.l.b16 %v2404
        %v2520 = vunpack.c.l.b16 %v2405
        %v2521 = vunpack.c.l.b16 %v2406
        %v2522 = vunpack.c.l.b16 %v2407
        %v2523 = vunpack.c.l.b16 %v2408
        %v2524 = vunpack.c.l.b16 %v2409
        %v2525 = vunpack.c.l.b16 %v2410
        %v2526 = vunpack.c.l.b16 %v2411
        %v2527 = vunpack.c.l.b16 %v2412
        %v2528 = vunpack.c.l.b16 %v2413
        %v2529 = vunpack.c.l.b16 %v2414
        %v2530 = vunpack.c.l.b16 %v2415
        %v2531 = vunpack.c.l.b16 %v2416
        %v2532 = vunpack.c.l.b16 %v2417
        %v2533 = vunpack.c.l.b16 %v2418
        %v2534 = vunpack.c.l.b16 %v2419
        %v2535 = vunpack.c.l.b16 %v2420
        %v2536 = vunpack.c.l.b16 %v2421
        %v2537 = vunpack.c.l.b16 %v2422
        %v2538 = vunpack.c.l.b16 %v2423
        %v2539 = vunpack.c.l.b16 %v2424
        %v2540 = vunpack.c.l.b16 %v2425
        %v2541 = vunpack.c.l.b16 %v2426
        %v2542 = vunpack.c.l.b16 %v2427
        %v2543 = vunpack.c.l.b16 %v2428
        %v2544 = vunpack.c.l.b16 %v2429
        %v2545 = vunpack.c.l.b16 %v2430
        %v2546 = vunpack.c.l.b16 %v2431
        %v2547 = vunpack.c.l.b16 %v2432
        %v2548 = vunpack.c.l.b16 %v2433
        %v2549 = vunpack.c.l.b16 %v2434
        %v2550 = vunpack.c.l.b16 %v2435
        %v2551 = vunpack.c.l.b16 %v2436
        %v2552 = vunpack.c.l.b16 %v2437
        %v2553 = vunpack.c.l.b16 %v2438
        %v2554 = vunpack.c.l.b16 %v2439
        %v2555 = vunpack.c.l.b16 %v2440
        %v2556 = vunpack.c.l.b16 %v2441
        %v2557 = vunpack.c.l.b16 %v2442
        %v2558 = vunpack.c.l.b16 %v2443
        %v2559 = vunpack.c.l.b16 %v2444
        %v2560 = vunpack.c.l.b16 %v2445
        %v2561 = vunpack.c.l.b16 %v2446
        %v2562 = vpack.c.b16 %v2514, %v2513
        %v2563 = vpack.c.b16 %v2516, %v2515
        %v2564 = vpack.c.b16 %v2518, %v2517
        %v2565 = vpack.c.b16 %v2520, %v2519
        %v2566 = vpack.c.b16 %v2522, %v2521
        %v2567 = vpack.c.b16 %v2524, %v2523
        %v2568 = vpack.c.b16 %v2526, %v2525
        %v2569 = vpack.c.b16 %v2528, %v2527
        %v2570 = vpack.c.b16 %v2530, %v2529
        %v2571 = vpack.c.b16 %v2532, %v2531
        %v2572 = vpack.c.b16 %v2534, %v2533
        %v2573 = vpack.c.b16 %v2536, %v2535
        %v2574 = vpack.c.b16 %v2538, %v2537
        %v2575 = vpack.c.b16 %v2540, %v2539
        %v2576 = vpack.c.b16 %v2542, %v2541
        %v2577 = vpack.c.b16 %v2544, %v2543
        %v2578 = vpack.c.b16 %v2546, %v2545
        %v2579 = vpack.c.b16 %v2548, %v2547
        %v2580 = vpack.c.b16 %v2550, %v2549
        %v2581 = vpack.c.b16 %v2552, %v2551
        %v2582 = vpack.c.b16 %v2554, %v2553
        %v2583 = vpack.c.b16 %v2556, %v2555
        %v2584 = vpack.c.b16 %v2558, %v2557
        %v2585 = vpack.c.b16 %v2560, %v2559
        %v2586 = vpack.c.b16 %v2561, %v2561
        %v2588 = vshrl.u32 %v2562, 16
        %v2590 = vshll.u32 %v2562, 16
        %v2592 = vrot.slane %v2590, 1
        %v2593 = vor.u32 %v2588, %v2592
        %v2595 = vshll.u32 %v2563, 16
        %v2597 = vrot.slane %v2595, 1
        %v2598 = vsel %vm661, %v2593, %v2597
        %v2599 = vshrl.u32 %v2563, 16
        %v2601 = vor.u32 %v2599, %v2597
        %v2603 = vshll.u32 %v2564, 16
        %v2605 = vrot.slane %v2603, 1
        %v2606 = vsel %vm661, %v2601, %v2605
        %v2607 = vshrl.u32 %v2564, 16
        %v2609 = vor.u32 %v2607, %v2605
        %v2611 = vshll.u32 %v2565, 16
        %v2613 = vrot.slane %v2611, 1
        %v2614 = vsel %vm661, %v2609, %v2613
        %v2615 = vshrl.u32 %v2565, 16
        %v2617 = vor.u32 %v2615, %v2613
        %v2619 = vshll.u32 %v2566, 16
        %v2621 = vrot.slane %v2619, 1
        %v2622 = vsel %vm661, %v2617, %v2621
        %v2623 = vshrl.u32 %v2566, 16
        %v2625 = vor.u32 %v2623, %v2621
        %v2627 = vshll.u32 %v2567, 16
        %v2629 = vrot.slane %v2627, 1
        %v2630 = vsel %vm661, %v2625, %v2629
        %v2631 = vshrl.u32 %v2567, 16
        %v2633 = vor.u32 %v2631, %v2629
        %v2635 = vshll.u32 %v2568, 16
        %v2637 = vrot.slane %v2635, 1
        %v2638 = vsel %vm661, %v2633, %v2637
        %v2639 = vshrl.u32 %v2568, 16
        %v2641 = vor.u32 %v2639, %v2637
        %v2643 = vshll.u32 %v2569, 16
        %v2645 = vrot.slane %v2643, 1
        %v2646 = vsel %vm661, %v2641, %v2645
        %v2647 = vshrl.u32 %v2569, 16
        %v2649 = vor.u32 %v2647, %v2645
        %v2651 = vshll.u32 %v2570, 16
        %v2653 = vrot.slane %v2651, 1
        %v2654 = vsel %vm661, %v2649, %v2653
        %v2655 = vshrl.u32 %v2570, 16
        %v2657 = vor.u32 %v2655, %v2653
        %v2659 = vshll.u32 %v2571, 16
        %v2661 = vrot.slane %v2659, 1
        %v2662 = vsel %vm661, %v2657, %v2661
        %v2663 = vshrl.u32 %v2571, 16
        %v2665 = vor.u32 %v2663, %v2661
        %v2667 = vshll.u32 %v2572, 16
        %v2669 = vrot.slane %v2667, 1
        %v2670 = vsel %vm661, %v2665, %v2669
        %v2671 = vshrl.u32 %v2572, 16
        %v2673 = vor.u32 %v2671, %v2669
        %v2675 = vshll.u32 %v2573, 16
        %v2677 = vrot.slane %v2675, 1
        %v2678 = vsel %vm661, %v2673, %v2677
        %v2679 = vshrl.u32 %v2573, 16
        %v2681 = vor.u32 %v2679, %v2677
        %v2683 = vshll.u32 %v2574, 16
        %v2685 = vrot.slane %v2683, 1
        %v2686 = vsel %vm661, %v2681, %v2685
        %v2687 = vshrl.u32 %v2574, 16
        %v2689 = vor.u32 %v2687, %v2685
        %v2691 = vshll.u32 %v2575, 16
        %v2693 = vrot.slane %v2691, 1
        %v2694 = vsel %vm661, %v2689, %v2693
        %v2695 = vshrl.u32 %v2575, 16
        %v2697 = vor.u32 %v2695, %v2693
        %v2699 = vshll.u32 %v2576, 16
        %v2701 = vrot.slane %v2699, 1
        %v2702 = vsel %vm661, %v2697, %v2701
        %v2703 = vshrl.u32 %v2576, 16
        %v2705 = vor.u32 %v2703, %v2701
        %v2707 = vshll.u32 %v2577, 16
        %v2709 = vrot.slane %v2707, 1
        %v2710 = vsel %vm661, %v2705, %v2709
        %v2711 = vshrl.u32 %v2577, 16
        %v2713 = vor.u32 %v2711, %v2709
        %v2715 = vshll.u32 %v2578, 16
        %v2717 = vrot.slane %v2715, 1
        %v2718 = vsel %vm661, %v2713, %v2717
        %v2719 = vshrl.u32 %v2578, 16
        %v2721 = vor.u32 %v2719, %v2717
        %v2723 = vshll.u32 %v2579, 16
        %v2725 = vrot.slane %v2723, 1
        %v2726 = vsel %vm661, %v2721, %v2725
        %v2727 = vshrl.u32 %v2579, 16
        %v2729 = vor.u32 %v2727, %v2725
        %v2731 = vshll.u32 %v2580, 16
        %v2733 = vrot.slane %v2731, 1
        %v2734 = vsel %vm661, %v2729, %v2733
        %v2735 = vshrl.u32 %v2580, 16
        %v2737 = vor.u32 %v2735, %v2733
        %v2739 = vshll.u32 %v2581, 16
        %v2741 = vrot.slane %v2739, 1
        %v2742 = vsel %vm661, %v2737, %v2741
        %v2743 = vshrl.u32 %v2581, 16
        %v2745 = vor.u32 %v2743, %v2741
        %v2747 = vshll.u32 %v2582, 16
        %v2749 = vrot.slane %v2747, 1
        %v2750 = vsel %vm661, %v2745, %v2749
        %v2751 = vshrl.u32 %v2582, 16
        %v2753 = vor.u32 %v2751, %v2749
        %v2755 = vshll.u32 %v2583, 16
        %v2757 = vrot.slane %v2755, 1
        %v2758 = vsel %vm661, %v2753, %v2757
        %v2759 = vshrl.u32 %v2583, 16
        %v2761 = vor.u32 %v2759, %v2757
        %v2763 = vshll.u32 %v2584, 16
        %v2765 = vrot.slane %v2763, 1
        %v2766 = vsel %vm661, %v2761, %v2765
        %v2767 = vshrl.u32 %v2584, 16
        %v2769 = vor.u32 %v2767, %v2765
        %v2771 = vshll.u32 %v2585, 16
        %v2773 = vrot.slane %v2771, 1
        %v2774 = vsel %vm661, %v2769, %v2773
        %v2775 = vshrl.u32 %v2585, 16
        %v2777 = vor.u32 %v2775, %v2773
        %v2779 = vshll.u32 %v2586, 16
        %v2781 = vrot.slane %v2779, 1
        %v2782 = vsel %vm661, %v2777, %v2781
        %v2823 = vunpack.c.l.b16 %v2448
        %v2824 = vunpack.c.l.b16 %v2449
        %v2825 = vunpack.c.l.b16 %v2450
        %v2826 = vunpack.c.l.b16 %v2451
        %v2827 = vunpack.c.l.b16 %v2452
        %v2828 = vunpack.c.l.b16 %v2453
        %v2829 = vunpack.c.l.b16 %v2454
        %v2830 = vunpack.c.l.b16 %v2455
        %v2831 = vunpack.c.l.b16 %v2456
        %v2832 = vunpack.c.l.b16 %v2457
        %v2833 = vunpack.c.l.b16 %v2458
        %v2834 = vunpack.c.l.b16 %v2459
        %v2835 = vunpack.c.l.b16 %v2460
        %v2836 = vunpack.c.l.b16 %v2461
        %v2837 = vunpack.c.l.b16 %v2462
        %v2838 = vunpack.c.l.b16 %v2463
        %v2839 = vpack.c.b16 %v2824, %v2823
        %v2840 = vpack.c.b16 %v2826, %v2825
        %v2841 = vpack.c.b16 %v2828, %v2827
        %v2842 = vpack.c.b16 %v2830, %v2829
        %v2843 = vpack.c.b16 %v2832, %v2831
        %v2844 = vpack.c.b16 %v2834, %v2833
        %v2845 = vpack.c.b16 %v2836, %v2835
        %v2846 = vpack.c.b16 %v2838, %v2837
        %2855 = vmatprep.subr.bf16.mxu0 0
        %2856 = vmatpush1.bf16.msra.mxu0 %v2846
        %2857 = vmatprep.subr.bf16.mxu0 0
        %2858 = vmatpush1.bf16.msra.mxu0 %v2845
        %2859 = vmatprep.subr.bf16.mxu0 0
        %2860 = vmatpush1.bf16.msra.mxu0 %v2844
        %2861 = vmatprep.subr.bf16.mxu0 0
        %2862 = vmatpush1.bf16.msra.mxu0 %v2843
        %2863 = vmatprep.subr.bf16.mxu0 0
        %2864 = vmatpush1.bf16.msra.mxu0 %v2842
        %2865 = vmatprep.subr.bf16.mxu0 0
        %2866 = vmatpush1.bf16.msra.mxu0 %v2841
        %2867 = vmatprep.subr.bf16.mxu0 0
        %2868 = vmatpush1.bf16.msra.mxu0 %v2840
        %2869 = vmatprep.subr.bf16.mxu0 0
        %2870 = vmatpush1.bf16.msra.mxu0 %v2839
        %2871 = vmatprep.subr.bf16.mxu0 0
        %2872 = vmatpush2.bf16.msra.mxu0 0
        %2873 = vmatprep.subr.bf16.mxu0 0
        %2874 = vmatpush2.bf16.msra.mxu0 0
        %2875 = vmatprep.subr.bf16.mxu0 0
        %2876 = vmatpush2.bf16.msra.mxu0 0
        %2877 = vmatprep.subr.bf16.mxu0 0
        %2878 = vmatpush2.bf16.msra.mxu0 0
        %2879 = vmatprep.subr.bf16.mxu0 0
        %2880 = vmatpush2.bf16.msra.mxu0 0
        %2881 = vmatprep.subr.bf16.mxu0 0
        %2882 = vmatpush2.bf16.msra.mxu0 0
        %2883 = vmatprep.subr.bf16.mxu0 0
        %2884 = vmatpush2.bf16.msra.mxu0 0
        %2885 = vmatprep.subr.bf16.mxu0 0
        %2886 = vmatpush2.bf16.msra.mxu0 0
        %2887 = vmatprep.mubr.bf16.mxu0 0
        %2888 = vmatmul.mubr.bf16.gmra.mxu0 %v2598
        %v2889 = vpop.f32.mrf.mxu0
        %v2890 = vadd.f32 0.0, %v2889
        %v2891 = vpop.f32.mrf.mxu0
        %v2892 = vpop.f32.mrf.mxu0
        %v2893 = vadd.f32 0.0, %v2892
        %v2894 = vpop.f32.mrf.mxu0
        %2895 = vmatprep.mubr.bf16.mxu0 0
        %2896 = vmatmul.mubr.bf16.gmra.mxu0 %v2606
        %v2897 = vpop.f32.mrf.mxu0
        %v2898 = vadd.f32 0.0, %v2897
        %v2899 = vpop.f32.mrf.mxu0
        %v2900 = vpop.f32.mrf.mxu0
        %v2901 = vadd.f32 0.0, %v2900
        %v2902 = vpop.f32.mrf.mxu0
        %2903 = vmatprep.mubr.bf16.mxu0 0
        %2904 = vmatmul.mubr.bf16.gmra.mxu0 %v2614
        %v2905 = vpop.f32.mrf.mxu0
        %v2906 = vadd.f32 0.0, %v2905
        %v2907 = vpop.f32.mrf.mxu0
        %v2908 = vpop.f32.mrf.mxu0
        %v2909 = vadd.f32 0.0, %v2908
        %v2910 = vpop.f32.mrf.mxu0
        %2911 = vmatprep.mubr.bf16.mxu0 0
        %2912 = vmatmul.mubr.bf16.gmra.mxu0 %v2622
        %v2913 = vpop.f32.mrf.mxu0
        %v2914 = vadd.f32 0.0, %v2913
        %v2915 = vpop.f32.mrf.mxu0
        %v2916 = vpop.f32.mrf.mxu0
        %v2917 = vadd.f32 0.0, %v2916
        %v2918 = vpop.f32.mrf.mxu0
        %2919 = vmatprep.mubr.bf16.mxu0 0
        %2920 = vmatmul.mubr.bf16.gmra.mxu0 %v2630
        %v2921 = vpop.f32.mrf.mxu0
        %v2922 = vadd.f32 0.0, %v2921
        %v2923 = vpop.f32.mrf.mxu0
        %v2924 = vpop.f32.mrf.mxu0
        %v2925 = vadd.f32 0.0, %v2924
        %v2926 = vpop.f32.mrf.mxu0
        %2927 = vmatprep.mubr.bf16.mxu0 0
        %2928 = vmatmul.mubr.bf16.gmra.mxu0 %v2638
        %v2929 = vpop.f32.mrf.mxu0
        %v2930 = vadd.f32 0.0, %v2929
        %v2931 = vpop.f32.mrf.mxu0
        %v2932 = vpop.f32.mrf.mxu0
        %v2933 = vadd.f32 0.0, %v2932
        %v2934 = vpop.f32.mrf.mxu0
        %2935 = vmatprep.mubr.bf16.mxu0 0
        %2936 = vmatmul.mubr.bf16.gmra.mxu0 %v2646
        %v2937 = vpop.f32.mrf.mxu0
        %v2938 = vadd.f32 0.0, %v2937
        %v2939 = vpop.f32.mrf.mxu0
        %v2940 = vpop.f32.mrf.mxu0
        %v2941 = vadd.f32 0.0, %v2940
        %v2942 = vpop.f32.mrf.mxu0
        %2943 = vmatprep.mubr.bf16.mxu0 0
        %2944 = vmatmul.mubr.bf16.gmra.mxu0 %v2654
        %v2945 = vpop.f32.mrf.mxu0
        %v2946 = vadd.f32 0.0, %v2945
        %v2947 = vpop.f32.mrf.mxu0
        %v2948 = vpop.f32.mrf.mxu0
        %v2949 = vadd.f32 0.0, %v2948
        %v2950 = vpop.f32.mrf.mxu0
        %2951 = vmatprep.mubr.bf16.mxu0 0
        %2952 = vmatmul.mubr.bf16.gmra.mxu0 %v2662
        %v2953 = vpop.f32.mrf.mxu0
        %v2954 = vadd.f32 0.0, %v2953
        %v2955 = vpop.f32.mrf.mxu0
        %v2956 = vpop.f32.mrf.mxu0
        %v2957 = vadd.f32 0.0, %v2956
        %v2958 = vpop.f32.mrf.mxu0
        %2959 = vmatprep.mubr.bf16.mxu0 0
        %2960 = vmatmul.mubr.bf16.gmra.mxu0 %v2670
        %v2961 = vpop.f32.mrf.mxu0
        %v2962 = vadd.f32 0.0, %v2961
        %v2963 = vpop.f32.mrf.mxu0
        %v2964 = vpop.f32.mrf.mxu0
        %v2965 = vadd.f32 0.0, %v2964
        %v2966 = vpop.f32.mrf.mxu0
        %2967 = vmatprep.mubr.bf16.mxu0 0
        %2968 = vmatmul.mubr.bf16.gmra.mxu0 %v2678
        %v2969 = vpop.f32.mrf.mxu0
        %v2970 = vadd.f32 0.0, %v2969
        %v2971 = vpop.f32.mrf.mxu0
        %v2972 = vpop.f32.mrf.mxu0
        %v2973 = vadd.f32 0.0, %v2972
        %v2974 = vpop.f32.mrf.mxu0
        %2975 = vmatprep.mubr.bf16.mxu0 0
        %2976 = vmatmul.mubr.bf16.gmra.mxu0 %v2686
        %v2977 = vpop.f32.mrf.mxu0
        %v2978 = vadd.f32 0.0, %v2977
        %v2979 = vpop.f32.mrf.mxu0
        %v2980 = vpop.f32.mrf.mxu0
        %v2981 = vadd.f32 0.0, %v2980
        %v2982 = vpop.f32.mrf.mxu0
        %2983 = vmatprep.mubr.bf16.mxu0 0
        %2984 = vmatmul.mubr.bf16.gmra.mxu0 %v2694
        %v2985 = vpop.f32.mrf.mxu0
        %v2986 = vadd.f32 0.0, %v2985
        %v2987 = vpop.f32.mrf.mxu0
        %v2988 = vpop.f32.mrf.mxu0
        %v2989 = vadd.f32 0.0, %v2988
        %v2990 = vpop.f32.mrf.mxu0
        %2991 = vmatprep.mubr.bf16.mxu0 0
        %2992 = vmatmul.mubr.bf16.gmra.mxu0 %v2702
        %v2993 = vpop.f32.mrf.mxu0
        %v2994 = vadd.f32 0.0, %v2993
        %v2995 = vpop.f32.mrf.mxu0
        %v2996 = vpop.f32.mrf.mxu0
        %v2997 = vadd.f32 0.0, %v2996
        %v2998 = vpop.f32.mrf.mxu0
        %2999 = vmatprep.mubr.bf16.mxu0 0
        %3000 = vmatmul.mubr.bf16.gmra.mxu0 %v2710
        %v3001 = vpop.f32.mrf.mxu0
        %v3002 = vadd.f32 0.0, %v3001
        %v3003 = vpop.f32.mrf.mxu0
        %v3004 = vpop.f32.mrf.mxu0
        %v3005 = vadd.f32 0.0, %v3004
        %v3006 = vpop.f32.mrf.mxu0
        %3007 = vmatprep.mubr.bf16.mxu0 0
        %3008 = vmatmul.mubr.bf16.gmra.mxu0 %v2718
        %v3009 = vpop.f32.mrf.mxu0
        %v3010 = vadd.f32 0.0, %v3009
        %v3011 = vpop.f32.mrf.mxu0
        %v3012 = vpop.f32.mrf.mxu0
        %v3013 = vadd.f32 0.0, %v3012
        %v3014 = vpop.f32.mrf.mxu0
        %3015 = vmatprep.mubr.bf16.mxu0 0
        %3016 = vmatmul.mubr.bf16.gmra.mxu0 %v2726
        %v3017 = vpop.f32.mrf.mxu0
        %v3018 = vadd.f32 0.0, %v3017
        %v3019 = vpop.f32.mrf.mxu0
        %v3020 = vpop.f32.mrf.mxu0
        %v3021 = vadd.f32 0.0, %v3020
        %v3022 = vpop.f32.mrf.mxu0
        %3023 = vmatprep.mubr.bf16.mxu0 0
        %3024 = vmatmul.mubr.bf16.gmra.mxu0 %v2734
        %v3025 = vpop.f32.mrf.mxu0
        %v3026 = vadd.f32 0.0, %v3025
        %v3027 = vpop.f32.mrf.mxu0
        %v3028 = vpop.f32.mrf.mxu0
        %v3029 = vadd.f32 0.0, %v3028
        %v3030 = vpop.f32.mrf.mxu0
        %3031 = vmatprep.mubr.bf16.mxu0 0
        %3032 = vmatmul.mubr.bf16.gmra.mxu0 %v2742
        %v3033 = vpop.f32.mrf.mxu0
        %v3034 = vadd.f32 0.0, %v3033
        %v3035 = vpop.f32.mrf.mxu0
        %v3036 = vpop.f32.mrf.mxu0
        %v3037 = vadd.f32 0.0, %v3036
        %v3038 = vpop.f32.mrf.mxu0
        %3039 = vmatprep.mubr.bf16.mxu0 0
        %3040 = vmatmul.mubr.bf16.gmra.mxu0 %v2750
        %v3041 = vpop.f32.mrf.mxu0
        %v3042 = vadd.f32 0.0, %v3041
        %v3043 = vpop.f32.mrf.mxu0
        %v3044 = vpop.f32.mrf.mxu0
        %v3045 = vadd.f32 0.0, %v3044
        %v3046 = vpop.f32.mrf.mxu0
        %3047 = vmatprep.mubr.bf16.mxu0 0
        %3048 = vmatmul.mubr.bf16.gmra.mxu0 %v2758
        %v3049 = vpop.f32.mrf.mxu0
        %v3050 = vadd.f32 0.0, %v3049
        %v3051 = vpop.f32.mrf.mxu0
        %v3052 = vpop.f32.mrf.mxu0
        %v3053 = vadd.f32 0.0, %v3052
        %v3054 = vpop.f32.mrf.mxu0
        %3055 = vmatprep.mubr.bf16.mxu0 0
        %3056 = vmatmul.mubr.bf16.gmra.mxu0 %v2766
        %v3057 = vpop.f32.mrf.mxu0
        %v3058 = vadd.f32 0.0, %v3057
        %v3059 = vpop.f32.mrf.mxu0
        %v3060 = vpop.f32.mrf.mxu0
        %v3061 = vadd.f32 0.0, %v3060
        %v3062 = vpop.f32.mrf.mxu0
        %3063 = vmatprep.mubr.bf16.mxu0 0
        %3064 = vmatmul.mubr.bf16.gmra.mxu0 %v2774
        %v3065 = vpop.f32.mrf.mxu0
        %v3066 = vadd.f32 0.0, %v3065
        %v3067 = vpop.f32.mrf.mxu0
        %v3068 = vpop.f32.mrf.mxu0
        %v3069 = vadd.f32 0.0, %v3068
        %v3070 = vpop.f32.mrf.mxu0
        %3071 = vmatprep.mubr.bf16.mxu0 0
        %3072 = vmatmul.mubr.bf16.gmra.mxu0 %v2782
        %v3073 = vpop.f32.mrf.mxu0
        %v3074 = vadd.f32 0.0, %v3073
        %v3075 = vpop.f32.mrf.mxu0
        %v3076 = vpop.f32.mrf.mxu0
        %v3077 = vadd.f32 0.0, %v3076
        %v3078 = vpop.f32.mrf.mxu0
        %3079 = vdwg.mxu0
        %v3080 = vadd.f32 %v2350, %v2890
        %v3081 = vadd.f32 %v2351, %v2893
        %v3082 = vadd.f32 %v2352, %v2898
        %v3083 = vadd.f32 %v2353, %v2901
        %v3084 = vadd.f32 %v2354, %v2906
        %v3085 = vadd.f32 %v2355, %v2909
        %v3086 = vadd.f32 %v2356, %v2914
        %v3087 = vadd.f32 %v2357, %v2917
        %v3088 = vadd.f32 %v2358, %v2922
        %v3089 = vadd.f32 %v2359, %v2925
        %v3090 = vadd.f32 %v2360, %v2930
        %v3091 = vadd.f32 %v2361, %v2933
        %v3092 = vadd.f32 %v2362, %v2938
        %v3093 = vadd.f32 %v2363, %v2941
        %v3094 = vadd.f32 %v2364, %v2946
        %v3095 = vadd.f32 %v2365, %v2949
        %v3096 = vadd.f32 %v2366, %v2954
        %v3097 = vadd.f32 %v2367, %v2957
        %v3098 = vadd.f32 %v2368, %v2962
        %v3099 = vadd.f32 %v2369, %v2965
        %v3100 = vadd.f32 %v2370, %v2970
        %v3101 = vadd.f32 %v2371, %v2973
        %v3102 = vadd.f32 %v2372, %v2978
        %v3103 = vadd.f32 %v2373, %v2981
        %v3104 = vadd.f32 %v2374, %v2986
        %v3105 = vadd.f32 %v2375, %v2989
        %v3106 = vadd.f32 %v2376, %v2994
        %v3107 = vadd.f32 %v2377, %v2997
        %v3108 = vadd.f32 %v2378, %v3002
        %v3109 = vadd.f32 %v2379, %v3005
        %v3110 = vadd.f32 %v2380, %v3010
        %v3111 = vadd.f32 %v2381, %v3013
        %v3112 = vadd.f32 %v2382, %v3018
        %v3113 = vadd.f32 %v2383, %v3021
        %v3114 = vadd.f32 %v2384, %v3026
        %v3115 = vadd.f32 %v2385, %v3029
        %v3116 = vadd.f32 %v2386, %v3034
        %v3117 = vadd.f32 %v2387, %v3037
        %v3118 = vadd.f32 %v2388, %v3042
        %v3119 = vadd.f32 %v2389, %v3045
        %v3120 = vadd.f32 %v2390, %v3050
        %v3121 = vadd.f32 %v2391, %v3053
        %v3122 = vadd.f32 %v2392, %v3058
        %v3123 = vadd.f32 %v2393, %v3061
        %v3124 = vadd.f32 %v2394, %v3066
        %v3125 = vadd.f32 %v2395, %v3069
        %v3126 = vadd.f32 %v2396, %v3074
        %v3127 = vadd.f32 %v2397, %v3077
        %v3128 = vld [vmem:[%s362 + $0xc] sm:$0xe]
        %s3129 = scalar_lea.vmem [#allocation6], 320
        %v3130 = vld [vmem:[%s3129] sm:$0xf]
        %v3131 = vld [vmem:[%s3129 + $0x4] sm:$0xf]
        %v3132 = vld [vmem:[%s3129 + $0x8] sm:$0xf]
        %v3133 = vld [vmem:[%s3129 + $0xc] sm:$0xf]
        %v3134 = vld [vmem:[%s3129 + $0x10] sm:$0xf]
        %v3135 = vld [vmem:[%s3129 + $0x14] sm:$0xf]
        %v3136 = vld [vmem:[%s3129 + $0x18] sm:$0xf]
        %v3137 = vld [vmem:[%s3129 + $0x1c] sm:$0xf]
        %v3138 = vld [vmem:[%s3129 + $0x20] sm:$0xf]
        %v3139 = vld [vmem:[%s3129 + $0x24] sm:$0xf]
        %v3140 = vld [vmem:[%s3129 + $0x28] sm:$0xf]
        %v3141 = vld [vmem:[%s3129 + $0x2c] sm:$0xf]
        %v3142 = vld [vmem:[%s3129 + $0x30] sm:$0xf]
        %v3143 = vld [vmem:[%s3129 + $0x34] sm:$0xf]
        %v3144 = vld [vmem:[%s3129 + $0x38] sm:$0xf]
        %v3145 = vld [vmem:[%s3129 + $0x3c] sm:$0xf]
        %v3147 = vunpack.c.l.b16 %v3128
        %v3148 = vpack.c.b16 %v2514, %v3147
        %v3149 = vrot.slane %v3148, 1
        %v3150 = vrot.slane %v2563, 1
        %v3151 = vsel %vm1473, %v3149, %v3150
        %v3152 = vrot.slane %v2564, 1
        %v3153 = vsel %vm1473, %v3150, %v3152
        %v3154 = vrot.slane %v2565, 1
        %v3155 = vsel %vm1473, %v3152, %v3154
        %v3156 = vrot.slane %v2566, 1
        %v3157 = vsel %vm1473, %v3154, %v3156
        %v3158 = vrot.slane %v2567, 1
        %v3159 = vsel %vm1473, %v3156, %v3158
        %v3160 = vrot.slane %v2568, 1
        %v3161 = vsel %vm1473, %v3158, %v3160
        %v3162 = vrot.slane %v2569, 1
        %v3163 = vsel %vm1473, %v3160, %v3162
        %v3164 = vrot.slane %v2570, 1
        %v3165 = vsel %vm1473, %v3162, %v3164
        %v3166 = vrot.slane %v2571, 1
        %v3167 = vsel %vm1473, %v3164, %v3166
        %v3168 = vrot.slane %v2572, 1
        %v3169 = vsel %vm1473, %v3166, %v3168
        %v3170 = vrot.slane %v2573, 1
        %v3171 = vsel %vm1473, %v3168, %v3170
        %v3172 = vrot.slane %v2574, 1
        %v3173 = vsel %vm1473, %v3170, %v3172
        %v3174 = vrot.slane %v2575, 1
        %v3175 = vsel %vm1473, %v3172, %v3174
        %v3176 = vrot.slane %v2576, 1
        %v3177 = vsel %vm1473, %v3174, %v3176
        %v3178 = vrot.slane %v2577, 1
        %v3179 = vsel %vm1473, %v3176, %v3178
        %v3180 = vrot.slane %v2578, 1
        %v3181 = vsel %vm1473, %v3178, %v3180
        %v3182 = vrot.slane %v2579, 1
        %v3183 = vsel %vm1473, %v3180, %v3182
        %v3184 = vrot.slane %v2580, 1
        %v3185 = vsel %vm1473, %v3182, %v3184
        %v3186 = vrot.slane %v2581, 1
        %v3187 = vsel %vm1473, %v3184, %v3186
        %v3188 = vrot.slane %v2582, 1
        %v3189 = vsel %vm1473, %v3186, %v3188
        %v3190 = vrot.slane %v2583, 1
        %v3191 = vsel %vm1473, %v3188, %v3190
        %v3192 = vrot.slane %v2584, 1
        %v3193 = vsel %vm1473, %v3190, %v3192
        %v3194 = vrot.slane %v2585, 1
        %v3195 = vsel %vm1473, %v3192, %v3194
        %v3196 = vrot.slane %v2586, 1
        %v3197 = vsel %vm1473, %v3194, %v3196
        %v3238 = vunpack.c.l.b16 %v3130
        %v3239 = vunpack.c.l.b16 %v3131
        %v3240 = vunpack.c.l.b16 %v3132
        %v3241 = vunpack.c.l.b16 %v3133
        %v3242 = vunpack.c.l.b16 %v3134
        %v3243 = vunpack.c.l.b16 %v3135
        %v3244 = vunpack.c.l.b16 %v3136
        %v3245 = vunpack.c.l.b16 %v3137
        %v3246 = vunpack.c.l.b16 %v3138
        %v3247 = vunpack.c.l.b16 %v3139
        %v3248 = vunpack.c.l.b16 %v3140
        %v3249 = vunpack.c.l.b16 %v3141
        %v3250 = vunpack.c.l.b16 %v3142
        %v3251 = vunpack.c.l.b16 %v3143
        %v3252 = vunpack.c.l.b16 %v3144
        %v3253 = vunpack.c.l.b16 %v3145
        %v3254 = vpack.c.b16 %v3239, %v3238
        %v3255 = vpack.c.b16 %v3241, %v3240
        %v3256 = vpack.c.b16 %v3243, %v3242
        %v3257 = vpack.c.b16 %v3245, %v3244
        %v3258 = vpack.c.b16 %v3247, %v3246
        %v3259 = vpack.c.b16 %v3249, %v3248
        %v3260 = vpack.c.b16 %v3251, %v3250
        %v3261 = vpack.c.b16 %v3253, %v3252
        %3270 = vmatprep.subr.bf16.mxu0 0
        %3271 = vmatpush1.bf16.msra.mxu0 %v3261
        %3272 = vmatprep.subr.bf16.mxu0 0
        %3273 = vmatpush1.bf16.msra.mxu0 %v3260
        %3274 = vmatprep.subr.bf16.mxu0 0
        %3275 = vmatpush1.bf16.msra.mxu0 %v3259
        %3276 = vmatprep.subr.bf16.mxu0 0
        %3277 = vmatpush1.bf16.msra.mxu0 %v3258
        %3278 = vmatprep.subr.bf16.mxu0 0
        %3279 = vmatpush1.bf16.msra.mxu0 %v3257
        %3280 = vmatprep.subr.bf16.mxu0 0
        %3281 = vmatpush1.bf16.msra.mxu0 %v3256
        %3282 = vmatprep.subr.bf16.mxu0 0
        %3283 = vmatpush1.bf16.msra.mxu0 %v3255
        %3284 = vmatprep.subr.bf16.mxu0 0
        %3285 = vmatpush1.bf16.msra.mxu0 %v3254
        %3286 = vmatprep.subr.bf16.mxu0 0
        %3287 = vmatpush2.bf16.msra.mxu0 0
        %3288 = vmatprep.subr.bf16.mxu0 0
        %3289 = vmatpush2.bf16.msra.mxu0 0
        %3290 = vmatprep.subr.bf16.mxu0 0
        %3291 = vmatpush2.bf16.msra.mxu0 0
        %3292 = vmatprep.subr.bf16.mxu0 0
        %3293 = vmatpush2.bf16.msra.mxu0 0
        %3294 = vmatprep.subr.bf16.mxu0 0
        %3295 = vmatpush2.bf16.msra.mxu0 0
        %3296 = vmatprep.subr.bf16.mxu0 0
        %3297 = vmatpush2.bf16.msra.mxu0 0
        %3298 = vmatprep.subr.bf16.mxu0 0
        %3299 = vmatpush2.bf16.msra.mxu0 0
        %3300 = vmatprep.subr.bf16.mxu0 0
        %3301 = vmatpush2.bf16.msra.mxu0 0
        %3302 = vmatprep.mubr.bf16.mxu0 0
        %3303 = vmatmul.mubr.bf16.gmra.mxu0 %v3151
        %v3304 = vpop.f32.mrf.mxu0
        %v3305 = vadd.f32 0.0, %v3304
        %v3306 = vpop.f32.mrf.mxu0
        %v3307 = vpop.f32.mrf.mxu0
        %v3308 = vadd.f32 0.0, %v3307
        %v3309 = vpop.f32.mrf.mxu0
        %3310 = vmatprep.mubr.bf16.mxu0 0
        %3311 = vmatmul.mubr.bf16.gmra.mxu0 %v3153
        %v3312 = vpop.f32.mrf.mxu0
        %v3313 = vadd.f32 0.0, %v3312
        %v3314 = vpop.f32.mrf.mxu0
        %v3315 = vpop.f32.mrf.mxu0
        %v3316 = vadd.f32 0.0, %v3315
        %v3317 = vpop.f32.mrf.mxu0
        %3318 = vmatprep.mubr.bf16.mxu0 0
        %3319 = vmatmul.mubr.bf16.gmra.mxu0 %v3155
        %v3320 = vpop.f32.mrf.mxu0
        %v3321 = vadd.f32 0.0, %v3320
        %v3322 = vpop.f32.mrf.mxu0
        %v3323 = vpop.f32.mrf.mxu0
        %v3324 = vadd.f32 0.0, %v3323
        %v3325 = vpop.f32.mrf.mxu0
        %3326 = vmatprep.mubr.bf16.mxu0 0
        %3327 = vmatmul.mubr.bf16.gmra.mxu0 %v3157
        %v3328 = vpop.f32.mrf.mxu0
        %v3329 = vadd.f32 0.0, %v3328
        %v3330 = vpop.f32.mrf.mxu0
        %v3331 = vpop.f32.mrf.mxu0
        %v3332 = vadd.f32 0.0, %v3331
        %v3333 = vpop.f32.mrf.mxu0
        %3334 = vmatprep.mubr.bf16.mxu0 0
        %3335 = vmatmul.mubr.bf16.gmra.mxu0 %v3159
        %v3336 = vpop.f32.mrf.mxu0
        %v3337 = vadd.f32 0.0, %v3336
        %v3338 = vpop.f32.mrf.mxu0
        %v3339 = vpop.f32.mrf.mxu0
        %v3340 = vadd.f32 0.0, %v3339
        %v3341 = vpop.f32.mrf.mxu0
        %3342 = vmatprep.mubr.bf16.mxu0 0
        %3343 = vmatmul.mubr.bf16.gmra.mxu0 %v3161
        %v3344 = vpop.f32.mrf.mxu0
        %v3345 = vadd.f32 0.0, %v3344
        %v3346 = vpop.f32.mrf.mxu0
        %v3347 = vpop.f32.mrf.mxu0
        %v3348 = vadd.f32 0.0, %v3347
        %v3349 = vpop.f32.mrf.mxu0
        %3350 = vmatprep.mubr.bf16.mxu0 0
        %3351 = vmatmul.mubr.bf16.gmra.mxu0 %v3163
        %v3352 = vpop.f32.mrf.mxu0
        %v3353 = vadd.f32 0.0, %v3352
        %v3354 = vpop.f32.mrf.mxu0
        %v3355 = vpop.f32.mrf.mxu0
        %v3356 = vadd.f32 0.0, %v3355
        %v3357 = vpop.f32.mrf.mxu0
        %3358 = vmatprep.mubr.bf16.mxu0 0
        %3359 = vmatmul.mubr.bf16.gmra.mxu0 %v3165
        %v3360 = vpop.f32.mrf.mxu0
        %v3361 = vadd.f32 0.0, %v3360
        %v3362 = vpop.f32.mrf.mxu0
        %v3363 = vpop.f32.mrf.mxu0
        %v3364 = vadd.f32 0.0, %v3363
        %v3365 = vpop.f32.mrf.mxu0
        %3366 = vmatprep.mubr.bf16.mxu0 0
        %3367 = vmatmul.mubr.bf16.gmra.mxu0 %v3167
        %v3368 = vpop.f32.mrf.mxu0
        %v3369 = vadd.f32 0.0, %v3368
        %v3370 = vpop.f32.mrf.mxu0
        %v3371 = vpop.f32.mrf.mxu0
        %v3372 = vadd.f32 0.0, %v3371
        %v3373 = vpop.f32.mrf.mxu0
        %3374 = vmatprep.mubr.bf16.mxu0 0
        %3375 = vmatmul.mubr.bf16.gmra.mxu0 %v3169
        %v3376 = vpop.f32.mrf.mxu0
        %v3377 = vadd.f32 0.0, %v3376
        %v3378 = vpop.f32.mrf.mxu0
        %v3379 = vpop.f32.mrf.mxu0
        %v3380 = vadd.f32 0.0, %v3379
        %v3381 = vpop.f32.mrf.mxu0
        %3382 = vmatprep.mubr.bf16.mxu0 0
        %3383 = vmatmul.mubr.bf16.gmra.mxu0 %v3171
        %v3384 = vpop.f32.mrf.mxu0
        %v3385 = vadd.f32 0.0, %v3384
        %v3386 = vpop.f32.mrf.mxu0
        %v3387 = vpop.f32.mrf.mxu0
        %v3388 = vadd.f32 0.0, %v3387
        %v3389 = vpop.f32.mrf.mxu0
        %3390 = vmatprep.mubr.bf16.mxu0 0
        %3391 = vmatmul.mubr.bf16.gmra.mxu0 %v3173
        %v3392 = vpop.f32.mrf.mxu0
        %v3393 = vadd.f32 0.0, %v3392
        %v3394 = vpop.f32.mrf.mxu0
        %v3395 = vpop.f32.mrf.mxu0
        %v3396 = vadd.f32 0.0, %v3395
        %v3397 = vpop.f32.mrf.mxu0
        %3398 = vmatprep.mubr.bf16.mxu0 0
        %3399 = vmatmul.mubr.bf16.gmra.mxu0 %v3175
        %v3400 = vpop.f32.mrf.mxu0
        %v3401 = vadd.f32 0.0, %v3400
        %v3402 = vpop.f32.mrf.mxu0
        %v3403 = vpop.f32.mrf.mxu0
        %v3404 = vadd.f32 0.0, %v3403
        %v3405 = vpop.f32.mrf.mxu0
        %3406 = vmatprep.mubr.bf16.mxu0 0
        %3407 = vmatmul.mubr.bf16.gmra.mxu0 %v3177
        %v3408 = vpop.f32.mrf.mxu0
        %v3409 = vadd.f32 0.0, %v3408
        %v3410 = vpop.f32.mrf.mxu0
        %v3411 = vpop.f32.mrf.mxu0
        %v3412 = vadd.f32 0.0, %v3411
        %v3413 = vpop.f32.mrf.mxu0
        %3414 = vmatprep.mubr.bf16.mxu0 0
        %3415 = vmatmul.mubr.bf16.gmra.mxu0 %v3179
        %v3416 = vpop.f32.mrf.mxu0
        %v3417 = vadd.f32 0.0, %v3416
        %v3418 = vpop.f32.mrf.mxu0
        %v3419 = vpop.f32.mrf.mxu0
        %v3420 = vadd.f32 0.0, %v3419
        %v3421 = vpop.f32.mrf.mxu0
        %3422 = vmatprep.mubr.bf16.mxu0 0
        %3423 = vmatmul.mubr.bf16.gmra.mxu0 %v3181
        %v3424 = vpop.f32.mrf.mxu0
        %v3425 = vadd.f32 0.0, %v3424
        %v3426 = vpop.f32.mrf.mxu0
        %v3427 = vpop.f32.mrf.mxu0
        %v3428 = vadd.f32 0.0, %v3427
        %v3429 = vpop.f32.mrf.mxu0
        %3430 = vmatprep.mubr.bf16.mxu0 0
        %3431 = vmatmul.mubr.bf16.gmra.mxu0 %v3183
        %v3432 = vpop.f32.mrf.mxu0
        %v3433 = vadd.f32 0.0, %v3432
        %v3434 = vpop.f32.mrf.mxu0
        %v3435 = vpop.f32.mrf.mxu0
        %v3436 = vadd.f32 0.0, %v3435
        %v3437 = vpop.f32.mrf.mxu0
        %3438 = vmatprep.mubr.bf16.mxu0 0
        %3439 = vmatmul.mubr.bf16.gmra.mxu0 %v3185
        %v3440 = vpop.f32.mrf.mxu0
        %v3441 = vadd.f32 0.0, %v3440
        %v3442 = vpop.f32.mrf.mxu0
        %v3443 = vpop.f32.mrf.mxu0
        %v3444 = vadd.f32 0.0, %v3443
        %v3445 = vpop.f32.mrf.mxu0
        %3446 = vmatprep.mubr.bf16.mxu0 0
        %3447 = vmatmul.mubr.bf16.gmra.mxu0 %v3187
        %v3448 = vpop.f32.mrf.mxu0
        %v3449 = vadd.f32 0.0, %v3448
        %v3450 = vpop.f32.mrf.mxu0
        %v3451 = vpop.f32.mrf.mxu0
        %v3452 = vadd.f32 0.0, %v3451
        %v3453 = vpop.f32.mrf.mxu0
        %3454 = vmatprep.mubr.bf16.mxu0 0
        %3455 = vmatmul.mubr.bf16.gmra.mxu0 %v3189
        %v3456 = vpop.f32.mrf.mxu0
        %v3457 = vadd.f32 0.0, %v3456
        %v3458 = vpop.f32.mrf.mxu0
        %v3459 = vpop.f32.mrf.mxu0
        %v3460 = vadd.f32 0.0, %v3459
        %v3461 = vpop.f32.mrf.mxu0
        %3462 = vmatprep.mubr.bf16.mxu0 0
        %3463 = vmatmul.mubr.bf16.gmra.mxu0 %v3191
        %v3464 = vpop.f32.mrf.mxu0
        %v3465 = vadd.f32 0.0, %v3464
        %v3466 = vpop.f32.mrf.mxu0
        %v3467 = vpop.f32.mrf.mxu0
        %v3468 = vadd.f32 0.0, %v3467
        %v3469 = vpop.f32.mrf.mxu0
        %3470 = vmatprep.mubr.bf16.mxu0 0
        %3471 = vmatmul.mubr.bf16.gmra.mxu0 %v3193
        %v3472 = vpop.f32.mrf.mxu0
        %v3473 = vadd.f32 0.0, %v3472
        %v3474 = vpop.f32.mrf.mxu0
        %v3475 = vpop.f32.mrf.mxu0
        %v3476 = vadd.f32 0.0, %v3475
        %v3477 = vpop.f32.mrf.mxu0
        %3478 = vmatprep.mubr.bf16.mxu0 0
        %3479 = vmatmul.mubr.bf16.gmra.mxu0 %v3195
        %v3480 = vpop.f32.mrf.mxu0
        %v3481 = vadd.f32 0.0, %v3480
        %v3482 = vpop.f32.mrf.mxu0
        %v3483 = vpop.f32.mrf.mxu0
        %v3484 = vadd.f32 0.0, %v3483
        %v3485 = vpop.f32.mrf.mxu0
        %3486 = vmatprep.mubr.bf16.mxu0 0
        %3487 = vmatmul.mubr.bf16.gmra.mxu0 %v3197
        %v3488 = vpop.f32.mrf.mxu0
        %v3489 = vadd.f32 0.0, %v3488
        %v3490 = vpop.f32.mrf.mxu0
        %v3491 = vpop.f32.mrf.mxu0
        %v3492 = vadd.f32 0.0, %v3491
        %v3493 = vpop.f32.mrf.mxu0
        %3494 = vdwg.mxu0
        %v3495 = vadd.f32 %v3080, %v3305
        %v3496 = vadd.f32 %v3081, %v3308
        %v3497 = vadd.f32 %v3082, %v3313
        %v3498 = vadd.f32 %v3083, %v3316
        %v3499 = vadd.f32 %v3084, %v3321
        %v3500 = vadd.f32 %v3085, %v3324
        %v3501 = vadd.f32 %v3086, %v3329
        %v3502 = vadd.f32 %v3087, %v3332
        %v3503 = vadd.f32 %v3088, %v3337
        %v3504 = vadd.f32 %v3089, %v3340
        %v3505 = vadd.f32 %v3090, %v3345
        %v3506 = vadd.f32 %v3091, %v3348
        %v3507 = vadd.f32 %v3092, %v3353
        %v3508 = vadd.f32 %v3093, %v3356
        %v3509 = vadd.f32 %v3094, %v3361
        %v3510 = vadd.f32 %v3095, %v3364
        %v3511 = vadd.f32 %v3096, %v3369
        %v3512 = vadd.f32 %v3097, %v3372
        %v3513 = vadd.f32 %v3098, %v3377
        %v3514 = vadd.f32 %v3099, %v3380
        %v3515 = vadd.f32 %v3100, %v3385
        %v3516 = vadd.f32 %v3101, %v3388
        %v3517 = vadd.f32 %v3102, %v3393
        %v3518 = vadd.f32 %v3103, %v3396
        %v3519 = vadd.f32 %v3104, %v3401
        %v3520 = vadd.f32 %v3105, %v3404
        %v3521 = vadd.f32 %v3106, %v3409
        %v3522 = vadd.f32 %v3107, %v3412
        %v3523 = vadd.f32 %v3108, %v3417
        %v3524 = vadd.f32 %v3109, %v3420
        %v3525 = vadd.f32 %v3110, %v3425
        %v3526 = vadd.f32 %v3111, %v3428
        %v3527 = vadd.f32 %v3112, %v3433
        %v3528 = vadd.f32 %v3113, %v3436
        %v3529 = vadd.f32 %v3114, %v3441
        %v3530 = vadd.f32 %v3115, %v3444
        %v3531 = vadd.f32 %v3116, %v3449
        %v3532 = vadd.f32 %v3117, %v3452
        %v3533 = vadd.f32 %v3118, %v3457
        %v3534 = vadd.f32 %v3119, %v3460
        %v3535 = vadd.f32 %v3120, %v3465
        %v3536 = vadd.f32 %v3121, %v3468
        %v3537 = vadd.f32 %v3122, %v3473
        %v3538 = vadd.f32 %v3123, %v3476
        %v3539 = vadd.f32 %v3124, %v3481
        %v3540 = vadd.f32 %v3125, %v3484
        %v3541 = vadd.f32 %v3126, %v3489
        %v3542 = vadd.f32 %v3127, %v3492
        %v3543 = vld [vmem:[%s362 + $0x18] sm:$0xf]
        %v3544 = vld [vmem:[%s362 + $0x1c] sm:$0xf]
        %v3545 = vld [vmem:[%s362 + $0x20] sm:$0xf]
        %v3546 = vld [vmem:[%s362 + $0x24] sm:$0xf]
        %v3547 = vld [vmem:[%s362 + $0x28] sm:$0xf]
        %v3548 = vld [vmem:[%s362 + $0x2c] sm:$0xf]
        %v3549 = vld [vmem:[%s362 + $0x30] sm:$0xf]
        %v3550 = vld [vmem:[%s362 + $0x34] sm:$0xf]
        %v3551 = vld [vmem:[%s362 + $0x38] sm:$0xf]
        %v3552 = vld [vmem:[%s362 + $0x3c] sm:$0xf]
        %v3553 = vld [vmem:[%s362 + $0x40] sm:$0xf]
        %v3554 = vld [vmem:[%s362 + $0x44] sm:$0xf]
        %v3555 = vld [vmem:[%s362 + $0x48] sm:$0xf]
        %v3556 = vld [vmem:[%s362 + $0x4c] sm:$0xf]
        %v3557 = vld [vmem:[%s362 + $0x50] sm:$0xf]
        %v3558 = vld [vmem:[%s362 + $0x54] sm:$0xf]
        %v3559 = vld [vmem:[%s362 + $0x58] sm:$0xf]
        %v3560 = vld [vmem:[%s362 + $0x5c] sm:$0xf]
        %v3561 = vld [vmem:[%s362 + $0x60] sm:$0xf]
        %v3562 = vld [vmem:[%s362 + $0x64] sm:$0xf]
        %v3563 = vld [vmem:[%s362 + $0x68] sm:$0xf]
        %v3564 = vld [vmem:[%s362 + $0x6c] sm:$0xf]
        %v3565 = vld [vmem:[%s362 + $0x70] sm:$0xf]
        %v3566 = vld [vmem:[%s362 + $0x74] sm:$0xf]
        %v3567 = vld [vmem:[%s362 + $0x78] sm:$0xf]
        %v3568 = vld [vmem:[%s362 + $0x7c] sm:$0xf]
        %v3569 = vld [vmem:[%s362 + $0x80] sm:$0xf]
        %v3570 = vld [vmem:[%s362 + $0x84] sm:$0xf]
        %v3571 = vld [vmem:[%s362 + $0x88] sm:$0xf]
        %v3572 = vld [vmem:[%s362 + $0x8c] sm:$0xf]
        %v3573 = vld [vmem:[%s362 + $0x90] sm:$0xf]
        %v3574 = vld [vmem:[%s362 + $0x94] sm:$0xf]
        %v3575 = vld [vmem:[%s362 + $0x98] sm:$0xf]
        %v3576 = vld [vmem:[%s362 + $0x9c] sm:$0xf]
        %v3577 = vld [vmem:[%s362 + $0xa0] sm:$0xf]
        %v3578 = vld [vmem:[%s362 + $0xa4] sm:$0xf]
        %v3579 = vld [vmem:[%s362 + $0xa8] sm:$0xf]
        %v3580 = vld [vmem:[%s362 + $0xac] sm:$0xf]
        %v3581 = vld [vmem:[%s362 + $0xb0] sm:$0xf]
        %v3582 = vld [vmem:[%s362 + $0xb4] sm:$0xf]
        %v3583 = vld [vmem:[%s362 + $0xb8] sm:$0xf]
        %v3584 = vld [vmem:[%s362 + $0xbc] sm:$0xf]
        %v3585 = vld [vmem:[%s362 + $0xc0] sm:$0xf]
        %v3586 = vld [vmem:[%s362 + $0xc4] sm:$0xf]
        %v3587 = vld [vmem:[%s362 + $0xc8] sm:$0xf]
        %v3588 = vld [vmem:[%s362 + $0xcc] sm:$0xf]
        %v3589 = vld [vmem:[%s362 + $0xd0] sm:$0xf]
        %v3590 = vld [vmem:[%s362 + $0xd4] sm:$0xf]
        %s3591 = scalar_lea.vmem [#allocation6], 384
        %v3592 = vld [vmem:[%s3591] sm:$0xf]
        %v3593 = vld [vmem:[%s3591 + $0x4] sm:$0xf]
        %v3594 = vld [vmem:[%s3591 + $0x8] sm:$0xf]
        %v3595 = vld [vmem:[%s3591 + $0xc] sm:$0xf]
        %v3596 = vld [vmem:[%s3591 + $0x10] sm:$0xf]
        %v3597 = vld [vmem:[%s3591 + $0x14] sm:$0xf]
        %v3598 = vld [vmem:[%s3591 + $0x18] sm:$0xf]
        %v3599 = vld [vmem:[%s3591 + $0x1c] sm:$0xf]
        %v3600 = vld [vmem:[%s3591 + $0x20] sm:$0xf]
        %v3601 = vld [vmem:[%s3591 + $0x24] sm:$0xf]
        %v3602 = vld [vmem:[%s3591 + $0x28] sm:$0xf]
        %v3603 = vld [vmem:[%s3591 + $0x2c] sm:$0xf]
        %v3604 = vld [vmem:[%s3591 + $0x30] sm:$0xf]
        %v3605 = vld [vmem:[%s3591 + $0x34] sm:$0xf]
        %v3606 = vld [vmem:[%s3591 + $0x38] sm:$0xf]
        %v3607 = vld [vmem:[%s3591 + $0x3c] sm:$0xf]
        %v3656 = vunpack.c.l.b16 %v3543
        %v3657 = vunpack.c.l.b16 %v3544
        %v3658 = vunpack.c.l.b16 %v3545
        %v3659 = vunpack.c.l.b16 %v3546
        %v3660 = vunpack.c.l.b16 %v3547
        %v3661 = vunpack.c.l.b16 %v3548
        %v3662 = vunpack.c.l.b16 %v3549
        %v3663 = vunpack.c.l.b16 %v3550
        %v3664 = vunpack.c.l.b16 %v3551
        %v3665 = vunpack.c.l.b16 %v3552
        %v3666 = vunpack.c.l.b16 %v3553
        %v3667 = vunpack.c.l.b16 %v3554
        %v3668 = vunpack.c.l.b16 %v3555
        %v3669 = vunpack.c.l.b16 %v3556
        %v3670 = vunpack.c.l.b16 %v3557
        %v3671 = vunpack.c.l.b16 %v3558
        %v3672 = vunpack.c.l.b16 %v3559
        %v3673 = vunpack.c.l.b16 %v3560
        %v3674 = vunpack.c.l.b16 %v3561
        %v3675 = vunpack.c.l.b16 %v3562
        %v3676 = vunpack.c.l.b16 %v3563
        %v3677 = vunpack.c.l.b16 %v3564
        %v3678 = vunpack.c.l.b16 %v3565
        %v3679 = vunpack.c.l.b16 %v3566
        %v3680 = vunpack.c.l.b16 %v3567
        %v3681 = vunpack.c.l.b16 %v3568
        %v3682 = vunpack.c.l.b16 %v3569
        %v3683 = vunpack.c.l.b16 %v3570
        %v3684 = vunpack.c.l.b16 %v3571
        %v3685 = vunpack.c.l.b16 %v3572
        %v3686 = vunpack.c.l.b16 %v3573
        %v3687 = vunpack.c.l.b16 %v3574
        %v3688 = vunpack.c.l.b16 %v3575
        %v3689 = vunpack.c.l.b16 %v3576
        %v3690 = vunpack.c.l.b16 %v3577
        %v3691 = vunpack.c.l.b16 %v3578
        %v3692 = vunpack.c.l.b16 %v3579
        %v3693 = vunpack.c.l.b16 %v3580
        %v3694 = vunpack.c.l.b16 %v3581
        %v3695 = vunpack.c.l.b16 %v3582
        %v3696 = vunpack.c.l.b16 %v3583
        %v3697 = vunpack.c.l.b16 %v3584
        %v3698 = vunpack.c.l.b16 %v3585
        %v3699 = vunpack.c.l.b16 %v3586
        %v3700 = vunpack.c.l.b16 %v3587
        %v3701 = vunpack.c.l.b16 %v3588
        %v3702 = vunpack.c.l.b16 %v3589
        %v3703 = vunpack.c.l.b16 %v3590
        %v3704 = vpack.c.b16 %v3657, %v3656
        %v3705 = vpack.c.b16 %v3659, %v3658
        %v3706 = vpack.c.b16 %v3661, %v3660
        %v3707 = vpack.c.b16 %v3663, %v3662
        %v3708 = vpack.c.b16 %v3665, %v3664
        %v3709 = vpack.c.b16 %v3667, %v3666
        %v3710 = vpack.c.b16 %v3669, %v3668
        %v3711 = vpack.c.b16 %v3671, %v3670
        %v3712 = vpack.c.b16 %v3673, %v3672
        %v3713 = vpack.c.b16 %v3675, %v3674
        %v3714 = vpack.c.b16 %v3677, %v3676
        %v3715 = vpack.c.b16 %v3679, %v3678
        %v3716 = vpack.c.b16 %v3681, %v3680
        %v3717 = vpack.c.b16 %v3683, %v3682
        %v3718 = vpack.c.b16 %v3685, %v3684
        %v3719 = vpack.c.b16 %v3687, %v3686
        %v3720 = vpack.c.b16 %v3689, %v3688
        %v3721 = vpack.c.b16 %v3691, %v3690
        %v3722 = vpack.c.b16 %v3693, %v3692
        %v3723 = vpack.c.b16 %v3695, %v3694
        %v3724 = vpack.c.b16 %v3697, %v3696
        %v3725 = vpack.c.b16 %v3699, %v3698
        %v3726 = vpack.c.b16 %v3701, %v3700
        %v3727 = vpack.c.b16 %v3703, %v3702
        %v3768 = vunpack.c.l.b16 %v3592
        %v3769 = vunpack.c.l.b16 %v3593
        %v3770 = vunpack.c.l.b16 %v3594
        %v3771 = vunpack.c.l.b16 %v3595
        %v3772 = vunpack.c.l.b16 %v3596
        %v3773 = vunpack.c.l.b16 %v3597
        %v3774 = vunpack.c.l.b16 %v3598
        %v3775 = vunpack.c.l.b16 %v3599
        %v3776 = vunpack.c.l.b16 %v3600
        %v3777 = vunpack.c.l.b16 %v3601
        %v3778 = vunpack.c.l.b16 %v3602
        %v3779 = vunpack.c.l.b16 %v3603
        %v3780 = vunpack.c.l.b16 %v3604
        %v3781 = vunpack.c.l.b16 %v3605
        %v3782 = vunpack.c.l.b16 %v3606
        %v3783 = vunpack.c.l.b16 %v3607
        %v3784 = vpack.c.b16 %v3769, %v3768
        %v3785 = vpack.c.b16 %v3771, %v3770
        %v3786 = vpack.c.b16 %v3773, %v3772
        %v3787 = vpack.c.b16 %v3775, %v3774
        %v3788 = vpack.c.b16 %v3777, %v3776
        %v3789 = vpack.c.b16 %v3779, %v3778
        %v3790 = vpack.c.b16 %v3781, %v3780
        %v3791 = vpack.c.b16 %v3783, %v3782
        %3800 = vmatprep.subr.bf16.mxu0 0
        %3801 = vmatpush1.bf16.msra.mxu0 %v3791
        %3802 = vmatprep.subr.bf16.mxu0 0
        %3803 = vmatpush1.bf16.msra.mxu0 %v3790
        %3804 = vmatprep.subr.bf16.mxu0 0
        %3805 = vmatpush1.bf16.msra.mxu0 %v3789
        %3806 = vmatprep.subr.bf16.mxu0 0
        %3807 = vmatpush1.bf16.msra.mxu0 %v3788
        %3808 = vmatprep.subr.bf16.mxu0 0
        %3809 = vmatpush1.bf16.msra.mxu0 %v3787
        %3810 = vmatprep.subr.bf16.mxu0 0
        %3811 = vmatpush1.bf16.msra.mxu0 %v3786
        %3812 = vmatprep.subr.bf16.mxu0 0
        %3813 = vmatpush1.bf16.msra.mxu0 %v3785
        %3814 = vmatprep.subr.bf16.mxu0 0
        %3815 = vmatpush1.bf16.msra.mxu0 %v3784
        %3816 = vmatprep.subr.bf16.mxu0 0
        %3817 = vmatpush2.bf16.msra.mxu0 0
        %3818 = vmatprep.subr.bf16.mxu0 0
        %3819 = vmatpush2.bf16.msra.mxu0 0
        %3820 = vmatprep.subr.bf16.mxu0 0
        %3821 = vmatpush2.bf16.msra.mxu0 0
        %3822 = vmatprep.subr.bf16.mxu0 0
        %3823 = vmatpush2.bf16.msra.mxu0 0
        %3824 = vmatprep.subr.bf16.mxu0 0
        %3825 = vmatpush2.bf16.msra.mxu0 0
        %3826 = vmatprep.subr.bf16.mxu0 0
        %3827 = vmatpush2.bf16.msra.mxu0 0
        %3828 = vmatprep.subr.bf16.mxu0 0
        %3829 = vmatpush2.bf16.msra.mxu0 0
        %3830 = vmatprep.subr.bf16.mxu0 0
        %3831 = vmatpush2.bf16.msra.mxu0 0
        %3832 = vmatprep.mubr.bf16.mxu0 0
        %3833 = vmatmul.mubr.bf16.gmra.mxu0 %v3704
        %v3834 = vpop.f32.mrf.mxu0
        %v3835 = vadd.f32 0.0, %v3834
        %v3836 = vpop.f32.mrf.mxu0
        %v3837 = vpop.f32.mrf.mxu0
        %v3838 = vadd.f32 0.0, %v3837
        %v3839 = vpop.f32.mrf.mxu0
        %3840 = vmatprep.mubr.bf16.mxu0 0
        %3841 = vmatmul.mubr.bf16.gmra.mxu0 %v3705
        %v3842 = vpop.f32.mrf.mxu0
        %v3843 = vadd.f32 0.0, %v3842
        %v3844 = vpop.f32.mrf.mxu0
        %v3845 = vpop.f32.mrf.mxu0
        %v3846 = vadd.f32 0.0, %v3845
        %v3847 = vpop.f32.mrf.mxu0
        %3848 = vmatprep.mubr.bf16.mxu0 0
        %3849 = vmatmul.mubr.bf16.gmra.mxu0 %v3706
        %v3850 = vpop.f32.mrf.mxu0
        %v3851 = vadd.f32 0.0, %v3850
        %v3852 = vpop.f32.mrf.mxu0
        %v3853 = vpop.f32.mrf.mxu0
        %v3854 = vadd.f32 0.0, %v3853
        %v3855 = vpop.f32.mrf.mxu0
        %3856 = vmatprep.mubr.bf16.mxu0 0
        %3857 = vmatmul.mubr.bf16.gmra.mxu0 %v3707
        %v3858 = vpop.f32.mrf.mxu0
        %v3859 = vadd.f32 0.0, %v3858
        %v3860 = vpop.f32.mrf.mxu0
        %v3861 = vpop.f32.mrf.mxu0
        %v3862 = vadd.f32 0.0, %v3861
        %v3863 = vpop.f32.mrf.mxu0
        %3864 = vmatprep.mubr.bf16.mxu0 0
        %3865 = vmatmul.mubr.bf16.gmra.mxu0 %v3708
        %v3866 = vpop.f32.mrf.mxu0
        %v3867 = vadd.f32 0.0, %v3866
        %v3868 = vpop.f32.mrf.mxu0
        %v3869 = vpop.f32.mrf.mxu0
        %v3870 = vadd.f32 0.0, %v3869
        %v3871 = vpop.f32.mrf.mxu0
        %3872 = vmatprep.mubr.bf16.mxu0 0
        %3873 = vmatmul.mubr.bf16.gmra.mxu0 %v3709
        %v3874 = vpop.f32.mrf.mxu0
        %v3875 = vadd.f32 0.0, %v3874
        %v3876 = vpop.f32.mrf.mxu0
        %v3877 = vpop.f32.mrf.mxu0
        %v3878 = vadd.f32 0.0, %v3877
        %v3879 = vpop.f32.mrf.mxu0
        %3880 = vmatprep.mubr.bf16.mxu0 0
        %3881 = vmatmul.mubr.bf16.gmra.mxu0 %v3710
        %v3882 = vpop.f32.mrf.mxu0
        %v3883 = vadd.f32 0.0, %v3882
        %v3884 = vpop.f32.mrf.mxu0
        %v3885 = vpop.f32.mrf.mxu0
        %v3886 = vadd.f32 0.0, %v3885
        %v3887 = vpop.f32.mrf.mxu0
        %3888 = vmatprep.mubr.bf16.mxu0 0
        %3889 = vmatmul.mubr.bf16.gmra.mxu0 %v3711
        %v3890 = vpop.f32.mrf.mxu0
        %v3891 = vadd.f32 0.0, %v3890
        %v3892 = vpop.f32.mrf.mxu0
        %v3893 = vpop.f32.mrf.mxu0
        %v3894 = vadd.f32 0.0, %v3893
        %v3895 = vpop.f32.mrf.mxu0
        %3896 = vmatprep.mubr.bf16.mxu0 0
        %3897 = vmatmul.mubr.bf16.gmra.mxu0 %v3712
        %v3898 = vpop.f32.mrf.mxu0
        %v3899 = vadd.f32 0.0, %v3898
        %v3900 = vpop.f32.mrf.mxu0
        %v3901 = vpop.f32.mrf.mxu0
        %v3902 = vadd.f32 0.0, %v3901
        %v3903 = vpop.f32.mrf.mxu0
        %3904 = vmatprep.mubr.bf16.mxu0 0
        %3905 = vmatmul.mubr.bf16.gmra.mxu0 %v3713
        %v3906 = vpop.f32.mrf.mxu0
        %v3907 = vadd.f32 0.0, %v3906
        %v3908 = vpop.f32.mrf.mxu0
        %v3909 = vpop.f32.mrf.mxu0
        %v3910 = vadd.f32 0.0, %v3909
        %v3911 = vpop.f32.mrf.mxu0
        %3912 = vmatprep.mubr.bf16.mxu0 0
        %3913 = vmatmul.mubr.bf16.gmra.mxu0 %v3714
        %v3914 = vpop.f32.mrf.mxu0
        %v3915 = vadd.f32 0.0, %v3914
        %v3916 = vpop.f32.mrf.mxu0
        %v3917 = vpop.f32.mrf.mxu0
        %v3918 = vadd.f32 0.0, %v3917
        %v3919 = vpop.f32.mrf.mxu0
        %3920 = vmatprep.mubr.bf16.mxu0 0
        %3921 = vmatmul.mubr.bf16.gmra.mxu0 %v3715
        %v3922 = vpop.f32.mrf.mxu0
        %v3923 = vadd.f32 0.0, %v3922
        %v3924 = vpop.f32.mrf.mxu0
        %v3925 = vpop.f32.mrf.mxu0
        %v3926 = vadd.f32 0.0, %v3925
        %v3927 = vpop.f32.mrf.mxu0
        %3928 = vmatprep.mubr.bf16.mxu0 0
        %3929 = vmatmul.mubr.bf16.gmra.mxu0 %v3716
        %v3930 = vpop.f32.mrf.mxu0
        %v3931 = vadd.f32 0.0, %v3930
        %v3932 = vpop.f32.mrf.mxu0
        %v3933 = vpop.f32.mrf.mxu0
        %v3934 = vadd.f32 0.0, %v3933
        %v3935 = vpop.f32.mrf.mxu0
        %3936 = vmatprep.mubr.bf16.mxu0 0
        %3937 = vmatmul.mubr.bf16.gmra.mxu0 %v3717
        %v3938 = vpop.f32.mrf.mxu0
        %v3939 = vadd.f32 0.0, %v3938
        %v3940 = vpop.f32.mrf.mxu0
        %v3941 = vpop.f32.mrf.mxu0
        %v3942 = vadd.f32 0.0, %v3941
        %v3943 = vpop.f32.mrf.mxu0
        %3944 = vmatprep.mubr.bf16.mxu0 0
        %3945 = vmatmul.mubr.bf16.gmra.mxu0 %v3718
        %v3946 = vpop.f32.mrf.mxu0
        %v3947 = vadd.f32 0.0, %v3946
        %v3948 = vpop.f32.mrf.mxu0
        %v3949 = vpop.f32.mrf.mxu0
        %v3950 = vadd.f32 0.0, %v3949
        %v3951 = vpop.f32.mrf.mxu0
        %3952 = vmatprep.mubr.bf16.mxu0 0
        %3953 = vmatmul.mubr.bf16.gmra.mxu0 %v3719
        %v3954 = vpop.f32.mrf.mxu0
        %v3955 = vadd.f32 0.0, %v3954
        %v3956 = vpop.f32.mrf.mxu0
        %v3957 = vpop.f32.mrf.mxu0
        %v3958 = vadd.f32 0.0, %v3957
        %v3959 = vpop.f32.mrf.mxu0
        %3960 = vmatprep.mubr.bf16.mxu0 0
        %3961 = vmatmul.mubr.bf16.gmra.mxu0 %v3720
        %v3962 = vpop.f32.mrf.mxu0
        %v3963 = vadd.f32 0.0, %v3962
        %v3964 = vpop.f32.mrf.mxu0
        %v3965 = vpop.f32.mrf.mxu0
        %v3966 = vadd.f32 0.0, %v3965
        %v3967 = vpop.f32.mrf.mxu0
        %3968 = vmatprep.mubr.bf16.mxu0 0
        %3969 = vmatmul.mubr.bf16.gmra.mxu0 %v3721
        %v3970 = vpop.f32.mrf.mxu0
        %v3971 = vadd.f32 0.0, %v3970
        %v3972 = vpop.f32.mrf.mxu0
        %v3973 = vpop.f32.mrf.mxu0
        %v3974 = vadd.f32 0.0, %v3973
        %v3975 = vpop.f32.mrf.mxu0
        %3976 = vmatprep.mubr.bf16.mxu0 0
        %3977 = vmatmul.mubr.bf16.gmra.mxu0 %v3722
        %v3978 = vpop.f32.mrf.mxu0
        %v3979 = vadd.f32 0.0, %v3978
        %v3980 = vpop.f32.mrf.mxu0
        %v3981 = vpop.f32.mrf.mxu0
        %v3982 = vadd.f32 0.0, %v3981
        %v3983 = vpop.f32.mrf.mxu0
        %3984 = vmatprep.mubr.bf16.mxu0 0
        %3985 = vmatmul.mubr.bf16.gmra.mxu0 %v3723
        %v3986 = vpop.f32.mrf.mxu0
        %v3987 = vadd.f32 0.0, %v3986
        %v3988 = vpop.f32.mrf.mxu0
        %v3989 = vpop.f32.mrf.mxu0
        %v3990 = vadd.f32 0.0, %v3989
        %v3991 = vpop.f32.mrf.mxu0
        %3992 = vmatprep.mubr.bf16.mxu0 0
        %3993 = vmatmul.mubr.bf16.gmra.mxu0 %v3724
        %v3994 = vpop.f32.mrf.mxu0
        %v3995 = vadd.f32 0.0, %v3994
        %v3996 = vpop.f32.mrf.mxu0
        %v3997 = vpop.f32.mrf.mxu0
        %v3998 = vadd.f32 0.0, %v3997
        %v3999 = vpop.f32.mrf.mxu0
        %4000 = vmatprep.mubr.bf16.mxu0 0
        %4001 = vmatmul.mubr.bf16.gmra.mxu0 %v3725
        %v4002 = vpop.f32.mrf.mxu0
        %v4003 = vadd.f32 0.0, %v4002
        %v4004 = vpop.f32.mrf.mxu0
        %v4005 = vpop.f32.mrf.mxu0
        %v4006 = vadd.f32 0.0, %v4005
        %v4007 = vpop.f32.mrf.mxu0
        %4008 = vmatprep.mubr.bf16.mxu0 0
        %4009 = vmatmul.mubr.bf16.gmra.mxu0 %v3726
        %v4010 = vpop.f32.mrf.mxu0
        %v4011 = vadd.f32 0.0, %v4010
        %v4012 = vpop.f32.mrf.mxu0
        %v4013 = vpop.f32.mrf.mxu0
        %v4014 = vadd.f32 0.0, %v4013
        %v4015 = vpop.f32.mrf.mxu0
        %4016 = vmatprep.mubr.bf16.mxu0 0
        %4017 = vmatmul.mubr.bf16.gmra.mxu0 %v3727
        %v4018 = vpop.f32.mrf.mxu0
        %v4019 = vadd.f32 0.0, %v4018
        %v4020 = vpop.f32.mrf.mxu0
        %v4021 = vpop.f32.mrf.mxu0
        %v4022 = vadd.f32 0.0, %v4021
        %v4023 = vpop.f32.mrf.mxu0
        %4024 = vdwg.mxu0
        %v4025 = vadd.f32 %v3495, %v3835
        %v4026 = vadd.f32 %v3496, %v3838
        %v4027 = vadd.f32 %v3497, %v3843
        %v4028 = vadd.f32 %v3498, %v3846
        %v4029 = vadd.f32 %v3499, %v3851
        %v4030 = vadd.f32 %v3500, %v3854
        %v4031 = vadd.f32 %v3501, %v3859
        %v4032 = vadd.f32 %v3502, %v3862
        %v4033 = vadd.f32 %v3503, %v3867
        %v4034 = vadd.f32 %v3504, %v3870
        %v4035 = vadd.f32 %v3505, %v3875
        %v4036 = vadd.f32 %v3506, %v3878
        %v4037 = vadd.f32 %v3507, %v3883
        %v4038 = vadd.f32 %v3508, %v3886
        %v4039 = vadd.f32 %v3509, %v3891
        %v4040 = vadd.f32 %v3510, %v3894
        %v4041 = vadd.f32 %v3511, %v3899
        %v4042 = vadd.f32 %v3512, %v3902
        %v4043 = vadd.f32 %v3513, %v3907
        %v4044 = vadd.f32 %v3514, %v3910
        %v4045 = vadd.f32 %v3515, %v3915
        %v4046 = vadd.f32 %v3516, %v3918
        %v4047 = vadd.f32 %v3517, %v3923
        %v4048 = vadd.f32 %v3518, %v3926
        %v4049 = vadd.f32 %v3519, %v3931
        %v4050 = vadd.f32 %v3520, %v3934
        %v4051 = vadd.f32 %v3521, %v3939
        %v4052 = vadd.f32 %v3522, %v3942
        %v4053 = vadd.f32 %v3523, %v3947
        %v4054 = vadd.f32 %v3524, %v3950
        %v4055 = vadd.f32 %v3525, %v3955
        %v4056 = vadd.f32 %v3526, %v3958
        %v4057 = vadd.f32 %v3527, %v3963
        %v4058 = vadd.f32 %v3528, %v3966
        %v4059 = vadd.f32 %v3529, %v3971
        %v4060 = vadd.f32 %v3530, %v3974
        %v4061 = vadd.f32 %v3531, %v3979
        %v4062 = vadd.f32 %v3532, %v3982
        %v4063 = vadd.f32 %v3533, %v3987
        %v4064 = vadd.f32 %v3534, %v3990
        %v4065 = vadd.f32 %v3535, %v3995
        %v4066 = vadd.f32 %v3536, %v3998
        %v4067 = vadd.f32 %v3537, %v4003
        %v4068 = vadd.f32 %v3538, %v4006
        %v4069 = vadd.f32 %v3539, %v4011
        %v4070 = vadd.f32 %v3540, %v4014
        %v4071 = vadd.f32 %v3541, %v4019
        %v4072 = vadd.f32 %v3542, %v4022
        %v4073 = vld [vmem:[%s362 + $0x18] sm:$0xf]
        %v4074 = vld [vmem:[%s362 + $0x1c] sm:$0xf]
        %v4075 = vld [vmem:[%s362 + $0x20] sm:$0xf]
        %v4076 = vld [vmem:[%s362 + $0x24] sm:$0xf]
        %v4077 = vld [vmem:[%s362 + $0x28] sm:$0xf]
        %v4078 = vld [vmem:[%s362 + $0x2c] sm:$0xf]
        %v4079 = vld [vmem:[%s362 + $0x30] sm:$0xf]
        %v4080 = vld [vmem:[%s362 + $0x34] sm:$0xf]
        %v4081 = vld [vmem:[%s362 + $0x38] sm:$0xf]
        %v4082 = vld [vmem:[%s362 + $0x3c] sm:$0xf]
        %v4083 = vld [vmem:[%s362 + $0x40] sm:$0xf]
        %v4084 = vld [vmem:[%s362 + $0x44] sm:$0xf]
        %v4085 = vld [vmem:[%s362 + $0x48] sm:$0xf]
        %v4086 = vld [vmem:[%s362 + $0x4c] sm:$0xf]
        %v4087 = vld [vmem:[%s362 + $0x50] sm:$0xf]
        %v4088 = vld [vmem:[%s362 + $0x54] sm:$0xf]
        %v4089 = vld [vmem:[%s362 + $0x58] sm:$0xf]
        %v4090 = vld [vmem:[%s362 + $0x5c] sm:$0xf]
        %v4091 = vld [vmem:[%s362 + $0x60] sm:$0xf]
        %v4092 = vld [vmem:[%s362 + $0x64] sm:$0xf]
        %v4093 = vld [vmem:[%s362 + $0x68] sm:$0xf]
        %v4094 = vld [vmem:[%s362 + $0x6c] sm:$0xf]
        %v4095 = vld [vmem:[%s362 + $0x70] sm:$0xf]
        %v4096 = vld [vmem:[%s362 + $0x74] sm:$0xf]
        %v4097 = vld [vmem:[%s362 + $0x78] sm:$0xf]
        %v4098 = vld [vmem:[%s362 + $0x7c] sm:$0xf]
        %v4099 = vld [vmem:[%s362 + $0x80] sm:$0xf]
        %v4100 = vld [vmem:[%s362 + $0x84] sm:$0xf]
        %v4101 = vld [vmem:[%s362 + $0x88] sm:$0xf]
        %v4102 = vld [vmem:[%s362 + $0x8c] sm:$0xf]
        %v4103 = vld [vmem:[%s362 + $0x90] sm:$0xf]
        %v4104 = vld [vmem:[%s362 + $0x94] sm:$0xf]
        %v4105 = vld [vmem:[%s362 + $0x98] sm:$0xf]
        %v4106 = vld [vmem:[%s362 + $0x9c] sm:$0xf]
        %v4107 = vld [vmem:[%s362 + $0xa0] sm:$0xf]
        %v4108 = vld [vmem:[%s362 + $0xa4] sm:$0xf]
        %v4109 = vld [vmem:[%s362 + $0xa8] sm:$0xf]
        %v4110 = vld [vmem:[%s362 + $0xac] sm:$0xf]
        %v4111 = vld [vmem:[%s362 + $0xb0] sm:$0xf]
        %v4112 = vld [vmem:[%s362 + $0xb4] sm:$0xf]
        %v4113 = vld [vmem:[%s362 + $0xb8] sm:$0xf]
        %v4114 = vld [vmem:[%s362 + $0xbc] sm:$0xf]
        %v4115 = vld [vmem:[%s362 + $0xc0] sm:$0xf]
        %v4116 = vld [vmem:[%s362 + $0xc4] sm:$0xf]
        %v4117 = vld [vmem:[%s362 + $0xc8] sm:$0xf]
        %v4118 = vld [vmem:[%s362 + $0xcc] sm:$0xf]
        %v4119 = vld [vmem:[%s362 + $0xd0] sm:$0xf]
        %v4120 = vld [vmem:[%s362 + $0xd4] sm:$0xf]
        %v4121 = vld [vmem:[%s362 + $0xd8] sm:$0x1]
        %s4122 = scalar_lea.vmem [#allocation6], 448
        %v4123 = vld [vmem:[%s4122] sm:$0xf]
        %v4124 = vld [vmem:[%s4122 + $0x4] sm:$0xf]
        %v4125 = vld [vmem:[%s4122 + $0x8] sm:$0xf]
        %v4126 = vld [vmem:[%s4122 + $0xc] sm:$0xf]
        %v4127 = vld [vmem:[%s4122 + $0x10] sm:$0xf]
        %v4128 = vld [vmem:[%s4122 + $0x14] sm:$0xf]
        %v4129 = vld [vmem:[%s4122 + $0x18] sm:$0xf]
        %v4130 = vld [vmem:[%s4122 + $0x1c] sm:$0xf]
        %v4131 = vld [vmem:[%s4122 + $0x20] sm:$0xf]
        %v4132 = vld [vmem:[%s4122 + $0x24] sm:$0xf]
        %v4133 = vld [vmem:[%s4122 + $0x28] sm:$0xf]
        %v4134 = vld [vmem:[%s4122 + $0x2c] sm:$0xf]
        %v4135 = vld [vmem:[%s4122 + $0x30] sm:$0xf]
        %v4136 = vld [vmem:[%s4122 + $0x34] sm:$0xf]
        %v4137 = vld [vmem:[%s4122 + $0x38] sm:$0xf]
        %v4138 = vld [vmem:[%s4122 + $0x3c] sm:$0xf]
        %v4188 = vunpack.c.l.b16 %v4073
        %v4189 = vunpack.c.l.b16 %v4074
        %v4190 = vunpack.c.l.b16 %v4075
        %v4191 = vunpack.c.l.b16 %v4076
        %v4192 = vunpack.c.l.b16 %v4077
        %v4193 = vunpack.c.l.b16 %v4078
        %v4194 = vunpack.c.l.b16 %v4079
        %v4195 = vunpack.c.l.b16 %v4080
        %v4196 = vunpack.c.l.b16 %v4081
        %v4197 = vunpack.c.l.b16 %v4082
        %v4198 = vunpack.c.l.b16 %v4083
        %v4199 = vunpack.c.l.b16 %v4084
        %v4200 = vunpack.c.l.b16 %v4085
        %v4201 = vunpack.c.l.b16 %v4086
        %v4202 = vunpack.c.l.b16 %v4087
        %v4203 = vunpack.c.l.b16 %v4088
        %v4204 = vunpack.c.l.b16 %v4089
        %v4205 = vunpack.c.l.b16 %v4090
        %v4206 = vunpack.c.l.b16 %v4091
        %v4207 = vunpack.c.l.b16 %v4092
        %v4208 = vunpack.c.l.b16 %v4093
        %v4209 = vunpack.c.l.b16 %v4094
        %v4210 = vunpack.c.l.b16 %v4095
        %v4211 = vunpack.c.l.b16 %v4096
        %v4212 = vunpack.c.l.b16 %v4097
        %v4213 = vunpack.c.l.b16 %v4098
        %v4214 = vunpack.c.l.b16 %v4099
        %v4215 = vunpack.c.l.b16 %v4100
        %v4216 = vunpack.c.l.b16 %v4101
        %v4217 = vunpack.c.l.b16 %v4102
        %v4218 = vunpack.c.l.b16 %v4103
        %v4219 = vunpack.c.l.b16 %v4104
        %v4220 = vunpack.c.l.b16 %v4105
        %v4221 = vunpack.c.l.b16 %v4106
        %v4222 = vunpack.c.l.b16 %v4107
        %v4223 = vunpack.c.l.b16 %v4108
        %v4224 = vunpack.c.l.b16 %v4109
        %v4225 = vunpack.c.l.b16 %v4110
        %v4226 = vunpack.c.l.b16 %v4111
        %v4227 = vunpack.c.l.b16 %v4112
        %v4228 = vunpack.c.l.b16 %v4113
        %v4229 = vunpack.c.l.b16 %v4114
        %v4230 = vunpack.c.l.b16 %v4115
        %v4231 = vunpack.c.l.b16 %v4116
        %v4232 = vunpack.c.l.b16 %v4117
        %v4233 = vunpack.c.l.b16 %v4118
        %v4234 = vunpack.c.l.b16 %v4119
        %v4235 = vunpack.c.l.b16 %v4120
        %v4236 = vunpack.c.l.b16 %v4121
        %v4237 = vpack.c.b16 %v4189, %v4188
        %v4238 = vpack.c.b16 %v4191, %v4190
        %v4239 = vpack.c.b16 %v4193, %v4192
        %v4240 = vpack.c.b16 %v4195, %v4194
        %v4241 = vpack.c.b16 %v4197, %v4196
        %v4242 = vpack.c.b16 %v4199, %v4198
        %v4243 = vpack.c.b16 %v4201, %v4200
        %v4244 = vpack.c.b16 %v4203, %v4202
        %v4245 = vpack.c.b16 %v4205, %v4204
        %v4246 = vpack.c.b16 %v4207, %v4206
        %v4247 = vpack.c.b16 %v4209, %v4208
        %v4248 = vpack.c.b16 %v4211, %v4210
        %v4249 = vpack.c.b16 %v4213, %v4212
        %v4250 = vpack.c.b16 %v4215, %v4214
        %v4251 = vpack.c.b16 %v4217, %v4216
        %v4252 = vpack.c.b16 %v4219, %v4218
        %v4253 = vpack.c.b16 %v4221, %v4220
        %v4254 = vpack.c.b16 %v4223, %v4222
        %v4255 = vpack.c.b16 %v4225, %v4224
        %v4256 = vpack.c.b16 %v4227, %v4226
        %v4257 = vpack.c.b16 %v4229, %v4228
        %v4258 = vpack.c.b16 %v4231, %v4230
        %v4259 = vpack.c.b16 %v4233, %v4232
        %v4260 = vpack.c.b16 %v4235, %v4234
        %v4261 = vpack.c.b16 %v4236, %v4236
        %v4263 = vshrl.u32 %v4237, 16
        %v4265 = vshll.u32 %v4237, 16
        %v4267 = vrot.slane %v4265, 1
        %v4268 = vor.u32 %v4263, %v4267
        %v4270 = vshll.u32 %v4238, 16
        %v4272 = vrot.slane %v4270, 1
        %v4273 = vsel %vm661, %v4268, %v4272
        %v4274 = vshrl.u32 %v4238, 16
        %v4276 = vor.u32 %v4274, %v4272
        %v4278 = vshll.u32 %v4239, 16
        %v4280 = vrot.slane %v4278, 1
        %v4281 = vsel %vm661, %v4276, %v4280
        %v4282 = vshrl.u32 %v4239, 16
        %v4284 = vor.u32 %v4282, %v4280
        %v4286 = vshll.u32 %v4240, 16
        %v4288 = vrot.slane %v4286, 1
        %v4289 = vsel %vm661, %v4284, %v4288
        %v4290 = vshrl.u32 %v4240, 16
        %v4292 = vor.u32 %v4290, %v4288
        %v4294 = vshll.u32 %v4241, 16
        %v4296 = vrot.slane %v4294, 1
        %v4297 = vsel %vm661, %v4292, %v4296
        %v4298 = vshrl.u32 %v4241, 16
        %v4300 = vor.u32 %v4298, %v4296
        %v4302 = vshll.u32 %v4242, 16
        %v4304 = vrot.slane %v4302, 1
        %v4305 = vsel %vm661, %v4300, %v4304
        %v4306 = vshrl.u32 %v4242, 16
        %v4308 = vor.u32 %v4306, %v4304
        %v4310 = vshll.u32 %v4243, 16
        %v4312 = vrot.slane %v4310, 1
        %v4313 = vsel %vm661, %v4308, %v4312
        %v4314 = vshrl.u32 %v4243, 16
        %v4316 = vor.u32 %v4314, %v4312
        %v4318 = vshll.u32 %v4244, 16
        %v4320 = vrot.slane %v4318, 1
        %v4321 = vsel %vm661, %v4316, %v4320
        %v4322 = vshrl.u32 %v4244, 16
        %v4324 = vor.u32 %v4322, %v4320
        %v4326 = vshll.u32 %v4245, 16
        %v4328 = vrot.slane %v4326, 1
        %v4329 = vsel %vm661, %v4324, %v4328
        %v4330 = vshrl.u32 %v4245, 16
        %v4332 = vor.u32 %v4330, %v4328
        %v4334 = vshll.u32 %v4246, 16
        %v4336 = vrot.slane %v4334, 1
        %v4337 = vsel %vm661, %v4332, %v4336
        %v4338 = vshrl.u32 %v4246, 16
        %v4340 = vor.u32 %v4338, %v4336
        %v4342 = vshll.u32 %v4247, 16
        %v4344 = vrot.slane %v4342, 1
        %v4345 = vsel %vm661, %v4340, %v4344
        %v4346 = vshrl.u32 %v4247, 16
        %v4348 = vor.u32 %v4346, %v4344
        %v4350 = vshll.u32 %v4248, 16
        %v4352 = vrot.slane %v4350, 1
        %v4353 = vsel %vm661, %v4348, %v4352
        %v4354 = vshrl.u32 %v4248, 16
        %v4356 = vor.u32 %v4354, %v4352
        %v4358 = vshll.u32 %v4249, 16
        %v4360 = vrot.slane %v4358, 1
        %v4361 = vsel %vm661, %v4356, %v4360
        %v4362 = vshrl.u32 %v4249, 16
        %v4364 = vor.u32 %v4362, %v4360
        %v4366 = vshll.u32 %v4250, 16
        %v4368 = vrot.slane %v4366, 1
        %v4369 = vsel %vm661, %v4364, %v4368
        %v4370 = vshrl.u32 %v4250, 16
        %v4372 = vor.u32 %v4370, %v4368
        %v4374 = vshll.u32 %v4251, 16
        %v4376 = vrot.slane %v4374, 1
        %v4377 = vsel %vm661, %v4372, %v4376
        %v4378 = vshrl.u32 %v4251, 16
        %v4380 = vor.u32 %v4378, %v4376
        %v4382 = vshll.u32 %v4252, 16
        %v4384 = vrot.slane %v4382, 1
        %v4385 = vsel %vm661, %v4380, %v4384
        %v4386 = vshrl.u32 %v4252, 16
        %v4388 = vor.u32 %v4386, %v4384
        %v4390 = vshll.u32 %v4253, 16
        %v4392 = vrot.slane %v4390, 1
        %v4393 = vsel %vm661, %v4388, %v4392
        %v4394 = vshrl.u32 %v4253, 16
        %v4396 = vor.u32 %v4394, %v4392
        %v4398 = vshll.u32 %v4254, 16
        %v4400 = vrot.slane %v4398, 1
        %v4401 = vsel %vm661, %v4396, %v4400
        %v4402 = vshrl.u32 %v4254, 16
        %v4404 = vor.u32 %v4402, %v4400
        %v4406 = vshll.u32 %v4255, 16
        %v4408 = vrot.slane %v4406, 1
        %v4409 = vsel %vm661, %v4404, %v4408
        %v4410 = vshrl.u32 %v4255, 16
        %v4412 = vor.u32 %v4410, %v4408
        %v4414 = vshll.u32 %v4256, 16
        %v4416 = vrot.slane %v4414, 1
        %v4417 = vsel %vm661, %v4412, %v4416
        %v4418 = vshrl.u32 %v4256, 16
        %v4420 = vor.u32 %v4418, %v4416
        %v4422 = vshll.u32 %v4257, 16
        %v4424 = vrot.slane %v4422, 1
        %v4425 = vsel %vm661, %v4420, %v4424
        %v4426 = vshrl.u32 %v4257, 16
        %v4428 = vor.u32 %v4426, %v4424
        %v4430 = vshll.u32 %v4258, 16
        %v4432 = vrot.slane %v4430, 1
        %v4433 = vsel %vm661, %v4428, %v4432
        %v4434 = vshrl.u32 %v4258, 16
        %v4436 = vor.u32 %v4434, %v4432
        %v4438 = vshll.u32 %v4259, 16
        %v4440 = vrot.slane %v4438, 1
        %v4441 = vsel %vm661, %v4436, %v4440
        %v4442 = vshrl.u32 %v4259, 16
        %v4444 = vor.u32 %v4442, %v4440
        %v4446 = vshll.u32 %v4260, 16
        %v4448 = vrot.slane %v4446, 1
        %v4449 = vsel %vm661, %v4444, %v4448
        %v4450 = vshrl.u32 %v4260, 16
        %v4452 = vor.u32 %v4450, %v4448
        %v4454 = vshll.u32 %v4261, 16
        %v4456 = vrot.slane %v4454, 1
        %v4457 = vsel %vm661, %v4452, %v4456
        %v4498 = vunpack.c.l.b16 %v4123
        %v4499 = vunpack.c.l.b16 %v4124
        %v4500 = vunpack.c.l.b16 %v4125
        %v4501 = vunpack.c.l.b16 %v4126
        %v4502 = vunpack.c.l.b16 %v4127
        %v4503 = vunpack.c.l.b16 %v4128
        %v4504 = vunpack.c.l.b16 %v4129
        %v4505 = vunpack.c.l.b16 %v4130
        %v4506 = vunpack.c.l.b16 %v4131
        %v4507 = vunpack.c.l.b16 %v4132
        %v4508 = vunpack.c.l.b16 %v4133
        %v4509 = vunpack.c.l.b16 %v4134
        %v4510 = vunpack.c.l.b16 %v4135
        %v4511 = vunpack.c.l.b16 %v4136
        %v4512 = vunpack.c.l.b16 %v4137
        %v4513 = vunpack.c.l.b16 %v4138
        %v4514 = vpack.c.b16 %v4499, %v4498
        %v4515 = vpack.c.b16 %v4501, %v4500
        %v4516 = vpack.c.b16 %v4503, %v4502
        %v4517 = vpack.c.b16 %v4505, %v4504
        %v4518 = vpack.c.b16 %v4507, %v4506
        %v4519 = vpack.c.b16 %v4509, %v4508
        %v4520 = vpack.c.b16 %v4511, %v4510
        %v4521 = vpack.c.b16 %v4513, %v4512
        %4530 = vmatprep.subr.bf16.mxu0 0
        %4531 = vmatpush1.bf16.msra.mxu0 %v4521
        %4532 = vmatprep.subr.bf16.mxu0 0
        %4533 = vmatpush1.bf16.msra.mxu0 %v4520
        %4534 = vmatprep.subr.bf16.mxu0 0
        %4535 = vmatpush1.bf16.msra.mxu0 %v4519
        %4536 = vmatprep.subr.bf16.mxu0 0
        %4537 = vmatpush1.bf16.msra.mxu0 %v4518
        %4538 = vmatprep.subr.bf16.mxu0 0
        %4539 = vmatpush1.bf16.msra.mxu0 %v4517
        %4540 = vmatprep.subr.bf16.mxu0 0
        %4541 = vmatpush1.bf16.msra.mxu0 %v4516
        %4542 = vmatprep.subr.bf16.mxu0 0
        %4543 = vmatpush1.bf16.msra.mxu0 %v4515
        %4544 = vmatprep.subr.bf16.mxu0 0
        %4545 = vmatpush1.bf16.msra.mxu0 %v4514
        %4546 = vmatprep.subr.bf16.mxu0 0
        %4547 = vmatpush2.bf16.msra.mxu0 0
        %4548 = vmatprep.subr.bf16.mxu0 0
        %4549 = vmatpush2.bf16.msra.mxu0 0
        %4550 = vmatprep.subr.bf16.mxu0 0
        %4551 = vmatpush2.bf16.msra.mxu0 0
        %4552 = vmatprep.subr.bf16.mxu0 0
        %4553 = vmatpush2.bf16.msra.mxu0 0
        %4554 = vmatprep.subr.bf16.mxu0 0
        %4555 = vmatpush2.bf16.msra.mxu0 0
        %4556 = vmatprep.subr.bf16.mxu0 0
        %4557 = vmatpush2.bf16.msra.mxu0 0
        %4558 = vmatprep.subr.bf16.mxu0 0
        %4559 = vmatpush2.bf16.msra.mxu0 0
        %4560 = vmatprep.subr.bf16.mxu0 0
        %4561 = vmatpush2.bf16.msra.mxu0 0
        %4562 = vmatprep.mubr.bf16.mxu0 0
        %4563 = vmatmul.mubr.bf16.gmra.mxu0 %v4273
        %v4564 = vpop.f32.mrf.mxu0
        %v4565 = vadd.f32 0.0, %v4564
        %v4566 = vpop.f32.mrf.mxu0
        %v4567 = vpop.f32.mrf.mxu0
        %v4568 = vadd.f32 0.0, %v4567
        %v4569 = vpop.f32.mrf.mxu0
        %4570 = vmatprep.mubr.bf16.mxu0 0
        %4571 = vmatmul.mubr.bf16.gmra.mxu0 %v4281
        %v4572 = vpop.f32.mrf.mxu0
        %v4573 = vadd.f32 0.0, %v4572
        %v4574 = vpop.f32.mrf.mxu0
        %v4575 = vpop.f32.mrf.mxu0
        %v4576 = vadd.f32 0.0, %v4575
        %v4577 = vpop.f32.mrf.mxu0
        %4578 = vmatprep.mubr.bf16.mxu0 0
        %4579 = vmatmul.mubr.bf16.gmra.mxu0 %v4289
        %v4580 = vpop.f32.mrf.mxu0
        %v4581 = vadd.f32 0.0, %v4580
        %v4582 = vpop.f32.mrf.mxu0
        %v4583 = vpop.f32.mrf.mxu0
        %v4584 = vadd.f32 0.0, %v4583
        %v4585 = vpop.f32.mrf.mxu0
        %4586 = vmatprep.mubr.bf16.mxu0 0
        %4587 = vmatmul.mubr.bf16.gmra.mxu0 %v4297
        %v4588 = vpop.f32.mrf.mxu0
        %v4589 = vadd.f32 0.0, %v4588
        %v4590 = vpop.f32.mrf.mxu0
        %v4591 = vpop.f32.mrf.mxu0
        %v4592 = vadd.f32 0.0, %v4591
        %v4593 = vpop.f32.mrf.mxu0
        %4594 = vmatprep.mubr.bf16.mxu0 0
        %4595 = vmatmul.mubr.bf16.gmra.mxu0 %v4305
        %v4596 = vpop.f32.mrf.mxu0
        %v4597 = vadd.f32 0.0, %v4596
        %v4598 = vpop.f32.mrf.mxu0
        %v4599 = vpop.f32.mrf.mxu0
        %v4600 = vadd.f32 0.0, %v4599
        %v4601 = vpop.f32.mrf.mxu0
        %4602 = vmatprep.mubr.bf16.mxu0 0
        %4603 = vmatmul.mubr.bf16.gmra.mxu0 %v4313
        %v4604 = vpop.f32.mrf.mxu0
        %v4605 = vadd.f32 0.0, %v4604
        %v4606 = vpop.f32.mrf.mxu0
        %v4607 = vpop.f32.mrf.mxu0
        %v4608 = vadd.f32 0.0, %v4607
        %v4609 = vpop.f32.mrf.mxu0
        %4610 = vmatprep.mubr.bf16.mxu0 0
        %4611 = vmatmul.mubr.bf16.gmra.mxu0 %v4321
        %v4612 = vpop.f32.mrf.mxu0
        %v4613 = vadd.f32 0.0, %v4612
        %v4614 = vpop.f32.mrf.mxu0
        %v4615 = vpop.f32.mrf.mxu0
        %v4616 = vadd.f32 0.0, %v4615
        %v4617 = vpop.f32.mrf.mxu0
        %4618 = vmatprep.mubr.bf16.mxu0 0
        %4619 = vmatmul.mubr.bf16.gmra.mxu0 %v4329
        %v4620 = vpop.f32.mrf.mxu0
        %v4621 = vadd.f32 0.0, %v4620
        %v4622 = vpop.f32.mrf.mxu0
        %v4623 = vpop.f32.mrf.mxu0
        %v4624 = vadd.f32 0.0, %v4623
        %v4625 = vpop.f32.mrf.mxu0
        %4626 = vmatprep.mubr.bf16.mxu0 0
        %4627 = vmatmul.mubr.bf16.gmra.mxu0 %v4337
        %v4628 = vpop.f32.mrf.mxu0
        %v4629 = vadd.f32 0.0, %v4628
        %v4630 = vpop.f32.mrf.mxu0
        %v4631 = vpop.f32.mrf.mxu0
        %v4632 = vadd.f32 0.0, %v4631
        %v4633 = vpop.f32.mrf.mxu0
        %4634 = vmatprep.mubr.bf16.mxu0 0
        %4635 = vmatmul.mubr.bf16.gmra.mxu0 %v4345
        %v4636 = vpop.f32.mrf.mxu0
        %v4637 = vadd.f32 0.0, %v4636
        %v4638 = vpop.f32.mrf.mxu0
        %v4639 = vpop.f32.mrf.mxu0
        %v4640 = vadd.f32 0.0, %v4639
        %v4641 = vpop.f32.mrf.mxu0
        %4642 = vmatprep.mubr.bf16.mxu0 0
        %4643 = vmatmul.mubr.bf16.gmra.mxu0 %v4353
        %v4644 = vpop.f32.mrf.mxu0
        %v4645 = vadd.f32 0.0, %v4644
        %v4646 = vpop.f32.mrf.mxu0
        %v4647 = vpop.f32.mrf.mxu0
        %v4648 = vadd.f32 0.0, %v4647
        %v4649 = vpop.f32.mrf.mxu0
        %4650 = vmatprep.mubr.bf16.mxu0 0
        %4651 = vmatmul.mubr.bf16.gmra.mxu0 %v4361
        %v4652 = vpop.f32.mrf.mxu0
        %v4653 = vadd.f32 0.0, %v4652
        %v4654 = vpop.f32.mrf.mxu0
        %v4655 = vpop.f32.mrf.mxu0
        %v4656 = vadd.f32 0.0, %v4655
        %v4657 = vpop.f32.mrf.mxu0
        %4658 = vmatprep.mubr.bf16.mxu0 0
        %4659 = vmatmul.mubr.bf16.gmra.mxu0 %v4369
        %v4660 = vpop.f32.mrf.mxu0
        %v4661 = vadd.f32 0.0, %v4660
        %v4662 = vpop.f32.mrf.mxu0
        %v4663 = vpop.f32.mrf.mxu0
        %v4664 = vadd.f32 0.0, %v4663
        %v4665 = vpop.f32.mrf.mxu0
        %4666 = vmatprep.mubr.bf16.mxu0 0
        %4667 = vmatmul.mubr.bf16.gmra.mxu0 %v4377
        %v4668 = vpop.f32.mrf.mxu0
        %v4669 = vadd.f32 0.0, %v4668
        %v4670 = vpop.f32.mrf.mxu0
        %v4671 = vpop.f32.mrf.mxu0
        %v4672 = vadd.f32 0.0, %v4671
        %v4673 = vpop.f32.mrf.mxu0
        %4674 = vmatprep.mubr.bf16.mxu0 0
        %4675 = vmatmul.mubr.bf16.gmra.mxu0 %v4385
        %v4676 = vpop.f32.mrf.mxu0
        %v4677 = vadd.f32 0.0, %v4676
        %v4678 = vpop.f32.mrf.mxu0
        %v4679 = vpop.f32.mrf.mxu0
        %v4680 = vadd.f32 0.0, %v4679
        %v4681 = vpop.f32.mrf.mxu0
        %4682 = vmatprep.mubr.bf16.mxu0 0
        %4683 = vmatmul.mubr.bf16.gmra.mxu0 %v4393
        %v4684 = vpop.f32.mrf.mxu0
        %v4685 = vadd.f32 0.0, %v4684
        %v4686 = vpop.f32.mrf.mxu0
        %v4687 = vpop.f32.mrf.mxu0
        %v4688 = vadd.f32 0.0, %v4687
        %v4689 = vpop.f32.mrf.mxu0
        %4690 = vmatprep.mubr.bf16.mxu0 0
        %4691 = vmatmul.mubr.bf16.gmra.mxu0 %v4401
        %v4692 = vpop.f32.mrf.mxu0
        %v4693 = vadd.f32 0.0, %v4692
        %v4694 = vpop.f32.mrf.mxu0
        %v4695 = vpop.f32.mrf.mxu0
        %v4696 = vadd.f32 0.0, %v4695
        %v4697 = vpop.f32.mrf.mxu0
        %4698 = vmatprep.mubr.bf16.mxu0 0
        %4699 = vmatmul.mubr.bf16.gmra.mxu0 %v4409
        %v4700 = vpop.f32.mrf.mxu0
        %v4701 = vadd.f32 0.0, %v4700
        %v4702 = vpop.f32.mrf.mxu0
        %v4703 = vpop.f32.mrf.mxu0
        %v4704 = vadd.f32 0.0, %v4703
        %v4705 = vpop.f32.mrf.mxu0
        %4706 = vmatprep.mubr.bf16.mxu0 0
        %4707 = vmatmul.mubr.bf16.gmra.mxu0 %v4417
        %v4708 = vpop.f32.mrf.mxu0
        %v4709 = vadd.f32 0.0, %v4708
        %v4710 = vpop.f32.mrf.mxu0
        %v4711 = vpop.f32.mrf.mxu0
        %v4712 = vadd.f32 0.0, %v4711
        %v4713 = vpop.f32.mrf.mxu0
        %4714 = vmatprep.mubr.bf16.mxu0 0
        %4715 = vmatmul.mubr.bf16.gmra.mxu0 %v4425
        %v4716 = vpop.f32.mrf.mxu0
        %v4717 = vadd.f32 0.0, %v4716
        %v4718 = vpop.f32.mrf.mxu0
        %v4719 = vpop.f32.mrf.mxu0
        %v4720 = vadd.f32 0.0, %v4719
        %v4721 = vpop.f32.mrf.mxu0
        %4722 = vmatprep.mubr.bf16.mxu0 0
        %4723 = vmatmul.mubr.bf16.gmra.mxu0 %v4433
        %v4724 = vpop.f32.mrf.mxu0
        %v4725 = vadd.f32 0.0, %v4724
        %v4726 = vpop.f32.mrf.mxu0
        %v4727 = vpop.f32.mrf.mxu0
        %v4728 = vadd.f32 0.0, %v4727
        %v4729 = vpop.f32.mrf.mxu0
        %4730 = vmatprep.mubr.bf16.mxu0 0
        %4731 = vmatmul.mubr.bf16.gmra.mxu0 %v4441
        %v4732 = vpop.f32.mrf.mxu0
        %v4733 = vadd.f32 0.0, %v4732
        %v4734 = vpop.f32.mrf.mxu0
        %v4735 = vpop.f32.mrf.mxu0
        %v4736 = vadd.f32 0.0, %v4735
        %v4737 = vpop.f32.mrf.mxu0
        %4738 = vmatprep.mubr.bf16.mxu0 0
        %4739 = vmatmul.mubr.bf16.gmra.mxu0 %v4449
        %v4740 = vpop.f32.mrf.mxu0
        %v4741 = vadd.f32 0.0, %v4740
        %v4742 = vpop.f32.mrf.mxu0
        %v4743 = vpop.f32.mrf.mxu0
        %v4744 = vadd.f32 0.0, %v4743
        %v4745 = vpop.f32.mrf.mxu0
        %4746 = vmatprep.mubr.bf16.mxu0 0
        %4747 = vmatmul.mubr.bf16.gmra.mxu0 %v4457
        %v4748 = vpop.f32.mrf.mxu0
        %v4749 = vadd.f32 0.0, %v4748
        %v4750 = vpop.f32.mrf.mxu0
        %v4751 = vpop.f32.mrf.mxu0
        %v4752 = vadd.f32 0.0, %v4751
        %v4753 = vpop.f32.mrf.mxu0
        %4754 = vdwg.mxu0
        %v4755 = vadd.f32 %v4025, %v4565
        %v4756 = vadd.f32 %v4026, %v4568
        %v4757 = vadd.f32 %v4027, %v4573
        %v4758 = vadd.f32 %v4028, %v4576
        %v4759 = vadd.f32 %v4029, %v4581
        %v4760 = vadd.f32 %v4030, %v4584
        %v4761 = vadd.f32 %v4031, %v4589
        %v4762 = vadd.f32 %v4032, %v4592
        %v4763 = vadd.f32 %v4033, %v4597
        %v4764 = vadd.f32 %v4034, %v4600
        %v4765 = vadd.f32 %v4035, %v4605
        %v4766 = vadd.f32 %v4036, %v4608
        %v4767 = vadd.f32 %v4037, %v4613
        %v4768 = vadd.f32 %v4038, %v4616
        %v4769 = vadd.f32 %v4039, %v4621
        %v4770 = vadd.f32 %v4040, %v4624
        %v4771 = vadd.f32 %v4041, %v4629
        %v4772 = vadd.f32 %v4042, %v4632
        %v4773 = vadd.f32 %v4043, %v4637
        %v4774 = vadd.f32 %v4044, %v4640
        %v4775 = vadd.f32 %v4045, %v4645
        %v4776 = vadd.f32 %v4046, %v4648
        %v4777 = vadd.f32 %v4047, %v4653
        %v4778 = vadd.f32 %v4048, %v4656
        %v4779 = vadd.f32 %v4049, %v4661
        %v4780 = vadd.f32 %v4050, %v4664
        %v4781 = vadd.f32 %v4051, %v4669
        %v4782 = vadd.f32 %v4052, %v4672
        %v4783 = vadd.f32 %v4053, %v4677
        %v4784 = vadd.f32 %v4054, %v4680
        %v4785 = vadd.f32 %v4055, %v4685
        %v4786 = vadd.f32 %v4056, %v4688
        %v4787 = vadd.f32 %v4057, %v4693
        %v4788 = vadd.f32 %v4058, %v4696
        %v4789 = vadd.f32 %v4059, %v4701
        %v4790 = vadd.f32 %v4060, %v4704
        %v4791 = vadd.f32 %v4061, %v4709
        %v4792 = vadd.f32 %v4062, %v4712
        %v4793 = vadd.f32 %v4063, %v4717
        %v4794 = vadd.f32 %v4064, %v4720
        %v4795 = vadd.f32 %v4065, %v4725
        %v4796 = vadd.f32 %v4066, %v4728
        %v4797 = vadd.f32 %v4067, %v4733
        %v4798 = vadd.f32 %v4068, %v4736
        %v4799 = vadd.f32 %v4069, %v4741
        %v4800 = vadd.f32 %v4070, %v4744
        %v4801 = vadd.f32 %v4071, %v4749
        %v4802 = vadd.f32 %v4072, %v4752
        %v4803 = vld [vmem:[%s362 + $0x18] sm:$0xe]
        %s4804 = scalar_lea.vmem [#allocation6], 512
        %v4805 = vld [vmem:[%s4804] sm:$0xf]
        %v4806 = vld [vmem:[%s4804 + $0x4] sm:$0xf]
        %v4807 = vld [vmem:[%s4804 + $0x8] sm:$0xf]
        %v4808 = vld [vmem:[%s4804 + $0xc] sm:$0xf]
        %v4809 = vld [vmem:[%s4804 + $0x10] sm:$0xf]
        %v4810 = vld [vmem:[%s4804 + $0x14] sm:$0xf]
        %v4811 = vld [vmem:[%s4804 + $0x18] sm:$0xf]
        %v4812 = vld [vmem:[%s4804 + $0x1c] sm:$0xf]
        %v4813 = vld [vmem:[%s4804 + $0x20] sm:$0xf]
        %v4814 = vld [vmem:[%s4804 + $0x24] sm:$0xf]
        %v4815 = vld [vmem:[%s4804 + $0x28] sm:$0xf]
        %v4816 = vld [vmem:[%s4804 + $0x2c] sm:$0xf]
        %v4817 = vld [vmem:[%s4804 + $0x30] sm:$0xf]
        %v4818 = vld [vmem:[%s4804 + $0x34] sm:$0xf]
        %v4819 = vld [vmem:[%s4804 + $0x38] sm:$0xf]
        %v4820 = vld [vmem:[%s4804 + $0x3c] sm:$0xf]
        %v4822 = vunpack.c.l.b16 %v4803
        %v4823 = vpack.c.b16 %v4189, %v4822
        %v4824 = vrot.slane %v4823, 1
        %v4825 = vrot.slane %v4238, 1
        %v4826 = vsel %vm1473, %v4824, %v4825
        %v4827 = vrot.slane %v4239, 1
        %v4828 = vsel %vm1473, %v4825, %v4827
        %v4829 = vrot.slane %v4240, 1
        %v4830 = vsel %vm1473, %v4827, %v4829
        %v4831 = vrot.slane %v4241, 1
        %v4832 = vsel %vm1473, %v4829, %v4831
        %v4833 = vrot.slane %v4242, 1
        %v4834 = vsel %vm1473, %v4831, %v4833
        %v4835 = vrot.slane %v4243, 1
        %v4836 = vsel %vm1473, %v4833, %v4835
        %v4837 = vrot.slane %v4244, 1
        %v4838 = vsel %vm1473, %v4835, %v4837
        %v4839 = vrot.slane %v4245, 1
        %v4840 = vsel %vm1473, %v4837, %v4839
        %v4841 = vrot.slane %v4246, 1
        %v4842 = vsel %vm1473, %v4839, %v4841
        %v4843 = vrot.slane %v4247, 1
        %v4844 = vsel %vm1473, %v4841, %v4843
        %v4845 = vrot.slane %v4248, 1
        %v4846 = vsel %vm1473, %v4843, %v4845
        %v4847 = vrot.slane %v4249, 1
        %v4848 = vsel %vm1473, %v4845, %v4847
        %v4849 = vrot.slane %v4250, 1
        %v4850 = vsel %vm1473, %v4847, %v4849
        %v4851 = vrot.slane %v4251, 1
        %v4852 = vsel %vm1473, %v4849, %v4851
        %v4853 = vrot.slane %v4252, 1
        %v4854 = vsel %vm1473, %v4851, %v4853
        %v4855 = vrot.slane %v4253, 1
        %v4856 = vsel %vm1473, %v4853, %v4855
        %v4857 = vrot.slane %v4254, 1
        %v4858 = vsel %vm1473, %v4855, %v4857
        %v4859 = vrot.slane %v4255, 1
        %v4860 = vsel %vm1473, %v4857, %v4859
        %v4861 = vrot.slane %v4256, 1
        %v4862 = vsel %vm1473, %v4859, %v4861
        %v4863 = vrot.slane %v4257, 1
        %v4864 = vsel %vm1473, %v4861, %v4863
        %v4865 = vrot.slane %v4258, 1
        %v4866 = vsel %vm1473, %v4863, %v4865
        %v4867 = vrot.slane %v4259, 1
        %v4868 = vsel %vm1473, %v4865, %v4867
        %v4869 = vrot.slane %v4260, 1
        %v4870 = vsel %vm1473, %v4867, %v4869
        %v4871 = vrot.slane %v4261, 1
        %v4872 = vsel %vm1473, %v4869, %v4871
        %v4913 = vunpack.c.l.b16 %v4805
        %v4914 = vunpack.c.l.b16 %v4806
        %v4915 = vunpack.c.l.b16 %v4807
        %v4916 = vunpack.c.l.b16 %v4808
        %v4917 = vunpack.c.l.b16 %v4809
        %v4918 = vunpack.c.l.b16 %v4810
        %v4919 = vunpack.c.l.b16 %v4811
        %v4920 = vunpack.c.l.b16 %v4812
        %v4921 = vunpack.c.l.b16 %v4813
        %v4922 = vunpack.c.l.b16 %v4814
        %v4923 = vunpack.c.l.b16 %v4815
        %v4924 = vunpack.c.l.b16 %v4816
        %v4925 = vunpack.c.l.b16 %v4817
        %v4926 = vunpack.c.l.b16 %v4818
        %v4927 = vunpack.c.l.b16 %v4819
        %v4928 = vunpack.c.l.b16 %v4820
        %v4929 = vpack.c.b16 %v4914, %v4913
        %v4930 = vpack.c.b16 %v4916, %v4915
        %v4931 = vpack.c.b16 %v4918, %v4917
        %v4932 = vpack.c.b16 %v4920, %v4919
        %v4933 = vpack.c.b16 %v4922, %v4921
        %v4934 = vpack.c.b16 %v4924, %v4923
        %v4935 = vpack.c.b16 %v4926, %v4925
        %v4936 = vpack.c.b16 %v4928, %v4927
        %4945 = vmatprep.subr.bf16.mxu0 0
        %4946 = vmatpush1.bf16.msra.mxu0 %v4936
        %4947 = vmatprep.subr.bf16.mxu0 0
        %4948 = vmatpush1.bf16.msra.mxu0 %v4935
        %4949 = vmatprep.subr.bf16.mxu0 0
        %4950 = vmatpush1.bf16.msra.mxu0 %v4934
        %4951 = vmatprep.subr.bf16.mxu0 0
        %4952 = vmatpush1.bf16.msra.mxu0 %v4933
        %4953 = vmatprep.subr.bf16.mxu0 0
        %4954 = vmatpush1.bf16.msra.mxu0 %v4932
        %4955 = vmatprep.subr.bf16.mxu0 0
        %4956 = vmatpush1.bf16.msra.mxu0 %v4931
        %4957 = vmatprep.subr.bf16.mxu0 0
        %4958 = vmatpush1.bf16.msra.mxu0 %v4930
        %4959 = vmatprep.subr.bf16.mxu0 0
        %4960 = vmatpush1.bf16.msra.mxu0 %v4929
        %4961 = vmatprep.subr.bf16.mxu0 0
        %4962 = vmatpush2.bf16.msra.mxu0 0
        %4963 = vmatprep.subr.bf16.mxu0 0
        %4964 = vmatpush2.bf16.msra.mxu0 0
        %4965 = vmatprep.subr.bf16.mxu0 0
        %4966 = vmatpush2.bf16.msra.mxu0 0
        %4967 = vmatprep.subr.bf16.mxu0 0
        %4968 = vmatpush2.bf16.msra.mxu0 0
        %4969 = vmatprep.subr.bf16.mxu0 0
        %4970 = vmatpush2.bf16.msra.mxu0 0
        %4971 = vmatprep.subr.bf16.mxu0 0
        %4972 = vmatpush2.bf16.msra.mxu0 0
        %4973 = vmatprep.subr.bf16.mxu0 0
        %4974 = vmatpush2.bf16.msra.mxu0 0
        %4975 = vmatprep.subr.bf16.mxu0 0
        %4976 = vmatpush2.bf16.msra.mxu0 0
        %4977 = vmatprep.mubr.bf16.mxu0 0
        %4978 = vmatmul.mubr.bf16.gmra.mxu0 %v4826
        %v4979 = vpop.f32.mrf.mxu0
        %v4980 = vadd.f32 0.0, %v4979
        %v4981 = vpop.f32.mrf.mxu0
        %v4982 = vpop.f32.mrf.mxu0
        %v4983 = vadd.f32 0.0, %v4982
        %v4984 = vpop.f32.mrf.mxu0
        %4985 = vmatprep.mubr.bf16.mxu0 0
        %4986 = vmatmul.mubr.bf16.gmra.mxu0 %v4828
        %v4987 = vpop.f32.mrf.mxu0
        %v4988 = vadd.f32 0.0, %v4987
        %v4989 = vpop.f32.mrf.mxu0
        %v4990 = vpop.f32.mrf.mxu0
        %v4991 = vadd.f32 0.0, %v4990
        %v4992 = vpop.f32.mrf.mxu0
        %4993 = vmatprep.mubr.bf16.mxu0 0
        %4994 = vmatmul.mubr.bf16.gmra.mxu0 %v4830
        %v4995 = vpop.f32.mrf.mxu0
        %v4996 = vadd.f32 0.0, %v4995
        %v4997 = vpop.f32.mrf.mxu0
        %v4998 = vpop.f32.mrf.mxu0
        %v4999 = vadd.f32 0.0, %v4998
        %v5000 = vpop.f32.mrf.mxu0
        %5001 = vmatprep.mubr.bf16.mxu0 0
        %5002 = vmatmul.mubr.bf16.gmra.mxu0 %v4832
        %v5003 = vpop.f32.mrf.mxu0
        %v5004 = vadd.f32 0.0, %v5003
        %v5005 = vpop.f32.mrf.mxu0
        %v5006 = vpop.f32.mrf.mxu0
        %v5007 = vadd.f32 0.0, %v5006
        %v5008 = vpop.f32.mrf.mxu0
        %5009 = vmatprep.mubr.bf16.mxu0 0
        %5010 = vmatmul.mubr.bf16.gmra.mxu0 %v4834
        %v5011 = vpop.f32.mrf.mxu0
        %v5012 = vadd.f32 0.0, %v5011
        %v5013 = vpop.f32.mrf.mxu0
        %v5014 = vpop.f32.mrf.mxu0
        %v5015 = vadd.f32 0.0, %v5014
        %v5016 = vpop.f32.mrf.mxu0
        %5017 = vmatprep.mubr.bf16.mxu0 0
        %5018 = vmatmul.mubr.bf16.gmra.mxu0 %v4836
        %v5019 = vpop.f32.mrf.mxu0
        %v5020 = vadd.f32 0.0, %v5019
        %v5021 = vpop.f32.mrf.mxu0
        %v5022 = vpop.f32.mrf.mxu0
        %v5023 = vadd.f32 0.0, %v5022
        %v5024 = vpop.f32.mrf.mxu0
        %5025 = vmatprep.mubr.bf16.mxu0 0
        %5026 = vmatmul.mubr.bf16.gmra.mxu0 %v4838
        %v5027 = vpop.f32.mrf.mxu0
        %v5028 = vadd.f32 0.0, %v5027
        %v5029 = vpop.f32.mrf.mxu0
        %v5030 = vpop.f32.mrf.mxu0
        %v5031 = vadd.f32 0.0, %v5030
        %v5032 = vpop.f32.mrf.mxu0
        %5033 = vmatprep.mubr.bf16.mxu0 0
        %5034 = vmatmul.mubr.bf16.gmra.mxu0 %v4840
        %v5035 = vpop.f32.mrf.mxu0
        %v5036 = vadd.f32 0.0, %v5035
        %v5037 = vpop.f32.mrf.mxu0
        %v5038 = vpop.f32.mrf.mxu0
        %v5039 = vadd.f32 0.0, %v5038
        %v5040 = vpop.f32.mrf.mxu0
        %5041 = vmatprep.mubr.bf16.mxu0 0
        %5042 = vmatmul.mubr.bf16.gmra.mxu0 %v4842
        %v5043 = vpop.f32.mrf.mxu0
        %v5044 = vadd.f32 0.0, %v5043
        %v5045 = vpop.f32.mrf.mxu0
        %v5046 = vpop.f32.mrf.mxu0
        %v5047 = vadd.f32 0.0, %v5046
        %v5048 = vpop.f32.mrf.mxu0
        %5049 = vmatprep.mubr.bf16.mxu0 0
        %5050 = vmatmul.mubr.bf16.gmra.mxu0 %v4844
        %v5051 = vpop.f32.mrf.mxu0
        %v5052 = vadd.f32 0.0, %v5051
        %v5053 = vpop.f32.mrf.mxu0
        %v5054 = vpop.f32.mrf.mxu0
        %v5055 = vadd.f32 0.0, %v5054
        %v5056 = vpop.f32.mrf.mxu0
        %5057 = vmatprep.mubr.bf16.mxu0 0
        %5058 = vmatmul.mubr.bf16.gmra.mxu0 %v4846
        %v5059 = vpop.f32.mrf.mxu0
        %v5060 = vadd.f32 0.0, %v5059
        %v5061 = vpop.f32.mrf.mxu0
        %v5062 = vpop.f32.mrf.mxu0
        %v5063 = vadd.f32 0.0, %v5062
        %v5064 = vpop.f32.mrf.mxu0
        %5065 = vmatprep.mubr.bf16.mxu0 0
        %5066 = vmatmul.mubr.bf16.gmra.mxu0 %v4848
        %v5067 = vpop.f32.mrf.mxu0
        %v5068 = vadd.f32 0.0, %v5067
        %v5069 = vpop.f32.mrf.mxu0
        %v5070 = vpop.f32.mrf.mxu0
        %v5071 = vadd.f32 0.0, %v5070
        %v5072 = vpop.f32.mrf.mxu0
        %5073 = vmatprep.mubr.bf16.mxu0 0
        %5074 = vmatmul.mubr.bf16.gmra.mxu0 %v4850
        %v5075 = vpop.f32.mrf.mxu0
        %v5076 = vadd.f32 0.0, %v5075
        %v5077 = vpop.f32.mrf.mxu0
        %v5078 = vpop.f32.mrf.mxu0
        %v5079 = vadd.f32 0.0, %v5078
        %v5080 = vpop.f32.mrf.mxu0
        %5081 = vmatprep.mubr.bf16.mxu0 0
        %5082 = vmatmul.mubr.bf16.gmra.mxu0 %v4852
        %v5083 = vpop.f32.mrf.mxu0
        %v5084 = vadd.f32 0.0, %v5083
        %v5085 = vpop.f32.mrf.mxu0
        %v5086 = vpop.f32.mrf.mxu0
        %v5087 = vadd.f32 0.0, %v5086
        %v5088 = vpop.f32.mrf.mxu0
        %5089 = vmatprep.mubr.bf16.mxu0 0
        %5090 = vmatmul.mubr.bf16.gmra.mxu0 %v4854
        %v5091 = vpop.f32.mrf.mxu0
        %v5092 = vadd.f32 0.0, %v5091
        %v5093 = vpop.f32.mrf.mxu0
        %v5094 = vpop.f32.mrf.mxu0
        %v5095 = vadd.f32 0.0, %v5094
        %v5096 = vpop.f32.mrf.mxu0
        %5097 = vmatprep.mubr.bf16.mxu0 0
        %5098 = vmatmul.mubr.bf16.gmra.mxu0 %v4856
        %v5099 = vpop.f32.mrf.mxu0
        %v5100 = vadd.f32 0.0, %v5099
        %v5101 = vpop.f32.mrf.mxu0
        %v5102 = vpop.f32.mrf.mxu0
        %v5103 = vadd.f32 0.0, %v5102
        %v5104 = vpop.f32.mrf.mxu0
        %5105 = vmatprep.mubr.bf16.mxu0 0
        %5106 = vmatmul.mubr.bf16.gmra.mxu0 %v4858
        %v5107 = vpop.f32.mrf.mxu0
        %v5108 = vadd.f32 0.0, %v5107
        %v5109 = vpop.f32.mrf.mxu0
        %v5110 = vpop.f32.mrf.mxu0
        %v5111 = vadd.f32 0.0, %v5110
        %v5112 = vpop.f32.mrf.mxu0
        %5113 = vmatprep.mubr.bf16.mxu0 0
        %5114 = vmatmul.mubr.bf16.gmra.mxu0 %v4860
        %v5115 = vpop.f32.mrf.mxu0
        %v5116 = vadd.f32 0.0, %v5115
        %v5117 = vpop.f32.mrf.mxu0
        %v5118 = vpop.f32.mrf.mxu0
        %v5119 = vadd.f32 0.0, %v5118
        %v5120 = vpop.f32.mrf.mxu0
        %5121 = vmatprep.mubr.bf16.mxu0 0
        %5122 = vmatmul.mubr.bf16.gmra.mxu0 %v4862
        %v5123 = vpop.f32.mrf.mxu0
        %v5124 = vadd.f32 0.0, %v5123
        %v5125 = vpop.f32.mrf.mxu0
        %v5126 = vpop.f32.mrf.mxu0
        %v5127 = vadd.f32 0.0, %v5126
        %v5128 = vpop.f32.mrf.mxu0
        %5129 = vmatprep.mubr.bf16.mxu0 0
        %5130 = vmatmul.mubr.bf16.gmra.mxu0 %v4864
        %v5131 = vpop.f32.mrf.mxu0
        %v5132 = vadd.f32 0.0, %v5131
        %v5133 = vpop.f32.mrf.mxu0
        %v5134 = vpop.f32.mrf.mxu0
        %v5135 = vadd.f32 0.0, %v5134
        %v5136 = vpop.f32.mrf.mxu0
        %5137 = vmatprep.mubr.bf16.mxu0 0
        %5138 = vmatmul.mubr.bf16.gmra.mxu0 %v4866
        %v5139 = vpop.f32.mrf.mxu0
        %v5140 = vadd.f32 0.0, %v5139
        %v5141 = vpop.f32.mrf.mxu0
        %v5142 = vpop.f32.mrf.mxu0
        %v5143 = vadd.f32 0.0, %v5142
        %v5144 = vpop.f32.mrf.mxu0
        %5145 = vmatprep.mubr.bf16.mxu0 0
        %5146 = vmatmul.mubr.bf16.gmra.mxu0 %v4868
        %v5147 = vpop.f32.mrf.mxu0
        %v5148 = vadd.f32 0.0, %v5147
        %v5149 = vpop.f32.mrf.mxu0
        %v5150 = vpop.f32.mrf.mxu0
        %v5151 = vadd.f32 0.0, %v5150
        %v5152 = vpop.f32.mrf.mxu0
        %5153 = vmatprep.mubr.bf16.mxu0 0
        %5154 = vmatmul.mubr.bf16.gmra.mxu0 %v4870
        %v5155 = vpop.f32.mrf.mxu0
        %v5156 = vadd.f32 0.0, %v5155
        %v5157 = vpop.f32.mrf.mxu0
        %v5158 = vpop.f32.mrf.mxu0
        %v5159 = vadd.f32 0.0, %v5158
        %v5160 = vpop.f32.mrf.mxu0
        %5161 = vmatprep.mubr.bf16.mxu0 0
        %5162 = vmatmul.mubr.bf16.gmra.mxu0 %v4872
        %v5163 = vpop.f32.mrf.mxu0
        %v5164 = vadd.f32 0.0, %v5163
        %v5165 = vpop.f32.mrf.mxu0
        %v5166 = vpop.f32.mrf.mxu0
        %v5167 = vadd.f32 0.0, %v5166
        %v5168 = vpop.f32.mrf.mxu0
        %5169 = vdwg.mxu0
        %v5170 = vadd.f32 %v4755, %v4980
        %v5171 = vadd.f32 %v4756, %v4983
        %v5172 = vadd.f32 %v4757, %v4988
        %v5173 = vadd.f32 %v4758, %v4991
        %v5174 = vadd.f32 %v4759, %v4996
        %v5175 = vadd.f32 %v4760, %v4999
        %v5176 = vadd.f32 %v4761, %v5004
        %v5177 = vadd.f32 %v4762, %v5007
        %v5178 = vadd.f32 %v4763, %v5012
        %v5179 = vadd.f32 %v4764, %v5015
        %v5180 = vadd.f32 %v4765, %v5020
        %v5181 = vadd.f32 %v4766, %v5023
        %v5182 = vadd.f32 %v4767, %v5028
        %v5183 = vadd.f32 %v4768, %v5031
        %v5184 = vadd.f32 %v4769, %v5036
        %v5185 = vadd.f32 %v4770, %v5039
        %v5186 = vadd.f32 %v4771, %v5044
        %v5187 = vadd.f32 %v4772, %v5047
        %v5188 = vadd.f32 %v4773, %v5052
        %v5189 = vadd.f32 %v4774, %v5055
        %v5190 = vadd.f32 %v4775, %v5060
        %v5191 = vadd.f32 %v4776, %v5063
        %v5192 = vadd.f32 %v4777, %v5068
        %v5193 = vadd.f32 %v4778, %v5071
        %v5194 = vadd.f32 %v4779, %v5076
        %v5195 = vadd.f32 %v4780, %v5079
        %v5196 = vadd.f32 %v4781, %v5084
        %v5197 = vadd.f32 %v4782, %v5087
        %v5198 = vadd.f32 %v4783, %v5092
        %v5199 = vadd.f32 %v4784, %v5095
        %v5200 = vadd.f32 %v4785, %v5100
        %v5201 = vadd.f32 %v4786, %v5103
        %v5202 = vadd.f32 %v4787, %v5108
        %v5203 = vadd.f32 %v4788, %v5111
        %v5204 = vadd.f32 %v4789, %v5116
        %v5205 = vadd.f32 %v4790, %v5119
        %v5206 = vadd.f32 %v4791, %v5124
        %v5207 = vadd.f32 %v4792, %v5127
        %v5208 = vadd.f32 %v4793, %v5132
        %v5209 = vadd.f32 %v4794, %v5135
        %v5210 = vadd.f32 %v4795, %v5140
        %v5211 = vadd.f32 %v4796, %v5143
        %v5212 = vadd.f32 %v4797, %v5148
        %v5213 = vadd.f32 %v4798, %v5151
        %v5214 = vadd.f32 %v4799, %v5156
        %v5215 = vadd.f32 %v4800, %v5159
        %v5216 = vadd.f32 %v4801, %v5164
        %v5217 = vadd.f32 %v4802, %v5167
        %v5218 = vld [vmem:[%s3] sm:$0x1]
        %v5220 = vlaneseq
        %v5221 = vshrl.u32 %v5220, 7
        %v5222 = vsub.s32 0, %v5221
        %v5223 = vrot.slane %v5218, %v5222
        %v5225 = vadd.f32 %v5170, %v5223
        %v5226 = vadd.f32 %v5171, %v5223
        %v5227 = vadd.f32 %v5172, %v5223
        %v5228 = vadd.f32 %v5173, %v5223
        %v5229 = vadd.f32 %v5174, %v5223
        %v5230 = vadd.f32 %v5175, %v5223
        %v5231 = vadd.f32 %v5176, %v5223
        %v5232 = vadd.f32 %v5177, %v5223
        %v5233 = vadd.f32 %v5178, %v5223
        %v5234 = vadd.f32 %v5179, %v5223
        %v5235 = vadd.f32 %v5180, %v5223
        %v5236 = vadd.f32 %v5181, %v5223
        %v5237 = vadd.f32 %v5182, %v5223
        %v5238 = vadd.f32 %v5183, %v5223
        %v5239 = vadd.f32 %v5184, %v5223
        %v5240 = vadd.f32 %v5185, %v5223
        %v5241 = vadd.f32 %v5186, %v5223
        %v5242 = vadd.f32 %v5187, %v5223
        %v5243 = vadd.f32 %v5188, %v5223
        %v5244 = vadd.f32 %v5189, %v5223
        %v5245 = vadd.f32 %v5190, %v5223
        %v5246 = vadd.f32 %v5191, %v5223
        %v5247 = vadd.f32 %v5192, %v5223
        %v5248 = vadd.f32 %v5193, %v5223
        %v5249 = vadd.f32 %v5194, %v5223
        %v5250 = vadd.f32 %v5195, %v5223
        %v5251 = vadd.f32 %v5196, %v5223
        %v5252 = vadd.f32 %v5197, %v5223
        %v5253 = vadd.f32 %v5198, %v5223
        %v5254 = vadd.f32 %v5199, %v5223
        %v5255 = vadd.f32 %v5200, %v5223
        %v5256 = vadd.f32 %v5201, %v5223
        %v5257 = vadd.f32 %v5202, %v5223
        %v5258 = vadd.f32 %v5203, %v5223
        %v5259 = vadd.f32 %v5204, %v5223
        %v5260 = vadd.f32 %v5205, %v5223
        %v5261 = vadd.f32 %v5206, %v5223
        %v5262 = vadd.f32 %v5207, %v5223
        %v5263 = vadd.f32 %v5208, %v5223
        %v5264 = vadd.f32 %v5209, %v5223
        %v5265 = vadd.f32 %v5210, %v5223
        %v5266 = vadd.f32 %v5211, %v5223
        %v5267 = vadd.f32 %v5212, %v5223
        %v5268 = vadd.f32 %v5213, %v5223
        %v5269 = vadd.f32 %v5214, %v5223
        %v5270 = vadd.f32 %v5215, %v5223
        %v5271 = vadd.f32 %v5216, %v5223
        %v5272 = vadd.f32 %v5217, %v5223
        %v5273 = vmax.f32 %v5225, 0.0
        %v5274 = vmax.f32 %v5226, 0.0
        %v5275 = vmax.f32 %v5227, 0.0
        %v5276 = vmax.f32 %v5228, 0.0
        %v5277 = vmax.f32 %v5229, 0.0
        %v5278 = vmax.f32 %v5230, 0.0
        %v5279 = vmax.f32 %v5231, 0.0
        %v5280 = vmax.f32 %v5232, 0.0
        %v5281 = vmax.f32 %v5233, 0.0
        %v5282 = vmax.f32 %v5234, 0.0
        %v5283 = vmax.f32 %v5235, 0.0
        %v5284 = vmax.f32 %v5236, 0.0
        %v5285 = vmax.f32 %v5237, 0.0
        %v5286 = vmax.f32 %v5238, 0.0
        %v5287 = vmax.f32 %v5239, 0.0
        %v5288 = vmax.f32 %v5240, 0.0
        %v5289 = vmax.f32 %v5241, 0.0
        %v5290 = vmax.f32 %v5242, 0.0
        %v5291 = vmax.f32 %v5243, 0.0
        %v5292 = vmax.f32 %v5244, 0.0
        %v5293 = vmax.f32 %v5245, 0.0
        %v5294 = vmax.f32 %v5246, 0.0
        %v5295 = vmax.f32 %v5247, 0.0
        %v5296 = vmax.f32 %v5248, 0.0
        %v5297 = vmax.f32 %v5249, 0.0
        %v5298 = vmax.f32 %v5250, 0.0
        %v5299 = vmax.f32 %v5251, 0.0
        %v5300 = vmax.f32 %v5252, 0.0
        %v5301 = vmax.f32 %v5253, 0.0
        %v5302 = vmax.f32 %v5254, 0.0
        %v5303 = vmax.f32 %v5255, 0.0
        %v5304 = vmax.f32 %v5256, 0.0
        %v5305 = vmax.f32 %v5257, 0.0
        %v5306 = vmax.f32 %v5258, 0.0
        %v5307 = vmax.f32 %v5259, 0.0
        %v5308 = vmax.f32 %v5260, 0.0
        %v5309 = vmax.f32 %v5261, 0.0
        %v5310 = vmax.f32 %v5262, 0.0
        %v5311 = vmax.f32 %v5263, 0.0
        %v5312 = vmax.f32 %v5264, 0.0
        %v5313 = vmax.f32 %v5265, 0.0
        %v5314 = vmax.f32 %v5266, 0.0
        %v5315 = vmax.f32 %v5267, 0.0
        %v5316 = vmax.f32 %v5268, 0.0
        %v5317 = vmax.f32 %v5269, 0.0
        %v5318 = vmax.f32 %v5270, 0.0
        %v5319 = vmax.f32 %v5271, 0.0
        %v5320 = vmax.f32 %v5272, 0.0
        %5322 = vset.pattern.permute.xlu0 0
        %5323 = vperm.xlu0 %5322, %v408
        %v5324 = vpop.permute.xlu0 %5323
        %5327 = vset.pattern.permute.xlu0 0
        %5328 = vperm.xlu0 %5327, %v409
        %v5329 = vpop.permute.xlu0 %5328
        %5332 = vset.pattern.permute.xlu0 0
        %5333 = vperm.xlu0 %5332, %v410
        %v5334 = vpop.permute.xlu0 %5333
        %5337 = vset.pattern.permute.xlu0 0
        %5338 = vperm.xlu0 %5337, %v411
        %v5339 = vpop.permute.xlu0 %5338
        %5342 = vset.pattern.permute.xlu0 0
        %5343 = vperm.xlu0 %5342, %v412
        %v5344 = vpop.permute.xlu0 %5343
        %5347 = vset.pattern.permute.xlu0 0
        %5348 = vperm.xlu0 %5347, %v413
        %v5349 = vpop.permute.xlu0 %5348
        %5352 = vset.pattern.permute.xlu0 0
        %5353 = vperm.xlu0 %5352, %v414
        %v5354 = vpop.permute.xlu0 %5353
        %5357 = vset.pattern.permute.xlu0 0
        %5358 = vperm.xlu0 %5357, %v415
        %v5359 = vpop.permute.xlu0 %5358
        %5362 = vset.pattern.permute.xlu0 0
        %5363 = vperm.xlu0 %5362, %v416
        %v5364 = vpop.permute.xlu0 %5363
        %5367 = vset.pattern.permute.xlu0 0
        %5368 = vperm.xlu0 %5367, %v417
        %v5369 = vpop.permute.xlu0 %5368
        %5372 = vset.pattern.permute.xlu0 0
        %5373 = vperm.xlu0 %5372, %v418
        %v5374 = vpop.permute.xlu0 %5373
        %5377 = vset.pattern.permute.xlu0 0
        %5378 = vperm.xlu0 %5377, %v419
        %v5379 = vpop.permute.xlu0 %5378
        %5382 = vset.pattern.permute.xlu0 0
        %5383 = vperm.xlu0 %5382, %v420
        %v5384 = vpop.permute.xlu0 %5383
        %5387 = vset.pattern.permute.xlu0 0
        %5388 = vperm.xlu0 %5387, %v421
        %v5389 = vpop.permute.xlu0 %5388
        %5392 = vset.pattern.permute.xlu0 0
        %5393 = vperm.xlu0 %5392, %v422
        %v5394 = vpop.permute.xlu0 %5393
        %5397 = vset.pattern.permute.xlu0 0
        %5398 = vperm.xlu0 %5397, %v423
        %v5399 = vpop.permute.xlu0 %5398
        %5402 = vset.pattern.permute.xlu0 0
        %5403 = vperm.xlu0 %5402, %v424
        %v5404 = vpop.permute.xlu0 %5403
        %5407 = vset.pattern.permute.xlu0 0
        %5408 = vperm.xlu0 %5407, %v425
        %v5409 = vpop.permute.xlu0 %5408
        %5412 = vset.pattern.permute.xlu0 0
        %5413 = vperm.xlu0 %5412, %v426
        %v5414 = vpop.permute.xlu0 %5413
        %5417 = vset.pattern.permute.xlu0 0
        %5418 = vperm.xlu0 %5417, %v427
        %v5419 = vpop.permute.xlu0 %5418
        %5422 = vset.pattern.permute.xlu0 0
        %5423 = vperm.xlu0 %5422, %v428
        %v5424 = vpop.permute.xlu0 %5423
        %5427 = vset.pattern.permute.xlu0 0
        %5428 = vperm.xlu0 %5427, %v429
        %v5429 = vpop.permute.xlu0 %5428
        %5432 = vset.pattern.permute.xlu0 0
        %5433 = vperm.xlu0 %5432, %v430
        %v5434 = vpop.permute.xlu0 %5433
        %5437 = vset.pattern.permute.xlu0 0
        %5438 = vperm.xlu0 %5437, %v431
        %v5439 = vpop.permute.xlu0 %5438
        %5442 = vset.pattern.permute.xlu0 0
        %5443 = vperm.xlu0 %5442, %v432
        %v5444 = vpop.permute.xlu0 %5443
        %5447 = vset.pattern.permute.xlu0 0
        %5448 = vperm.xlu0 %5447, %v433
        %v5449 = vpop.permute.xlu0 %5448
        %5452 = vset.pattern.permute.xlu0 0
        %5453 = vperm.xlu0 %5452, %v434
        %v5454 = vpop.permute.xlu0 %5453
        %5457 = vset.pattern.permute.xlu0 0
        %5458 = vperm.xlu0 %5457, %v435
        %v5459 = vpop.permute.xlu0 %5458
        %5462 = vset.pattern.permute.xlu0 0
        %5463 = vperm.xlu0 %5462, %v436
        %v5464 = vpop.permute.xlu0 %5463
        %5467 = vset.pattern.permute.xlu0 0
        %5468 = vperm.xlu0 %5467, %v437
        %v5469 = vpop.permute.xlu0 %5468
        %5472 = vset.pattern.permute.xlu0 0
        %5473 = vperm.xlu0 %5472, %v438
        %v5474 = vpop.permute.xlu0 %5473
        %5477 = vset.pattern.permute.xlu0 0
        %5478 = vperm.xlu0 %5477, %v439
        %v5479 = vpop.permute.xlu0 %5478
        %5482 = vset.pattern.permute.xlu0 0
        %5483 = vperm.xlu0 %5482, %v440
        %v5484 = vpop.permute.xlu0 %5483
        %5487 = vset.pattern.permute.xlu0 0
        %5488 = vperm.xlu0 %5487, %v441
        %v5489 = vpop.permute.xlu0 %5488
        %5492 = vset.pattern.permute.xlu0 0
        %5493 = vperm.xlu0 %5492, %v442
        %v5494 = vpop.permute.xlu0 %5493
        %5497 = vset.pattern.permute.xlu0 0
        %5498 = vperm.xlu0 %5497, %v443
        %v5499 = vpop.permute.xlu0 %5498
        %5502 = vset.pattern.permute.xlu0 0
        %5503 = vperm.xlu0 %5502, %v444
        %v5504 = vpop.permute.xlu0 %5503
        %5507 = vset.pattern.permute.xlu0 0
        %5508 = vperm.xlu0 %5507, %v445
        %v5509 = vpop.permute.xlu0 %5508
        %5512 = vset.pattern.permute.xlu0 0
        %5513 = vperm.xlu0 %5512, %v446
        %v5514 = vpop.permute.xlu0 %5513
        %5517 = vset.pattern.permute.xlu0 0
        %5518 = vperm.xlu0 %5517, %v447
        %v5519 = vpop.permute.xlu0 %5518
        %5522 = vset.pattern.permute.xlu0 0
        %5523 = vperm.xlu0 %5522, %v448
        %v5524 = vpop.permute.xlu0 %5523
        %5527 = vset.pattern.permute.xlu0 0
        %5528 = vperm.xlu0 %5527, %v449
        %v5529 = vpop.permute.xlu0 %5528
        %5532 = vset.pattern.permute.xlu0 0
        %5533 = vperm.xlu0 %5532, %v450
        %v5534 = vpop.permute.xlu0 %5533
        %5537 = vset.pattern.permute.xlu0 0
        %5538 = vperm.xlu0 %5537, %v451
        %v5539 = vpop.permute.xlu0 %5538
        %5542 = vset.pattern.permute.xlu0 0
        %5543 = vperm.xlu0 %5542, %v452
        %v5544 = vpop.permute.xlu0 %5543
        %5547 = vset.pattern.permute.xlu0 0
        %5548 = vperm.xlu0 %5547, %v453
        %v5549 = vpop.permute.xlu0 %5548
        %5552 = vset.pattern.permute.xlu0 0
        %5553 = vperm.xlu0 %5552, %v454
        %v5554 = vpop.permute.xlu0 %5553
        %5557 = vset.pattern.permute.xlu0 0
        %5558 = vperm.xlu0 %5557, %v455
        %v5559 = vpop.permute.xlu0 %5558
        %v5561 = vmul.f32 %v5273, %v5324
        %v5562 = vmul.f32 %v5274, %v5329
        %v5563 = vmul.f32 %v5275, %v5334
        %v5564 = vmul.f32 %v5276, %v5339
        %v5565 = vmul.f32 %v5277, %v5344
        %v5566 = vmul.f32 %v5278, %v5349
        %v5567 = vmul.f32 %v5279, %v5354
        %v5568 = vmul.f32 %v5280, %v5359
        %v5569 = vmul.f32 %v5281, %v5364
        %v5570 = vmul.f32 %v5282, %v5369
        %v5571 = vmul.f32 %v5283, %v5374
        %v5572 = vmul.f32 %v5284, %v5379
        %v5573 = vmul.f32 %v5285, %v5384
        %v5574 = vmul.f32 %v5286, %v5389
        %v5575 = vmul.f32 %v5287, %v5394
        %v5576 = vmul.f32 %v5288, %v5399
        %v5577 = vmul.f32 %v5289, %v5404
        %v5578 = vmul.f32 %v5290, %v5409
        %v5579 = vmul.f32 %v5291, %v5414
        %v5580 = vmul.f32 %v5292, %v5419
        %v5581 = vmul.f32 %v5293, %v5424
        %v5582 = vmul.f32 %v5294, %v5429
        %v5583 = vmul.f32 %v5295, %v5434
        %v5584 = vmul.f32 %v5296, %v5439
        %v5585 = vmul.f32 %v5297, %v5444
        %v5586 = vmul.f32 %v5298, %v5449
        %v5587 = vmul.f32 %v5299, %v5454
        %v5588 = vmul.f32 %v5300, %v5459
        %v5589 = vmul.f32 %v5301, %v5464
        %v5590 = vmul.f32 %v5302, %v5469
        %v5591 = vmul.f32 %v5303, %v5474
        %v5592 = vmul.f32 %v5304, %v5479
        %v5593 = vmul.f32 %v5305, %v5484
        %v5594 = vmul.f32 %v5306, %v5489
        %v5595 = vmul.f32 %v5307, %v5494
        %v5596 = vmul.f32 %v5308, %v5499
        %v5597 = vmul.f32 %v5309, %v5504
        %v5598 = vmul.f32 %v5310, %v5509
        %v5599 = vmul.f32 %v5311, %v5514
        %v5600 = vmul.f32 %v5312, %v5519
        %v5601 = vmul.f32 %v5313, %v5524
        %v5602 = vmul.f32 %v5314, %v5529
        %v5603 = vmul.f32 %v5315, %v5534
        %v5604 = vmul.f32 %v5316, %v5539
        %v5605 = vmul.f32 %v5317, %v5544
        %v5606 = vmul.f32 %v5318, %v5549
        %v5607 = vmul.f32 %v5319, %v5554
        %v5608 = vmul.f32 %v5320, %v5559
        %v5609 = vadd.f32 %v5561, %v5562
        %v5610 = vadd.f32 %v5609, %v5563
        %v5611 = vadd.f32 %v5610, %v5564
        %v5612 = vadd.f32 %v5611, %v5565
        %v5613 = vadd.f32 %v5612, %v5566
        %v5614 = vadd.f32 %v5613, %v5567
        %v5615 = vadd.f32 %v5614, %v5568
        %v5616 = vadd.f32 %v5615, %v5569
        %v5617 = vadd.f32 %v5616, %v5570
        %v5618 = vadd.f32 %v5617, %v5571
        %v5619 = vadd.f32 %v5618, %v5572
        %v5620 = vadd.f32 %v5619, %v5573
        %v5621 = vadd.f32 %v5620, %v5574
        %v5622 = vadd.f32 %v5621, %v5575
        %v5623 = vadd.f32 %v5622, %v5576
        %v5624 = vadd.f32 %v5623, %v5577
        %v5625 = vadd.f32 %v5624, %v5578
        %v5626 = vadd.f32 %v5625, %v5579
        %v5627 = vadd.f32 %v5626, %v5580
        %v5628 = vadd.f32 %v5627, %v5581
        %v5629 = vadd.f32 %v5628, %v5582
        %v5630 = vadd.f32 %v5629, %v5583
        %v5631 = vadd.f32 %v5630, %v5584
        %v5632 = vadd.f32 %v5631, %v5585
        %v5633 = vadd.f32 %v5632, %v5586
        %v5634 = vadd.f32 %v5633, %v5587
        %v5635 = vadd.f32 %v5634, %v5588
        %v5636 = vadd.f32 %v5635, %v5589
        %v5637 = vadd.f32 %v5636, %v5590
        %v5638 = vadd.f32 %v5637, %v5591
        %v5639 = vadd.f32 %v5638, %v5592
        %v5640 = vadd.f32 %v5639, %v5593
        %v5641 = vadd.f32 %v5640, %v5594
        %v5642 = vadd.f32 %v5641, %v5595
        %v5643 = vadd.f32 %v5642, %v5596
        %v5644 = vadd.f32 %v5643, %v5597
        %v5645 = vadd.f32 %v5644, %v5598
        %v5646 = vadd.f32 %v5645, %v5599
        %v5647 = vadd.f32 %v5646, %v5600
        %v5648 = vadd.f32 %v5647, %v5601
        %v5649 = vadd.f32 %v5648, %v5602
        %v5650 = vadd.f32 %v5649, %v5603
        %v5651 = vadd.f32 %v5650, %v5604
        %v5652 = vadd.f32 %v5651, %v5605
        %v5653 = vadd.f32 %v5652, %v5606
        %v5654 = vadd.f32 %v5653, %v5607
        %v5655 = vadd.f32 %v5654, %v5608
        %v5656 = vrot.slane %v5655, 4
        %v5657 = vadd.f32 %v5655, %v5656
        %v5658 = vrot.slane %v5657, 2
        %v5659 = vadd.f32 %v5657, %v5658
        %v5660 = vrot.slane %v5659, 1
        %v5661 = vadd.f32 %v5659, %v5660
        %v5662 = vmul.f32 %v5561, %v5273
        %v5663 = vmul.f32 %v5562, %v5274
        %v5664 = vmul.f32 %v5563, %v5275
        %v5665 = vmul.f32 %v5564, %v5276
        %v5666 = vmul.f32 %v5565, %v5277
        %v5667 = vmul.f32 %v5566, %v5278
        %v5668 = vmul.f32 %v5567, %v5279
        %v5669 = vmul.f32 %v5568, %v5280
        %v5670 = vmul.f32 %v5569, %v5281
        %v5671 = vmul.f32 %v5570, %v5282
        %v5672 = vmul.f32 %v5571, %v5283
        %v5673 = vmul.f32 %v5572, %v5284
        %v5674 = vmul.f32 %v5573, %v5285
        %v5675 = vmul.f32 %v5574, %v5286
        %v5676 = vmul.f32 %v5575, %v5287
        %v5677 = vmul.f32 %v5576, %v5288
        %v5678 = vmul.f32 %v5577, %v5289
        %v5679 = vmul.f32 %v5578, %v5290
        %v5680 = vmul.f32 %v5579, %v5291
        %v5681 = vmul.f32 %v5580, %v5292
        %v5682 = vmul.f32 %v5581, %v5293
        %v5683 = vmul.f32 %v5582, %v5294
        %v5684 = vmul.f32 %v5583, %v5295
        %v5685 = vmul.f32 %v5584, %v5296
        %v5686 = vmul.f32 %v5585, %v5297
        %v5687 = vmul.f32 %v5586, %v5298
        %v5688 = vmul.f32 %v5587, %v5299
        %v5689 = vmul.f32 %v5588, %v5300
        %v5690 = vmul.f32 %v5589, %v5301
        %v5691 = vmul.f32 %v5590, %v5302
        %v5692 = vmul.f32 %v5591, %v5303
        %v5693 = vmul.f32 %v5592, %v5304
        %v5694 = vmul.f32 %v5593, %v5305
        %v5695 = vmul.f32 %v5594, %v5306
        %v5696 = vmul.f32 %v5595, %v5307
        %v5697 = vmul.f32 %v5596, %v5308
        %v5698 = vmul.f32 %v5597, %v5309
        %v5699 = vmul.f32 %v5598, %v5310
        %v5700 = vmul.f32 %v5599, %v5311
        %v5701 = vmul.f32 %v5600, %v5312
        %v5702 = vmul.f32 %v5601, %v5313
        %v5703 = vmul.f32 %v5602, %v5314
        %v5704 = vmul.f32 %v5603, %v5315
        %v5705 = vmul.f32 %v5604, %v5316
        %v5706 = vmul.f32 %v5605, %v5317
        %v5707 = vmul.f32 %v5606, %v5318
        %v5708 = vmul.f32 %v5607, %v5319
        %v5709 = vmul.f32 %v5608, %v5320
        %v5710 = vadd.f32 %v5662, %v5663
        %v5711 = vadd.f32 %v5710, %v5664
        %v5712 = vadd.f32 %v5711, %v5665
        %v5713 = vadd.f32 %v5712, %v5666
        %v5714 = vadd.f32 %v5713, %v5667
        %v5715 = vadd.f32 %v5714, %v5668
        %v5716 = vadd.f32 %v5715, %v5669
        %v5717 = vadd.f32 %v5716, %v5670
        %v5718 = vadd.f32 %v5717, %v5671
        %v5719 = vadd.f32 %v5718, %v5672
        %v5720 = vadd.f32 %v5719, %v5673
        %v5721 = vadd.f32 %v5720, %v5674
        %v5722 = vadd.f32 %v5721, %v5675
        %v5723 = vadd.f32 %v5722, %v5676
        %v5724 = vadd.f32 %v5723, %v5677
        %v5725 = vadd.f32 %v5724, %v5678
        %v5726 = vadd.f32 %v5725, %v5679
        %v5727 = vadd.f32 %v5726, %v5680
        %v5728 = vadd.f32 %v5727, %v5681
        %v5729 = vadd.f32 %v5728, %v5682
        %v5730 = vadd.f32 %v5729, %v5683
        %v5731 = vadd.f32 %v5730, %v5684
        %v5732 = vadd.f32 %v5731, %v5685
        %v5733 = vadd.f32 %v5732, %v5686
        %v5734 = vadd.f32 %v5733, %v5687
        %v5735 = vadd.f32 %v5734, %v5688
        %v5736 = vadd.f32 %v5735, %v5689
        %v5737 = vadd.f32 %v5736, %v5690
        %v5738 = vadd.f32 %v5737, %v5691
        %v5739 = vadd.f32 %v5738, %v5692
        %v5740 = vadd.f32 %v5739, %v5693
        %v5741 = vadd.f32 %v5740, %v5694
        %v5742 = vadd.f32 %v5741, %v5695
        %v5743 = vadd.f32 %v5742, %v5696
        %v5744 = vadd.f32 %v5743, %v5697
        %v5745 = vadd.f32 %v5744, %v5698
        %v5746 = vadd.f32 %v5745, %v5699
        %v5747 = vadd.f32 %v5746, %v5700
        %v5748 = vadd.f32 %v5747, %v5701
        %v5749 = vadd.f32 %v5748, %v5702
        %v5750 = vadd.f32 %v5749, %v5703
        %v5751 = vadd.f32 %v5750, %v5704
        %v5752 = vadd.f32 %v5751, %v5705
        %v5753 = vadd.f32 %v5752, %v5706
        %v5754 = vadd.f32 %v5753, %v5707
        %v5755 = vadd.f32 %v5754, %v5708
        %v5756 = vadd.f32 %v5755, %v5709
        %v5757 = vrot.slane %v5756, 4
        %v5758 = vadd.f32 %v5756, %v5757
        %v5759 = vrot.slane %v5758, 2
        %v5760 = vadd.f32 %v5758, %v5759
        %v5761 = vrot.slane %v5760, 1
        %v5762 = vadd.f32 %v5760, %v5761
        %v5763 = vlaneseq
        %v5764 = vand.u32 %v5763, 127
        %vm5765 = vcmp.ge.s32.totalorder %v5764, 0
        %vm5766 = vcmp.lt.s32.totalorder %v5764, 4
        %vm5767 = vmand %vm5765, %vm5766
        %v5768 = vsel %vm5767, %v5661, 0.0
        %vm5769 = vcmask 1040384
        %v5770 = vsel %vm5769, %v5768, 0.0
        %5771 = vadd.xlane.f32.xlu0 %v5770
        %v5772 = vpop.xlane.xlu0 %5771
        %v5773 = vrot.slane %v5772, 4
        %v5774 = vadd.f32 %v5772, %v5773
        %v5775 = vrot.slane %v5774, 2
        %v5776 = vadd.f32 %v5774, %v5775
        %v5777 = vrot.slane %v5776, 1
        %v5778 = vadd.f32 %v5776, %v5777
        %s5779 = vtos %v5778
        %v5780 = vrcp.pop 1024.0
        %s5781 = vtos %v5780
        %s5782 = smul.f32 %s5779, %s5781
        %v5783 = vsel %vm5767, %v5762, 0.0
        %v5784 = vsel %vm5769, %v5783, 0.0
        %5785 = vadd.xlane.f32.xlu0 %v5784
        %v5786 = vpop.xlane.xlu0 %5785
        %v5787 = vrot.slane %v5786, 4
        %v5788 = vadd.f32 %v5786, %v5787
        %v5789 = vrot.slane %v5788, 2
        %v5790 = vadd.f32 %v5788, %v5789
        %v5791 = vrot.slane %v5790, 1
        %v5792 = vadd.f32 %v5790, %v5791
        %s5793 = vtos %v5792
        %v5794 = vrcp.pop 1024.0
        %s5795 = vtos %v5794
        %s5796 = smul.f32 %s5793, %s5795
        %s5797 = smul.f32 %s5782, %s5782
        %s5798 = ssub.f32 %s5796, %s5797
        %s5799 = smax.f32 %s5798, 0.0
        %v5800 = vstv %s5782
        %v5801 = vsel %vm5767, %v5800, 0.0
        %s5802 = sadd.f32 %s5799, 1e-05
        %v5803 = vstv %s5802
        %v5804 = vrsqrt.pop %v5803
        %s5805 = vtos %v5804
        %v5806 = vstv %s5805
        %v5807 = vsel %vm5767, %v5806, 0.0
        %v5808 = vsub.f32 %v5273, %v5801
        %v5809 = vsub.f32 %v5274, %v5801
        %v5810 = vsub.f32 %v5275, %v5801
        %v5811 = vsub.f32 %v5276, %v5801
        %v5812 = vsub.f32 %v5277, %v5801
        %v5813 = vsub.f32 %v5278, %v5801
        %v5814 = vsub.f32 %v5279, %v5801
        %v5815 = vsub.f32 %v5280, %v5801
        %v5816 = vsub.f32 %v5281, %v5801
        %v5817 = vsub.f32 %v5282, %v5801
        %v5818 = vsub.f32 %v5283, %v5801
        %v5819 = vsub.f32 %v5284, %v5801
        %v5820 = vsub.f32 %v5285, %v5801
        %v5821 = vsub.f32 %v5286, %v5801
        %v5822 = vsub.f32 %v5287, %v5801
        %v5823 = vsub.f32 %v5288, %v5801
        %v5824 = vsub.f32 %v5289, %v5801
        %v5825 = vsub.f32 %v5290, %v5801
        %v5826 = vsub.f32 %v5291, %v5801
        %v5827 = vsub.f32 %v5292, %v5801
        %v5828 = vsub.f32 %v5293, %v5801
        %v5829 = vsub.f32 %v5294, %v5801
        %v5830 = vsub.f32 %v5295, %v5801
        %v5831 = vsub.f32 %v5296, %v5801
        %v5832 = vsub.f32 %v5297, %v5801
        %v5833 = vsub.f32 %v5298, %v5801
        %v5834 = vsub.f32 %v5299, %v5801
        %v5835 = vsub.f32 %v5300, %v5801
        %v5836 = vsub.f32 %v5301, %v5801
        %v5837 = vsub.f32 %v5302, %v5801
        %v5838 = vsub.f32 %v5303, %v5801
        %v5839 = vsub.f32 %v5304, %v5801
        %v5840 = vsub.f32 %v5305, %v5801
        %v5841 = vsub.f32 %v5306, %v5801
        %v5842 = vsub.f32 %v5307, %v5801
        %v5843 = vsub.f32 %v5308, %v5801
        %v5844 = vsub.f32 %v5309, %v5801
        %v5845 = vsub.f32 %v5310, %v5801
        %v5846 = vsub.f32 %v5311, %v5801
        %v5847 = vsub.f32 %v5312, %v5801
        %v5848 = vsub.f32 %v5313, %v5801
        %v5849 = vsub.f32 %v5314, %v5801
        %v5850 = vsub.f32 %v5315, %v5801
        %v5851 = vsub.f32 %v5316, %v5801
        %v5852 = vsub.f32 %v5317, %v5801
        %v5853 = vsub.f32 %v5318, %v5801
        %v5854 = vsub.f32 %v5319, %v5801
        %v5855 = vsub.f32 %v5320, %v5801
        %v5856 = vld [vmem:[%s4] sm:$0x1]
        %v5857 = vmul.f32 %v5807, %v5856
        %v5858 = vlaneseq
        %v5859 = vshrl.u32 %v5858, 7
        %v5860 = vsub.s32 0, %v5859
        %v5861 = vrot.slane %v5857, %v5860
        %v5862 = vmul.f32 %v5808, %v5861
        %v5863 = vmul.f32 %v5809, %v5861
        %v5864 = vmul.f32 %v5810, %v5861
        %v5865 = vmul.f32 %v5811, %v5861
        %v5866 = vmul.f32 %v5812, %v5861
        %v5867 = vmul.f32 %v5813, %v5861
        %v5868 = vmul.f32 %v5814, %v5861
        %v5869 = vmul.f32 %v5815, %v5861
        %v5870 = vmul.f32 %v5816, %v5861
        %v5871 = vmul.f32 %v5817, %v5861
        %v5872 = vmul.f32 %v5818, %v5861
        %v5873 = vmul.f32 %v5819, %v5861
        %v5874 = vmul.f32 %v5820, %v5861
        %v5875 = vmul.f32 %v5821, %v5861
        %v5876 = vmul.f32 %v5822, %v5861
        %v5877 = vmul.f32 %v5823, %v5861
        %v5878 = vmul.f32 %v5824, %v5861
        %v5879 = vmul.f32 %v5825, %v5861
        %v5880 = vmul.f32 %v5826, %v5861
        %v5881 = vmul.f32 %v5827, %v5861
        %v5882 = vmul.f32 %v5828, %v5861
        %v5883 = vmul.f32 %v5829, %v5861
        %v5884 = vmul.f32 %v5830, %v5861
        %v5885 = vmul.f32 %v5831, %v5861
        %v5886 = vmul.f32 %v5832, %v5861
        %v5887 = vmul.f32 %v5833, %v5861
        %v5888 = vmul.f32 %v5834, %v5861
        %v5889 = vmul.f32 %v5835, %v5861
        %v5890 = vmul.f32 %v5836, %v5861
        %v5891 = vmul.f32 %v5837, %v5861
        %v5892 = vmul.f32 %v5838, %v5861
        %v5893 = vmul.f32 %v5839, %v5861
        %v5894 = vmul.f32 %v5840, %v5861
        %v5895 = vmul.f32 %v5841, %v5861
        %v5896 = vmul.f32 %v5842, %v5861
        %v5897 = vmul.f32 %v5843, %v5861
        %v5898 = vmul.f32 %v5844, %v5861
        %v5899 = vmul.f32 %v5845, %v5861
        %v5900 = vmul.f32 %v5846, %v5861
        %v5901 = vmul.f32 %v5847, %v5861
        %v5902 = vmul.f32 %v5848, %v5861
        %v5903 = vmul.f32 %v5849, %v5861
        %v5904 = vmul.f32 %v5850, %v5861
        %v5905 = vmul.f32 %v5851, %v5861
        %v5906 = vmul.f32 %v5852, %v5861
        %v5907 = vmul.f32 %v5853, %v5861
        %v5908 = vmul.f32 %v5854, %v5861
        %v5909 = vmul.f32 %v5855, %v5861
        %v5910 = vld [vmem:[%s5] sm:$0x1]
        %v5912 = vlaneseq
        %v5913 = vshrl.u32 %v5912, 7
        %v5914 = vsub.s32 0, %v5913
        %v5915 = vrot.slane %v5910, %v5914
        %v5917 = vadd.f32 %v5862, %v5915
        %v5918 = vadd.f32 %v5863, %v5915
        %v5919 = vadd.f32 %v5864, %v5915
        %v5920 = vadd.f32 %v5865, %v5915
        %v5921 = vadd.f32 %v5866, %v5915
        %v5922 = vadd.f32 %v5867, %v5915
        %v5923 = vadd.f32 %v5868, %v5915
        %v5924 = vadd.f32 %v5869, %v5915
        %v5925 = vadd.f32 %v5870, %v5915
        %v5926 = vadd.f32 %v5871, %v5915
        %v5927 = vadd.f32 %v5872, %v5915
        %v5928 = vadd.f32 %v5873, %v5915
        %v5929 = vadd.f32 %v5874, %v5915
        %v5930 = vadd.f32 %v5875, %v5915
        %v5931 = vadd.f32 %v5876, %v5915
        %v5932 = vadd.f32 %v5877, %v5915
        %v5933 = vadd.f32 %v5878, %v5915
        %v5934 = vadd.f32 %v5879, %v5915
        %v5935 = vadd.f32 %v5880, %v5915
        %v5936 = vadd.f32 %v5881, %v5915
        %v5937 = vadd.f32 %v5882, %v5915
        %v5938 = vadd.f32 %v5883, %v5915
        %v5939 = vadd.f32 %v5884, %v5915
        %v5940 = vadd.f32 %v5885, %v5915
        %v5941 = vadd.f32 %v5886, %v5915
        %v5942 = vadd.f32 %v5887, %v5915
        %v5943 = vadd.f32 %v5888, %v5915
        %v5944 = vadd.f32 %v5889, %v5915
        %v5945 = vadd.f32 %v5890, %v5915
        %v5946 = vadd.f32 %v5891, %v5915
        %v5947 = vadd.f32 %v5892, %v5915
        %v5948 = vadd.f32 %v5893, %v5915
        %v5949 = vadd.f32 %v5894, %v5915
        %v5950 = vadd.f32 %v5895, %v5915
        %v5951 = vadd.f32 %v5896, %v5915
        %v5952 = vadd.f32 %v5897, %v5915
        %v5953 = vadd.f32 %v5898, %v5915
        %v5954 = vadd.f32 %v5899, %v5915
        %v5955 = vadd.f32 %v5900, %v5915
        %v5956 = vadd.f32 %v5901, %v5915
        %v5957 = vadd.f32 %v5902, %v5915
        %v5958 = vadd.f32 %v5903, %v5915
        %v5959 = vadd.f32 %v5904, %v5915
        %v5960 = vadd.f32 %v5905, %v5915
        %v5961 = vadd.f32 %v5906, %v5915
        %v5962 = vadd.f32 %v5907, %v5915
        %v5963 = vadd.f32 %v5908, %v5915
        %v5964 = vadd.f32 %v5909, %v5915
        %5965 = vst [vmem:[#allocation2] sm:$0xf] 0
        %5966 = vst [vmem:[#allocation2 + $0x4] sm:$0xf] 0
        %5967 = vst [vmem:[#allocation2 + $0x8] sm:$0xf] 0
        %vm5968 = vcmask 1040384
        %vm5969 = vsmask.f32 256
        %vm5970 = vmand %vm5968, %vm5969
        %v5971 = vld [vmem:[#allocation2 + $0xc] sm:$0x1]
        %v5972 = vsel %vm5970, 0, %v5971
        %5973 = vst [vmem:[#allocation2 + $0xc] sm:$0x1] %v5972
        %vm5974 = vcmask 1043456
        %vm5975 = vsmask.f32 7938
        %vm5976 = vmand %vm5974, %vm5975
        %v5977 = vld [vmem:[#allocation2 + $0xcc] sm:$0xf]
        %v5978 = vsel %vm5976, 0, %v5977
        %5979 = vst [vmem:[#allocation2 + $0xcc] sm:$0xf] %v5978
        %5980 = vst [vmem:[#allocation2 + $0xd0] sm:$0xf] 0
        %5981 = vst [vmem:[#allocation2 + $0xd4] sm:$0xf] 0
        %5982 = vst [vmem:[#allocation2 + $0xd8] sm:$0xf] 0
        %5983 = vst [vmem:[#allocation2 + $0xdc] sm:$0xf] 0
        %5984 = vst [vmem:[#allocation2 + $0xe0] sm:$0xf] 0
        %v5985 = vmul.f32 %v5917, %v5324
        %v5986 = vmul.f32 %v5918, %v5329
        %v5987 = vmul.f32 %v5919, %v5334
        %v5988 = vmul.f32 %v5920, %v5339
        %v5989 = vmul.f32 %v5921, %v5344
        %v5990 = vmul.f32 %v5922, %v5349
        %v5991 = vmul.f32 %v5923, %v5354
        %v5992 = vmul.f32 %v5924, %v5359
        %v5993 = vmul.f32 %v5925, %v5364
        %v5994 = vmul.f32 %v5926, %v5369
        %v5995 = vmul.f32 %v5927, %v5374
        %v5996 = vmul.f32 %v5928, %v5379
        %v5997 = vmul.f32 %v5929, %v5384
        %v5998 = vmul.f32 %v5930, %v5389
        %v5999 = vmul.f32 %v5931, %v5394
        %v6000 = vmul.f32 %v5932, %v5399
        %v6001 = vmul.f32 %v5933, %v5404
        %v6002 = vmul.f32 %v5934, %v5409
        %v6003 = vmul.f32 %v5935, %v5414
        %v6004 = vmul.f32 %v5936, %v5419
        %v6005 = vmul.f32 %v5937, %v5424
        %v6006 = vmul.f32 %v5938, %v5429
        %v6007 = vmul.f32 %v5939, %v5434
        %v6008 = vmul.f32 %v5940, %v5439
        %v6009 = vmul.f32 %v5941, %v5444
        %v6010 = vmul.f32 %v5942, %v5449
        %v6011 = vmul.f32 %v5943, %v5454
        %v6012 = vmul.f32 %v5944, %v5459
        %v6013 = vmul.f32 %v5945, %v5464
        %v6014 = vmul.f32 %v5946, %v5469
        %v6015 = vmul.f32 %v5947, %v5474
        %v6016 = vmul.f32 %v5948, %v5479
        %v6017 = vmul.f32 %v5949, %v5484
        %v6018 = vmul.f32 %v5950, %v5489
        %v6019 = vmul.f32 %v5951, %v5494
        %v6020 = vmul.f32 %v5952, %v5499
        %v6021 = vmul.f32 %v5953, %v5504
        %v6022 = vmul.f32 %v5954, %v5509
        %v6023 = vmul.f32 %v5955, %v5514
        %v6024 = vmul.f32 %v5956, %v5519
        %v6025 = vmul.f32 %v5957, %v5524
        %v6026 = vmul.f32 %v5958, %v5529
        %v6027 = vmul.f32 %v5959, %v5534
        %v6028 = vmul.f32 %v5960, %v5539
        %v6029 = vmul.f32 %v5961, %v5544
        %v6030 = vmul.f32 %v5962, %v5549
        %v6031 = vmul.f32 %v5963, %v5554
        %v6032 = vmul.f32 %v5964, %v5559
        %v6033 = vpack.c.bf16 %v5986, %v5985
        %v6034 = vpack.c.bf16 %v5988, %v5987
        %v6035 = vpack.c.bf16 %v5990, %v5989
        %v6036 = vpack.c.bf16 %v5992, %v5991
        %v6037 = vpack.c.bf16 %v5994, %v5993
        %v6038 = vpack.c.bf16 %v5996, %v5995
        %v6039 = vpack.c.bf16 %v5998, %v5997
        %v6040 = vpack.c.bf16 %v6000, %v5999
        %v6041 = vpack.c.bf16 %v6002, %v6001
        %v6042 = vpack.c.bf16 %v6004, %v6003
        %v6043 = vpack.c.bf16 %v6006, %v6005
        %v6044 = vpack.c.bf16 %v6008, %v6007
        %v6045 = vpack.c.bf16 %v6010, %v6009
        %v6046 = vpack.c.bf16 %v6012, %v6011
        %v6047 = vpack.c.bf16 %v6014, %v6013
        %v6048 = vpack.c.bf16 %v6016, %v6015
        %v6049 = vpack.c.bf16 %v6018, %v6017
        %v6050 = vpack.c.bf16 %v6020, %v6019
        %v6051 = vpack.c.bf16 %v6022, %v6021
        %v6052 = vpack.c.bf16 %v6024, %v6023
        %v6053 = vpack.c.bf16 %v6026, %v6025
        %v6054 = vpack.c.bf16 %v6028, %v6027
        %v6055 = vpack.c.bf16 %v6030, %v6029
        %v6056 = vpack.c.bf16 %v6032, %v6031
        %v6081 = vunpack.c.l.b16 %v6033
        %v6082 = vunpack.c.h.b16 %v6033
        %v6083 = vunpack.c.l.b16 %v6034
        %v6084 = vunpack.c.h.b16 %v6034
        %v6085 = vunpack.c.l.b16 %v6035
        %v6086 = vunpack.c.h.b16 %v6035
        %v6087 = vunpack.c.l.b16 %v6036
        %v6088 = vunpack.c.h.b16 %v6036
        %v6089 = vunpack.c.l.b16 %v6037
        %v6090 = vunpack.c.h.b16 %v6037
        %v6091 = vunpack.c.l.b16 %v6038
        %v6092 = vunpack.c.h.b16 %v6038
        %v6093 = vunpack.c.l.b16 %v6039
        %v6094 = vunpack.c.h.b16 %v6039
        %v6095 = vunpack.c.l.b16 %v6040
        %v6096 = vunpack.c.h.b16 %v6040
        %v6097 = vunpack.c.l.b16 %v6041
        %v6098 = vunpack.c.h.b16 %v6041
        %v6099 = vunpack.c.l.b16 %v6042
        %v6100 = vunpack.c.h.b16 %v6042
        %v6101 = vunpack.c.l.b16 %v6043
        %v6102 = vunpack.c.h.b16 %v6043
        %v6103 = vunpack.c.l.b16 %v6044
        %v6104 = vunpack.c.h.b16 %v6044
        %v6105 = vunpack.c.l.b16 %v6045
        %v6106 = vunpack.c.h.b16 %v6045
        %v6107 = vunpack.c.l.b16 %v6046
        %v6108 = vunpack.c.h.b16 %v6046
        %v6109 = vunpack.c.l.b16 %v6047
        %v6110 = vunpack.c.h.b16 %v6047
        %v6111 = vunpack.c.l.b16 %v6048
        %v6112 = vunpack.c.h.b16 %v6048
        %v6113 = vunpack.c.l.b16 %v6049
        %v6114 = vunpack.c.h.b16 %v6049
        %v6115 = vunpack.c.l.b16 %v6050
        %v6116 = vunpack.c.h.b16 %v6050
        %v6117 = vunpack.c.l.b16 %v6051
        %v6118 = vunpack.c.h.b16 %v6051
        %v6119 = vunpack.c.l.b16 %v6052
        %v6120 = vunpack.c.h.b16 %v6052
        %v6121 = vunpack.c.l.b16 %v6053
        %v6122 = vunpack.c.h.b16 %v6053
        %v6123 = vunpack.c.l.b16 %v6054
        %v6124 = vunpack.c.h.b16 %v6054
        %v6125 = vunpack.c.l.b16 %v6055
        %v6126 = vunpack.c.h.b16 %v6055
        %v6127 = vunpack.c.l.b16 %v6056
        %v6128 = vunpack.c.h.b16 %v6056
        %v6129 = vpack.c.b16 %v6081, %v6081
        %v6130 = vpack.c.b16 %v6082, %v6082
        %v6131 = vpack.c.b16 %v6083, %v6083
        %v6132 = vpack.c.b16 %v6084, %v6084
        %v6133 = vpack.c.b16 %v6085, %v6085
        %v6134 = vpack.c.b16 %v6086, %v6086
        %v6135 = vpack.c.b16 %v6087, %v6087
        %v6136 = vpack.c.b16 %v6088, %v6088
        %v6137 = vpack.c.b16 %v6089, %v6089
        %v6138 = vpack.c.b16 %v6090, %v6090
        %v6139 = vpack.c.b16 %v6091, %v6091
        %v6140 = vpack.c.b16 %v6092, %v6092
        %v6141 = vpack.c.b16 %v6093, %v6093
        %v6142 = vpack.c.b16 %v6094, %v6094
        %v6143 = vpack.c.b16 %v6095, %v6095
        %v6144 = vpack.c.b16 %v6096, %v6096
        %v6145 = vpack.c.b16 %v6097, %v6097
        %v6146 = vpack.c.b16 %v6098, %v6098
        %v6147 = vpack.c.b16 %v6099, %v6099
        %v6148 = vpack.c.b16 %v6100, %v6100
        %v6149 = vpack.c.b16 %v6101, %v6101
        %v6150 = vpack.c.b16 %v6102, %v6102
        %v6151 = vpack.c.b16 %v6103, %v6103
        %v6152 = vpack.c.b16 %v6104, %v6104
        %v6153 = vpack.c.b16 %v6105, %v6105
        %v6154 = vpack.c.b16 %v6106, %v6106
        %v6155 = vpack.c.b16 %v6107, %v6107
        %v6156 = vpack.c.b16 %v6108, %v6108
        %v6157 = vpack.c.b16 %v6109, %v6109
        %v6158 = vpack.c.b16 %v6110, %v6110
        %v6159 = vpack.c.b16 %v6111, %v6111
        %v6160 = vpack.c.b16 %v6112, %v6112
        %v6161 = vpack.c.b16 %v6113, %v6113
        %v6162 = vpack.c.b16 %v6114, %v6114
        %v6163 = vpack.c.b16 %v6115, %v6115
        %v6164 = vpack.c.b16 %v6116, %v6116
        %v6165 = vpack.c.b16 %v6117, %v6117
        %v6166 = vpack.c.b16 %v6118, %v6118
        %v6167 = vpack.c.b16 %v6119, %v6119
        %v6168 = vpack.c.b16 %v6120, %v6120
        %v6169 = vpack.c.b16 %v6121, %v6121
        %v6170 = vpack.c.b16 %v6122, %v6122
        %v6171 = vpack.c.b16 %v6123, %v6123
        %v6172 = vpack.c.b16 %v6124, %v6124
        %v6173 = vpack.c.b16 %v6125, %v6125
        %v6174 = vpack.c.b16 %v6126, %v6126
        %v6175 = vpack.c.b16 %v6127, %v6127
        %v6176 = vpack.c.b16 %v6128, %v6128
        %vm6177 = vsmask.f32 4368
        %vm6178 = vmor %vm5969, %vm6177
        %v6180 = vshrl.u32 %v6129, 16
        %v6182 = vrot.slane %v6180, 7
        %v6183 = vshll.u32 %v6129, 16
        %v6185 = vor.u32 %v6182, %v6183
        %v6186 = vrot.slane %v6182, 4
        %v6188 = vshrl.u32 %v6130, 16
        %v6190 = vrot.slane %v6188, 7
        %v6191 = vshll.u32 %v6130, 16
        %v6193 = vor.u32 %v6190, %v6191
        %v6194 = vsel %vm6178, %v6186, %v6193
        %v6195 = vrot.slane %v6190, 4
        %v6197 = vshrl.u32 %v6131, 16
        %v6199 = vrot.slane %v6197, 7
        %v6200 = vshll.u32 %v6131, 16
        %v6202 = vor.u32 %v6199, %v6200
        %v6203 = vsel %vm6178, %v6195, %v6202
        %v6204 = vrot.slane %v6199, 4
        %v6206 = vshrl.u32 %v6132, 16
        %v6208 = vrot.slane %v6206, 7
        %v6209 = vshll.u32 %v6132, 16
        %v6211 = vor.u32 %v6208, %v6209
        %v6212 = vsel %vm6178, %v6204, %v6211
        %v6213 = vrot.slane %v6208, 4
        %v6215 = vshrl.u32 %v6133, 16
        %v6217 = vrot.slane %v6215, 7
        %v6218 = vshll.u32 %v6133, 16
        %v6220 = vor.u32 %v6217, %v6218
        %v6221 = vsel %vm6178, %v6213, %v6220
        %v6222 = vrot.slane %v6217, 4
        %v6224 = vshrl.u32 %v6134, 16
        %v6226 = vrot.slane %v6224, 7
        %v6227 = vshll.u32 %v6134, 16
        %v6229 = vor.u32 %v6226, %v6227
        %v6230 = vsel %vm6178, %v6222, %v6229
        %v6231 = vrot.slane %v6226, 4
        %v6233 = vshrl.u32 %v6135, 16
        %v6235 = vrot.slane %v6233, 7
        %v6236 = vshll.u32 %v6135, 16
        %v6238 = vor.u32 %v6235, %v6236
        %v6239 = vsel %vm6178, %v6231, %v6238
        %v6240 = vrot.slane %v6235, 4
        %v6242 = vshrl.u32 %v6136, 16
        %v6244 = vrot.slane %v6242, 7
        %v6245 = vshll.u32 %v6136, 16
        %v6247 = vor.u32 %v6244, %v6245
        %v6248 = vsel %vm6178, %v6240, %v6247
        %v6249 = vrot.slane %v6244, 4
        %v6251 = vshrl.u32 %v6137, 16
        %v6253 = vrot.slane %v6251, 7
        %v6254 = vshll.u32 %v6137, 16
        %v6256 = vor.u32 %v6253, %v6254
        %v6257 = vsel %vm6178, %v6249, %v6256
        %v6258 = vrot.slane %v6253, 4
        %v6260 = vshrl.u32 %v6138, 16
        %v6262 = vrot.slane %v6260, 7
        %v6263 = vshll.u32 %v6138, 16
        %v6265 = vor.u32 %v6262, %v6263
        %v6266 = vsel %vm6178, %v6258, %v6265
        %v6267 = vrot.slane %v6262, 4
        %v6269 = vshrl.u32 %v6139, 16
        %v6271 = vrot.slane %v6269, 7
        %v6272 = vshll.u32 %v6139, 16
        %v6274 = vor.u32 %v6271, %v6272
        %v6275 = vsel %vm6178, %v6267, %v6274
        %v6276 = vrot.slane %v6271, 4
        %v6278 = vshrl.u32 %v6140, 16
        %v6280 = vrot.slane %v6278, 7
        %v6281 = vshll.u32 %v6140, 16
        %v6283 = vor.u32 %v6280, %v6281
        %v6284 = vsel %vm6178, %v6276, %v6283
        %v6285 = vrot.slane %v6280, 4
        %v6287 = vshrl.u32 %v6141, 16
        %v6289 = vrot.slane %v6287, 7
        %v6290 = vshll.u32 %v6141, 16
        %v6292 = vor.u32 %v6289, %v6290
        %v6293 = vsel %vm6178, %v6285, %v6292
        %v6294 = vrot.slane %v6289, 4
        %v6296 = vshrl.u32 %v6142, 16
        %v6298 = vrot.slane %v6296, 7
        %v6299 = vshll.u32 %v6142, 16
        %v6301 = vor.u32 %v6298, %v6299
        %v6302 = vsel %vm6178, %v6294, %v6301
        %v6303 = vrot.slane %v6298, 4
        %v6305 = vshrl.u32 %v6143, 16
        %v6307 = vrot.slane %v6305, 7
        %v6308 = vshll.u32 %v6143, 16
        %v6310 = vor.u32 %v6307, %v6308
        %v6311 = vsel %vm6178, %v6303, %v6310
        %v6312 = vrot.slane %v6307, 4
        %v6314 = vshrl.u32 %v6144, 16
        %v6316 = vrot.slane %v6314, 7
        %v6317 = vshll.u32 %v6144, 16
        %v6319 = vor.u32 %v6316, %v6317
        %v6320 = vsel %vm6178, %v6312, %v6319
        %v6321 = vrot.slane %v6316, 4
        %v6323 = vshrl.u32 %v6145, 16
        %v6325 = vrot.slane %v6323, 7
        %v6326 = vshll.u32 %v6145, 16
        %v6328 = vor.u32 %v6325, %v6326
        %v6329 = vsel %vm6178, %v6321, %v6328
        %v6330 = vrot.slane %v6325, 4
        %v6332 = vshrl.u32 %v6146, 16
        %v6334 = vrot.slane %v6332, 7
        %v6335 = vshll.u32 %v6146, 16
        %v6337 = vor.u32 %v6334, %v6335
        %v6338 = vsel %vm6178, %v6330, %v6337
        %v6339 = vrot.slane %v6334, 4
        %v6341 = vshrl.u32 %v6147, 16
        %v6343 = vrot.slane %v6341, 7
        %v6344 = vshll.u32 %v6147, 16
        %v6346 = vor.u32 %v6343, %v6344
        %v6347 = vsel %vm6178, %v6339, %v6346
        %v6348 = vrot.slane %v6343, 4
        %v6350 = vshrl.u32 %v6148, 16
        %v6352 = vrot.slane %v6350, 7
        %v6353 = vshll.u32 %v6148, 16
        %v6355 = vor.u32 %v6352, %v6353
        %v6356 = vsel %vm6178, %v6348, %v6355
        %v6357 = vrot.slane %v6352, 4
        %v6359 = vshrl.u32 %v6149, 16
        %v6361 = vrot.slane %v6359, 7
        %v6362 = vshll.u32 %v6149, 16
        %v6364 = vor.u32 %v6361, %v6362
        %v6365 = vsel %vm6178, %v6357, %v6364
        %v6366 = vrot.slane %v6361, 4
        %v6368 = vshrl.u32 %v6150, 16
        %v6370 = vrot.slane %v6368, 7
        %v6371 = vshll.u32 %v6150, 16
        %v6373 = vor.u32 %v6370, %v6371
        %v6374 = vsel %vm6178, %v6366, %v6373
        %v6375 = vrot.slane %v6370, 4
        %v6377 = vshrl.u32 %v6151, 16
        %v6379 = vrot.slane %v6377, 7
        %v6380 = vshll.u32 %v6151, 16
        %v6382 = vor.u32 %v6379, %v6380
        %v6383 = vsel %vm6178, %v6375, %v6382
        %v6384 = vrot.slane %v6379, 4
        %v6386 = vshrl.u32 %v6152, 16
        %v6388 = vrot.slane %v6386, 7
        %v6389 = vshll.u32 %v6152, 16
        %v6391 = vor.u32 %v6388, %v6389
        %v6392 = vsel %vm6178, %v6384, %v6391
        %v6393 = vrot.slane %v6388, 4
        %v6395 = vshrl.u32 %v6153, 16
        %v6397 = vrot.slane %v6395, 7
        %v6398 = vshll.u32 %v6153, 16
        %v6400 = vor.u32 %v6397, %v6398
        %v6401 = vsel %vm6178, %v6393, %v6400
        %v6402 = vrot.slane %v6397, 4
        %v6404 = vshrl.u32 %v6154, 16
        %v6406 = vrot.slane %v6404, 7
        %v6407 = vshll.u32 %v6154, 16
        %v6409 = vor.u32 %v6406, %v6407
        %v6410 = vsel %vm6178, %v6402, %v6409
        %v6411 = vrot.slane %v6406, 4
        %v6413 = vshrl.u32 %v6155, 16
        %v6415 = vrot.slane %v6413, 7
        %v6416 = vshll.u32 %v6155, 16
        %v6418 = vor.u32 %v6415, %v6416
        %v6419 = vsel %vm6178, %v6411, %v6418
        %v6420 = vrot.slane %v6415, 4
        %v6422 = vshrl.u32 %v6156, 16
        %v6424 = vrot.slane %v6422, 7
        %v6425 = vshll.u32 %v6156, 16
        %v6427 = vor.u32 %v6424, %v6425
        %v6428 = vsel %vm6178, %v6420, %v6427
        %v6429 = vrot.slane %v6424, 4
        %v6431 = vshrl.u32 %v6157, 16
        %v6433 = vrot.slane %v6431, 7
        %v6434 = vshll.u32 %v6157, 16
        %v6436 = vor.u32 %v6433, %v6434
        %v6437 = vsel %vm6178, %v6429, %v6436
        %v6438 = vrot.slane %v6433, 4
        %v6440 = vshrl.u32 %v6158, 16
        %v6442 = vrot.slane %v6440, 7
        %v6443 = vshll.u32 %v6158, 16
        %v6445 = vor.u32 %v6442, %v6443
        %v6446 = vsel %vm6178, %v6438, %v6445
        %v6447 = vrot.slane %v6442, 4
        %v6449 = vshrl.u32 %v6159, 16
        %v6451 = vrot.slane %v6449, 7
        %v6452 = vshll.u32 %v6159, 16
        %v6454 = vor.u32 %v6451, %v6452
        %v6455 = vsel %vm6178, %v6447, %v6454
        %v6456 = vrot.slane %v6451, 4
        %v6458 = vshrl.u32 %v6160, 16
        %v6460 = vrot.slane %v6458, 7
        %v6461 = vshll.u32 %v6160, 16
        %v6463 = vor.u32 %v6460, %v6461
        %v6464 = vsel %vm6178, %v6456, %v6463
        %v6465 = vrot.slane %v6460, 4
        %v6467 = vshrl.u32 %v6161, 16
        %v6469 = vrot.slane %v6467, 7
        %v6470 = vshll.u32 %v6161, 16
        %v6472 = vor.u32 %v6469, %v6470
        %v6473 = vsel %vm6178, %v6465, %v6472
        %v6474 = vrot.slane %v6469, 4
        %v6476 = vshrl.u32 %v6162, 16
        %v6478 = vrot.slane %v6476, 7
        %v6479 = vshll.u32 %v6162, 16
        %v6481 = vor.u32 %v6478, %v6479
        %v6482 = vsel %vm6178, %v6474, %v6481
        %v6483 = vrot.slane %v6478, 4
        %v6485 = vshrl.u32 %v6163, 16
        %v6487 = vrot.slane %v6485, 7
        %v6488 = vshll.u32 %v6163, 16
        %v6490 = vor.u32 %v6487, %v6488
        %v6491 = vsel %vm6178, %v6483, %v6490
        %v6492 = vrot.slane %v6487, 4
        %v6494 = vshrl.u32 %v6164, 16
        %v6496 = vrot.slane %v6494, 7
        %v6497 = vshll.u32 %v6164, 16
        %v6499 = vor.u32 %v6496, %v6497
        %v6500 = vsel %vm6178, %v6492, %v6499
        %v6501 = vrot.slane %v6496, 4
        %v6503 = vshrl.u32 %v6165, 16
        %v6505 = vrot.slane %v6503, 7
        %v6506 = vshll.u32 %v6165, 16
        %v6508 = vor.u32 %v6505, %v6506
        %v6509 = vsel %vm6178, %v6501, %v6508
        %v6510 = vrot.slane %v6505, 4
        %v6512 = vshrl.u32 %v6166, 16
        %v6514 = vrot.slane %v6512, 7
        %v6515 = vshll.u32 %v6166, 16
        %v6517 = vor.u32 %v6514, %v6515
        %v6518 = vsel %vm6178, %v6510, %v6517
        %v6519 = vrot.slane %v6514, 4
        %v6521 = vshrl.u32 %v6167, 16
        %v6523 = vrot.slane %v6521, 7
        %v6524 = vshll.u32 %v6167, 16
        %v6526 = vor.u32 %v6523, %v6524
        %v6527 = vsel %vm6178, %v6519, %v6526
        %v6528 = vrot.slane %v6523, 4
        %v6530 = vshrl.u32 %v6168, 16
        %v6532 = vrot.slane %v6530, 7
        %v6533 = vshll.u32 %v6168, 16
        %v6535 = vor.u32 %v6532, %v6533
        %v6536 = vsel %vm6178, %v6528, %v6535
        %v6537 = vrot.slane %v6532, 4
        %v6539 = vshrl.u32 %v6169, 16
        %v6541 = vrot.slane %v6539, 7
        %v6542 = vshll.u32 %v6169, 16
        %v6544 = vor.u32 %v6541, %v6542
        %v6545 = vsel %vm6178, %v6537, %v6544
        %v6546 = vrot.slane %v6541, 4
        %v6548 = vshrl.u32 %v6170, 16
        %v6550 = vrot.slane %v6548, 7
        %v6551 = vshll.u32 %v6170, 16
        %v6553 = vor.u32 %v6550, %v6551
        %v6554 = vsel %vm6178, %v6546, %v6553
        %v6555 = vrot.slane %v6550, 4
        %v6557 = vshrl.u32 %v6171, 16
        %v6559 = vrot.slane %v6557, 7
        %v6560 = vshll.u32 %v6171, 16
        %v6562 = vor.u32 %v6559, %v6560
        %v6563 = vsel %vm6178, %v6555, %v6562
        %v6564 = vrot.slane %v6559, 4
        %v6566 = vshrl.u32 %v6172, 16
        %v6568 = vrot.slane %v6566, 7
        %v6569 = vshll.u32 %v6172, 16
        %v6571 = vor.u32 %v6568, %v6569
        %v6572 = vsel %vm6178, %v6564, %v6571
        %v6573 = vrot.slane %v6568, 4
        %v6575 = vshrl.u32 %v6173, 16
        %v6577 = vrot.slane %v6575, 7
        %v6578 = vshll.u32 %v6173, 16
        %v6580 = vor.u32 %v6577, %v6578
        %v6581 = vsel %vm6178, %v6573, %v6580
        %v6582 = vrot.slane %v6577, 4
        %v6584 = vshrl.u32 %v6174, 16
        %v6586 = vrot.slane %v6584, 7
        %v6587 = vshll.u32 %v6174, 16
        %v6589 = vor.u32 %v6586, %v6587
        %v6590 = vsel %vm6178, %v6582, %v6589
        %v6591 = vrot.slane %v6586, 4
        %v6593 = vshrl.u32 %v6175, 16
        %v6595 = vrot.slane %v6593, 7
        %v6596 = vshll.u32 %v6175, 16
        %v6598 = vor.u32 %v6595, %v6596
        %v6599 = vsel %vm6178, %v6591, %v6598
        %v6600 = vrot.slane %v6595, 4
        %v6602 = vshrl.u32 %v6176, 16
        %v6604 = vrot.slane %v6602, 7
        %v6605 = vshll.u32 %v6176, 16
        %v6607 = vor.u32 %v6604, %v6605
        %v6608 = vsel %vm6178, %v6600, %v6607
        %v6609 = vrot.slane %v6604, 4
        %v6659 = vld [vmem:[#allocation2 + $0xc] sm:$0xf]
        %v6660 = vsel %vm5976, %v6185, %v6659
        %6661 = vst [vmem:[#allocation2 + $0xc] sm:$0xf] %v6660
        %6662 = vst [vmem:[#allocation2 + $0x10] sm:$0xf] %v6194
        %6663 = vst [vmem:[#allocation2 + $0x14] sm:$0xf] %v6203
        %6664 = vst [vmem:[#allocation2 + $0x18] sm:$0xf] %v6212
        %6665 = vst [vmem:[#allocation2 + $0x1c] sm:$0xf] %v6221
        %6666 = vst [vmem:[#allocation2 + $0x20] sm:$0xf] %v6230
        %6667 = vst [vmem:[#allocation2 + $0x24] sm:$0xf] %v6239
        %6668 = vst [vmem:[#allocation2 + $0x28] sm:$0xf] %v6248
        %6669 = vst [vmem:[#allocation2 + $0x2c] sm:$0xf] %v6257
        %6670 = vst [vmem:[#allocation2 + $0x30] sm:$0xf] %v6266
        %6671 = vst [vmem:[#allocation2 + $0x34] sm:$0xf] %v6275
        %6672 = vst [vmem:[#allocation2 + $0x38] sm:$0xf] %v6284
        %6673 = vst [vmem:[#allocation2 + $0x3c] sm:$0xf] %v6293
        %6674 = vst [vmem:[#allocation2 + $0x40] sm:$0xf] %v6302
        %6675 = vst [vmem:[#allocation2 + $0x44] sm:$0xf] %v6311
        %6676 = vst [vmem:[#allocation2 + $0x48] sm:$0xf] %v6320
        %6677 = vst [vmem:[#allocation2 + $0x4c] sm:$0xf] %v6329
        %6678 = vst [vmem:[#allocation2 + $0x50] sm:$0xf] %v6338
        %6679 = vst [vmem:[#allocation2 + $0x54] sm:$0xf] %v6347
        %6680 = vst [vmem:[#allocation2 + $0x58] sm:$0xf] %v6356
        %6681 = vst [vmem:[#allocation2 + $0x5c] sm:$0xf] %v6365
        %6682 = vst [vmem:[#allocation2 + $0x60] sm:$0xf] %v6374
        %6683 = vst [vmem:[#allocation2 + $0x64] sm:$0xf] %v6383
        %6684 = vst [vmem:[#allocation2 + $0x68] sm:$0xf] %v6392
        %6685 = vst [vmem:[#allocation2 + $0x6c] sm:$0xf] %v6401
        %6686 = vst [vmem:[#allocation2 + $0x70] sm:$0xf] %v6410
        %6687 = vst [vmem:[#allocation2 + $0x74] sm:$0xf] %v6419
        %6688 = vst [vmem:[#allocation2 + $0x78] sm:$0xf] %v6428
        %6689 = vst [vmem:[#allocation2 + $0x7c] sm:$0xf] %v6437
        %6690 = vst [vmem:[#allocation2 + $0x80] sm:$0xf] %v6446
        %6691 = vst [vmem:[#allocation2 + $0x84] sm:$0xf] %v6455
        %6692 = vst [vmem:[#allocation2 + $0x88] sm:$0xf] %v6464
        %6693 = vst [vmem:[#allocation2 + $0x8c] sm:$0xf] %v6473
        %6694 = vst [vmem:[#allocation2 + $0x90] sm:$0xf] %v6482
        %6695 = vst [vmem:[#allocation2 + $0x94] sm:$0xf] %v6491
        %6696 = vst [vmem:[#allocation2 + $0x98] sm:$0xf] %v6500
        %6697 = vst [vmem:[#allocation2 + $0x9c] sm:$0xf] %v6509
        %6698 = vst [vmem:[#allocation2 + $0xa0] sm:$0xf] %v6518
        %6699 = vst [vmem:[#allocation2 + $0xa4] sm:$0xf] %v6527
        %6700 = vst [vmem:[#allocation2 + $0xa8] sm:$0xf] %v6536
        %6701 = vst [vmem:[#allocation2 + $0xac] sm:$0xf] %v6545
        %6702 = vst [vmem:[#allocation2 + $0xb0] sm:$0xf] %v6554
        %6703 = vst [vmem:[#allocation2 + $0xb4] sm:$0xf] %v6563
        %6704 = vst [vmem:[#allocation2 + $0xb8] sm:$0xf] %v6572
        %6705 = vst [vmem:[#allocation2 + $0xbc] sm:$0xf] %v6581
        %6706 = vst [vmem:[#allocation2 + $0xc0] sm:$0xf] %v6590
        %6707 = vst [vmem:[#allocation2 + $0xc4] sm:$0xf] %v6599
        %6708 = vst [vmem:[#allocation2 + $0xc8] sm:$0xf] %v6608
        %v6709 = vld [vmem:[#allocation2 + $0xcc] sm:$0x1]
        %v6710 = vsel %vm5970, %v6609, %v6709
        %6711 = vst [vmem:[#allocation2 + $0xcc] sm:$0x1] %v6710
        %v6712 = vld [vmem:[#allocation2] sm:$0xf]
        %v6713 = vld [vmem:[#allocation2 + $0x4] sm:$0xf]
        %v6714 = vld [vmem:[#allocation2 + $0x8] sm:$0xf]
        %v6715 = vld [vmem:[#allocation2 + $0xc] sm:$0xf]
        %v6716 = vld [vmem:[#allocation2 + $0x10] sm:$0xf]
        %v6717 = vld [vmem:[#allocation2 + $0x14] sm:$0xf]
        %v6718 = vld [vmem:[#allocation2 + $0x18] sm:$0xf]
        %v6719 = vld [vmem:[#allocation2 + $0x1c] sm:$0xf]
        %v6720 = vld [vmem:[#allocation2 + $0x20] sm:$0xf]
        %v6721 = vld [vmem:[#allocation2 + $0x24] sm:$0xf]
        %v6722 = vld [vmem:[#allocation2 + $0x28] sm:$0xf]
        %v6723 = vld [vmem:[#allocation2 + $0x2c] sm:$0xf]
        %v6724 = vld [vmem:[#allocation2 + $0x30] sm:$0xf]
        %v6725 = vld [vmem:[#allocation2 + $0x34] sm:$0xf]
        %v6726 = vld [vmem:[#allocation2 + $0x38] sm:$0xf]
        %v6727 = vld [vmem:[#allocation2 + $0x3c] sm:$0xf]
        %v6728 = vld [vmem:[#allocation2 + $0x40] sm:$0xf]
        %v6729 = vld [vmem:[#allocation2 + $0x44] sm:$0xf]
        %v6730 = vld [vmem:[#allocation2 + $0x48] sm:$0xf]
        %v6731 = vld [vmem:[#allocation2 + $0x4c] sm:$0xf]
        %v6732 = vld [vmem:[#allocation2 + $0x50] sm:$0xf]
        %v6733 = vld [vmem:[#allocation2 + $0x54] sm:$0xf]
        %v6734 = vld [vmem:[#allocation2 + $0x58] sm:$0xf]
        %v6735 = vld [vmem:[#allocation2 + $0x5c] sm:$0xf]
        %v6736 = vld [vmem:[#allocation2 + $0x60] sm:$0xf]
        %v6737 = vld [vmem:[#allocation2 + $0x64] sm:$0xf]
        %v6738 = vld [vmem:[#allocation2 + $0x68] sm:$0xf]
        %v6739 = vld [vmem:[#allocation2 + $0x6c] sm:$0xf]
        %v6740 = vld [vmem:[#allocation2 + $0x70] sm:$0xf]
        %v6741 = vld [vmem:[#allocation2 + $0x74] sm:$0xf]
        %v6742 = vld [vmem:[#allocation2 + $0x78] sm:$0xf]
        %v6743 = vld [vmem:[#allocation2 + $0x7c] sm:$0xf]
        %v6744 = vld [vmem:[#allocation2 + $0x80] sm:$0xf]
        %v6745 = vld [vmem:[#allocation2 + $0x84] sm:$0xf]
        %v6746 = vld [vmem:[#allocation2 + $0x88] sm:$0xf]
        %v6747 = vld [vmem:[#allocation2 + $0x8c] sm:$0xf]
        %v6748 = vld [vmem:[#allocation2 + $0x90] sm:$0xf]
        %v6749 = vld [vmem:[#allocation2 + $0x94] sm:$0xf]
        %v6750 = vld [vmem:[#allocation2 + $0x98] sm:$0xf]
        %v6751 = vld [vmem:[#allocation2 + $0x9c] sm:$0xf]
        %v6752 = vld [vmem:[#allocation2 + $0xa0] sm:$0xf]
        %v6753 = vld [vmem:[#allocation2 + $0xa4] sm:$0xf]
        %v6754 = vld [vmem:[#allocation2 + $0xa8] sm:$0xf]
        %v6755 = vld [vmem:[#allocation2 + $0xac] sm:$0xf]
        %v6756 = vld [vmem:[#allocation2 + $0xb0] sm:$0xf]
        %v6757 = vld [vmem:[#allocation2 + $0xb4] sm:$0xf]
        %v6758 = vld [vmem:[#allocation2 + $0xb8] sm:$0xf]
        %v6759 = vld [vmem:[#allocation2 + $0xbc] sm:$0xf]
        %v6760 = vld [vmem:[#allocation8] sm:$0xf]
        %v6761 = vld [vmem:[#allocation8 + $0x4] sm:$0xf]
        %v6762 = vld [vmem:[#allocation8 + $0x8] sm:$0xf]
        %v6763 = vld [vmem:[#allocation8 + $0xc] sm:$0xf]
        %v6764 = vld [vmem:[#allocation8 + $0x10] sm:$0xf]
        %v6765 = vld [vmem:[#allocation8 + $0x14] sm:$0xf]
        %v6766 = vld [vmem:[#allocation8 + $0x18] sm:$0xf]
        %v6767 = vld [vmem:[#allocation8 + $0x1c] sm:$0xf]
        %v6768 = vld [vmem:[#allocation8 + $0x20] sm:$0xf]
        %v6769 = vld [vmem:[#allocation8 + $0x24] sm:$0xf]
        %v6770 = vld [vmem:[#allocation8 + $0x28] sm:$0xf]
        %v6771 = vld [vmem:[#allocation8 + $0x2c] sm:$0xf]
        %v6772 = vld [vmem:[#allocation8 + $0x30] sm:$0xf]
        %v6773 = vld [vmem:[#allocation8 + $0x34] sm:$0xf]
        %v6774 = vld [vmem:[#allocation8 + $0x38] sm:$0xf]
        %v6775 = vld [vmem:[#allocation8 + $0x3c] sm:$0xf]
        %v6776 = vld [vmem:[#allocation2 + $0xc0] sm:$0x1]
        %s6777 = scalar_lea.vmem [#allocation8], 64
        %v6778 = vld [vmem:[%s6777] sm:$0xf]
        %v6779 = vld [vmem:[%s6777 + $0x4] sm:$0xf]
        %v6780 = vld [vmem:[%s6777 + $0x8] sm:$0xf]
        %v6781 = vld [vmem:[%s6777 + $0xc] sm:$0xf]
        %v6782 = vld [vmem:[%s6777 + $0x10] sm:$0xf]
        %v6783 = vld [vmem:[%s6777 + $0x14] sm:$0xf]
        %v6784 = vld [vmem:[%s6777 + $0x18] sm:$0xf]
        %v6785 = vld [vmem:[%s6777 + $0x1c] sm:$0xf]
        %v6786 = vld [vmem:[%s6777 + $0x20] sm:$0xf]
        %v6787 = vld [vmem:[%s6777 + $0x24] sm:$0xf]
        %v6788 = vld [vmem:[%s6777 + $0x28] sm:$0xf]
        %v6789 = vld [vmem:[%s6777 + $0x2c] sm:$0xf]
        %v6790 = vld [vmem:[%s6777 + $0x30] sm:$0xf]
        %v6791 = vld [vmem:[%s6777 + $0x34] sm:$0xf]
        %v6792 = vld [vmem:[%s6777 + $0x38] sm:$0xf]
        %v6793 = vld [vmem:[%s6777 + $0x3c] sm:$0xf]
        %v6843 = vunpack.c.l.b16 %v6712
        %v6844 = vunpack.c.l.b16 %v6713
        %v6845 = vunpack.c.l.b16 %v6714
        %v6846 = vunpack.c.l.b16 %v6715
        %v6847 = vunpack.c.l.b16 %v6716
        %v6848 = vunpack.c.l.b16 %v6717
        %v6849 = vunpack.c.l.b16 %v6718
        %v6850 = vunpack.c.l.b16 %v6719
        %v6851 = vunpack.c.l.b16 %v6720
        %v6852 = vunpack.c.l.b16 %v6721
        %v6853 = vunpack.c.l.b16 %v6722
        %v6854 = vunpack.c.l.b16 %v6723
        %v6855 = vunpack.c.l.b16 %v6724
        %v6856 = vunpack.c.l.b16 %v6725
        %v6857 = vunpack.c.l.b16 %v6726
        %v6858 = vunpack.c.l.b16 %v6727
        %v6859 = vunpack.c.l.b16 %v6728
        %v6860 = vunpack.c.l.b16 %v6729
        %v6861 = vunpack.c.l.b16 %v6730
        %v6862 = vunpack.c.l.b16 %v6731
        %v6863 = vunpack.c.l.b16 %v6732
        %v6864 = vunpack.c.l.b16 %v6733
        %v6865 = vunpack.c.l.b16 %v6734
        %v6866 = vunpack.c.l.b16 %v6735
        %v6867 = vunpack.c.l.b16 %v6736
        %v6868 = vunpack.c.l.b16 %v6737
        %v6869 = vunpack.c.l.b16 %v6738
        %v6870 = vunpack.c.l.b16 %v6739
        %v6871 = vunpack.c.l.b16 %v6740
        %v6872 = vunpack.c.l.b16 %v6741
        %v6873 = vunpack.c.l.b16 %v6742
        %v6874 = vunpack.c.l.b16 %v6743
        %v6875 = vunpack.c.l.b16 %v6744
        %v6876 = vunpack.c.l.b16 %v6745
        %v6877 = vunpack.c.l.b16 %v6746
        %v6878 = vunpack.c.l.b16 %v6747
        %v6879 = vunpack.c.l.b16 %v6748
        %v6880 = vunpack.c.l.b16 %v6749
        %v6881 = vunpack.c.l.b16 %v6750
        %v6882 = vunpack.c.l.b16 %v6751
        %v6883 = vunpack.c.l.b16 %v6752
        %v6884 = vunpack.c.l.b16 %v6753
        %v6885 = vunpack.c.l.b16 %v6754
        %v6886 = vunpack.c.l.b16 %v6755
        %v6887 = vunpack.c.l.b16 %v6756
        %v6888 = vunpack.c.l.b16 %v6757
        %v6889 = vunpack.c.l.b16 %v6758
        %v6890 = vunpack.c.l.b16 %v6759
        %v6891 = vunpack.c.l.b16 %v6776
        %v6892 = vpack.c.b16 %v6844, %v6843
        %v6893 = vpack.c.b16 %v6846, %v6845
        %v6894 = vpack.c.b16 %v6848, %v6847
        %v6895 = vpack.c.b16 %v6850, %v6849
        %v6896 = vpack.c.b16 %v6852, %v6851
        %v6897 = vpack.c.b16 %v6854, %v6853
        %v6898 = vpack.c.b16 %v6856, %v6855
        %v6899 = vpack.c.b16 %v6858, %v6857
        %v6900 = vpack.c.b16 %v6860, %v6859
        %v6901 = vpack.c.b16 %v6862, %v6861
        %v6902 = vpack.c.b16 %v6864, %v6863
        %v6903 = vpack.c.b16 %v6866, %v6865
        %v6904 = vpack.c.b16 %v6868, %v6867
        %v6905 = vpack.c.b16 %v6870, %v6869
        %v6906 = vpack.c.b16 %v6872, %v6871
        %v6907 = vpack.c.b16 %v6874, %v6873
        %v6908 = vpack.c.b16 %v6876, %v6875
        %v6909 = vpack.c.b16 %v6878, %v6877
        %v6910 = vpack.c.b16 %v6880, %v6879
        %v6911 = vpack.c.b16 %v6882, %v6881
        %v6912 = vpack.c.b16 %v6884, %v6883
        %v6913 = vpack.c.b16 %v6886, %v6885
        %v6914 = vpack.c.b16 %v6888, %v6887
        %v6915 = vpack.c.b16 %v6890, %v6889
        %v6916 = vpack.c.b16 %v6891, %v6891
        %v6918 = vshrl.u32 %v6892, 16
        %v6920 = vshll.u32 %v6892, 16
        %v6922 = vrot.slane %v6920, 1
        %v6923 = vor.u32 %v6918, %v6922
        %v6925 = vshll.u32 %v6893, 16
        %v6927 = vrot.slane %v6925, 1
        %v6928 = vsel %vm661, %v6923, %v6927
        %v6929 = vshrl.u32 %v6893, 16
        %v6931 = vor.u32 %v6929, %v6927
        %v6933 = vshll.u32 %v6894, 16
        %v6935 = vrot.slane %v6933, 1
        %v6936 = vsel %vm661, %v6931, %v6935
        %v6937 = vshrl.u32 %v6894, 16
        %v6939 = vor.u32 %v6937, %v6935
        %v6941 = vshll.u32 %v6895, 16
        %v6943 = vrot.slane %v6941, 1
        %v6944 = vsel %vm661, %v6939, %v6943
        %v6945 = vshrl.u32 %v6895, 16
        %v6947 = vor.u32 %v6945, %v6943
        %v6949 = vshll.u32 %v6896, 16
        %v6951 = vrot.slane %v6949, 1
        %v6952 = vsel %vm661, %v6947, %v6951
        %v6953 = vshrl.u32 %v6896, 16
        %v6955 = vor.u32 %v6953, %v6951
        %v6957 = vshll.u32 %v6897, 16
        %v6959 = vrot.slane %v6957, 1
        %v6960 = vsel %vm661, %v6955, %v6959
        %v6961 = vshrl.u32 %v6897, 16
        %v6963 = vor.u32 %v6961, %v6959
        %v6965 = vshll.u32 %v6898, 16
        %v6967 = vrot.slane %v6965, 1
        %v6968 = vsel %vm661, %v6963, %v6967
        %v6969 = vshrl.u32 %v6898, 16
        %v6971 = vor.u32 %v6969, %v6967
        %v6973 = vshll.u32 %v6899, 16
        %v6975 = vrot.slane %v6973, 1
        %v6976 = vsel %vm661, %v6971, %v6975
        %v6977 = vshrl.u32 %v6899, 16
        %v6979 = vor.u32 %v6977, %v6975
        %v6981 = vshll.u32 %v6900, 16
        %v6983 = vrot.slane %v6981, 1
        %v6984 = vsel %vm661, %v6979, %v6983
        %v6985 = vshrl.u32 %v6900, 16
        %v6987 = vor.u32 %v6985, %v6983
        %v6989 = vshll.u32 %v6901, 16
        %v6991 = vrot.slane %v6989, 1
        %v6992 = vsel %vm661, %v6987, %v6991
        %v6993 = vshrl.u32 %v6901, 16
        %v6995 = vor.u32 %v6993, %v6991
        %v6997 = vshll.u32 %v6902, 16
        %v6999 = vrot.slane %v6997, 1
        %v7000 = vsel %vm661, %v6995, %v6999
        %v7001 = vshrl.u32 %v6902, 16
        %v7003 = vor.u32 %v7001, %v6999
        %v7005 = vshll.u32 %v6903, 16
        %v7007 = vrot.slane %v7005, 1
        %v7008 = vsel %vm661, %v7003, %v7007
        %v7009 = vshrl.u32 %v6903, 16
        %v7011 = vor.u32 %v7009, %v7007
        %v7013 = vshll.u32 %v6904, 16
        %v7015 = vrot.slane %v7013, 1
        %v7016 = vsel %vm661, %v7011, %v7015
        %v7017 = vshrl.u32 %v6904, 16
        %v7019 = vor.u32 %v7017, %v7015
        %v7021 = vshll.u32 %v6905, 16
        %v7023 = vrot.slane %v7021, 1
        %v7024 = vsel %vm661, %v7019, %v7023
        %v7025 = vshrl.u32 %v6905, 16
        %v7027 = vor.u32 %v7025, %v7023
        %v7029 = vshll.u32 %v6906, 16
        %v7031 = vrot.slane %v7029, 1
        %v7032 = vsel %vm661, %v7027, %v7031
        %v7033 = vshrl.u32 %v6906, 16
        %v7035 = vor.u32 %v7033, %v7031
        %v7037 = vshll.u32 %v6907, 16
        %v7039 = vrot.slane %v7037, 1
        %v7040 = vsel %vm661, %v7035, %v7039
        %v7041 = vshrl.u32 %v6907, 16
        %v7043 = vor.u32 %v7041, %v7039
        %v7045 = vshll.u32 %v6908, 16
        %v7047 = vrot.slane %v7045, 1
        %v7048 = vsel %vm661, %v7043, %v7047
        %v7049 = vshrl.u32 %v6908, 16
        %v7051 = vor.u32 %v7049, %v7047
        %v7053 = vshll.u32 %v6909, 16
        %v7055 = vrot.slane %v7053, 1
        %v7056 = vsel %vm661, %v7051, %v7055
        %v7057 = vshrl.u32 %v6909, 16
        %v7059 = vor.u32 %v7057, %v7055
        %v7061 = vshll.u32 %v6910, 16
        %v7063 = vrot.slane %v7061, 1
        %v7064 = vsel %vm661, %v7059, %v7063
        %v7065 = vshrl.u32 %v6910, 16
        %v7067 = vor.u32 %v7065, %v7063
        %v7069 = vshll.u32 %v6911, 16
        %v7071 = vrot.slane %v7069, 1
        %v7072 = vsel %vm661, %v7067, %v7071
        %v7073 = vshrl.u32 %v6911, 16
        %v7075 = vor.u32 %v7073, %v7071
        %v7077 = vshll.u32 %v6912, 16
        %v7079 = vrot.slane %v7077, 1
        %v7080 = vsel %vm661, %v7075, %v7079
        %v7081 = vshrl.u32 %v6912, 16
        %v7083 = vor.u32 %v7081, %v7079
        %v7085 = vshll.u32 %v6913, 16
        %v7087 = vrot.slane %v7085, 1
        %v7088 = vsel %vm661, %v7083, %v7087
        %v7089 = vshrl.u32 %v6913, 16
        %v7091 = vor.u32 %v7089, %v7087
        %v7093 = vshll.u32 %v6914, 16
        %v7095 = vrot.slane %v7093, 1
        %v7096 = vsel %vm661, %v7091, %v7095
        %v7097 = vshrl.u32 %v6914, 16
        %v7099 = vor.u32 %v7097, %v7095
        %v7101 = vshll.u32 %v6915, 16
        %v7103 = vrot.slane %v7101, 1
        %v7104 = vsel %vm661, %v7099, %v7103
        %v7105 = vshrl.u32 %v6915, 16
        %v7107 = vor.u32 %v7105, %v7103
        %v7109 = vshll.u32 %v6916, 16
        %v7111 = vrot.slane %v7109, 1
        %v7112 = vsel %vm661, %v7107, %v7111
        %v7153 = vunpack.c.l.b16 %v6778
        %v7154 = vunpack.c.l.b16 %v6779
        %v7155 = vunpack.c.l.b16 %v6780
        %v7156 = vunpack.c.l.b16 %v6781
        %v7157 = vunpack.c.l.b16 %v6782
        %v7158 = vunpack.c.l.b16 %v6783
        %v7159 = vunpack.c.l.b16 %v6784
        %v7160 = vunpack.c.l.b16 %v6785
        %v7161 = vunpack.c.l.b16 %v6786
        %v7162 = vunpack.c.l.b16 %v6787
        %v7163 = vunpack.c.l.b16 %v6788
        %v7164 = vunpack.c.l.b16 %v6789
        %v7165 = vunpack.c.l.b16 %v6790
        %v7166 = vunpack.c.l.b16 %v6791
        %v7167 = vunpack.c.l.b16 %v6792
        %v7168 = vunpack.c.l.b16 %v6793
        %v7169 = vpack.c.b16 %v7154, %v7153
        %v7170 = vpack.c.b16 %v7156, %v7155
        %v7171 = vpack.c.b16 %v7158, %v7157
        %v7172 = vpack.c.b16 %v7160, %v7159
        %v7173 = vpack.c.b16 %v7162, %v7161
        %v7174 = vpack.c.b16 %v7164, %v7163
        %v7175 = vpack.c.b16 %v7166, %v7165
        %v7176 = vpack.c.b16 %v7168, %v7167
        %7185 = vmatprep.subr.bf16.mxu0 0
        %7186 = vmatpush1.bf16.msra.mxu0 %v7176
        %7187 = vmatprep.subr.bf16.mxu0 0
        %7188 = vmatpush1.bf16.msra.mxu0 %v7175
        %7189 = vmatprep.subr.bf16.mxu0 0
        %7190 = vmatpush1.bf16.msra.mxu0 %v7174
        %7191 = vmatprep.subr.bf16.mxu0 0
        %7192 = vmatpush1.bf16.msra.mxu0 %v7173
        %7193 = vmatprep.subr.bf16.mxu0 0
        %7194 = vmatpush1.bf16.msra.mxu0 %v7172
        %7195 = vmatprep.subr.bf16.mxu0 0
        %7196 = vmatpush1.bf16.msra.mxu0 %v7171
        %7197 = vmatprep.subr.bf16.mxu0 0
        %7198 = vmatpush1.bf16.msra.mxu0 %v7170
        %7199 = vmatprep.subr.bf16.mxu0 0
        %7200 = vmatpush1.bf16.msra.mxu0 %v7169
        %7201 = vmatprep.subr.bf16.mxu0 0
        %7202 = vmatpush2.bf16.msra.mxu0 0
        %7203 = vmatprep.subr.bf16.mxu0 0
        %7204 = vmatpush2.bf16.msra.mxu0 0
        %7205 = vmatprep.subr.bf16.mxu0 0
        %7206 = vmatpush2.bf16.msra.mxu0 0
        %7207 = vmatprep.subr.bf16.mxu0 0
        %7208 = vmatpush2.bf16.msra.mxu0 0
        %7209 = vmatprep.subr.bf16.mxu0 0
        %7210 = vmatpush2.bf16.msra.mxu0 0
        %7211 = vmatprep.subr.bf16.mxu0 0
        %7212 = vmatpush2.bf16.msra.mxu0 0
        %7213 = vmatprep.subr.bf16.mxu0 0
        %7214 = vmatpush2.bf16.msra.mxu0 0
        %7215 = vmatprep.subr.bf16.mxu0 0
        %7216 = vmatpush2.bf16.msra.mxu0 0
        %7217 = vmatprep.mubr.bf16.mxu0 0
        %7218 = vmatmul.mubr.bf16.gmra.mxu0 %v6928
        %v7219 = vpop.f32.mrf.mxu0
        %v7220 = vadd.f32 0.0, %v7219
        %v7221 = vpop.f32.mrf.mxu0
        %v7222 = vpop.f32.mrf.mxu0
        %v7223 = vadd.f32 0.0, %v7222
        %v7224 = vpop.f32.mrf.mxu0
        %7225 = vmatprep.mubr.bf16.mxu0 0
        %7226 = vmatmul.mubr.bf16.gmra.mxu0 %v6936
        %v7227 = vpop.f32.mrf.mxu0
        %v7228 = vadd.f32 0.0, %v7227
        %v7229 = vpop.f32.mrf.mxu0
        %v7230 = vpop.f32.mrf.mxu0
        %v7231 = vadd.f32 0.0, %v7230
        %v7232 = vpop.f32.mrf.mxu0
        %7233 = vmatprep.mubr.bf16.mxu0 0
        %7234 = vmatmul.mubr.bf16.gmra.mxu0 %v6944
        %v7235 = vpop.f32.mrf.mxu0
        %v7236 = vadd.f32 0.0, %v7235
        %v7237 = vpop.f32.mrf.mxu0
        %v7238 = vpop.f32.mrf.mxu0
        %v7239 = vadd.f32 0.0, %v7238
        %v7240 = vpop.f32.mrf.mxu0
        %7241 = vmatprep.mubr.bf16.mxu0 0
        %7242 = vmatmul.mubr.bf16.gmra.mxu0 %v6952
        %v7243 = vpop.f32.mrf.mxu0
        %v7244 = vadd.f32 0.0, %v7243
        %v7245 = vpop.f32.mrf.mxu0
        %v7246 = vpop.f32.mrf.mxu0
        %v7247 = vadd.f32 0.0, %v7246
        %v7248 = vpop.f32.mrf.mxu0
        %7249 = vmatprep.mubr.bf16.mxu0 0
        %7250 = vmatmul.mubr.bf16.gmra.mxu0 %v6960
        %v7251 = vpop.f32.mrf.mxu0
        %v7252 = vadd.f32 0.0, %v7251
        %v7253 = vpop.f32.mrf.mxu0
        %v7254 = vpop.f32.mrf.mxu0
        %v7255 = vadd.f32 0.0, %v7254
        %v7256 = vpop.f32.mrf.mxu0
        %7257 = vmatprep.mubr.bf16.mxu0 0
        %7258 = vmatmul.mubr.bf16.gmra.mxu0 %v6968
        %v7259 = vpop.f32.mrf.mxu0
        %v7260 = vadd.f32 0.0, %v7259
        %v7261 = vpop.f32.mrf.mxu0
        %v7262 = vpop.f32.mrf.mxu0
        %v7263 = vadd.f32 0.0, %v7262
        %v7264 = vpop.f32.mrf.mxu0
        %7265 = vmatprep.mubr.bf16.mxu0 0
        %7266 = vmatmul.mubr.bf16.gmra.mxu0 %v6976
        %v7267 = vpop.f32.mrf.mxu0
        %v7268 = vadd.f32 0.0, %v7267
        %v7269 = vpop.f32.mrf.mxu0
        %v7270 = vpop.f32.mrf.mxu0
        %v7271 = vadd.f32 0.0, %v7270
        %v7272 = vpop.f32.mrf.mxu0
        %7273 = vmatprep.mubr.bf16.mxu0 0
        %7274 = vmatmul.mubr.bf16.gmra.mxu0 %v6984
        %v7275 = vpop.f32.mrf.mxu0
        %v7276 = vadd.f32 0.0, %v7275
        %v7277 = vpop.f32.mrf.mxu0
        %v7278 = vpop.f32.mrf.mxu0
        %v7279 = vadd.f32 0.0, %v7278
        %v7280 = vpop.f32.mrf.mxu0
        %7281 = vmatprep.mubr.bf16.mxu0 0
        %7282 = vmatmul.mubr.bf16.gmra.mxu0 %v6992
        %v7283 = vpop.f32.mrf.mxu0
        %v7284 = vadd.f32 0.0, %v7283
        %v7285 = vpop.f32.mrf.mxu0
        %v7286 = vpop.f32.mrf.mxu0
        %v7287 = vadd.f32 0.0, %v7286
        %v7288 = vpop.f32.mrf.mxu0
        %7289 = vmatprep.mubr.bf16.mxu0 0
        %7290 = vmatmul.mubr.bf16.gmra.mxu0 %v7000
        %v7291 = vpop.f32.mrf.mxu0
        %v7292 = vadd.f32 0.0, %v7291
        %v7293 = vpop.f32.mrf.mxu0
        %v7294 = vpop.f32.mrf.mxu0
        %v7295 = vadd.f32 0.0, %v7294
        %v7296 = vpop.f32.mrf.mxu0
        %7297 = vmatprep.mubr.bf16.mxu0 0
        %7298 = vmatmul.mubr.bf16.gmra.mxu0 %v7008
        %v7299 = vpop.f32.mrf.mxu0
        %v7300 = vadd.f32 0.0, %v7299
        %v7301 = vpop.f32.mrf.mxu0
        %v7302 = vpop.f32.mrf.mxu0
        %v7303 = vadd.f32 0.0, %v7302
        %v7304 = vpop.f32.mrf.mxu0
        %7305 = vmatprep.mubr.bf16.mxu0 0
        %7306 = vmatmul.mubr.bf16.gmra.mxu0 %v7016
        %v7307 = vpop.f32.mrf.mxu0
        %v7308 = vadd.f32 0.0, %v7307
        %v7309 = vpop.f32.mrf.mxu0
        %v7310 = vpop.f32.mrf.mxu0
        %v7311 = vadd.f32 0.0, %v7310
        %v7312 = vpop.f32.mrf.mxu0
        %7313 = vmatprep.mubr.bf16.mxu0 0
        %7314 = vmatmul.mubr.bf16.gmra.mxu0 %v7024
        %v7315 = vpop.f32.mrf.mxu0
        %v7316 = vadd.f32 0.0, %v7315
        %v7317 = vpop.f32.mrf.mxu0
        %v7318 = vpop.f32.mrf.mxu0
        %v7319 = vadd.f32 0.0, %v7318
        %v7320 = vpop.f32.mrf.mxu0
        %7321 = vmatprep.mubr.bf16.mxu0 0
        %7322 = vmatmul.mubr.bf16.gmra.mxu0 %v7032
        %v7323 = vpop.f32.mrf.mxu0
        %v7324 = vadd.f32 0.0, %v7323
        %v7325 = vpop.f32.mrf.mxu0
        %v7326 = vpop.f32.mrf.mxu0
        %v7327 = vadd.f32 0.0, %v7326
        %v7328 = vpop.f32.mrf.mxu0
        %7329 = vmatprep.mubr.bf16.mxu0 0
        %7330 = vmatmul.mubr.bf16.gmra.mxu0 %v7040
        %v7331 = vpop.f32.mrf.mxu0
        %v7332 = vadd.f32 0.0, %v7331
        %v7333 = vpop.f32.mrf.mxu0
        %v7334 = vpop.f32.mrf.mxu0
        %v7335 = vadd.f32 0.0, %v7334
        %v7336 = vpop.f32.mrf.mxu0
        %7337 = vmatprep.mubr.bf16.mxu0 0
        %7338 = vmatmul.mubr.bf16.gmra.mxu0 %v7048
        %v7339 = vpop.f32.mrf.mxu0
        %v7340 = vadd.f32 0.0, %v7339
        %v7341 = vpop.f32.mrf.mxu0
        %v7342 = vpop.f32.mrf.mxu0
        %v7343 = vadd.f32 0.0, %v7342
        %v7344 = vpop.f32.mrf.mxu0
        %7345 = vmatprep.mubr.bf16.mxu0 0
        %7346 = vmatmul.mubr.bf16.gmra.mxu0 %v7056
        %v7347 = vpop.f32.mrf.mxu0
        %v7348 = vadd.f32 0.0, %v7347
        %v7349 = vpop.f32.mrf.mxu0
        %v7350 = vpop.f32.mrf.mxu0
        %v7351 = vadd.f32 0.0, %v7350
        %v7352 = vpop.f32.mrf.mxu0
        %7353 = vmatprep.mubr.bf16.mxu0 0
        %7354 = vmatmul.mubr.bf16.gmra.mxu0 %v7064
        %v7355 = vpop.f32.mrf.mxu0
        %v7356 = vadd.f32 0.0, %v7355
        %v7357 = vpop.f32.mrf.mxu0
        %v7358 = vpop.f32.mrf.mxu0
        %v7359 = vadd.f32 0.0, %v7358
        %v7360 = vpop.f32.mrf.mxu0
        %7361 = vmatprep.mubr.bf16.mxu0 0
        %7362 = vmatmul.mubr.bf16.gmra.mxu0 %v7072
        %v7363 = vpop.f32.mrf.mxu0
        %v7364 = vadd.f32 0.0, %v7363
        %v7365 = vpop.f32.mrf.mxu0
        %v7366 = vpop.f32.mrf.mxu0
        %v7367 = vadd.f32 0.0, %v7366
        %v7368 = vpop.f32.mrf.mxu0
        %7369 = vmatprep.mubr.bf16.mxu0 0
        %7370 = vmatmul.mubr.bf16.gmra.mxu0 %v7080
        %v7371 = vpop.f32.mrf.mxu0
        %v7372 = vadd.f32 0.0, %v7371
        %v7373 = vpop.f32.mrf.mxu0
        %v7374 = vpop.f32.mrf.mxu0
        %v7375 = vadd.f32 0.0, %v7374
        %v7376 = vpop.f32.mrf.mxu0
        %7377 = vmatprep.mubr.bf16.mxu0 0
        %7378 = vmatmul.mubr.bf16.gmra.mxu0 %v7088
        %v7379 = vpop.f32.mrf.mxu0
        %v7380 = vadd.f32 0.0, %v7379
        %v7381 = vpop.f32.mrf.mxu0
        %v7382 = vpop.f32.mrf.mxu0
        %v7383 = vadd.f32 0.0, %v7382
        %v7384 = vpop.f32.mrf.mxu0
        %7385 = vmatprep.mubr.bf16.mxu0 0
        %7386 = vmatmul.mubr.bf16.gmra.mxu0 %v7096
        %v7387 = vpop.f32.mrf.mxu0
        %v7388 = vadd.f32 0.0, %v7387
        %v7389 = vpop.f32.mrf.mxu0
        %v7390 = vpop.f32.mrf.mxu0
        %v7391 = vadd.f32 0.0, %v7390
        %v7392 = vpop.f32.mrf.mxu0
        %7393 = vmatprep.mubr.bf16.mxu0 0
        %7394 = vmatmul.mubr.bf16.gmra.mxu0 %v7104
        %v7395 = vpop.f32.mrf.mxu0
        %v7396 = vadd.f32 0.0, %v7395
        %v7397 = vpop.f32.mrf.mxu0
        %v7398 = vpop.f32.mrf.mxu0
        %v7399 = vadd.f32 0.0, %v7398
        %v7400 = vpop.f32.mrf.mxu0
        %7401 = vmatprep.mubr.bf16.mxu0 0
        %7402 = vmatmul.mubr.bf16.gmra.mxu0 %v7112
        %v7403 = vpop.f32.mrf.mxu0
        %v7404 = vadd.f32 0.0, %v7403
        %v7405 = vpop.f32.mrf.mxu0
        %v7406 = vpop.f32.mrf.mxu0
        %v7407 = vadd.f32 0.0, %v7406
        %v7408 = vpop.f32.mrf.mxu0
        %7409 = vdwg.mxu0
        %v7450 = vunpack.c.l.b16 %v6760
        %v7451 = vunpack.c.l.b16 %v6761
        %v7452 = vunpack.c.l.b16 %v6762
        %v7453 = vunpack.c.l.b16 %v6763
        %v7454 = vunpack.c.l.b16 %v6764
        %v7455 = vunpack.c.l.b16 %v6765
        %v7456 = vunpack.c.l.b16 %v6766
        %v7457 = vunpack.c.l.b16 %v6767
        %v7458 = vunpack.c.l.b16 %v6768
        %v7459 = vunpack.c.l.b16 %v6769
        %v7460 = vunpack.c.l.b16 %v6770
        %v7461 = vunpack.c.l.b16 %v6771
        %v7462 = vunpack.c.l.b16 %v6772
        %v7463 = vunpack.c.l.b16 %v6773
        %v7464 = vunpack.c.l.b16 %v6774
        %v7465 = vunpack.c.l.b16 %v6775
        %v7466 = vpack.c.b16 %v7451, %v7450
        %v7467 = vpack.c.b16 %v7453, %v7452
        %v7468 = vpack.c.b16 %v7455, %v7454
        %v7469 = vpack.c.b16 %v7457, %v7456
        %v7470 = vpack.c.b16 %v7459, %v7458
        %v7471 = vpack.c.b16 %v7461, %v7460
        %v7472 = vpack.c.b16 %v7463, %v7462
        %v7473 = vpack.c.b16 %v7465, %v7464
        %7482 = vmatprep.subr.bf16.mxu0 0
        %7483 = vmatpush1.bf16.msra.mxu0 %v7473
        %7484 = vmatprep.subr.bf16.mxu0 0
        %7485 = vmatpush1.bf16.msra.mxu0 %v7472
        %7486 = vmatprep.subr.bf16.mxu0 0
        %7487 = vmatpush1.bf16.msra.mxu0 %v7471
        %7488 = vmatprep.subr.bf16.mxu0 0
        %7489 = vmatpush1.bf16.msra.mxu0 %v7470
        %7490 = vmatprep.subr.bf16.mxu0 0
        %7491 = vmatpush1.bf16.msra.mxu0 %v7469
        %7492 = vmatprep.subr.bf16.mxu0 0
        %7493 = vmatpush1.bf16.msra.mxu0 %v7468
        %7494 = vmatprep.subr.bf16.mxu0 0
        %7495 = vmatpush1.bf16.msra.mxu0 %v7467
        %7496 = vmatprep.subr.bf16.mxu0 0
        %7497 = vmatpush1.bf16.msra.mxu0 %v7466
        %7498 = vmatprep.subr.bf16.mxu0 0
        %7499 = vmatpush2.bf16.msra.mxu0 0
        %7500 = vmatprep.subr.bf16.mxu0 0
        %7501 = vmatpush2.bf16.msra.mxu0 0
        %7502 = vmatprep.subr.bf16.mxu0 0
        %7503 = vmatpush2.bf16.msra.mxu0 0
        %7504 = vmatprep.subr.bf16.mxu0 0
        %7505 = vmatpush2.bf16.msra.mxu0 0
        %7506 = vmatprep.subr.bf16.mxu0 0
        %7507 = vmatpush2.bf16.msra.mxu0 0
        %7508 = vmatprep.subr.bf16.mxu0 0
        %7509 = vmatpush2.bf16.msra.mxu0 0
        %7510 = vmatprep.subr.bf16.mxu0 0
        %7511 = vmatpush2.bf16.msra.mxu0 0
        %7512 = vmatprep.subr.bf16.mxu0 0
        %7513 = vmatpush2.bf16.msra.mxu0 0
        %7514 = vmatprep.mubr.bf16.mxu0 0
        %7515 = vmatmul.mubr.bf16.gmra.mxu0 %v6892
        %v7516 = vpop.f32.mrf.mxu0
        %v7517 = vadd.f32 %v7220, %v7516
        %v7518 = vpop.f32.mrf.mxu0
        %v7519 = vpop.f32.mrf.mxu0
        %v7520 = vadd.f32 %v7223, %v7519
        %v7521 = vpop.f32.mrf.mxu0
        %7522 = vmatprep.mubr.bf16.mxu0 0
        %7523 = vmatmul.mubr.bf16.gmra.mxu0 %v6893
        %v7524 = vpop.f32.mrf.mxu0
        %v7525 = vadd.f32 %v7228, %v7524
        %v7526 = vpop.f32.mrf.mxu0
        %v7527 = vpop.f32.mrf.mxu0
        %v7528 = vadd.f32 %v7231, %v7527
        %v7529 = vpop.f32.mrf.mxu0
        %7530 = vmatprep.mubr.bf16.mxu0 0
        %7531 = vmatmul.mubr.bf16.gmra.mxu0 %v6894
        %v7532 = vpop.f32.mrf.mxu0
        %v7533 = vadd.f32 %v7236, %v7532
        %v7534 = vpop.f32.mrf.mxu0
        %v7535 = vpop.f32.mrf.mxu0
        %v7536 = vadd.f32 %v7239, %v7535
        %v7537 = vpop.f32.mrf.mxu0
        %7538 = vmatprep.mubr.bf16.mxu0 0
        %7539 = vmatmul.mubr.bf16.gmra.mxu0 %v6895
        %v7540 = vpop.f32.mrf.mxu0
        %v7541 = vadd.f32 %v7244, %v7540
        %v7542 = vpop.f32.mrf.mxu0
        %v7543 = vpop.f32.mrf.mxu0
        %v7544 = vadd.f32 %v7247, %v7543
        %v7545 = vpop.f32.mrf.mxu0
        %7546 = vmatprep.mubr.bf16.mxu0 0
        %7547 = vmatmul.mubr.bf16.gmra.mxu0 %v6896
        %v7548 = vpop.f32.mrf.mxu0
        %v7549 = vadd.f32 %v7252, %v7548
        %v7550 = vpop.f32.mrf.mxu0
        %v7551 = vpop.f32.mrf.mxu0
        %v7552 = vadd.f32 %v7255, %v7551
        %v7553 = vpop.f32.mrf.mxu0
        %7554 = vmatprep.mubr.bf16.mxu0 0
        %7555 = vmatmul.mubr.bf16.gmra.mxu0 %v6897
        %v7556 = vpop.f32.mrf.mxu0
        %v7557 = vadd.f32 %v7260, %v7556
        %v7558 = vpop.f32.mrf.mxu0
        %v7559 = vpop.f32.mrf.mxu0
        %v7560 = vadd.f32 %v7263, %v7559
        %v7561 = vpop.f32.mrf.mxu0
        %7562 = vmatprep.mubr.bf16.mxu0 0
        %7563 = vmatmul.mubr.bf16.gmra.mxu0 %v6898
        %v7564 = vpop.f32.mrf.mxu0
        %v7565 = vadd.f32 %v7268, %v7564
        %v7566 = vpop.f32.mrf.mxu0
        %v7567 = vpop.f32.mrf.mxu0
        %v7568 = vadd.f32 %v7271, %v7567
        %v7569 = vpop.f32.mrf.mxu0
        %7570 = vmatprep.mubr.bf16.mxu0 0
        %7571 = vmatmul.mubr.bf16.gmra.mxu0 %v6899
        %v7572 = vpop.f32.mrf.mxu0
        %v7573 = vadd.f32 %v7276, %v7572
        %v7574 = vpop.f32.mrf.mxu0
        %v7575 = vpop.f32.mrf.mxu0
        %v7576 = vadd.f32 %v7279, %v7575
        %v7577 = vpop.f32.mrf.mxu0
        %7578 = vmatprep.mubr.bf16.mxu0 0
        %7579 = vmatmul.mubr.bf16.gmra.mxu0 %v6900
        %v7580 = vpop.f32.mrf.mxu0
        %v7581 = vadd.f32 %v7284, %v7580
        %v7582 = vpop.f32.mrf.mxu0
        %v7583 = vpop.f32.mrf.mxu0
        %v7584 = vadd.f32 %v7287, %v7583
        %v7585 = vpop.f32.mrf.mxu0
        %7586 = vmatprep.mubr.bf16.mxu0 0
        %7587 = vmatmul.mubr.bf16.gmra.mxu0 %v6901
        %v7588 = vpop.f32.mrf.mxu0
        %v7589 = vadd.f32 %v7292, %v7588
        %v7590 = vpop.f32.mrf.mxu0
        %v7591 = vpop.f32.mrf.mxu0
        %v7592 = vadd.f32 %v7295, %v7591
        %v7593 = vpop.f32.mrf.mxu0
        %7594 = vmatprep.mubr.bf16.mxu0 0
        %7595 = vmatmul.mubr.bf16.gmra.mxu0 %v6902
        %v7596 = vpop.f32.mrf.mxu0
        %v7597 = vadd.f32 %v7300, %v7596
        %v7598 = vpop.f32.mrf.mxu0
        %v7599 = vpop.f32.mrf.mxu0
        %v7600 = vadd.f32 %v7303, %v7599
        %v7601 = vpop.f32.mrf.mxu0
        %7602 = vmatprep.mubr.bf16.mxu0 0
        %7603 = vmatmul.mubr.bf16.gmra.mxu0 %v6903
        %v7604 = vpop.f32.mrf.mxu0
        %v7605 = vadd.f32 %v7308, %v7604
        %v7606 = vpop.f32.mrf.mxu0
        %v7607 = vpop.f32.mrf.mxu0
        %v7608 = vadd.f32 %v7311, %v7607
        %v7609 = vpop.f32.mrf.mxu0
        %7610 = vmatprep.mubr.bf16.mxu0 0
        %7611 = vmatmul.mubr.bf16.gmra.mxu0 %v6904
        %v7612 = vpop.f32.mrf.mxu0
        %v7613 = vadd.f32 %v7316, %v7612
        %v7614 = vpop.f32.mrf.mxu0
        %v7615 = vpop.f32.mrf.mxu0
        %v7616 = vadd.f32 %v7319, %v7615
        %v7617 = vpop.f32.mrf.mxu0
        %7618 = vmatprep.mubr.bf16.mxu0 0
        %7619 = vmatmul.mubr.bf16.gmra.mxu0 %v6905
        %v7620 = vpop.f32.mrf.mxu0
        %v7621 = vadd.f32 %v7324, %v7620
        %v7622 = vpop.f32.mrf.mxu0
        %v7623 = vpop.f32.mrf.mxu0
        %v7624 = vadd.f32 %v7327, %v7623
        %v7625 = vpop.f32.mrf.mxu0
        %7626 = vmatprep.mubr.bf16.mxu0 0
        %7627 = vmatmul.mubr.bf16.gmra.mxu0 %v6906
        %v7628 = vpop.f32.mrf.mxu0
        %v7629 = vadd.f32 %v7332, %v7628
        %v7630 = vpop.f32.mrf.mxu0
        %v7631 = vpop.f32.mrf.mxu0
        %v7632 = vadd.f32 %v7335, %v7631
        %v7633 = vpop.f32.mrf.mxu0
        %7634 = vmatprep.mubr.bf16.mxu0 0
        %7635 = vmatmul.mubr.bf16.gmra.mxu0 %v6907
        %v7636 = vpop.f32.mrf.mxu0
        %v7637 = vadd.f32 %v7340, %v7636
        %v7638 = vpop.f32.mrf.mxu0
        %v7639 = vpop.f32.mrf.mxu0
        %v7640 = vadd.f32 %v7343, %v7639
        %v7641 = vpop.f32.mrf.mxu0
        %7642 = vmatprep.mubr.bf16.mxu0 0
        %7643 = vmatmul.mubr.bf16.gmra.mxu0 %v6908
        %v7644 = vpop.f32.mrf.mxu0
        %v7645 = vadd.f32 %v7348, %v7644
        %v7646 = vpop.f32.mrf.mxu0
        %v7647 = vpop.f32.mrf.mxu0
        %v7648 = vadd.f32 %v7351, %v7647
        %v7649 = vpop.f32.mrf.mxu0
        %7650 = vmatprep.mubr.bf16.mxu0 0
        %7651 = vmatmul.mubr.bf16.gmra.mxu0 %v6909
        %v7652 = vpop.f32.mrf.mxu0
        %v7653 = vadd.f32 %v7356, %v7652
        %v7654 = vpop.f32.mrf.mxu0
        %v7655 = vpop.f32.mrf.mxu0
        %v7656 = vadd.f32 %v7359, %v7655
        %v7657 = vpop.f32.mrf.mxu0
        %7658 = vmatprep.mubr.bf16.mxu0 0
        %7659 = vmatmul.mubr.bf16.gmra.mxu0 %v6910
        %v7660 = vpop.f32.mrf.mxu0
        %v7661 = vadd.f32 %v7364, %v7660
        %v7662 = vpop.f32.mrf.mxu0
        %v7663 = vpop.f32.mrf.mxu0
        %v7664 = vadd.f32 %v7367, %v7663
        %v7665 = vpop.f32.mrf.mxu0
        %7666 = vmatprep.mubr.bf16.mxu0 0
        %7667 = vmatmul.mubr.bf16.gmra.mxu0 %v6911
        %v7668 = vpop.f32.mrf.mxu0
        %v7669 = vadd.f32 %v7372, %v7668
        %v7670 = vpop.f32.mrf.mxu0
        %v7671 = vpop.f32.mrf.mxu0
        %v7672 = vadd.f32 %v7375, %v7671
        %v7673 = vpop.f32.mrf.mxu0
        %7674 = vmatprep.mubr.bf16.mxu0 0
        %7675 = vmatmul.mubr.bf16.gmra.mxu0 %v6912
        %v7676 = vpop.f32.mrf.mxu0
        %v7677 = vadd.f32 %v7380, %v7676
        %v7678 = vpop.f32.mrf.mxu0
        %v7679 = vpop.f32.mrf.mxu0
        %v7680 = vadd.f32 %v7383, %v7679
        %v7681 = vpop.f32.mrf.mxu0
        %7682 = vmatprep.mubr.bf16.mxu0 0
        %7683 = vmatmul.mubr.bf16.gmra.mxu0 %v6913
        %v7684 = vpop.f32.mrf.mxu0
        %v7685 = vadd.f32 %v7388, %v7684
        %v7686 = vpop.f32.mrf.mxu0
        %v7687 = vpop.f32.mrf.mxu0
        %v7688 = vadd.f32 %v7391, %v7687
        %v7689 = vpop.f32.mrf.mxu0
        %7690 = vmatprep.mubr.bf16.mxu0 0
        %7691 = vmatmul.mubr.bf16.gmra.mxu0 %v6914
        %v7692 = vpop.f32.mrf.mxu0
        %v7693 = vadd.f32 %v7396, %v7692
        %v7694 = vpop.f32.mrf.mxu0
        %v7695 = vpop.f32.mrf.mxu0
        %v7696 = vadd.f32 %v7399, %v7695
        %v7697 = vpop.f32.mrf.mxu0
        %7698 = vmatprep.mubr.bf16.mxu0 0
        %7699 = vmatmul.mubr.bf16.gmra.mxu0 %v6915
        %v7700 = vpop.f32.mrf.mxu0
        %v7701 = vadd.f32 %v7404, %v7700
        %v7702 = vpop.f32.mrf.mxu0
        %v7703 = vpop.f32.mrf.mxu0
        %v7704 = vadd.f32 %v7407, %v7703
        %v7705 = vpop.f32.mrf.mxu0
        %7706 = vdwg.mxu0
        %v7707 = vld [vmem:[#allocation2] sm:$0xe]
        %s7708 = scalar_lea.vmem [#allocation8], 128
        %v7709 = vld [vmem:[%s7708] sm:$0xf]
        %v7710 = vld [vmem:[%s7708 + $0x4] sm:$0xf]
        %v7711 = vld [vmem:[%s7708 + $0x8] sm:$0xf]
        %v7712 = vld [vmem:[%s7708 + $0xc] sm:$0xf]
        %v7713 = vld [vmem:[%s7708 + $0x10] sm:$0xf]
        %v7714 = vld [vmem:[%s7708 + $0x14] sm:$0xf]
        %v7715 = vld [vmem:[%s7708 + $0x18] sm:$0xf]
        %v7716 = vld [vmem:[%s7708 + $0x1c] sm:$0xf]
        %v7717 = vld [vmem:[%s7708 + $0x20] sm:$0xf]
        %v7718 = vld [vmem:[%s7708 + $0x24] sm:$0xf]
        %v7719 = vld [vmem:[%s7708 + $0x28] sm:$0xf]
        %v7720 = vld [vmem:[%s7708 + $0x2c] sm:$0xf]
        %v7721 = vld [vmem:[%s7708 + $0x30] sm:$0xf]
        %v7722 = vld [vmem:[%s7708 + $0x34] sm:$0xf]
        %v7723 = vld [vmem:[%s7708 + $0x38] sm:$0xf]
        %v7724 = vld [vmem:[%s7708 + $0x3c] sm:$0xf]
        %v7726 = vunpack.c.l.b16 %v7707
        %v7727 = vpack.c.b16 %v6844, %v7726
        %v7728 = vrot.slane %v7727, 1
        %v7729 = vrot.slane %v6893, 1
        %v7730 = vsel %vm1473, %v7728, %v7729
        %v7731 = vrot.slane %v6894, 1
        %v7732 = vsel %vm1473, %v7729, %v7731
        %v7733 = vrot.slane %v6895, 1
        %v7734 = vsel %vm1473, %v7731, %v7733
        %v7735 = vrot.slane %v6896, 1
        %v7736 = vsel %vm1473, %v7733, %v7735
        %v7737 = vrot.slane %v6897, 1
        %v7738 = vsel %vm1473, %v7735, %v7737
        %v7739 = vrot.slane %v6898, 1
        %v7740 = vsel %vm1473, %v7737, %v7739
        %v7741 = vrot.slane %v6899, 1
        %v7742 = vsel %vm1473, %v7739, %v7741
        %v7743 = vrot.slane %v6900, 1
        %v7744 = vsel %vm1473, %v7741, %v7743
        %v7745 = vrot.slane %v6901, 1
        %v7746 = vsel %vm1473, %v7743, %v7745
        %v7747 = vrot.slane %v6902, 1
        %v7748 = vsel %vm1473, %v7745, %v7747
        %v7749 = vrot.slane %v6903, 1
        %v7750 = vsel %vm1473, %v7747, %v7749
        %v7751 = vrot.slane %v6904, 1
        %v7752 = vsel %vm1473, %v7749, %v7751
        %v7753 = vrot.slane %v6905, 1
        %v7754 = vsel %vm1473, %v7751, %v7753
        %v7755 = vrot.slane %v6906, 1
        %v7756 = vsel %vm1473, %v7753, %v7755
        %v7757 = vrot.slane %v6907, 1
        %v7758 = vsel %vm1473, %v7755, %v7757
        %v7759 = vrot.slane %v6908, 1
        %v7760 = vsel %vm1473, %v7757, %v7759
        %v7761 = vrot.slane %v6909, 1
        %v7762 = vsel %vm1473, %v7759, %v7761
        %v7763 = vrot.slane %v6910, 1
        %v7764 = vsel %vm1473, %v7761, %v7763
        %v7765 = vrot.slane %v6911, 1
        %v7766 = vsel %vm1473, %v7763, %v7765
        %v7767 = vrot.slane %v6912, 1
        %v7768 = vsel %vm1473, %v7765, %v7767
        %v7769 = vrot.slane %v6913, 1
        %v7770 = vsel %vm1473, %v7767, %v7769
        %v7771 = vrot.slane %v6914, 1
        %v7772 = vsel %vm1473, %v7769, %v7771
        %v7773 = vrot.slane %v6915, 1
        %v7774 = vsel %vm1473, %v7771, %v7773
        %v7775 = vrot.slane %v6916, 1
        %v7776 = vsel %vm1473, %v7773, %v7775
        %v7817 = vunpack.c.l.b16 %v7709
        %v7818 = vunpack.c.l.b16 %v7710
        %v7819 = vunpack.c.l.b16 %v7711
        %v7820 = vunpack.c.l.b16 %v7712
        %v7821 = vunpack.c.l.b16 %v7713
        %v7822 = vunpack.c.l.b16 %v7714
        %v7823 = vunpack.c.l.b16 %v7715
        %v7824 = vunpack.c.l.b16 %v7716
        %v7825 = vunpack.c.l.b16 %v7717
        %v7826 = vunpack.c.l.b16 %v7718
        %v7827 = vunpack.c.l.b16 %v7719
        %v7828 = vunpack.c.l.b16 %v7720
        %v7829 = vunpack.c.l.b16 %v7721
        %v7830 = vunpack.c.l.b16 %v7722
        %v7831 = vunpack.c.l.b16 %v7723
        %v7832 = vunpack.c.l.b16 %v7724
        %v7833 = vpack.c.b16 %v7818, %v7817
        %v7834 = vpack.c.b16 %v7820, %v7819
        %v7835 = vpack.c.b16 %v7822, %v7821
        %v7836 = vpack.c.b16 %v7824, %v7823
        %v7837 = vpack.c.b16 %v7826, %v7825
        %v7838 = vpack.c.b16 %v7828, %v7827
        %v7839 = vpack.c.b16 %v7830, %v7829
        %v7840 = vpack.c.b16 %v7832, %v7831
        %7849 = vmatprep.subr.bf16.mxu0 0
        %7850 = vmatpush1.bf16.msra.mxu0 %v7840
        %7851 = vmatprep.subr.bf16.mxu0 0
        %7852 = vmatpush1.bf16.msra.mxu0 %v7839
        %7853 = vmatprep.subr.bf16.mxu0 0
        %7854 = vmatpush1.bf16.msra.mxu0 %v7838
        %7855 = vmatprep.subr.bf16.mxu0 0
        %7856 = vmatpush1.bf16.msra.mxu0 %v7837
        %7857 = vmatprep.subr.bf16.mxu0 0
        %7858 = vmatpush1.bf16.msra.mxu0 %v7836
        %7859 = vmatprep.subr.bf16.mxu0 0
        %7860 = vmatpush1.bf16.msra.mxu0 %v7835
        %7861 = vmatprep.subr.bf16.mxu0 0
        %7862 = vmatpush1.bf16.msra.mxu0 %v7834
        %7863 = vmatprep.subr.bf16.mxu0 0
        %7864 = vmatpush1.bf16.msra.mxu0 %v7833
        %7865 = vmatprep.subr.bf16.mxu0 0
        %7866 = vmatpush2.bf16.msra.mxu0 0
        %7867 = vmatprep.subr.bf16.mxu0 0
        %7868 = vmatpush2.bf16.msra.mxu0 0
        %7869 = vmatprep.subr.bf16.mxu0 0
        %7870 = vmatpush2.bf16.msra.mxu0 0
        %7871 = vmatprep.subr.bf16.mxu0 0
        %7872 = vmatpush2.bf16.msra.mxu0 0
        %7873 = vmatprep.subr.bf16.mxu0 0
        %7874 = vmatpush2.bf16.msra.mxu0 0
        %7875 = vmatprep.subr.bf16.mxu0 0
        %7876 = vmatpush2.bf16.msra.mxu0 0
        %7877 = vmatprep.subr.bf16.mxu0 0
        %7878 = vmatpush2.bf16.msra.mxu0 0
        %7879 = vmatprep.subr.bf16.mxu0 0
        %7880 = vmatpush2.bf16.msra.mxu0 0
        %7881 = vmatprep.mubr.bf16.mxu0 0
        %7882 = vmatmul.mubr.bf16.gmra.mxu0 %v7730
        %v7883 = vpop.f32.mrf.mxu0
        %v7884 = vadd.f32 0.0, %v7883
        %v7885 = vpop.f32.mrf.mxu0
        %v7886 = vpop.f32.mrf.mxu0
        %v7887 = vadd.f32 0.0, %v7886
        %v7888 = vpop.f32.mrf.mxu0
        %7889 = vmatprep.mubr.bf16.mxu0 0
        %7890 = vmatmul.mubr.bf16.gmra.mxu0 %v7732
        %v7891 = vpop.f32.mrf.mxu0
        %v7892 = vadd.f32 0.0, %v7891
        %v7893 = vpop.f32.mrf.mxu0
        %v7894 = vpop.f32.mrf.mxu0
        %v7895 = vadd.f32 0.0, %v7894
        %v7896 = vpop.f32.mrf.mxu0
        %7897 = vmatprep.mubr.bf16.mxu0 0
        %7898 = vmatmul.mubr.bf16.gmra.mxu0 %v7734
        %v7899 = vpop.f32.mrf.mxu0
        %v7900 = vadd.f32 0.0, %v7899
        %v7901 = vpop.f32.mrf.mxu0
        %v7902 = vpop.f32.mrf.mxu0
        %v7903 = vadd.f32 0.0, %v7902
        %v7904 = vpop.f32.mrf.mxu0
        %7905 = vmatprep.mubr.bf16.mxu0 0
        %7906 = vmatmul.mubr.bf16.gmra.mxu0 %v7736
        %v7907 = vpop.f32.mrf.mxu0
        %v7908 = vadd.f32 0.0, %v7907
        %v7909 = vpop.f32.mrf.mxu0
        %v7910 = vpop.f32.mrf.mxu0
        %v7911 = vadd.f32 0.0, %v7910
        %v7912 = vpop.f32.mrf.mxu0
        %7913 = vmatprep.mubr.bf16.mxu0 0
        %7914 = vmatmul.mubr.bf16.gmra.mxu0 %v7738
        %v7915 = vpop.f32.mrf.mxu0
        %v7916 = vadd.f32 0.0, %v7915
        %v7917 = vpop.f32.mrf.mxu0
        %v7918 = vpop.f32.mrf.mxu0
        %v7919 = vadd.f32 0.0, %v7918
        %v7920 = vpop.f32.mrf.mxu0
        %7921 = vmatprep.mubr.bf16.mxu0 0
        %7922 = vmatmul.mubr.bf16.gmra.mxu0 %v7740
        %v7923 = vpop.f32.mrf.mxu0
        %v7924 = vadd.f32 0.0, %v7923
        %v7925 = vpop.f32.mrf.mxu0
        %v7926 = vpop.f32.mrf.mxu0
        %v7927 = vadd.f32 0.0, %v7926
        %v7928 = vpop.f32.mrf.mxu0
        %7929 = vmatprep.mubr.bf16.mxu0 0
        %7930 = vmatmul.mubr.bf16.gmra.mxu0 %v7742
        %v7931 = vpop.f32.mrf.mxu0
        %v7932 = vadd.f32 0.0, %v7931
        %v7933 = vpop.f32.mrf.mxu0
        %v7934 = vpop.f32.mrf.mxu0
        %v7935 = vadd.f32 0.0, %v7934
        %v7936 = vpop.f32.mrf.mxu0
        %7937 = vmatprep.mubr.bf16.mxu0 0
        %7938 = vmatmul.mubr.bf16.gmra.mxu0 %v7744
        %v7939 = vpop.f32.mrf.mxu0
        %v7940 = vadd.f32 0.0, %v7939
        %v7941 = vpop.f32.mrf.mxu0
        %v7942 = vpop.f32.mrf.mxu0
        %v7943 = vadd.f32 0.0, %v7942
        %v7944 = vpop.f32.mrf.mxu0
        %7945 = vmatprep.mubr.bf16.mxu0 0
        %7946 = vmatmul.mubr.bf16.gmra.mxu0 %v7746
        %v7947 = vpop.f32.mrf.mxu0
        %v7948 = vadd.f32 0.0, %v7947
        %v7949 = vpop.f32.mrf.mxu0
        %v7950 = vpop.f32.mrf.mxu0
        %v7951 = vadd.f32 0.0, %v7950
        %v7952 = vpop.f32.mrf.mxu0
        %7953 = vmatprep.mubr.bf16.mxu0 0
        %7954 = vmatmul.mubr.bf16.gmra.mxu0 %v7748
        %v7955 = vpop.f32.mrf.mxu0
        %v7956 = vadd.f32 0.0, %v7955
        %v7957 = vpop.f32.mrf.mxu0
        %v7958 = vpop.f32.mrf.mxu0
        %v7959 = vadd.f32 0.0, %v7958
        %v7960 = vpop.f32.mrf.mxu0
        %7961 = vmatprep.mubr.bf16.mxu0 0
        %7962 = vmatmul.mubr.bf16.gmra.mxu0 %v7750
        %v7963 = vpop.f32.mrf.mxu0
        %v7964 = vadd.f32 0.0, %v7963
        %v7965 = vpop.f32.mrf.mxu0
        %v7966 = vpop.f32.mrf.mxu0
        %v7967 = vadd.f32 0.0, %v7966
        %v7968 = vpop.f32.mrf.mxu0
        %7969 = vmatprep.mubr.bf16.mxu0 0
        %7970 = vmatmul.mubr.bf16.gmra.mxu0 %v7752
        %v7971 = vpop.f32.mrf.mxu0
        %v7972 = vadd.f32 0.0, %v7971
        %v7973 = vpop.f32.mrf.mxu0
        %v7974 = vpop.f32.mrf.mxu0
        %v7975 = vadd.f32 0.0, %v7974
        %v7976 = vpop.f32.mrf.mxu0
        %7977 = vmatprep.mubr.bf16.mxu0 0
        %7978 = vmatmul.mubr.bf16.gmra.mxu0 %v7754
        %v7979 = vpop.f32.mrf.mxu0
        %v7980 = vadd.f32 0.0, %v7979
        %v7981 = vpop.f32.mrf.mxu0
        %v7982 = vpop.f32.mrf.mxu0
        %v7983 = vadd.f32 0.0, %v7982
        %v7984 = vpop.f32.mrf.mxu0
        %7985 = vmatprep.mubr.bf16.mxu0 0
        %7986 = vmatmul.mubr.bf16.gmra.mxu0 %v7756
        %v7987 = vpop.f32.mrf.mxu0
        %v7988 = vadd.f32 0.0, %v7987
        %v7989 = vpop.f32.mrf.mxu0
        %v7990 = vpop.f32.mrf.mxu0
        %v7991 = vadd.f32 0.0, %v7990
        %v7992 = vpop.f32.mrf.mxu0
        %7993 = vmatprep.mubr.bf16.mxu0 0
        %7994 = vmatmul.mubr.bf16.gmra.mxu0 %v7758
        %v7995 = vpop.f32.mrf.mxu0
        %v7996 = vadd.f32 0.0, %v7995
        %v7997 = vpop.f32.mrf.mxu0
        %v7998 = vpop.f32.mrf.mxu0
        %v7999 = vadd.f32 0.0, %v7998
        %v8000 = vpop.f32.mrf.mxu0
        %8001 = vmatprep.mubr.bf16.mxu0 0
        %8002 = vmatmul.mubr.bf16.gmra.mxu0 %v7760
        %v8003 = vpop.f32.mrf.mxu0
        %v8004 = vadd.f32 0.0, %v8003
        %v8005 = vpop.f32.mrf.mxu0
        %v8006 = vpop.f32.mrf.mxu0
        %v8007 = vadd.f32 0.0, %v8006
        %v8008 = vpop.f32.mrf.mxu0
        %8009 = vmatprep.mubr.bf16.mxu0 0
        %8010 = vmatmul.mubr.bf16.gmra.mxu0 %v7762
        %v8011 = vpop.f32.mrf.mxu0
        %v8012 = vadd.f32 0.0, %v8011
        %v8013 = vpop.f32.mrf.mxu0
        %v8014 = vpop.f32.mrf.mxu0
        %v8015 = vadd.f32 0.0, %v8014
        %v8016 = vpop.f32.mrf.mxu0
        %8017 = vmatprep.mubr.bf16.mxu0 0
        %8018 = vmatmul.mubr.bf16.gmra.mxu0 %v7764
        %v8019 = vpop.f32.mrf.mxu0
        %v8020 = vadd.f32 0.0, %v8019
        %v8021 = vpop.f32.mrf.mxu0
        %v8022 = vpop.f32.mrf.mxu0
        %v8023 = vadd.f32 0.0, %v8022
        %v8024 = vpop.f32.mrf.mxu0
        %8025 = vmatprep.mubr.bf16.mxu0 0
        %8026 = vmatmul.mubr.bf16.gmra.mxu0 %v7766
        %v8027 = vpop.f32.mrf.mxu0
        %v8028 = vadd.f32 0.0, %v8027
        %v8029 = vpop.f32.mrf.mxu0
        %v8030 = vpop.f32.mrf.mxu0
        %v8031 = vadd.f32 0.0, %v8030
        %v8032 = vpop.f32.mrf.mxu0
        %8033 = vmatprep.mubr.bf16.mxu0 0
        %8034 = vmatmul.mubr.bf16.gmra.mxu0 %v7768
        %v8035 = vpop.f32.mrf.mxu0
        %v8036 = vadd.f32 0.0, %v8035
        %v8037 = vpop.f32.mrf.mxu0
        %v8038 = vpop.f32.mrf.mxu0
        %v8039 = vadd.f32 0.0, %v8038
        %v8040 = vpop.f32.mrf.mxu0
        %8041 = vmatprep.mubr.bf16.mxu0 0
        %8042 = vmatmul.mubr.bf16.gmra.mxu0 %v7770
        %v8043 = vpop.f32.mrf.mxu0
        %v8044 = vadd.f32 0.0, %v8043
        %v8045 = vpop.f32.mrf.mxu0
        %v8046 = vpop.f32.mrf.mxu0
        %v8047 = vadd.f32 0.0, %v8046
        %v8048 = vpop.f32.mrf.mxu0
        %8049 = vmatprep.mubr.bf16.mxu0 0
        %8050 = vmatmul.mubr.bf16.gmra.mxu0 %v7772
        %v8051 = vpop.f32.mrf.mxu0
        %v8052 = vadd.f32 0.0, %v8051
        %v8053 = vpop.f32.mrf.mxu0
        %v8054 = vpop.f32.mrf.mxu0
        %v8055 = vadd.f32 0.0, %v8054
        %v8056 = vpop.f32.mrf.mxu0
        %8057 = vmatprep.mubr.bf16.mxu0 0
        %8058 = vmatmul.mubr.bf16.gmra.mxu0 %v7774
        %v8059 = vpop.f32.mrf.mxu0
        %v8060 = vadd.f32 0.0, %v8059
        %v8061 = vpop.f32.mrf.mxu0
        %v8062 = vpop.f32.mrf.mxu0
        %v8063 = vadd.f32 0.0, %v8062
        %v8064 = vpop.f32.mrf.mxu0
        %8065 = vmatprep.mubr.bf16.mxu0 0
        %8066 = vmatmul.mubr.bf16.gmra.mxu0 %v7776
        %v8067 = vpop.f32.mrf.mxu0
        %v8068 = vadd.f32 0.0, %v8067
        %v8069 = vpop.f32.mrf.mxu0
        %v8070 = vpop.f32.mrf.mxu0
        %v8071 = vadd.f32 0.0, %v8070
        %v8072 = vpop.f32.mrf.mxu0
        %8073 = vdwg.mxu0
        %v8074 = vadd.f32 %v7517, %v7884
        %v8075 = vadd.f32 %v7520, %v7887
        %v8076 = vadd.f32 %v7525, %v7892
        %v8077 = vadd.f32 %v7528, %v7895
        %v8078 = vadd.f32 %v7533, %v7900
        %v8079 = vadd.f32 %v7536, %v7903
        %v8080 = vadd.f32 %v7541, %v7908
        %v8081 = vadd.f32 %v7544, %v7911
        %v8082 = vadd.f32 %v7549, %v7916
        %v8083 = vadd.f32 %v7552, %v7919
        %v8084 = vadd.f32 %v7557, %v7924
        %v8085 = vadd.f32 %v7560, %v7927
        %v8086 = vadd.f32 %v7565, %v7932
        %v8087 = vadd.f32 %v7568, %v7935
        %v8088 = vadd.f32 %v7573, %v7940
        %v8089 = vadd.f32 %v7576, %v7943
        %v8090 = vadd.f32 %v7581, %v7948
        %v8091 = vadd.f32 %v7584, %v7951
        %v8092 = vadd.f32 %v7589, %v7956
        %v8093 = vadd.f32 %v7592, %v7959
        %v8094 = vadd.f32 %v7597, %v7964
        %v8095 = vadd.f32 %v7600, %v7967
        %v8096 = vadd.f32 %v7605, %v7972
        %v8097 = vadd.f32 %v7608, %v7975
        %v8098 = vadd.f32 %v7613, %v7980
        %v8099 = vadd.f32 %v7616, %v7983
        %v8100 = vadd.f32 %v7621, %v7988
        %v8101 = vadd.f32 %v7624, %v7991
        %v8102 = vadd.f32 %v7629, %v7996
        %v8103 = vadd.f32 %v7632, %v7999
        %v8104 = vadd.f32 %v7637, %v8004
        %v8105 = vadd.f32 %v7640, %v8007
        %v8106 = vadd.f32 %v7645, %v8012
        %v8107 = vadd.f32 %v7648, %v8015
        %v8108 = vadd.f32 %v7653, %v8020
        %v8109 = vadd.f32 %v7656, %v8023
        %v8110 = vadd.f32 %v7661, %v8028
        %v8111 = vadd.f32 %v7664, %v8031
        %v8112 = vadd.f32 %v7669, %v8036
        %v8113 = vadd.f32 %v7672, %v8039
        %v8114 = vadd.f32 %v7677, %v8044
        %v8115 = vadd.f32 %v7680, %v8047
        %v8116 = vadd.f32 %v7685, %v8052
        %v8117 = vadd.f32 %v7688, %v8055
        %v8118 = vadd.f32 %v7693, %v8060
        %v8119 = vadd.f32 %v7696, %v8063
        %v8120 = vadd.f32 %v7701, %v8068
        %v8121 = vadd.f32 %v7704, %v8071
        %v8122 = vld [vmem:[#allocation2 + $0xc] sm:$0xf]
        %v8123 = vld [vmem:[#allocation2 + $0x10] sm:$0xf]
        %v8124 = vld [vmem:[#allocation2 + $0x14] sm:$0xf]
        %v8125 = vld [vmem:[#allocation2 + $0x18] sm:$0xf]
        %v8126 = vld [vmem:[#allocation2 + $0x1c] sm:$0xf]
        %v8127 = vld [vmem:[#allocation2 + $0x20] sm:$0xf]
        %v8128 = vld [vmem:[#allocation2 + $0x24] sm:$0xf]
        %v8129 = vld [vmem:[#allocation2 + $0x28] sm:$0xf]
        %v8130 = vld [vmem:[#allocation2 + $0x2c] sm:$0xf]
        %v8131 = vld [vmem:[#allocation2 + $0x30] sm:$0xf]
        %v8132 = vld [vmem:[#allocation2 + $0x34] sm:$0xf]
        %v8133 = vld [vmem:[#allocation2 + $0x38] sm:$0xf]
        %v8134 = vld [vmem:[#allocation2 + $0x3c] sm:$0xf]
        %v8135 = vld [vmem:[#allocation2 + $0x40] sm:$0xf]
        %v8136 = vld [vmem:[#allocation2 + $0x44] sm:$0xf]
        %v8137 = vld [vmem:[#allocation2 + $0x48] sm:$0xf]
        %v8138 = vld [vmem:[#allocation2 + $0x4c] sm:$0xf]
        %v8139 = vld [vmem:[#allocation2 + $0x50] sm:$0xf]
        %v8140 = vld [vmem:[#allocation2 + $0x54] sm:$0xf]
        %v8141 = vld [vmem:[#allocation2 + $0x58] sm:$0xf]
        %v8142 = vld [vmem:[#allocation2 + $0x5c] sm:$0xf]
        %v8143 = vld [vmem:[#allocation2 + $0x60] sm:$0xf]
        %v8144 = vld [vmem:[#allocation2 + $0x64] sm:$0xf]
        %v8145 = vld [vmem:[#allocation2 + $0x68] sm:$0xf]
        %v8146 = vld [vmem:[#allocation2 + $0x6c] sm:$0xf]
        %v8147 = vld [vmem:[#allocation2 + $0x70] sm:$0xf]
        %v8148 = vld [vmem:[#allocation2 + $0x74] sm:$0xf]
        %v8149 = vld [vmem:[#allocation2 + $0x78] sm:$0xf]
        %v8150 = vld [vmem:[#allocation2 + $0x7c] sm:$0xf]
        %v8151 = vld [vmem:[#allocation2 + $0x80] sm:$0xf]
        %v8152 = vld [vmem:[#allocation2 + $0x84] sm:$0xf]
        %v8153 = vld [vmem:[#allocation2 + $0x88] sm:$0xf]
        %v8154 = vld [vmem:[#allocation2 + $0x8c] sm:$0xf]
        %v8155 = vld [vmem:[#allocation2 + $0x90] sm:$0xf]
        %v8156 = vld [vmem:[#allocation2 + $0x94] sm:$0xf]
        %v8157 = vld [vmem:[#allocation2 + $0x98] sm:$0xf]
        %v8158 = vld [vmem:[#allocation2 + $0x9c] sm:$0xf]
        %v8159 = vld [vmem:[#allocation2 + $0xa0] sm:$0xf]
        %v8160 = vld [vmem:[#allocation2 + $0xa4] sm:$0xf]
        %v8161 = vld [vmem:[#allocation2 + $0xa8] sm:$0xf]
        %v8162 = vld [vmem:[#allocation2 + $0xac] sm:$0xf]
        %v8163 = vld [vmem:[#allocation2 + $0xb0] sm:$0xf]
        %v8164 = vld [vmem:[#allocation2 + $0xb4] sm:$0xf]
        %v8165 = vld [vmem:[#allocation2 + $0xb8] sm:$0xf]
        %v8166 = vld [vmem:[#allocation2 + $0xbc] sm:$0xf]
        %v8167 = vld [vmem:[#allocation2 + $0xc0] sm:$0xf]
        %v8168 = vld [vmem:[#allocation2 + $0xc4] sm:$0xf]
        %v8169 = vld [vmem:[#allocation2 + $0xc8] sm:$0xf]
        %s8170 = scalar_lea.vmem [#allocation8], 192
        %v8171 = vld [vmem:[%s8170] sm:$0xf]
        %v8172 = vld [vmem:[%s8170 + $0x4] sm:$0xf]
        %v8173 = vld [vmem:[%s8170 + $0x8] sm:$0xf]
        %v8174 = vld [vmem:[%s8170 + $0xc] sm:$0xf]
        %v8175 = vld [vmem:[%s8170 + $0x10] sm:$0xf]
        %v8176 = vld [vmem:[%s8170 + $0x14] sm:$0xf]
        %v8177 = vld [vmem:[%s8170 + $0x18] sm:$0xf]
        %v8178 = vld [vmem:[%s8170 + $0x1c] sm:$0xf]
        %v8179 = vld [vmem:[%s8170 + $0x20] sm:$0xf]
        %v8180 = vld [vmem:[%s8170 + $0x24] sm:$0xf]
        %v8181 = vld [vmem:[%s8170 + $0x28] sm:$0xf]
        %v8182 = vld [vmem:[%s8170 + $0x2c] sm:$0xf]
        %v8183 = vld [vmem:[%s8170 + $0x30] sm:$0xf]
        %v8184 = vld [vmem:[%s8170 + $0x34] sm:$0xf]
        %v8185 = vld [vmem:[%s8170 + $0x38] sm:$0xf]
        %v8186 = vld [vmem:[%s8170 + $0x3c] sm:$0xf]
        %v8235 = vunpack.c.l.b16 %v8122
        %v8236 = vunpack.c.l.b16 %v8123
        %v8237 = vunpack.c.l.b16 %v8124
        %v8238 = vunpack.c.l.b16 %v8125
        %v8239 = vunpack.c.l.b16 %v8126
        %v8240 = vunpack.c.l.b16 %v8127
        %v8241 = vunpack.c.l.b16 %v8128
        %v8242 = vunpack.c.l.b16 %v8129
        %v8243 = vunpack.c.l.b16 %v8130
        %v8244 = vunpack.c.l.b16 %v8131
        %v8245 = vunpack.c.l.b16 %v8132
        %v8246 = vunpack.c.l.b16 %v8133
        %v8247 = vunpack.c.l.b16 %v8134
        %v8248 = vunpack.c.l.b16 %v8135
        %v8249 = vunpack.c.l.b16 %v8136
        %v8250 = vunpack.c.l.b16 %v8137
        %v8251 = vunpack.c.l.b16 %v8138
        %v8252 = vunpack.c.l.b16 %v8139
        %v8253 = vunpack.c.l.b16 %v8140
        %v8254 = vunpack.c.l.b16 %v8141
        %v8255 = vunpack.c.l.b16 %v8142
        %v8256 = vunpack.c.l.b16 %v8143
        %v8257 = vunpack.c.l.b16 %v8144
        %v8258 = vunpack.c.l.b16 %v8145
        %v8259 = vunpack.c.l.b16 %v8146
        %v8260 = vunpack.c.l.b16 %v8147
        %v8261 = vunpack.c.l.b16 %v8148
        %v8262 = vunpack.c.l.b16 %v8149
        %v8263 = vunpack.c.l.b16 %v8150
        %v8264 = vunpack.c.l.b16 %v8151
        %v8265 = vunpack.c.l.b16 %v8152
        %v8266 = vunpack.c.l.b16 %v8153
        %v8267 = vunpack.c.l.b16 %v8154
        %v8268 = vunpack.c.l.b16 %v8155
        %v8269 = vunpack.c.l.b16 %v8156
        %v8270 = vunpack.c.l.b16 %v8157
        %v8271 = vunpack.c.l.b16 %v8158
        %v8272 = vunpack.c.l.b16 %v8159
        %v8273 = vunpack.c.l.b16 %v8160
        %v8274 = vunpack.c.l.b16 %v8161
        %v8275 = vunpack.c.l.b16 %v8162
        %v8276 = vunpack.c.l.b16 %v8163
        %v8277 = vunpack.c.l.b16 %v8164
        %v8278 = vunpack.c.l.b16 %v8165
        %v8279 = vunpack.c.l.b16 %v8166
        %v8280 = vunpack.c.l.b16 %v8167
        %v8281 = vunpack.c.l.b16 %v8168
        %v8282 = vunpack.c.l.b16 %v8169
        %v8283 = vpack.c.b16 %v8236, %v8235
        %v8284 = vpack.c.b16 %v8238, %v8237
        %v8285 = vpack.c.b16 %v8240, %v8239
        %v8286 = vpack.c.b16 %v8242, %v8241
        %v8287 = vpack.c.b16 %v8244, %v8243
        %v8288 = vpack.c.b16 %v8246, %v8245
        %v8289 = vpack.c.b16 %v8248, %v8247
        %v8290 = vpack.c.b16 %v8250, %v8249
        %v8291 = vpack.c.b16 %v8252, %v8251
        %v8292 = vpack.c.b16 %v8254, %v8253
        %v8293 = vpack.c.b16 %v8256, %v8255
        %v8294 = vpack.c.b16 %v8258, %v8257
        %v8295 = vpack.c.b16 %v8260, %v8259
        %v8296 = vpack.c.b16 %v8262, %v8261
        %v8297 = vpack.c.b16 %v8264, %v8263
        %v8298 = vpack.c.b16 %v8266, %v8265
        %v8299 = vpack.c.b16 %v8268, %v8267
        %v8300 = vpack.c.b16 %v8270, %v8269
        %v8301 = vpack.c.b16 %v8272, %v8271
        %v8302 = vpack.c.b16 %v8274, %v8273
        %v8303 = vpack.c.b16 %v8276, %v8275
        %v8304 = vpack.c.b16 %v8278, %v8277
        %v8305 = vpack.c.b16 %v8280, %v8279
        %v8306 = vpack.c.b16 %v8282, %v8281
        %v8347 = vunpack.c.l.b16 %v8171
        %v8348 = vunpack.c.l.b16 %v8172
        %v8349 = vunpack.c.l.b16 %v8173
        %v8350 = vunpack.c.l.b16 %v8174
        %v8351 = vunpack.c.l.b16 %v8175
        %v8352 = vunpack.c.l.b16 %v8176
        %v8353 = vunpack.c.l.b16 %v8177
        %v8354 = vunpack.c.l.b16 %v8178
        %v8355 = vunpack.c.l.b16 %v8179
        %v8356 = vunpack.c.l.b16 %v8180
        %v8357 = vunpack.c.l.b16 %v8181
        %v8358 = vunpack.c.l.b16 %v8182
        %v8359 = vunpack.c.l.b16 %v8183
        %v8360 = vunpack.c.l.b16 %v8184
        %v8361 = vunpack.c.l.b16 %v8185
        %v8362 = vunpack.c.l.b16 %v8186
        %v8363 = vpack.c.b16 %v8348, %v8347
        %v8364 = vpack.c.b16 %v8350, %v8349
        %v8365 = vpack.c.b16 %v8352, %v8351
        %v8366 = vpack.c.b16 %v8354, %v8353
        %v8367 = vpack.c.b16 %v8356, %v8355
        %v8368 = vpack.c.b16 %v8358, %v8357
        %v8369 = vpack.c.b16 %v8360, %v8359
        %v8370 = vpack.c.b16 %v8362, %v8361
        %8379 = vmatprep.subr.bf16.mxu0 0
        %8380 = vmatpush1.bf16.msra.mxu0 %v8370
        %8381 = vmatprep.subr.bf16.mxu0 0
        %8382 = vmatpush1.bf16.msra.mxu0 %v8369
        %8383 = vmatprep.subr.bf16.mxu0 0
        %8384 = vmatpush1.bf16.msra.mxu0 %v8368
        %8385 = vmatprep.subr.bf16.mxu0 0
        %8386 = vmatpush1.bf16.msra.mxu0 %v8367
        %8387 = vmatprep.subr.bf16.mxu0 0
        %8388 = vmatpush1.bf16.msra.mxu0 %v8366
        %8389 = vmatprep.subr.bf16.mxu0 0
        %8390 = vmatpush1.bf16.msra.mxu0 %v8365
        %8391 = vmatprep.subr.bf16.mxu0 0
        %8392 = vmatpush1.bf16.msra.mxu0 %v8364
        %8393 = vmatprep.subr.bf16.mxu0 0
        %8394 = vmatpush1.bf16.msra.mxu0 %v8363
        %8395 = vmatprep.subr.bf16.mxu0 0
        %8396 = vmatpush2.bf16.msra.mxu0 0
        %8397 = vmatprep.subr.bf16.mxu0 0
        %8398 = vmatpush2.bf16.msra.mxu0 0
        %8399 = vmatprep.subr.bf16.mxu0 0
        %8400 = vmatpush2.bf16.msra.mxu0 0
        %8401 = vmatprep.subr.bf16.mxu0 0
        %8402 = vmatpush2.bf16.msra.mxu0 0
        %8403 = vmatprep.subr.bf16.mxu0 0
        %8404 = vmatpush2.bf16.msra.mxu0 0
        %8405 = vmatprep.subr.bf16.mxu0 0
        %8406 = vmatpush2.bf16.msra.mxu0 0
        %8407 = vmatprep.subr.bf16.mxu0 0
        %8408 = vmatpush2.bf16.msra.mxu0 0
        %8409 = vmatprep.subr.bf16.mxu0 0
        %8410 = vmatpush2.bf16.msra.mxu0 0
        %8411 = vmatprep.mubr.bf16.mxu0 0
        %8412 = vmatmul.mubr.bf16.gmra.mxu0 %v8283
        %v8413 = vpop.f32.mrf.mxu0
        %v8414 = vadd.f32 0.0, %v8413
        %v8415 = vpop.f32.mrf.mxu0
        %v8416 = vpop.f32.mrf.mxu0
        %v8417 = vadd.f32 0.0, %v8416
        %v8418 = vpop.f32.mrf.mxu0
        %8419 = vmatprep.mubr.bf16.mxu0 0
        %8420 = vmatmul.mubr.bf16.gmra.mxu0 %v8284
        %v8421 = vpop.f32.mrf.mxu0
        %v8422 = vadd.f32 0.0, %v8421
        %v8423 = vpop.f32.mrf.mxu0
        %v8424 = vpop.f32.mrf.mxu0
        %v8425 = vadd.f32 0.0, %v8424
        %v8426 = vpop.f32.mrf.mxu0
        %8427 = vmatprep.mubr.bf16.mxu0 0
        %8428 = vmatmul.mubr.bf16.gmra.mxu0 %v8285
        %v8429 = vpop.f32.mrf.mxu0
        %v8430 = vadd.f32 0.0, %v8429
        %v8431 = vpop.f32.mrf.mxu0
        %v8432 = vpop.f32.mrf.mxu0
        %v8433 = vadd.f32 0.0, %v8432
        %v8434 = vpop.f32.mrf.mxu0
        %8435 = vmatprep.mubr.bf16.mxu0 0
        %8436 = vmatmul.mubr.bf16.gmra.mxu0 %v8286
        %v8437 = vpop.f32.mrf.mxu0
        %v8438 = vadd.f32 0.0, %v8437
        %v8439 = vpop.f32.mrf.mxu0
        %v8440 = vpop.f32.mrf.mxu0
        %v8441 = vadd.f32 0.0, %v8440
        %v8442 = vpop.f32.mrf.mxu0
        %8443 = vmatprep.mubr.bf16.mxu0 0
        %8444 = vmatmul.mubr.bf16.gmra.mxu0 %v8287
        %v8445 = vpop.f32.mrf.mxu0
        %v8446 = vadd.f32 0.0, %v8445
        %v8447 = vpop.f32.mrf.mxu0
        %v8448 = vpop.f32.mrf.mxu0
        %v8449 = vadd.f32 0.0, %v8448
        %v8450 = vpop.f32.mrf.mxu0
        %8451 = vmatprep.mubr.bf16.mxu0 0
        %8452 = vmatmul.mubr.bf16.gmra.mxu0 %v8288
        %v8453 = vpop.f32.mrf.mxu0
        %v8454 = vadd.f32 0.0, %v8453
        %v8455 = vpop.f32.mrf.mxu0
        %v8456 = vpop.f32.mrf.mxu0
        %v8457 = vadd.f32 0.0, %v8456
        %v8458 = vpop.f32.mrf.mxu0
        %8459 = vmatprep.mubr.bf16.mxu0 0
        %8460 = vmatmul.mubr.bf16.gmra.mxu0 %v8289
        %v8461 = vpop.f32.mrf.mxu0
        %v8462 = vadd.f32 0.0, %v8461
        %v8463 = vpop.f32.mrf.mxu0
        %v8464 = vpop.f32.mrf.mxu0
        %v8465 = vadd.f32 0.0, %v8464
        %v8466 = vpop.f32.mrf.mxu0
        %8467 = vmatprep.mubr.bf16.mxu0 0
        %8468 = vmatmul.mubr.bf16.gmra.mxu0 %v8290
        %v8469 = vpop.f32.mrf.mxu0
        %v8470 = vadd.f32 0.0, %v8469
        %v8471 = vpop.f32.mrf.mxu0
        %v8472 = vpop.f32.mrf.mxu0
        %v8473 = vadd.f32 0.0, %v8472
        %v8474 = vpop.f32.mrf.mxu0
        %8475 = vmatprep.mubr.bf16.mxu0 0
        %8476 = vmatmul.mubr.bf16.gmra.mxu0 %v8291
        %v8477 = vpop.f32.mrf.mxu0
        %v8478 = vadd.f32 0.0, %v8477
        %v8479 = vpop.f32.mrf.mxu0
        %v8480 = vpop.f32.mrf.mxu0
        %v8481 = vadd.f32 0.0, %v8480
        %v8482 = vpop.f32.mrf.mxu0
        %8483 = vmatprep.mubr.bf16.mxu0 0
        %8484 = vmatmul.mubr.bf16.gmra.mxu0 %v8292
        %v8485 = vpop.f32.mrf.mxu0
        %v8486 = vadd.f32 0.0, %v8485
        %v8487 = vpop.f32.mrf.mxu0
        %v8488 = vpop.f32.mrf.mxu0
        %v8489 = vadd.f32 0.0, %v8488
        %v8490 = vpop.f32.mrf.mxu0
        %8491 = vmatprep.mubr.bf16.mxu0 0
        %8492 = vmatmul.mubr.bf16.gmra.mxu0 %v8293
        %v8493 = vpop.f32.mrf.mxu0
        %v8494 = vadd.f32 0.0, %v8493
        %v8495 = vpop.f32.mrf.mxu0
        %v8496 = vpop.f32.mrf.mxu0
        %v8497 = vadd.f32 0.0, %v8496
        %v8498 = vpop.f32.mrf.mxu0
        %8499 = vmatprep.mubr.bf16.mxu0 0
        %8500 = vmatmul.mubr.bf16.gmra.mxu0 %v8294
        %v8501 = vpop.f32.mrf.mxu0
        %v8502 = vadd.f32 0.0, %v8501
        %v8503 = vpop.f32.mrf.mxu0
        %v8504 = vpop.f32.mrf.mxu0
        %v8505 = vadd.f32 0.0, %v8504
        %v8506 = vpop.f32.mrf.mxu0
        %8507 = vmatprep.mubr.bf16.mxu0 0
        %8508 = vmatmul.mubr.bf16.gmra.mxu0 %v8295
        %v8509 = vpop.f32.mrf.mxu0
        %v8510 = vadd.f32 0.0, %v8509
        %v8511 = vpop.f32.mrf.mxu0
        %v8512 = vpop.f32.mrf.mxu0
        %v8513 = vadd.f32 0.0, %v8512
        %v8514 = vpop.f32.mrf.mxu0
        %8515 = vmatprep.mubr.bf16.mxu0 0
        %8516 = vmatmul.mubr.bf16.gmra.mxu0 %v8296
        %v8517 = vpop.f32.mrf.mxu0
        %v8518 = vadd.f32 0.0, %v8517
        %v8519 = vpop.f32.mrf.mxu0
        %v8520 = vpop.f32.mrf.mxu0
        %v8521 = vadd.f32 0.0, %v8520
        %v8522 = vpop.f32.mrf.mxu0
        %8523 = vmatprep.mubr.bf16.mxu0 0
        %8524 = vmatmul.mubr.bf16.gmra.mxu0 %v8297
        %v8525 = vpop.f32.mrf.mxu0
        %v8526 = vadd.f32 0.0, %v8525
        %v8527 = vpop.f32.mrf.mxu0
        %v8528 = vpop.f32.mrf.mxu0
        %v8529 = vadd.f32 0.0, %v8528
        %v8530 = vpop.f32.mrf.mxu0
        %8531 = vmatprep.mubr.bf16.mxu0 0
        %8532 = vmatmul.mubr.bf16.gmra.mxu0 %v8298
        %v8533 = vpop.f32.mrf.mxu0
        %v8534 = vadd.f32 0.0, %v8533
        %v8535 = vpop.f32.mrf.mxu0
        %v8536 = vpop.f32.mrf.mxu0
        %v8537 = vadd.f32 0.0, %v8536
        %v8538 = vpop.f32.mrf.mxu0
        %8539 = vmatprep.mubr.bf16.mxu0 0
        %8540 = vmatmul.mubr.bf16.gmra.mxu0 %v8299
        %v8541 = vpop.f32.mrf.mxu0
        %v8542 = vadd.f32 0.0, %v8541
        %v8543 = vpop.f32.mrf.mxu0
        %v8544 = vpop.f32.mrf.mxu0
        %v8545 = vadd.f32 0.0, %v8544
        %v8546 = vpop.f32.mrf.mxu0
        %8547 = vmatprep.mubr.bf16.mxu0 0
        %8548 = vmatmul.mubr.bf16.gmra.mxu0 %v8300
        %v8549 = vpop.f32.mrf.mxu0
        %v8550 = vadd.f32 0.0, %v8549
        %v8551 = vpop.f32.mrf.mxu0
        %v8552 = vpop.f32.mrf.mxu0
        %v8553 = vadd.f32 0.0, %v8552
        %v8554 = vpop.f32.mrf.mxu0
        %8555 = vmatprep.mubr.bf16.mxu0 0
        %8556 = vmatmul.mubr.bf16.gmra.mxu0 %v8301
        %v8557 = vpop.f32.mrf.mxu0
        %v8558 = vadd.f32 0.0, %v8557
        %v8559 = vpop.f32.mrf.mxu0
        %v8560 = vpop.f32.mrf.mxu0
        %v8561 = vadd.f32 0.0, %v8560
        %v8562 = vpop.f32.mrf.mxu0
        %8563 = vmatprep.mubr.bf16.mxu0 0
        %8564 = vmatmul.mubr.bf16.gmra.mxu0 %v8302
        %v8565 = vpop.f32.mrf.mxu0
        %v8566 = vadd.f32 0.0, %v8565
        %v8567 = vpop.f32.mrf.mxu0
        %v8568 = vpop.f32.mrf.mxu0
        %v8569 = vadd.f32 0.0, %v8568
        %v8570 = vpop.f32.mrf.mxu0
        %8571 = vmatprep.mubr.bf16.mxu0 0
        %8572 = vmatmul.mubr.bf16.gmra.mxu0 %v8303
        %v8573 = vpop.f32.mrf.mxu0
        %v8574 = vadd.f32 0.0, %v8573
        %v8575 = vpop.f32.mrf.mxu0
        %v8576 = vpop.f32.mrf.mxu0
        %v8577 = vadd.f32 0.0, %v8576
        %v8578 = vpop.f32.mrf.mxu0
        %8579 = vmatprep.mubr.bf16.mxu0 0
        %8580 = vmatmul.mubr.bf16.gmra.mxu0 %v8304
        %v8581 = vpop.f32.mrf.mxu0
        %v8582 = vadd.f32 0.0, %v8581
        %v8583 = vpop.f32.mrf.mxu0
        %v8584 = vpop.f32.mrf.mxu0
        %v8585 = vadd.f32 0.0, %v8584
        %v8586 = vpop.f32.mrf.mxu0
        %8587 = vmatprep.mubr.bf16.mxu0 0
        %8588 = vmatmul.mubr.bf16.gmra.mxu0 %v8305
        %v8589 = vpop.f32.mrf.mxu0
        %v8590 = vadd.f32 0.0, %v8589
        %v8591 = vpop.f32.mrf.mxu0
        %v8592 = vpop.f32.mrf.mxu0
        %v8593 = vadd.f32 0.0, %v8592
        %v8594 = vpop.f32.mrf.mxu0
        %8595 = vmatprep.mubr.bf16.mxu0 0
        %8596 = vmatmul.mubr.bf16.gmra.mxu0 %v8306
        %v8597 = vpop.f32.mrf.mxu0
        %v8598 = vadd.f32 0.0, %v8597
        %v8599 = vpop.f32.mrf.mxu0
        %v8600 = vpop.f32.mrf.mxu0
        %v8601 = vadd.f32 0.0, %v8600
        %v8602 = vpop.f32.mrf.mxu0
        %8603 = vdwg.mxu0
        %v8604 = vadd.f32 %v8074, %v8414
        %v8605 = vadd.f32 %v8075, %v8417
        %v8606 = vadd.f32 %v8076, %v8422
        %v8607 = vadd.f32 %v8077, %v8425
        %v8608 = vadd.f32 %v8078, %v8430
        %v8609 = vadd.f32 %v8079, %v8433
        %v8610 = vadd.f32 %v8080, %v8438
        %v8611 = vadd.f32 %v8081, %v8441
        %v8612 = vadd.f32 %v8082, %v8446
        %v8613 = vadd.f32 %v8083, %v8449
        %v8614 = vadd.f32 %v8084, %v8454
        %v8615 = vadd.f32 %v8085, %v8457
        %v8616 = vadd.f32 %v8086, %v8462
        %v8617 = vadd.f32 %v8087, %v8465
        %v8618 = vadd.f32 %v8088, %v8470
        %v8619 = vadd.f32 %v8089, %v8473
        %v8620 = vadd.f32 %v8090, %v8478
        %v8621 = vadd.f32 %v8091, %v8481
        %v8622 = vadd.f32 %v8092, %v8486
        %v8623 = vadd.f32 %v8093, %v8489
        %v8624 = vadd.f32 %v8094, %v8494
        %v8625 = vadd.f32 %v8095, %v8497
        %v8626 = vadd.f32 %v8096, %v8502
        %v8627 = vadd.f32 %v8097, %v8505
        %v8628 = vadd.f32 %v8098, %v8510
        %v8629 = vadd.f32 %v8099, %v8513
        %v8630 = vadd.f32 %v8100, %v8518
        %v8631 = vadd.f32 %v8101, %v8521
        %v8632 = vadd.f32 %v8102, %v8526
        %v8633 = vadd.f32 %v8103, %v8529
        %v8634 = vadd.f32 %v8104, %v8534
        %v8635 = vadd.f32 %v8105, %v8537
        %v8636 = vadd.f32 %v8106, %v8542
        %v8637 = vadd.f32 %v8107, %v8545
        %v8638 = vadd.f32 %v8108, %v8550
        %v8639 = vadd.f32 %v8109, %v8553
        %v8640 = vadd.f32 %v8110, %v8558
        %v8641 = vadd.f32 %v8111, %v8561
        %v8642 = vadd.f32 %v8112, %v8566
        %v8643 = vadd.f32 %v8113, %v8569
        %v8644 = vadd.f32 %v8114, %v8574
        %v8645 = vadd.f32 %v8115, %v8577
        %v8646 = vadd.f32 %v8116, %v8582
        %v8647 = vadd.f32 %v8117, %v8585
        %v8648 = vadd.f32 %v8118, %v8590
        %v8649 = vadd.f32 %v8119, %v8593
        %v8650 = vadd.f32 %v8120, %v8598
        %v8651 = vadd.f32 %v8121, %v8601
        %v8652 = vld [vmem:[#allocation2 + $0xc] sm:$0xf]
        %v8653 = vld [vmem:[#allocation2 + $0x10] sm:$0xf]
        %v8654 = vld [vmem:[#allocation2 + $0x14] sm:$0xf]
        %v8655 = vld [vmem:[#allocation2 + $0x18] sm:$0xf]
        %v8656 = vld [vmem:[#allocation2 + $0x1c] sm:$0xf]
        %v8657 = vld [vmem:[#allocation2 + $0x20] sm:$0xf]
        %v8658 = vld [vmem:[#allocation2 + $0x24] sm:$0xf]
        %v8659 = vld [vmem:[#allocation2 + $0x28] sm:$0xf]
        %v8660 = vld [vmem:[#allocation2 + $0x2c] sm:$0xf]
        %v8661 = vld [vmem:[#allocation2 + $0x30] sm:$0xf]
        %v8662 = vld [vmem:[#allocation2 + $0x34] sm:$0xf]
        %v8663 = vld [vmem:[#allocation2 + $0x38] sm:$0xf]
        %v8664 = vld [vmem:[#allocation2 + $0x3c] sm:$0xf]
        %v8665 = vld [vmem:[#allocation2 + $0x40] sm:$0xf]
        %v8666 = vld [vmem:[#allocation2 + $0x44] sm:$0xf]
        %v8667 = vld [vmem:[#allocation2 + $0x48] sm:$0xf]
        %v8668 = vld [vmem:[#allocation2 + $0x4c] sm:$0xf]
        %v8669 = vld [vmem:[#allocation2 + $0x50] sm:$0xf]
        %v8670 = vld [vmem:[#allocation2 + $0x54] sm:$0xf]
        %v8671 = vld [vmem:[#allocation2 + $0x58] sm:$0xf]
        %v8672 = vld [vmem:[#allocation2 + $0x5c] sm:$0xf]
        %v8673 = vld [vmem:[#allocation2 + $0x60] sm:$0xf]
        %v8674 = vld [vmem:[#allocation2 + $0x64] sm:$0xf]
        %v8675 = vld [vmem:[#allocation2 + $0x68] sm:$0xf]
        %v8676 = vld [vmem:[#allocation2 + $0x6c] sm:$0xf]
        %v8677 = vld [vmem:[#allocation2 + $0x70] sm:$0xf]
        %v8678 = vld [vmem:[#allocation2 + $0x74] sm:$0xf]
        %v8679 = vld [vmem:[#allocation2 + $0x78] sm:$0xf]
        %v8680 = vld [vmem:[#allocation2 + $0x7c] sm:$0xf]
        %v8681 = vld [vmem:[#allocation2 + $0x80] sm:$0xf]
        %v8682 = vld [vmem:[#allocation2 + $0x84] sm:$0xf]
        %v8683 = vld [vmem:[#allocation2 + $0x88] sm:$0xf]
        %v8684 = vld [vmem:[#allocation2 + $0x8c] sm:$0xf]
        %v8685 = vld [vmem:[#allocation2 + $0x90] sm:$0xf]
        %v8686 = vld [vmem:[#allocation2 + $0x94] sm:$0xf]
        %v8687 = vld [vmem:[#allocation2 + $0x98] sm:$0xf]
        %v8688 = vld [vmem:[#allocation2 + $0x9c] sm:$0xf]
        %v8689 = vld [vmem:[#allocation2 + $0xa0] sm:$0xf]
        %v8690 = vld [vmem:[#allocation2 + $0xa4] sm:$0xf]
        %v8691 = vld [vmem:[#allocation2 + $0xa8] sm:$0xf]
        %v8692 = vld [vmem:[#allocation2 + $0xac] sm:$0xf]
        %v8693 = vld [vmem:[#allocation2 + $0xb0] sm:$0xf]
        %v8694 = vld [vmem:[#allocation2 + $0xb4] sm:$0xf]
        %v8695 = vld [vmem:[#allocation2 + $0xb8] sm:$0xf]
        %v8696 = vld [vmem:[#allocation2 + $0xbc] sm:$0xf]
        %v8697 = vld [vmem:[#allocation2 + $0xc0] sm:$0xf]
        %v8698 = vld [vmem:[#allocation2 + $0xc4] sm:$0xf]
        %v8699 = vld [vmem:[#allocation2 + $0xc8] sm:$0xf]
        %v8700 = vld [vmem:[#allocation2 + $0xcc] sm:$0x1]
        %s8701 = scalar_lea.vmem [#allocation8], 256
        %v8702 = vld [vmem:[%s8701] sm:$0xf]
        %v8703 = vld [vmem:[%s8701 + $0x4] sm:$0xf]
        %v8704 = vld [vmem:[%s8701 + $0x8] sm:$0xf]
        %v8705 = vld [vmem:[%s8701 + $0xc] sm:$0xf]
        %v8706 = vld [vmem:[%s8701 + $0x10] sm:$0xf]
        %v8707 = vld [vmem:[%s8701 + $0x14] sm:$0xf]
        %v8708 = vld [vmem:[%s8701 + $0x18] sm:$0xf]
        %v8709 = vld [vmem:[%s8701 + $0x1c] sm:$0xf]
        %v8710 = vld [vmem:[%s8701 + $0x20] sm:$0xf]
        %v8711 = vld [vmem:[%s8701 + $0x24] sm:$0xf]
        %v8712 = vld [vmem:[%s8701 + $0x28] sm:$0xf]
        %v8713 = vld [vmem:[%s8701 + $0x2c] sm:$0xf]
        %v8714 = vld [vmem:[%s8701 + $0x30] sm:$0xf]
        %v8715 = vld [vmem:[%s8701 + $0x34] sm:$0xf]
        %v8716 = vld [vmem:[%s8701 + $0x38] sm:$0xf]
        %v8717 = vld [vmem:[%s8701 + $0x3c] sm:$0xf]
        %v8767 = vunpack.c.l.b16 %v8652
        %v8768 = vunpack.c.l.b16 %v8653
        %v8769 = vunpack.c.l.b16 %v8654
        %v8770 = vunpack.c.l.b16 %v8655
        %v8771 = vunpack.c.l.b16 %v8656
        %v8772 = vunpack.c.l.b16 %v8657
        %v8773 = vunpack.c.l.b16 %v8658
        %v8774 = vunpack.c.l.b16 %v8659
        %v8775 = vunpack.c.l.b16 %v8660
        %v8776 = vunpack.c.l.b16 %v8661
        %v8777 = vunpack.c.l.b16 %v8662
        %v8778 = vunpack.c.l.b16 %v8663
        %v8779 = vunpack.c.l.b16 %v8664
        %v8780 = vunpack.c.l.b16 %v8665
        %v8781 = vunpack.c.l.b16 %v8666
        %v8782 = vunpack.c.l.b16 %v8667
        %v8783 = vunpack.c.l.b16 %v8668
        %v8784 = vunpack.c.l.b16 %v8669
        %v8785 = vunpack.c.l.b16 %v8670
        %v8786 = vunpack.c.l.b16 %v8671
        %v8787 = vunpack.c.l.b16 %v8672
        %v8788 = vunpack.c.l.b16 %v8673
        %v8789 = vunpack.c.l.b16 %v8674
        %v8790 = vunpack.c.l.b16 %v8675
        %v8791 = vunpack.c.l.b16 %v8676
        %v8792 = vunpack.c.l.b16 %v8677
        %v8793 = vunpack.c.l.b16 %v8678
        %v8794 = vunpack.c.l.b16 %v8679
        %v8795 = vunpack.c.l.b16 %v8680
        %v8796 = vunpack.c.l.b16 %v8681
        %v8797 = vunpack.c.l.b16 %v8682
        %v8798 = vunpack.c.l.b16 %v8683
        %v8799 = vunpack.c.l.b16 %v8684
        %v8800 = vunpack.c.l.b16 %v8685
        %v8801 = vunpack.c.l.b16 %v8686
        %v8802 = vunpack.c.l.b16 %v8687
        %v8803 = vunpack.c.l.b16 %v8688
        %v8804 = vunpack.c.l.b16 %v8689
        %v8805 = vunpack.c.l.b16 %v8690
        %v8806 = vunpack.c.l.b16 %v8691
        %v8807 = vunpack.c.l.b16 %v8692
        %v8808 = vunpack.c.l.b16 %v8693
        %v8809 = vunpack.c.l.b16 %v8694
        %v8810 = vunpack.c.l.b16 %v8695
        %v8811 = vunpack.c.l.b16 %v8696
        %v8812 = vunpack.c.l.b16 %v8697
        %v8813 = vunpack.c.l.b16 %v8698
        %v8814 = vunpack.c.l.b16 %v8699
        %v8815 = vunpack.c.l.b16 %v8700
        %v8816 = vpack.c.b16 %v8768, %v8767
        %v8817 = vpack.c.b16 %v8770, %v8769
        %v8818 = vpack.c.b16 %v8772, %v8771
        %v8819 = vpack.c.b16 %v8774, %v8773
        %v8820 = vpack.c.b16 %v8776, %v8775
        %v8821 = vpack.c.b16 %v8778, %v8777
        %v8822 = vpack.c.b16 %v8780, %v8779
        %v8823 = vpack.c.b16 %v8782, %v8781
        %v8824 = vpack.c.b16 %v8784, %v8783
        %v8825 = vpack.c.b16 %v8786, %v8785
        %v8826 = vpack.c.b16 %v8788, %v8787
        %v8827 = vpack.c.b16 %v8790, %v8789
        %v8828 = vpack.c.b16 %v8792, %v8791
        %v8829 = vpack.c.b16 %v8794, %v8793
        %v8830 = vpack.c.b16 %v8796, %v8795
        %v8831 = vpack.c.b16 %v8798, %v8797
        %v8832 = vpack.c.b16 %v8800, %v8799
        %v8833 = vpack.c.b16 %v8802, %v8801
        %v8834 = vpack.c.b16 %v8804, %v8803
        %v8835 = vpack.c.b16 %v8806, %v8805
        %v8836 = vpack.c.b16 %v8808, %v8807
        %v8837 = vpack.c.b16 %v8810, %v8809
        %v8838 = vpack.c.b16 %v8812, %v8811
        %v8839 = vpack.c.b16 %v8814, %v8813
        %v8840 = vpack.c.b16 %v8815, %v8815
        %v8842 = vshrl.u32 %v8816, 16
        %v8844 = vshll.u32 %v8816, 16
        %v8846 = vrot.slane %v8844, 1
        %v8847 = vor.u32 %v8842, %v8846
        %v8849 = vshll.u32 %v8817, 16
        %v8851 = vrot.slane %v8849, 1
        %v8852 = vsel %vm661, %v8847, %v8851
        %v8853 = vshrl.u32 %v8817, 16
        %v8855 = vor.u32 %v8853, %v8851
        %v8857 = vshll.u32 %v8818, 16
        %v8859 = vrot.slane %v8857, 1
        %v8860 = vsel %vm661, %v8855, %v8859
        %v8861 = vshrl.u32 %v8818, 16
        %v8863 = vor.u32 %v8861, %v8859
        %v8865 = vshll.u32 %v8819, 16
        %v8867 = vrot.slane %v8865, 1
        %v8868 = vsel %vm661, %v8863, %v8867
        %v8869 = vshrl.u32 %v8819, 16
        %v8871 = vor.u32 %v8869, %v8867
        %v8873 = vshll.u32 %v8820, 16
        %v8875 = vrot.slane %v8873, 1
        %v8876 = vsel %vm661, %v8871, %v8875
        %v8877 = vshrl.u32 %v8820, 16
        %v8879 = vor.u32 %v8877, %v8875
        %v8881 = vshll.u32 %v8821, 16
        %v8883 = vrot.slane %v8881, 1
        %v8884 = vsel %vm661, %v8879, %v8883
        %v8885 = vshrl.u32 %v8821, 16
        %v8887 = vor.u32 %v8885, %v8883
        %v8889 = vshll.u32 %v8822, 16
        %v8891 = vrot.slane %v8889, 1
        %v8892 = vsel %vm661, %v8887, %v8891
        %v8893 = vshrl.u32 %v8822, 16
        %v8895 = vor.u32 %v8893, %v8891
        %v8897 = vshll.u32 %v8823, 16
        %v8899 = vrot.slane %v8897, 1
        %v8900 = vsel %vm661, %v8895, %v8899
        %v8901 = vshrl.u32 %v8823, 16
        %v8903 = vor.u32 %v8901, %v8899
        %v8905 = vshll.u32 %v8824, 16
        %v8907 = vrot.slane %v8905, 1
        %v8908 = vsel %vm661, %v8903, %v8907
        %v8909 = vshrl.u32 %v8824, 16
        %v8911 = vor.u32 %v8909, %v8907
        %v8913 = vshll.u32 %v8825, 16
        %v8915 = vrot.slane %v8913, 1
        %v8916 = vsel %vm661, %v8911, %v8915
        %v8917 = vshrl.u32 %v8825, 16
        %v8919 = vor.u32 %v8917, %v8915
        %v8921 = vshll.u32 %v8826, 16
        %v8923 = vrot.slane %v8921, 1
        %v8924 = vsel %vm661, %v8919, %v8923
        %v8925 = vshrl.u32 %v8826, 16
        %v8927 = vor.u32 %v8925, %v8923
        %v8929 = vshll.u32 %v8827, 16
        %v8931 = vrot.slane %v8929, 1
        %v8932 = vsel %vm661, %v8927, %v8931
        %v8933 = vshrl.u32 %v8827, 16
        %v8935 = vor.u32 %v8933, %v8931
        %v8937 = vshll.u32 %v8828, 16
        %v8939 = vrot.slane %v8937, 1
        %v8940 = vsel %vm661, %v8935, %v8939
        %v8941 = vshrl.u32 %v8828, 16
        %v8943 = vor.u32 %v8941, %v8939
        %v8945 = vshll.u32 %v8829, 16
        %v8947 = vrot.slane %v8945, 1
        %v8948 = vsel %vm661, %v8943, %v8947
        %v8949 = vshrl.u32 %v8829, 16
        %v8951 = vor.u32 %v8949, %v8947
        %v8953 = vshll.u32 %v8830, 16
        %v8955 = vrot.slane %v8953, 1
        %v8956 = vsel %vm661, %v8951, %v8955
        %v8957 = vshrl.u32 %v8830, 16
        %v8959 = vor.u32 %v8957, %v8955
        %v8961 = vshll.u32 %v8831, 16
        %v8963 = vrot.slane %v8961, 1
        %v8964 = vsel %vm661, %v8959, %v8963
        %v8965 = vshrl.u32 %v8831, 16
        %v8967 = vor.u32 %v8965, %v8963
        %v8969 = vshll.u32 %v8832, 16
        %v8971 = vrot.slane %v8969, 1
        %v8972 = vsel %vm661, %v8967, %v8971
        %v8973 = vshrl.u32 %v8832, 16
        %v8975 = vor.u32 %v8973, %v8971
        %v8977 = vshll.u32 %v8833, 16
        %v8979 = vrot.slane %v8977, 1
        %v8980 = vsel %vm661, %v8975, %v8979
        %v8981 = vshrl.u32 %v8833, 16
        %v8983 = vor.u32 %v8981, %v8979
        %v8985 = vshll.u32 %v8834, 16
        %v8987 = vrot.slane %v8985, 1
        %v8988 = vsel %vm661, %v8983, %v8987
        %v8989 = vshrl.u32 %v8834, 16
        %v8991 = vor.u32 %v8989, %v8987
        %v8993 = vshll.u32 %v8835, 16
        %v8995 = vrot.slane %v8993, 1
        %v8996 = vsel %vm661, %v8991, %v8995
        %v8997 = vshrl.u32 %v8835, 16
        %v8999 = vor.u32 %v8997, %v8995
        %v9001 = vshll.u32 %v8836, 16
        %v9003 = vrot.slane %v9001, 1
        %v9004 = vsel %vm661, %v8999, %v9003
        %v9005 = vshrl.u32 %v8836, 16
        %v9007 = vor.u32 %v9005, %v9003
        %v9009 = vshll.u32 %v8837, 16
        %v9011 = vrot.slane %v9009, 1
        %v9012 = vsel %vm661, %v9007, %v9011
        %v9013 = vshrl.u32 %v8837, 16
        %v9015 = vor.u32 %v9013, %v9011
        %v9017 = vshll.u32 %v8838, 16
        %v9019 = vrot.slane %v9017, 1
        %v9020 = vsel %vm661, %v9015, %v9019
        %v9021 = vshrl.u32 %v8838, 16
        %v9023 = vor.u32 %v9021, %v9019
        %v9025 = vshll.u32 %v8839, 16
        %v9027 = vrot.slane %v9025, 1
        %v9028 = vsel %vm661, %v9023, %v9027
        %v9029 = vshrl.u32 %v8839, 16
        %v9031 = vor.u32 %v9029, %v9027
        %v9033 = vshll.u32 %v8840, 16
        %v9035 = vrot.slane %v9033, 1
        %v9036 = vsel %vm661, %v9031, %v9035
        %v9077 = vunpack.c.l.b16 %v8702
        %v9078 = vunpack.c.l.b16 %v8703
        %v9079 = vunpack.c.l.b16 %v8704
        %v9080 = vunpack.c.l.b16 %v8705
        %v9081 = vunpack.c.l.b16 %v8706
        %v9082 = vunpack.c.l.b16 %v8707
        %v9083 = vunpack.c.l.b16 %v8708
        %v9084 = vunpack.c.l.b16 %v8709
        %v9085 = vunpack.c.l.b16 %v8710
        %v9086 = vunpack.c.l.b16 %v8711
        %v9087 = vunpack.c.l.b16 %v8712
        %v9088 = vunpack.c.l.b16 %v8713
        %v9089 = vunpack.c.l.b16 %v8714
        %v9090 = vunpack.c.l.b16 %v8715
        %v9091 = vunpack.c.l.b16 %v8716
        %v9092 = vunpack.c.l.b16 %v8717
        %v9093 = vpack.c.b16 %v9078, %v9077
        %v9094 = vpack.c.b16 %v9080, %v9079
        %v9095 = vpack.c.b16 %v9082, %v9081
        %v9096 = vpack.c.b16 %v9084, %v9083
        %v9097 = vpack.c.b16 %v9086, %v9085
        %v9098 = vpack.c.b16 %v9088, %v9087
        %v9099 = vpack.c.b16 %v9090, %v9089
        %v9100 = vpack.c.b16 %v9092, %v9091
        %9109 = vmatprep.subr.bf16.mxu0 0
        %9110 = vmatpush1.bf16.msra.mxu0 %v9100
        %9111 = vmatprep.subr.bf16.mxu0 0
        %9112 = vmatpush1.bf16.msra.mxu0 %v9099
        %9113 = vmatprep.subr.bf16.mxu0 0
        %9114 = vmatpush1.bf16.msra.mxu0 %v9098
        %9115 = vmatprep.subr.bf16.mxu0 0
        %9116 = vmatpush1.bf16.msra.mxu0 %v9097
        %9117 = vmatprep.subr.bf16.mxu0 0
        %9118 = vmatpush1.bf16.msra.mxu0 %v9096
        %9119 = vmatprep.subr.bf16.mxu0 0
        %9120 = vmatpush1.bf16.msra.mxu0 %v9095
        %9121 = vmatprep.subr.bf16.mxu0 0
        %9122 = vmatpush1.bf16.msra.mxu0 %v9094
        %9123 = vmatprep.subr.bf16.mxu0 0
        %9124 = vmatpush1.bf16.msra.mxu0 %v9093
        %9125 = vmatprep.subr.bf16.mxu0 0
        %9126 = vmatpush2.bf16.msra.mxu0 0
        %9127 = vmatprep.subr.bf16.mxu0 0
        %9128 = vmatpush2.bf16.msra.mxu0 0
        %9129 = vmatprep.subr.bf16.mxu0 0
        %9130 = vmatpush2.bf16.msra.mxu0 0
        %9131 = vmatprep.subr.bf16.mxu0 0
        %9132 = vmatpush2.bf16.msra.mxu0 0
        %9133 = vmatprep.subr.bf16.mxu0 0
        %9134 = vmatpush2.bf16.msra.mxu0 0
        %9135 = vmatprep.subr.bf16.mxu0 0
        %9136 = vmatpush2.bf16.msra.mxu0 0
        %9137 = vmatprep.subr.bf16.mxu0 0
        %9138 = vmatpush2.bf16.msra.mxu0 0
        %9139 = vmatprep.subr.bf16.mxu0 0
        %9140 = vmatpush2.bf16.msra.mxu0 0
        %9141 = vmatprep.mubr.bf16.mxu0 0
        %9142 = vmatmul.mubr.bf16.gmra.mxu0 %v8852
        %v9143 = vpop.f32.mrf.mxu0
        %v9144 = vadd.f32 0.0, %v9143
        %v9145 = vpop.f32.mrf.mxu0
        %v9146 = vpop.f32.mrf.mxu0
        %v9147 = vadd.f32 0.0, %v9146
        %v9148 = vpop.f32.mrf.mxu0
        %9149 = vmatprep.mubr.bf16.mxu0 0
        %9150 = vmatmul.mubr.bf16.gmra.mxu0 %v8860
        %v9151 = vpop.f32.mrf.mxu0
        %v9152 = vadd.f32 0.0, %v9151
        %v9153 = vpop.f32.mrf.mxu0
        %v9154 = vpop.f32.mrf.mxu0
        %v9155 = vadd.f32 0.0, %v9154
        %v9156 = vpop.f32.mrf.mxu0
        %9157 = vmatprep.mubr.bf16.mxu0 0
        %9158 = vmatmul.mubr.bf16.gmra.mxu0 %v8868
        %v9159 = vpop.f32.mrf.mxu0
        %v9160 = vadd.f32 0.0, %v9159
        %v9161 = vpop.f32.mrf.mxu0
        %v9162 = vpop.f32.mrf.mxu0
        %v9163 = vadd.f32 0.0, %v9162
        %v9164 = vpop.f32.mrf.mxu0
        %9165 = vmatprep.mubr.bf16.mxu0 0
        %9166 = vmatmul.mubr.bf16.gmra.mxu0 %v8876
        %v9167 = vpop.f32.mrf.mxu0
        %v9168 = vadd.f32 0.0, %v9167
        %v9169 = vpop.f32.mrf.mxu0
        %v9170 = vpop.f32.mrf.mxu0
        %v9171 = vadd.f32 0.0, %v9170
        %v9172 = vpop.f32.mrf.mxu0
        %9173 = vmatprep.mubr.bf16.mxu0 0
        %9174 = vmatmul.mubr.bf16.gmra.mxu0 %v8884
        %v9175 = vpop.f32.mrf.mxu0
        %v9176 = vadd.f32 0.0, %v9175
        %v9177 = vpop.f32.mrf.mxu0
        %v9178 = vpop.f32.mrf.mxu0
        %v9179 = vadd.f32 0.0, %v9178
        %v9180 = vpop.f32.mrf.mxu0
        %9181 = vmatprep.mubr.bf16.mxu0 0
        %9182 = vmatmul.mubr.bf16.gmra.mxu0 %v8892
        %v9183 = vpop.f32.mrf.mxu0
        %v9184 = vadd.f32 0.0, %v9183
        %v9185 = vpop.f32.mrf.mxu0
        %v9186 = vpop.f32.mrf.mxu0
        %v9187 = vadd.f32 0.0, %v9186
        %v9188 = vpop.f32.mrf.mxu0
        %9189 = vmatprep.mubr.bf16.mxu0 0
        %9190 = vmatmul.mubr.bf16.gmra.mxu0 %v8900
        %v9191 = vpop.f32.mrf.mxu0
        %v9192 = vadd.f32 0.0, %v9191
        %v9193 = vpop.f32.mrf.mxu0
        %v9194 = vpop.f32.mrf.mxu0
        %v9195 = vadd.f32 0.0, %v9194
        %v9196 = vpop.f32.mrf.mxu0
        %9197 = vmatprep.mubr.bf16.mxu0 0
        %9198 = vmatmul.mubr.bf16.gmra.mxu0 %v8908
        %v9199 = vpop.f32.mrf.mxu0
        %v9200 = vadd.f32 0.0, %v9199
        %v9201 = vpop.f32.mrf.mxu0
        %v9202 = vpop.f32.mrf.mxu0
        %v9203 = vadd.f32 0.0, %v9202
        %v9204 = vpop.f32.mrf.mxu0
        %9205 = vmatprep.mubr.bf16.mxu0 0
        %9206 = vmatmul.mubr.bf16.gmra.mxu0 %v8916
        %v9207 = vpop.f32.mrf.mxu0
        %v9208 = vadd.f32 0.0, %v9207
        %v9209 = vpop.f32.mrf.mxu0
        %v9210 = vpop.f32.mrf.mxu0
        %v9211 = vadd.f32 0.0, %v9210
        %v9212 = vpop.f32.mrf.mxu0
        %9213 = vmatprep.mubr.bf16.mxu0 0
        %9214 = vmatmul.mubr.bf16.gmra.mxu0 %v8924
        %v9215 = vpop.f32.mrf.mxu0
        %v9216 = vadd.f32 0.0, %v9215
        %v9217 = vpop.f32.mrf.mxu0
        %v9218 = vpop.f32.mrf.mxu0
        %v9219 = vadd.f32 0.0, %v9218
        %v9220 = vpop.f32.mrf.mxu0
        %9221 = vmatprep.mubr.bf16.mxu0 0
        %9222 = vmatmul.mubr.bf16.gmra.mxu0 %v8932
        %v9223 = vpop.f32.mrf.mxu0
        %v9224 = vadd.f32 0.0, %v9223
        %v9225 = vpop.f32.mrf.mxu0
        %v9226 = vpop.f32.mrf.mxu0
        %v9227 = vadd.f32 0.0, %v9226
        %v9228 = vpop.f32.mrf.mxu0
        %9229 = vmatprep.mubr.bf16.mxu0 0
        %9230 = vmatmul.mubr.bf16.gmra.mxu0 %v8940
        %v9231 = vpop.f32.mrf.mxu0
        %v9232 = vadd.f32 0.0, %v9231
        %v9233 = vpop.f32.mrf.mxu0
        %v9234 = vpop.f32.mrf.mxu0
        %v9235 = vadd.f32 0.0, %v9234
        %v9236 = vpop.f32.mrf.mxu0
        %9237 = vmatprep.mubr.bf16.mxu0 0
        %9238 = vmatmul.mubr.bf16.gmra.mxu0 %v8948
        %v9239 = vpop.f32.mrf.mxu0
        %v9240 = vadd.f32 0.0, %v9239
        %v9241 = vpop.f32.mrf.mxu0
        %v9242 = vpop.f32.mrf.mxu0
        %v9243 = vadd.f32 0.0, %v9242
        %v9244 = vpop.f32.mrf.mxu0
        %9245 = vmatprep.mubr.bf16.mxu0 0
        %9246 = vmatmul.mubr.bf16.gmra.mxu0 %v8956
        %v9247 = vpop.f32.mrf.mxu0
        %v9248 = vadd.f32 0.0, %v9247
        %v9249 = vpop.f32.mrf.mxu0
        %v9250 = vpop.f32.mrf.mxu0
        %v9251 = vadd.f32 0.0, %v9250
        %v9252 = vpop.f32.mrf.mxu0
        %9253 = vmatprep.mubr.bf16.mxu0 0
        %9254 = vmatmul.mubr.bf16.gmra.mxu0 %v8964
        %v9255 = vpop.f32.mrf.mxu0
        %v9256 = vadd.f32 0.0, %v9255
        %v9257 = vpop.f32.mrf.mxu0
        %v9258 = vpop.f32.mrf.mxu0
        %v9259 = vadd.f32 0.0, %v9258
        %v9260 = vpop.f32.mrf.mxu0
        %9261 = vmatprep.mubr.bf16.mxu0 0
        %9262 = vmatmul.mubr.bf16.gmra.mxu0 %v8972
        %v9263 = vpop.f32.mrf.mxu0
        %v9264 = vadd.f32 0.0, %v9263
        %v9265 = vpop.f32.mrf.mxu0
        %v9266 = vpop.f32.mrf.mxu0
        %v9267 = vadd.f32 0.0, %v9266
        %v9268 = vpop.f32.mrf.mxu0
        %9269 = vmatprep.mubr.bf16.mxu0 0
        %9270 = vmatmul.mubr.bf16.gmra.mxu0 %v8980
        %v9271 = vpop.f32.mrf.mxu0
        %v9272 = vadd.f32 0.0, %v9271
        %v9273 = vpop.f32.mrf.mxu0
        %v9274 = vpop.f32.mrf.mxu0
        %v9275 = vadd.f32 0.0, %v9274
        %v9276 = vpop.f32.mrf.mxu0
        %9277 = vmatprep.mubr.bf16.mxu0 0
        %9278 = vmatmul.mubr.bf16.gmra.mxu0 %v8988
        %v9279 = vpop.f32.mrf.mxu0
        %v9280 = vadd.f32 0.0, %v9279
        %v9281 = vpop.f32.mrf.mxu0
        %v9282 = vpop.f32.mrf.mxu0
        %v9283 = vadd.f32 0.0, %v9282
        %v9284 = vpop.f32.mrf.mxu0
        %9285 = vmatprep.mubr.bf16.mxu0 0
        %9286 = vmatmul.mubr.bf16.gmra.mxu0 %v8996
        %v9287 = vpop.f32.mrf.mxu0
        %v9288 = vadd.f32 0.0, %v9287
        %v9289 = vpop.f32.mrf.mxu0
        %v9290 = vpop.f32.mrf.mxu0
        %v9291 = vadd.f32 0.0, %v9290
        %v9292 = vpop.f32.mrf.mxu0
        %9293 = vmatprep.mubr.bf16.mxu0 0
        %9294 = vmatmul.mubr.bf16.gmra.mxu0 %v9004
        %v9295 = vpop.f32.mrf.mxu0
        %v9296 = vadd.f32 0.0, %v9295
        %v9297 = vpop.f32.mrf.mxu0
        %v9298 = vpop.f32.mrf.mxu0
        %v9299 = vadd.f32 0.0, %v9298
        %v9300 = vpop.f32.mrf.mxu0
        %9301 = vmatprep.mubr.bf16.mxu0 0
        %9302 = vmatmul.mubr.bf16.gmra.mxu0 %v9012
        %v9303 = vpop.f32.mrf.mxu0
        %v9304 = vadd.f32 0.0, %v9303
        %v9305 = vpop.f32.mrf.mxu0
        %v9306 = vpop.f32.mrf.mxu0
        %v9307 = vadd.f32 0.0, %v9306
        %v9308 = vpop.f32.mrf.mxu0
        %9309 = vmatprep.mubr.bf16.mxu0 0
        %9310 = vmatmul.mubr.bf16.gmra.mxu0 %v9020
        %v9311 = vpop.f32.mrf.mxu0
        %v9312 = vadd.f32 0.0, %v9311
        %v9313 = vpop.f32.mrf.mxu0
        %v9314 = vpop.f32.mrf.mxu0
        %v9315 = vadd.f32 0.0, %v9314
        %v9316 = vpop.f32.mrf.mxu0
        %9317 = vmatprep.mubr.bf16.mxu0 0
        %9318 = vmatmul.mubr.bf16.gmra.mxu0 %v9028
        %v9319 = vpop.f32.mrf.mxu0
        %v9320 = vadd.f32 0.0, %v9319
        %v9321 = vpop.f32.mrf.mxu0
        %v9322 = vpop.f32.mrf.mxu0
        %v9323 = vadd.f32 0.0, %v9322
        %v9324 = vpop.f32.mrf.mxu0
        %9325 = vmatprep.mubr.bf16.mxu0 0
        %9326 = vmatmul.mubr.bf16.gmra.mxu0 %v9036
        %v9327 = vpop.f32.mrf.mxu0
        %v9328 = vadd.f32 0.0, %v9327
        %v9329 = vpop.f32.mrf.mxu0
        %v9330 = vpop.f32.mrf.mxu0
        %v9331 = vadd.f32 0.0, %v9330
        %v9332 = vpop.f32.mrf.mxu0
        %9333 = vdwg.mxu0
        %v9334 = vadd.f32 %v8604, %v9144
        %v9335 = vadd.f32 %v8605, %v9147
        %v9336 = vadd.f32 %v8606, %v9152
        %v9337 = vadd.f32 %v8607, %v9155
        %v9338 = vadd.f32 %v8608, %v9160
        %v9339 = vadd.f32 %v8609, %v9163
        %v9340 = vadd.f32 %v8610, %v9168
        %v9341 = vadd.f32 %v8611, %v9171
        %v9342 = vadd.f32 %v8612, %v9176
        %v9343 = vadd.f32 %v8613, %v9179
        %v9344 = vadd.f32 %v8614, %v9184
        %v9345 = vadd.f32 %v8615, %v9187
        %v9346 = vadd.f32 %v8616, %v9192
        %v9347 = vadd.f32 %v8617, %v9195
        %v9348 = vadd.f32 %v8618, %v9200
        %v9349 = vadd.f32 %v8619, %v9203
        %v9350 = vadd.f32 %v8620, %v9208
        %v9351 = vadd.f32 %v8621, %v9211
        %v9352 = vadd.f32 %v8622, %v9216
        %v9353 = vadd.f32 %v8623, %v9219
        %v9354 = vadd.f32 %v8624, %v9224
        %v9355 = vadd.f32 %v8625, %v9227
        %v9356 = vadd.f32 %v8626, %v9232
        %v9357 = vadd.f32 %v8627, %v9235
        %v9358 = vadd.f32 %v8628, %v9240
        %v9359 = vadd.f32 %v8629, %v9243
        %v9360 = vadd.f32 %v8630, %v9248
        %v9361 = vadd.f32 %v8631, %v9251
        %v9362 = vadd.f32 %v8632, %v9256
        %v9363 = vadd.f32 %v8633, %v9259
        %v9364 = vadd.f32 %v8634, %v9264
        %v9365 = vadd.f32 %v8635, %v9267
        %v9366 = vadd.f32 %v8636, %v9272
        %v9367 = vadd.f32 %v8637, %v9275
        %v9368 = vadd.f32 %v8638, %v9280
        %v9369 = vadd.f32 %v8639, %v9283
        %v9370 = vadd.f32 %v8640, %v9288
        %v9371 = vadd.f32 %v8641, %v9291
        %v9372 = vadd.f32 %v8642, %v9296
        %v9373 = vadd.f32 %v8643, %v9299
        %v9374 = vadd.f32 %v8644, %v9304
        %v9375 = vadd.f32 %v8645, %v9307
        %v9376 = vadd.f32 %v8646, %v9312
        %v9377 = vadd.f32 %v8647, %v9315
        %v9378 = vadd.f32 %v8648, %v9320
        %v9379 = vadd.f32 %v8649, %v9323
        %v9380 = vadd.f32 %v8650, %v9328
        %v9381 = vadd.f32 %v8651, %v9331
        %v9382 = vld [vmem:[#allocation2 + $0xc] sm:$0xe]
        %s9383 = scalar_lea.vmem [#allocation8], 320
        %v9384 = vld [vmem:[%s9383] sm:$0xf]
        %v9385 = vld [vmem:[%s9383 + $0x4] sm:$0xf]
        %v9386 = vld [vmem:[%s9383 + $0x8] sm:$0xf]
        %v9387 = vld [vmem:[%s9383 + $0xc] sm:$0xf]
        %v9388 = vld [vmem:[%s9383 + $0x10] sm:$0xf]
        %v9389 = vld [vmem:[%s9383 + $0x14] sm:$0xf]
        %v9390 = vld [vmem:[%s9383 + $0x18] sm:$0xf]
        %v9391 = vld [vmem:[%s9383 + $0x1c] sm:$0xf]
        %v9392 = vld [vmem:[%s9383 + $0x20] sm:$0xf]
        %v9393 = vld [vmem:[%s9383 + $0x24] sm:$0xf]
        %v9394 = vld [vmem:[%s9383 + $0x28] sm:$0xf]
        %v9395 = vld [vmem:[%s9383 + $0x2c] sm:$0xf]
        %v9396 = vld [vmem:[%s9383 + $0x30] sm:$0xf]
        %v9397 = vld [vmem:[%s9383 + $0x34] sm:$0xf]
        %v9398 = vld [vmem:[%s9383 + $0x38] sm:$0xf]
        %v9399 = vld [vmem:[%s9383 + $0x3c] sm:$0xf]
        %v9401 = vunpack.c.l.b16 %v9382
        %v9402 = vpack.c.b16 %v8768, %v9401
        %v9403 = vrot.slane %v9402, 1
        %v9404 = vrot.slane %v8817, 1
        %v9405 = vsel %vm1473, %v9403, %v9404
        %v9406 = vrot.slane %v8818, 1
        %v9407 = vsel %vm1473, %v9404, %v9406
        %v9408 = vrot.slane %v8819, 1
        %v9409 = vsel %vm1473, %v9406, %v9408
        %v9410 = vrot.slane %v8820, 1
        %v9411 = vsel %vm1473, %v9408, %v9410
        %v9412 = vrot.slane %v8821, 1
        %v9413 = vsel %vm1473, %v9410, %v9412
        %v9414 = vrot.slane %v8822, 1
        %v9415 = vsel %vm1473, %v9412, %v9414
        %v9416 = vrot.slane %v8823, 1
        %v9417 = vsel %vm1473, %v9414, %v9416
        %v9418 = vrot.slane %v8824, 1
        %v9419 = vsel %vm1473, %v9416, %v9418
        %v9420 = vrot.slane %v8825, 1
        %v9421 = vsel %vm1473, %v9418, %v9420
        %v9422 = vrot.slane %v8826, 1
        %v9423 = vsel %vm1473, %v9420, %v9422
        %v9424 = vrot.slane %v8827, 1
        %v9425 = vsel %vm1473, %v9422, %v9424
        %v9426 = vrot.slane %v8828, 1
        %v9427 = vsel %vm1473, %v9424, %v9426
        %v9428 = vrot.slane %v8829, 1
        %v9429 = vsel %vm1473, %v9426, %v9428
        %v9430 = vrot.slane %v8830, 1
        %v9431 = vsel %vm1473, %v9428, %v9430
        %v9432 = vrot.slane %v8831, 1
        %v9433 = vsel %vm1473, %v9430, %v9432
        %v9434 = vrot.slane %v8832, 1
        %v9435 = vsel %vm1473, %v9432, %v9434
        %v9436 = vrot.slane %v8833, 1
        %v9437 = vsel %vm1473, %v9434, %v9436
        %v9438 = vrot.slane %v8834, 1
        %v9439 = vsel %vm1473, %v9436, %v9438
        %v9440 = vrot.slane %v8835, 1
        %v9441 = vsel %vm1473, %v9438, %v9440
        %v9442 = vrot.slane %v8836, 1
        %v9443 = vsel %vm1473, %v9440, %v9442
        %v9444 = vrot.slane %v8837, 1
        %v9445 = vsel %vm1473, %v9442, %v9444
        %v9446 = vrot.slane %v8838, 1
        %v9447 = vsel %vm1473, %v9444, %v9446
        %v9448 = vrot.slane %v8839, 1
        %v9449 = vsel %vm1473, %v9446, %v9448
        %v9450 = vrot.slane %v8840, 1
        %v9451 = vsel %vm1473, %v9448, %v9450
        %v9492 = vunpack.c.l.b16 %v9384
        %v9493 = vunpack.c.l.b16 %v9385
        %v9494 = vunpack.c.l.b16 %v9386
        %v9495 = vunpack.c.l.b16 %v9387
        %v9496 = vunpack.c.l.b16 %v9388
        %v9497 = vunpack.c.l.b16 %v9389
        %v9498 = vunpack.c.l.b16 %v9390
        %v9499 = vunpack.c.l.b16 %v9391
        %v9500 = vunpack.c.l.b16 %v9392
        %v9501 = vunpack.c.l.b16 %v9393
        %v9502 = vunpack.c.l.b16 %v9394
        %v9503 = vunpack.c.l.b16 %v9395
        %v9504 = vunpack.c.l.b16 %v9396
        %v9505 = vunpack.c.l.b16 %v9397
        %v9506 = vunpack.c.l.b16 %v9398
        %v9507 = vunpack.c.l.b16 %v9399
        %v9508 = vpack.c.b16 %v9493, %v9492
        %v9509 = vpack.c.b16 %v9495, %v9494
        %v9510 = vpack.c.b16 %v9497, %v9496
        %v9511 = vpack.c.b16 %v9499, %v9498
        %v9512 = vpack.c.b16 %v9501, %v9500
        %v9513 = vpack.c.b16 %v9503, %v9502
        %v9514 = vpack.c.b16 %v9505, %v9504
        %v9515 = vpack.c.b16 %v9507, %v9506
        %9524 = vmatprep.subr.bf16.mxu0 0
        %9525 = vmatpush1.bf16.msra.mxu0 %v9515
        %9526 = vmatprep.subr.bf16.mxu0 0
        %9527 = vmatpush1.bf16.msra.mxu0 %v9514
        %9528 = vmatprep.subr.bf16.mxu0 0
        %9529 = vmatpush1.bf16.msra.mxu0 %v9513
        %9530 = vmatprep.subr.bf16.mxu0 0
        %9531 = vmatpush1.bf16.msra.mxu0 %v9512
        %9532 = vmatprep.subr.bf16.mxu0 0
        %9533 = vmatpush1.bf16.msra.mxu0 %v9511
        %9534 = vmatprep.subr.bf16.mxu0 0
        %9535 = vmatpush1.bf16.msra.mxu0 %v9510
        %9536 = vmatprep.subr.bf16.mxu0 0
        %9537 = vmatpush1.bf16.msra.mxu0 %v9509
        %9538 = vmatprep.subr.bf16.mxu0 0
        %9539 = vmatpush1.bf16.msra.mxu0 %v9508
        %9540 = vmatprep.subr.bf16.mxu0 0
        %9541 = vmatpush2.bf16.msra.mxu0 0
        %9542 = vmatprep.subr.bf16.mxu0 0
        %9543 = vmatpush2.bf16.msra.mxu0 0
        %9544 = vmatprep.subr.bf16.mxu0 0
        %9545 = vmatpush2.bf16.msra.mxu0 0
        %9546 = vmatprep.subr.bf16.mxu0 0
        %9547 = vmatpush2.bf16.msra.mxu0 0
        %9548 = vmatprep.subr.bf16.mxu0 0
        %9549 = vmatpush2.bf16.msra.mxu0 0
        %9550 = vmatprep.subr.bf16.mxu0 0
        %9551 = vmatpush2.bf16.msra.mxu0 0
        %9552 = vmatprep.subr.bf16.mxu0 0
        %9553 = vmatpush2.bf16.msra.mxu0 0
        %9554 = vmatprep.subr.bf16.mxu0 0
        %9555 = vmatpush2.bf16.msra.mxu0 0
        %9556 = vmatprep.mubr.bf16.mxu0 0
        %9557 = vmatmul.mubr.bf16.gmra.mxu0 %v9405
        %v9558 = vpop.f32.mrf.mxu0
        %v9559 = vadd.f32 0.0, %v9558
        %v9560 = vpop.f32.mrf.mxu0
        %v9561 = vpop.f32.mrf.mxu0
        %v9562 = vadd.f32 0.0, %v9561
        %v9563 = vpop.f32.mrf.mxu0
        %9564 = vmatprep.mubr.bf16.mxu0 0
        %9565 = vmatmul.mubr.bf16.gmra.mxu0 %v9407
        %v9566 = vpop.f32.mrf.mxu0
        %v9567 = vadd.f32 0.0, %v9566
        %v9568 = vpop.f32.mrf.mxu0
        %v9569 = vpop.f32.mrf.mxu0
        %v9570 = vadd.f32 0.0, %v9569
        %v9571 = vpop.f32.mrf.mxu0
        %9572 = vmatprep.mubr.bf16.mxu0 0
        %9573 = vmatmul.mubr.bf16.gmra.mxu0 %v9409
        %v9574 = vpop.f32.mrf.mxu0
        %v9575 = vadd.f32 0.0, %v9574
        %v9576 = vpop.f32.mrf.mxu0
        %v9577 = vpop.f32.mrf.mxu0
        %v9578 = vadd.f32 0.0, %v9577
        %v9579 = vpop.f32.mrf.mxu0
        %9580 = vmatprep.mubr.bf16.mxu0 0
        %9581 = vmatmul.mubr.bf16.gmra.mxu0 %v9411
        %v9582 = vpop.f32.mrf.mxu0
        %v9583 = vadd.f32 0.0, %v9582
        %v9584 = vpop.f32.mrf.mxu0
        %v9585 = vpop.f32.mrf.mxu0
        %v9586 = vadd.f32 0.0, %v9585
        %v9587 = vpop.f32.mrf.mxu0
        %9588 = vmatprep.mubr.bf16.mxu0 0
        %9589 = vmatmul.mubr.bf16.gmra.mxu0 %v9413
        %v9590 = vpop.f32.mrf.mxu0
        %v9591 = vadd.f32 0.0, %v9590
        %v9592 = vpop.f32.mrf.mxu0
        %v9593 = vpop.f32.mrf.mxu0
        %v9594 = vadd.f32 0.0, %v9593
        %v9595 = vpop.f32.mrf.mxu0
        %9596 = vmatprep.mubr.bf16.mxu0 0
        %9597 = vmatmul.mubr.bf16.gmra.mxu0 %v9415
        %v9598 = vpop.f32.mrf.mxu0
        %v9599 = vadd.f32 0.0, %v9598
        %v9600 = vpop.f32.mrf.mxu0
        %v9601 = vpop.f32.mrf.mxu0
        %v9602 = vadd.f32 0.0, %v9601
        %v9603 = vpop.f32.mrf.mxu0
        %9604 = vmatprep.mubr.bf16.mxu0 0
        %9605 = vmatmul.mubr.bf16.gmra.mxu0 %v9417
        %v9606 = vpop.f32.mrf.mxu0
        %v9607 = vadd.f32 0.0, %v9606
        %v9608 = vpop.f32.mrf.mxu0
        %v9609 = vpop.f32.mrf.mxu0
        %v9610 = vadd.f32 0.0, %v9609
        %v9611 = vpop.f32.mrf.mxu0
        %9612 = vmatprep.mubr.bf16.mxu0 0
        %9613 = vmatmul.mubr.bf16.gmra.mxu0 %v9419
        %v9614 = vpop.f32.mrf.mxu0
        %v9615 = vadd.f32 0.0, %v9614
        %v9616 = vpop.f32.mrf.mxu0
        %v9617 = vpop.f32.mrf.mxu0
        %v9618 = vadd.f32 0.0, %v9617
        %v9619 = vpop.f32.mrf.mxu0
        %9620 = vmatprep.mubr.bf16.mxu0 0
        %9621 = vmatmul.mubr.bf16.gmra.mxu0 %v9421
        %v9622 = vpop.f32.mrf.mxu0
        %v9623 = vadd.f32 0.0, %v9622
        %v9624 = vpop.f32.mrf.mxu0
        %v9625 = vpop.f32.mrf.mxu0
        %v9626 = vadd.f32 0.0, %v9625
        %v9627 = vpop.f32.mrf.mxu0
        %9628 = vmatprep.mubr.bf16.mxu0 0
        %9629 = vmatmul.mubr.bf16.gmra.mxu0 %v9423
        %v9630 = vpop.f32.mrf.mxu0
        %v9631 = vadd.f32 0.0, %v9630
        %v9632 = vpop.f32.mrf.mxu0
        %v9633 = vpop.f32.mrf.mxu0
        %v9634 = vadd.f32 0.0, %v9633
        %v9635 = vpop.f32.mrf.mxu0
        %9636 = vmatprep.mubr.bf16.mxu0 0
        %9637 = vmatmul.mubr.bf16.gmra.mxu0 %v9425
        %v9638 = vpop.f32.mrf.mxu0
        %v9639 = vadd.f32 0.0, %v9638
        %v9640 = vpop.f32.mrf.mxu0
        %v9641 = vpop.f32.mrf.mxu0
        %v9642 = vadd.f32 0.0, %v9641
        %v9643 = vpop.f32.mrf.mxu0
        %9644 = vmatprep.mubr.bf16.mxu0 0
        %9645 = vmatmul.mubr.bf16.gmra.mxu0 %v9427
        %v9646 = vpop.f32.mrf.mxu0
        %v9647 = vadd.f32 0.0, %v9646
        %v9648 = vpop.f32.mrf.mxu0
        %v9649 = vpop.f32.mrf.mxu0
        %v9650 = vadd.f32 0.0, %v9649
        %v9651 = vpop.f32.mrf.mxu0
        %9652 = vmatprep.mubr.bf16.mxu0 0
        %9653 = vmatmul.mubr.bf16.gmra.mxu0 %v9429
        %v9654 = vpop.f32.mrf.mxu0
        %v9655 = vadd.f32 0.0, %v9654
        %v9656 = vpop.f32.mrf.mxu0
        %v9657 = vpop.f32.mrf.mxu0
        %v9658 = vadd.f32 0.0, %v9657
        %v9659 = vpop.f32.mrf.mxu0
        %9660 = vmatprep.mubr.bf16.mxu0 0
        %9661 = vmatmul.mubr.bf16.gmra.mxu0 %v9431
        %v9662 = vpop.f32.mrf.mxu0
        %v9663 = vadd.f32 0.0, %v9662
        %v9664 = vpop.f32.mrf.mxu0
        %v9665 = vpop.f32.mrf.mxu0
        %v9666 = vadd.f32 0.0, %v9665
        %v9667 = vpop.f32.mrf.mxu0
        %9668 = vmatprep.mubr.bf16.mxu0 0
        %9669 = vmatmul.mubr.bf16.gmra.mxu0 %v9433
        %v9670 = vpop.f32.mrf.mxu0
        %v9671 = vadd.f32 0.0, %v9670
        %v9672 = vpop.f32.mrf.mxu0
        %v9673 = vpop.f32.mrf.mxu0
        %v9674 = vadd.f32 0.0, %v9673
        %v9675 = vpop.f32.mrf.mxu0
        %9676 = vmatprep.mubr.bf16.mxu0 0
        %9677 = vmatmul.mubr.bf16.gmra.mxu0 %v9435
        %v9678 = vpop.f32.mrf.mxu0
        %v9679 = vadd.f32 0.0, %v9678
        %v9680 = vpop.f32.mrf.mxu0
        %v9681 = vpop.f32.mrf.mxu0
        %v9682 = vadd.f32 0.0, %v9681
        %v9683 = vpop.f32.mrf.mxu0
        %9684 = vmatprep.mubr.bf16.mxu0 0
        %9685 = vmatmul.mubr.bf16.gmra.mxu0 %v9437
        %v9686 = vpop.f32.mrf.mxu0
        %v9687 = vadd.f32 0.0, %v9686
        %v9688 = vpop.f32.mrf.mxu0
        %v9689 = vpop.f32.mrf.mxu0
        %v9690 = vadd.f32 0.0, %v9689
        %v9691 = vpop.f32.mrf.mxu0
        %9692 = vmatprep.mubr.bf16.mxu0 0
        %9693 = vmatmul.mubr.bf16.gmra.mxu0 %v9439
        %v9694 = vpop.f32.mrf.mxu0
        %v9695 = vadd.f32 0.0, %v9694
        %v9696 = vpop.f32.mrf.mxu0
        %v9697 = vpop.f32.mrf.mxu0
        %v9698 = vadd.f32 0.0, %v9697
        %v9699 = vpop.f32.mrf.mxu0
        %9700 = vmatprep.mubr.bf16.mxu0 0
        %9701 = vmatmul.mubr.bf16.gmra.mxu0 %v9441
        %v9702 = vpop.f32.mrf.mxu0
        %v9703 = vadd.f32 0.0, %v9702
        %v9704 = vpop.f32.mrf.mxu0
        %v9705 = vpop.f32.mrf.mxu0
        %v9706 = vadd.f32 0.0, %v9705
        %v9707 = vpop.f32.mrf.mxu0
        %9708 = vmatprep.mubr.bf16.mxu0 0
        %9709 = vmatmul.mubr.bf16.gmra.mxu0 %v9443
        %v9710 = vpop.f32.mrf.mxu0
        %v9711 = vadd.f32 0.0, %v9710
        %v9712 = vpop.f32.mrf.mxu0
        %v9713 = vpop.f32.mrf.mxu0
        %v9714 = vadd.f32 0.0, %v9713
        %v9715 = vpop.f32.mrf.mxu0
        %9716 = vmatprep.mubr.bf16.mxu0 0
        %9717 = vmatmul.mubr.bf16.gmra.mxu0 %v9445
        %v9718 = vpop.f32.mrf.mxu0
        %v9719 = vadd.f32 0.0, %v9718
        %v9720 = vpop.f32.mrf.mxu0
        %v9721 = vpop.f32.mrf.mxu0
        %v9722 = vadd.f32 0.0, %v9721
        %v9723 = vpop.f32.mrf.mxu0
        %9724 = vmatprep.mubr.bf16.mxu0 0
        %9725 = vmatmul.mubr.bf16.gmra.mxu0 %v9447
        %v9726 = vpop.f32.mrf.mxu0
        %v9727 = vadd.f32 0.0, %v9726
        %v9728 = vpop.f32.mrf.mxu0
        %v9729 = vpop.f32.mrf.mxu0
        %v9730 = vadd.f32 0.0, %v9729
        %v9731 = vpop.f32.mrf.mxu0
        %9732 = vmatprep.mubr.bf16.mxu0 0
        %9733 = vmatmul.mubr.bf16.gmra.mxu0 %v9449
        %v9734 = vpop.f32.mrf.mxu0
        %v9735 = vadd.f32 0.0, %v9734
        %v9736 = vpop.f32.mrf.mxu0
        %v9737 = vpop.f32.mrf.mxu0
        %v9738 = vadd.f32 0.0, %v9737
        %v9739 = vpop.f32.mrf.mxu0
        %9740 = vmatprep.mubr.bf16.mxu0 0
        %9741 = vmatmul.mubr.bf16.gmra.mxu0 %v9451
        %v9742 = vpop.f32.mrf.mxu0
        %v9743 = vadd.f32 0.0, %v9742
        %v9744 = vpop.f32.mrf.mxu0
        %v9745 = vpop.f32.mrf.mxu0
        %v9746 = vadd.f32 0.0, %v9745
        %v9747 = vpop.f32.mrf.mxu0
        %9748 = vdwg.mxu0
        %v9749 = vadd.f32 %v9334, %v9559
        %v9750 = vadd.f32 %v9335, %v9562
        %v9751 = vadd.f32 %v9336, %v9567
        %v9752 = vadd.f32 %v9337, %v9570
        %v9753 = vadd.f32 %v9338, %v9575
        %v9754 = vadd.f32 %v9339, %v9578
        %v9755 = vadd.f32 %v9340, %v9583
        %v9756 = vadd.f32 %v9341, %v9586
        %v9757 = vadd.f32 %v9342, %v9591
        %v9758 = vadd.f32 %v9343, %v9594
        %v9759 = vadd.f32 %v9344, %v9599
        %v9760 = vadd.f32 %v9345, %v9602
        %v9761 = vadd.f32 %v9346, %v9607
        %v9762 = vadd.f32 %v9347, %v9610
        %v9763 = vadd.f32 %v9348, %v9615
        %v9764 = vadd.f32 %v9349, %v9618
        %v9765 = vadd.f32 %v9350, %v9623
        %v9766 = vadd.f32 %v9351, %v9626
        %v9767 = vadd.f32 %v9352, %v9631
        %v9768 = vadd.f32 %v9353, %v9634
        %v9769 = vadd.f32 %v9354, %v9639
        %v9770 = vadd.f32 %v9355, %v9642
        %v9771 = vadd.f32 %v9356, %v9647
        %v9772 = vadd.f32 %v9357, %v9650
        %v9773 = vadd.f32 %v9358, %v9655
        %v9774 = vadd.f32 %v9359, %v9658
        %v9775 = vadd.f32 %v9360, %v9663
        %v9776 = vadd.f32 %v9361, %v9666
        %v9777 = vadd.f32 %v9362, %v9671
        %v9778 = vadd.f32 %v9363, %v9674
        %v9779 = vadd.f32 %v9364, %v9679
        %v9780 = vadd.f32 %v9365, %v9682
        %v9781 = vadd.f32 %v9366, %v9687
        %v9782 = vadd.f32 %v9367, %v9690
        %v9783 = vadd.f32 %v9368, %v9695
        %v9784 = vadd.f32 %v9369, %v9698
        %v9785 = vadd.f32 %v9370, %v9703
        %v9786 = vadd.f32 %v9371, %v9706
        %v9787 = vadd.f32 %v9372, %v9711
        %v9788 = vadd.f32 %v9373, %v9714
        %v9789 = vadd.f32 %v9374, %v9719
        %v9790 = vadd.f32 %v9375, %v9722
        %v9791 = vadd.f32 %v9376, %v9727
        %v9792 = vadd.f32 %v9377, %v9730
        %v9793 = vadd.f32 %v9378, %v9735
        %v9794 = vadd.f32 %v9379, %v9738
        %v9795 = vadd.f32 %v9380, %v9743
        %v9796 = vadd.f32 %v9381, %v9746
        %v9797 = vld [vmem:[#allocation2 + $0x18] sm:$0xf]
        %v9798 = vld [vmem:[#allocation2 + $0x1c] sm:$0xf]
        %v9799 = vld [vmem:[#allocation2 + $0x20] sm:$0xf]
        %v9800 = vld [vmem:[#allocation2 + $0x24] sm:$0xf]
        %v9801 = vld [vmem:[#allocation2 + $0x28] sm:$0xf]
        %v9802 = vld [vmem:[#allocation2 + $0x2c] sm:$0xf]
        %v9803 = vld [vmem:[#allocation2 + $0x30] sm:$0xf]
        %v9804 = vld [vmem:[#allocation2 + $0x34] sm:$0xf]
        %v9805 = vld [vmem:[#allocation2 + $0x38] sm:$0xf]
        %v9806 = vld [vmem:[#allocation2 + $0x3c] sm:$0xf]
        %v9807 = vld [vmem:[#allocation2 + $0x40] sm:$0xf]
        %v9808 = vld [vmem:[#allocation2 + $0x44] sm:$0xf]
        %v9809 = vld [vmem:[#allocation2 + $0x48] sm:$0xf]
        %v9810 = vld [vmem:[#allocation2 + $0x4c] sm:$0xf]
        %v9811 = vld [vmem:[#allocation2 + $0x50] sm:$0xf]
        %v9812 = vld [vmem:[#allocation2 + $0x54] sm:$0xf]
        %v9813 = vld [vmem:[#allocation2 + $0x58] sm:$0xf]
        %v9814 = vld [vmem:[#allocation2 + $0x5c] sm:$0xf]
        %v9815 = vld [vmem:[#allocation2 + $0x60] sm:$0xf]
        %v9816 = vld [vmem:[#allocation2 + $0x64] sm:$0xf]
        %v9817 = vld [vmem:[#allocation2 + $0x68] sm:$0xf]
        %v9818 = vld [vmem:[#allocation2 + $0x6c] sm:$0xf]
        %v9819 = vld [vmem:[#allocation2 + $0x70] sm:$0xf]
        %v9820 = vld [vmem:[#allocation2 + $0x74] sm:$0xf]
        %v9821 = vld [vmem:[#allocation2 + $0x78] sm:$0xf]
        %v9822 = vld [vmem:[#allocation2 + $0x7c] sm:$0xf]
        %v9823 = vld [vmem:[#allocation2 + $0x80] sm:$0xf]
        %v9824 = vld [vmem:[#allocation2 + $0x84] sm:$0xf]
        %v9825 = vld [vmem:[#allocation2 + $0x88] sm:$0xf]
        %v9826 = vld [vmem:[#allocation2 + $0x8c] sm:$0xf]
        %v9827 = vld [vmem:[#allocation2 + $0x90] sm:$0xf]
        %v9828 = vld [vmem:[#allocation2 + $0x94] sm:$0xf]
        %v9829 = vld [vmem:[#allocation2 + $0x98] sm:$0xf]
        %v9830 = vld [vmem:[#allocation2 + $0x9c] sm:$0xf]
        %v9831 = vld [vmem:[#allocation2 + $0xa0] sm:$0xf]
        %v9832 = vld [vmem:[#allocation2 + $0xa4] sm:$0xf]
        %v9833 = vld [vmem:[#allocation2 + $0xa8] sm:$0xf]
        %v9834 = vld [vmem:[#allocation2 + $0xac] sm:$0xf]
        %v9835 = vld [vmem:[#allocation2 + $0xb0] sm:$0xf]
        %v9836 = vld [vmem:[#allocation2 + $0xb4] sm:$0xf]
        %v9837 = vld [vmem:[#allocation2 + $0xb8] sm:$0xf]
        %v9838 = vld [vmem:[#allocation2 + $0xbc] sm:$0xf]
        %v9839 = vld [vmem:[#allocation2 + $0xc0] sm:$0xf]
        %v9840 = vld [vmem:[#allocation2 + $0xc4] sm:$0xf]
        %v9841 = vld [vmem:[#allocation2 + $0xc8] sm:$0xf]
        %v9842 = vld [vmem:[#allocation2 + $0xcc] sm:$0xf]
        %v9843 = vld [vmem:[#allocation2 + $0xd0] sm:$0xf]
        %v9844 = vld [vmem:[#allocation2 + $0xd4] sm:$0xf]
        %s9845 = scalar_lea.vmem [#allocation8], 384
        %v9846 = vld [vmem:[%s9845] sm:$0xf]
        %v9847 = vld [vmem:[%s9845 + $0x4] sm:$0xf]
        %v9848 = vld [vmem:[%s9845 + $0x8] sm:$0xf]
        %v9849 = vld [vmem:[%s9845 + $0xc] sm:$0xf]
        %v9850 = vld [vmem:[%s9845 + $0x10] sm:$0xf]
        %v9851 = vld [vmem:[%s9845 + $0x14] sm:$0xf]
        %v9852 = vld [vmem:[%s9845 + $0x18] sm:$0xf]
        %v9853 = vld [vmem:[%s9845 + $0x1c] sm:$0xf]
        %v9854 = vld [vmem:[%s9845 + $0x20] sm:$0xf]
        %v9855 = vld [vmem:[%s9845 + $0x24] sm:$0xf]
        %v9856 = vld [vmem:[%s9845 + $0x28] sm:$0xf]
        %v9857 = vld [vmem:[%s9845 + $0x2c] sm:$0xf]
        %v9858 = vld [vmem:[%s9845 + $0x30] sm:$0xf]
        %v9859 = vld [vmem:[%s9845 + $0x34] sm:$0xf]
        %v9860 = vld [vmem:[%s9845 + $0x38] sm:$0xf]
        %v9861 = vld [vmem:[%s9845 + $0x3c] sm:$0xf]
        %v9910 = vunpack.c.l.b16 %v9797
        %v9911 = vunpack.c.l.b16 %v9798
        %v9912 = vunpack.c.l.b16 %v9799
        %v9913 = vunpack.c.l.b16 %v9800
        %v9914 = vunpack.c.l.b16 %v9801
        %v9915 = vunpack.c.l.b16 %v9802
        %v9916 = vunpack.c.l.b16 %v9803
        %v9917 = vunpack.c.l.b16 %v9804
        %v9918 = vunpack.c.l.b16 %v9805
        %v9919 = vunpack.c.l.b16 %v9806
        %v9920 = vunpack.c.l.b16 %v9807
        %v9921 = vunpack.c.l.b16 %v9808
        %v9922 = vunpack.c.l.b16 %v9809
        %v9923 = vunpack.c.l.b16 %v9810
        %v9924 = vunpack.c.l.b16 %v9811
        %v9925 = vunpack.c.l.b16 %v9812
        %v9926 = vunpack.c.l.b16 %v9813
        %v9927 = vunpack.c.l.b16 %v9814
        %v9928 = vunpack.c.l.b16 %v9815
        %v9929 = vunpack.c.l.b16 %v9816
        %v9930 = vunpack.c.l.b16 %v9817
        %v9931 = vunpack.c.l.b16 %v9818
        %v9932 = vunpack.c.l.b16 %v9819
        %v9933 = vunpack.c.l.b16 %v9820
        %v9934 = vunpack.c.l.b16 %v9821
        %v9935 = vunpack.c.l.b16 %v9822
        %v9936 = vunpack.c.l.b16 %v9823
        %v9937 = vunpack.c.l.b16 %v9824
        %v9938 = vunpack.c.l.b16 %v9825
        %v9939 = vunpack.c.l.b16 %v9826
        %v9940 = vunpack.c.l.b16 %v9827
        %v9941 = vunpack.c.l.b16 %v9828
        %v9942 = vunpack.c.l.b16 %v9829
        %v9943 = vunpack.c.l.b16 %v9830
        %v9944 = vunpack.c.l.b16 %v9831
        %v9945 = vunpack.c.l.b16 %v9832
        %v9946 = vunpack.c.l.b16 %v9833
        %v9947 = vunpack.c.l.b16 %v9834
        %v9948 = vunpack.c.l.b16 %v9835
        %v9949 = vunpack.c.l.b16 %v9836
        %v9950 = vunpack.c.l.b16 %v9837
        %v9951 = vunpack.c.l.b16 %v9838
        %v9952 = vunpack.c.l.b16 %v9839
        %v9953 = vunpack.c.l.b16 %v9840
        %v9954 = vunpack.c.l.b16 %v9841
        %v9955 = vunpack.c.l.b16 %v9842
        %v9956 = vunpack.c.l.b16 %v9843
        %v9957 = vunpack.c.l.b16 %v9844
        %v9958 = vpack.c.b16 %v9911, %v9910
        %v9959 = vpack.c.b16 %v9913, %v9912
        %v9960 = vpack.c.b16 %v9915, %v9914
        %v9961 = vpack.c.b16 %v9917, %v9916
        %v9962 = vpack.c.b16 %v9919, %v9918
        %v9963 = vpack.c.b16 %v9921, %v9920
        %v9964 = vpack.c.b16 %v9923, %v9922
        %v9965 = vpack.c.b16 %v9925, %v9924
        %v9966 = vpack.c.b16 %v9927, %v9926
        %v9967 = vpack.c.b16 %v9929, %v9928
        %v9968 = vpack.c.b16 %v9931, %v9930
        %v9969 = vpack.c.b16 %v9933, %v9932
        %v9970 = vpack.c.b16 %v9935, %v9934
        %v9971 = vpack.c.b16 %v9937, %v9936
        %v9972 = vpack.c.b16 %v9939, %v9938
        %v9973 = vpack.c.b16 %v9941, %v9940
        %v9974 = vpack.c.b16 %v9943, %v9942
        %v9975 = vpack.c.b16 %v9945, %v9944
        %v9976 = vpack.c.b16 %v9947, %v9946
        %v9977 = vpack.c.b16 %v9949, %v9948
        %v9978 = vpack.c.b16 %v9951, %v9950
        %v9979 = vpack.c.b16 %v9953, %v9952
        %v9980 = vpack.c.b16 %v9955, %v9954
        %v9981 = vpack.c.b16 %v9957, %v9956
        %v10022 = vunpack.c.l.b16 %v9846
        %v10023 = vunpack.c.l.b16 %v9847
        %v10024 = vunpack.c.l.b16 %v9848
        %v10025 = vunpack.c.l.b16 %v9849
        %v10026 = vunpack.c.l.b16 %v9850
        %v10027 = vunpack.c.l.b16 %v9851
        %v10028 = vunpack.c.l.b16 %v9852
        %v10029 = vunpack.c.l.b16 %v9853
        %v10030 = vunpack.c.l.b16 %v9854
        %v10031 = vunpack.c.l.b16 %v9855
        %v10032 = vunpack.c.l.b16 %v9856
        %v10033 = vunpack.c.l.b16 %v9857
        %v10034 = vunpack.c.l.b16 %v9858
        %v10035 = vunpack.c.l.b16 %v9859
        %v10036 = vunpack.c.l.b16 %v9860
        %v10037 = vunpack.c.l.b16 %v9861
        %v10038 = vpack.c.b16 %v10023, %v10022
        %v10039 = vpack.c.b16 %v10025, %v10024
        %v10040 = vpack.c.b16 %v10027, %v10026
        %v10041 = vpack.c.b16 %v10029, %v10028
        %v10042 = vpack.c.b16 %v10031, %v10030
        %v10043 = vpack.c.b16 %v10033, %v10032
        %v10044 = vpack.c.b16 %v10035, %v10034
        %v10045 = vpack.c.b16 %v10037, %v10036
        %10054 = vmatprep.subr.bf16.mxu0 0
        %10055 = vmatpush1.bf16.msra.mxu0 %v10045
        %10056 = vmatprep.subr.bf16.mxu0 0
        %10057 = vmatpush1.bf16.msra.mxu0 %v10044
        %10058 = vmatprep.subr.bf16.mxu0 0
        %10059 = vmatpush1.bf16.msra.mxu0 %v10043
        %10060 = vmatprep.subr.bf16.mxu0 0
        %10061 = vmatpush1.bf16.msra.mxu0 %v10042
        %10062 = vmatprep.subr.bf16.mxu0 0
        %10063 = vmatpush1.bf16.msra.mxu0 %v10041
        %10064 = vmatprep.subr.bf16.mxu0 0
        %10065 = vmatpush1.bf16.msra.mxu0 %v10040
        %10066 = vmatprep.subr.bf16.mxu0 0
        %10067 = vmatpush1.bf16.msra.mxu0 %v10039
        %10068 = vmatprep.subr.bf16.mxu0 0
        %10069 = vmatpush1.bf16.msra.mxu0 %v10038
        %10070 = vmatprep.subr.bf16.mxu0 0
        %10071 = vmatpush2.bf16.msra.mxu0 0
        %10072 = vmatprep.subr.bf16.mxu0 0
        %10073 = vmatpush2.bf16.msra.mxu0 0
        %10074 = vmatprep.subr.bf16.mxu0 0
        %10075 = vmatpush2.bf16.msra.mxu0 0
        %10076 = vmatprep.subr.bf16.mxu0 0
        %10077 = vmatpush2.bf16.msra.mxu0 0
        %10078 = vmatprep.subr.bf16.mxu0 0
        %10079 = vmatpush2.bf16.msra.mxu0 0
        %10080 = vmatprep.subr.bf16.mxu0 0
        %10081 = vmatpush2.bf16.msra.mxu0 0
        %10082 = vmatprep.subr.bf16.mxu0 0
        %10083 = vmatpush2.bf16.msra.mxu0 0
        %10084 = vmatprep.subr.bf16.mxu0 0
        %10085 = vmatpush2.bf16.msra.mxu0 0
        %10086 = vmatprep.mubr.bf16.mxu0 0
        %10087 = vmatmul.mubr.bf16.gmra.mxu0 %v9958
        %v10088 = vpop.f32.mrf.mxu0
        %v10089 = vadd.f32 0.0, %v10088
        %v10090 = vpop.f32.mrf.mxu0
        %v10091 = vpop.f32.mrf.mxu0
        %v10092 = vadd.f32 0.0, %v10091
        %v10093 = vpop.f32.mrf.mxu0
        %10094 = vmatprep.mubr.bf16.mxu0 0
        %10095 = vmatmul.mubr.bf16.gmra.mxu0 %v9959
        %v10096 = vpop.f32.mrf.mxu0
        %v10097 = vadd.f32 0.0, %v10096
        %v10098 = vpop.f32.mrf.mxu0
        %v10099 = vpop.f32.mrf.mxu0
        %v10100 = vadd.f32 0.0, %v10099
        %v10101 = vpop.f32.mrf.mxu0
        %10102 = vmatprep.mubr.bf16.mxu0 0
        %10103 = vmatmul.mubr.bf16.gmra.mxu0 %v9960
        %v10104 = vpop.f32.mrf.mxu0
        %v10105 = vadd.f32 0.0, %v10104
        %v10106 = vpop.f32.mrf.mxu0
        %v10107 = vpop.f32.mrf.mxu0
        %v10108 = vadd.f32 0.0, %v10107
        %v10109 = vpop.f32.mrf.mxu0
        %10110 = vmatprep.mubr.bf16.mxu0 0
        %10111 = vmatmul.mubr.bf16.gmra.mxu0 %v9961
        %v10112 = vpop.f32.mrf.mxu0
        %v10113 = vadd.f32 0.0, %v10112
        %v10114 = vpop.f32.mrf.mxu0
        %v10115 = vpop.f32.mrf.mxu0
        %v10116 = vadd.f32 0.0, %v10115
        %v10117 = vpop.f32.mrf.mxu0
        %10118 = vmatprep.mubr.bf16.mxu0 0
        %10119 = vmatmul.mubr.bf16.gmra.mxu0 %v9962
        %v10120 = vpop.f32.mrf.mxu0
        %v10121 = vadd.f32 0.0, %v10120
        %v10122 = vpop.f32.mrf.mxu0
        %v10123 = vpop.f32.mrf.mxu0
        %v10124 = vadd.f32 0.0, %v10123
        %v10125 = vpop.f32.mrf.mxu0
        %10126 = vmatprep.mubr.bf16.mxu0 0
        %10127 = vmatmul.mubr.bf16.gmra.mxu0 %v9963
        %v10128 = vpop.f32.mrf.mxu0
        %v10129 = vadd.f32 0.0, %v10128
        %v10130 = vpop.f32.mrf.mxu0
        %v10131 = vpop.f32.mrf.mxu0
        %v10132 = vadd.f32 0.0, %v10131
        %v10133 = vpop.f32.mrf.mxu0
        %10134 = vmatprep.mubr.bf16.mxu0 0
        %10135 = vmatmul.mubr.bf16.gmra.mxu0 %v9964
        %v10136 = vpop.f32.mrf.mxu0
        %v10137 = vadd.f32 0.0, %v10136
        %v10138 = vpop.f32.mrf.mxu0
        %v10139 = vpop.f32.mrf.mxu0
        %v10140 = vadd.f32 0.0, %v10139
        %v10141 = vpop.f32.mrf.mxu0
        %10142 = vmatprep.mubr.bf16.mxu0 0
        %10143 = vmatmul.mubr.bf16.gmra.mxu0 %v9965
        %v10144 = vpop.f32.mrf.mxu0
        %v10145 = vadd.f32 0.0, %v10144
        %v10146 = vpop.f32.mrf.mxu0
        %v10147 = vpop.f32.mrf.mxu0
        %v10148 = vadd.f32 0.0, %v10147
        %v10149 = vpop.f32.mrf.mxu0
        %10150 = vmatprep.mubr.bf16.mxu0 0
        %10151 = vmatmul.mubr.bf16.gmra.mxu0 %v9966
        %v10152 = vpop.f32.mrf.mxu0
        %v10153 = vadd.f32 0.0, %v10152
        %v10154 = vpop.f32.mrf.mxu0
        %v10155 = vpop.f32.mrf.mxu0
        %v10156 = vadd.f32 0.0, %v10155
        %v10157 = vpop.f32.mrf.mxu0
        %10158 = vmatprep.mubr.bf16.mxu0 0
        %10159 = vmatmul.mubr.bf16.gmra.mxu0 %v9967
        %v10160 = vpop.f32.mrf.mxu0
        %v10161 = vadd.f32 0.0, %v10160
        %v10162 = vpop.f32.mrf.mxu0
        %v10163 = vpop.f32.mrf.mxu0
        %v10164 = vadd.f32 0.0, %v10163
        %v10165 = vpop.f32.mrf.mxu0
        %10166 = vmatprep.mubr.bf16.mxu0 0
        %10167 = vmatmul.mubr.bf16.gmra.mxu0 %v9968
        %v10168 = vpop.f32.mrf.mxu0
        %v10169 = vadd.f32 0.0, %v10168
        %v10170 = vpop.f32.mrf.mxu0
        %v10171 = vpop.f32.mrf.mxu0
        %v10172 = vadd.f32 0.0, %v10171
        %v10173 = vpop.f32.mrf.mxu0
        %10174 = vmatprep.mubr.bf16.mxu0 0
        %10175 = vmatmul.mubr.bf16.gmra.mxu0 %v9969
        %v10176 = vpop.f32.mrf.mxu0
        %v10177 = vadd.f32 0.0, %v10176
        %v10178 = vpop.f32.mrf.mxu0
        %v10179 = vpop.f32.mrf.mxu0
        %v10180 = vadd.f32 0.0, %v10179
        %v10181 = vpop.f32.mrf.mxu0
        %10182 = vmatprep.mubr.bf16.mxu0 0
        %10183 = vmatmul.mubr.bf16.gmra.mxu0 %v9970
        %v10184 = vpop.f32.mrf.mxu0
        %v10185 = vadd.f32 0.0, %v10184
        %v10186 = vpop.f32.mrf.mxu0
        %v10187 = vpop.f32.mrf.mxu0
        %v10188 = vadd.f32 0.0, %v10187
        %v10189 = vpop.f32.mrf.mxu0
        %10190 = vmatprep.mubr.bf16.mxu0 0
        %10191 = vmatmul.mubr.bf16.gmra.mxu0 %v9971
        %v10192 = vpop.f32.mrf.mxu0
        %v10193 = vadd.f32 0.0, %v10192
        %v10194 = vpop.f32.mrf.mxu0
        %v10195 = vpop.f32.mrf.mxu0
        %v10196 = vadd.f32 0.0, %v10195
        %v10197 = vpop.f32.mrf.mxu0
        %10198 = vmatprep.mubr.bf16.mxu0 0
        %10199 = vmatmul.mubr.bf16.gmra.mxu0 %v9972
        %v10200 = vpop.f32.mrf.mxu0
        %v10201 = vadd.f32 0.0, %v10200
        %v10202 = vpop.f32.mrf.mxu0
        %v10203 = vpop.f32.mrf.mxu0
        %v10204 = vadd.f32 0.0, %v10203
        %v10205 = vpop.f32.mrf.mxu0
        %10206 = vmatprep.mubr.bf16.mxu0 0
        %10207 = vmatmul.mubr.bf16.gmra.mxu0 %v9973
        %v10208 = vpop.f32.mrf.mxu0
        %v10209 = vadd.f32 0.0, %v10208
        %v10210 = vpop.f32.mrf.mxu0
        %v10211 = vpop.f32.mrf.mxu0
        %v10212 = vadd.f32 0.0, %v10211
        %v10213 = vpop.f32.mrf.mxu0
        %10214 = vmatprep.mubr.bf16.mxu0 0
        %10215 = vmatmul.mubr.bf16.gmra.mxu0 %v9974
        %v10216 = vpop.f32.mrf.mxu0
        %v10217 = vadd.f32 0.0, %v10216
        %v10218 = vpop.f32.mrf.mxu0
        %v10219 = vpop.f32.mrf.mxu0
        %v10220 = vadd.f32 0.0, %v10219
        %v10221 = vpop.f32.mrf.mxu0
        %10222 = vmatprep.mubr.bf16.mxu0 0
        %10223 = vmatmul.mubr.bf16.gmra.mxu0 %v9975
        %v10224 = vpop.f32.mrf.mxu0
        %v10225 = vadd.f32 0.0, %v10224
        %v10226 = vpop.f32.mrf.mxu0
        %v10227 = vpop.f32.mrf.mxu0
        %v10228 = vadd.f32 0.0, %v10227
        %v10229 = vpop.f32.mrf.mxu0
        %10230 = vmatprep.mubr.bf16.mxu0 0
        %10231 = vmatmul.mubr.bf16.gmra.mxu0 %v9976
        %v10232 = vpop.f32.mrf.mxu0
        %v10233 = vadd.f32 0.0, %v10232
        %v10234 = vpop.f32.mrf.mxu0
        %v10235 = vpop.f32.mrf.mxu0
        %v10236 = vadd.f32 0.0, %v10235
        %v10237 = vpop.f32.mrf.mxu0
        %10238 = vmatprep.mubr.bf16.mxu0 0
        %10239 = vmatmul.mubr.bf16.gmra.mxu0 %v9977
        %v10240 = vpop.f32.mrf.mxu0
        %v10241 = vadd.f32 0.0, %v10240
        %v10242 = vpop.f32.mrf.mxu0
        %v10243 = vpop.f32.mrf.mxu0
        %v10244 = vadd.f32 0.0, %v10243
        %v10245 = vpop.f32.mrf.mxu0
        %10246 = vmatprep.mubr.bf16.mxu0 0
        %10247 = vmatmul.mubr.bf16.gmra.mxu0 %v9978
        %v10248 = vpop.f32.mrf.mxu0
        %v10249 = vadd.f32 0.0, %v10248
        %v10250 = vpop.f32.mrf.mxu0
        %v10251 = vpop.f32.mrf.mxu0
        %v10252 = vadd.f32 0.0, %v10251
        %v10253 = vpop.f32.mrf.mxu0
        %10254 = vmatprep.mubr.bf16.mxu0 0
        %10255 = vmatmul.mubr.bf16.gmra.mxu0 %v9979
        %v10256 = vpop.f32.mrf.mxu0
        %v10257 = vadd.f32 0.0, %v10256
        %v10258 = vpop.f32.mrf.mxu0
        %v10259 = vpop.f32.mrf.mxu0
        %v10260 = vadd.f32 0.0, %v10259
        %v10261 = vpop.f32.mrf.mxu0
        %10262 = vmatprep.mubr.bf16.mxu0 0
        %10263 = vmatmul.mubr.bf16.gmra.mxu0 %v9980
        %v10264 = vpop.f32.mrf.mxu0
        %v10265 = vadd.f32 0.0, %v10264
        %v10266 = vpop.f32.mrf.mxu0
        %v10267 = vpop.f32.mrf.mxu0
        %v10268 = vadd.f32 0.0, %v10267
        %v10269 = vpop.f32.mrf.mxu0
        %10270 = vmatprep.mubr.bf16.mxu0 0
        %10271 = vmatmul.mubr.bf16.gmra.mxu0 %v9981
        %v10272 = vpop.f32.mrf.mxu0
        %v10273 = vadd.f32 0.0, %v10272
        %v10274 = vpop.f32.mrf.mxu0
        %v10275 = vpop.f32.mrf.mxu0
        %v10276 = vadd.f32 0.0, %v10275
        %v10277 = vpop.f32.mrf.mxu0
        %10278 = vdwg.mxu0
        %v10279 = vadd.f32 %v9749, %v10089
        %v10280 = vadd.f32 %v9750, %v10092
        %v10281 = vadd.f32 %v9751, %v10097
        %v10282 = vadd.f32 %v9752, %v10100
        %v10283 = vadd.f32 %v9753, %v10105
        %v10284 = vadd.f32 %v9754, %v10108
        %v10285 = vadd.f32 %v9755, %v10113
        %v10286 = vadd.f32 %v9756, %v10116
        %v10287 = vadd.f32 %v9757, %v10121
        %v10288 = vadd.f32 %v9758, %v10124
        %v10289 = vadd.f32 %v9759, %v10129
        %v10290 = vadd.f32 %v9760, %v10132
        %v10291 = vadd.f32 %v9761, %v10137
        %v10292 = vadd.f32 %v9762, %v10140
        %v10293 = vadd.f32 %v9763, %v10145
        %v10294 = vadd.f32 %v9764, %v10148
        %v10295 = vadd.f32 %v9765, %v10153
        %v10296 = vadd.f32 %v9766, %v10156
        %v10297 = vadd.f32 %v9767, %v10161
        %v10298 = vadd.f32 %v9768, %v10164
        %v10299 = vadd.f32 %v9769, %v10169
        %v10300 = vadd.f32 %v9770, %v10172
        %v10301 = vadd.f32 %v9771, %v10177
        %v10302 = vadd.f32 %v9772, %v10180
        %v10303 = vadd.f32 %v9773, %v10185
        %v10304 = vadd.f32 %v9774, %v10188
        %v10305 = vadd.f32 %v9775, %v10193
        %v10306 = vadd.f32 %v9776, %v10196
        %v10307 = vadd.f32 %v9777, %v10201
        %v10308 = vadd.f32 %v9778, %v10204
        %v10309 = vadd.f32 %v9779, %v10209
        %v10310 = vadd.f32 %v9780, %v10212
        %v10311 = vadd.f32 %v9781, %v10217
        %v10312 = vadd.f32 %v9782, %v10220
        %v10313 = vadd.f32 %v9783, %v10225
        %v10314 = vadd.f32 %v9784, %v10228
        %v10315 = vadd.f32 %v9785, %v10233
        %v10316 = vadd.f32 %v9786, %v10236
        %v10317 = vadd.f32 %v9787, %v10241
        %v10318 = vadd.f32 %v9788, %v10244
        %v10319 = vadd.f32 %v9789, %v10249
        %v10320 = vadd.f32 %v9790, %v10252
        %v10321 = vadd.f32 %v9791, %v10257
        %v10322 = vadd.f32 %v9792, %v10260
        %v10323 = vadd.f32 %v9793, %v10265
        %v10324 = vadd.f32 %v9794, %v10268
        %v10325 = vadd.f32 %v9795, %v10273
        %v10326 = vadd.f32 %v9796, %v10276
        %v10327 = vld [vmem:[#allocation2 + $0x18] sm:$0xf]
        %v10328 = vld [vmem:[#allocation2 + $0x1c] sm:$0xf]
        %v10329 = vld [vmem:[#allocation2 + $0x20] sm:$0xf]
        %v10330 = vld [vmem:[#allocation2 + $0x24] sm:$0xf]
        %v10331 = vld [vmem:[#allocation2 + $0x28] sm:$0xf]
        %v10332 = vld [vmem:[#allocation2 + $0x2c] sm:$0xf]
        %v10333 = vld [vmem:[#allocation2 + $0x30] sm:$0xf]
        %v10334 = vld [vmem:[#allocation2 + $0x34] sm:$0xf]
        %v10335 = vld [vmem:[#allocation2 + $0x38] sm:$0xf]
        %v10336 = vld [vmem:[#allocation2 + $0x3c] sm:$0xf]
        %v10337 = vld [vmem:[#allocation2 + $0x40] sm:$0xf]
        %v10338 = vld [vmem:[#allocation2 + $0x44] sm:$0xf]
        %v10339 = vld [vmem:[#allocation2 + $0x48] sm:$0xf]
        %v10340 = vld [vmem:[#allocation2 + $0x4c] sm:$0xf]
        %v10341 = vld [vmem:[#allocation2 + $0x50] sm:$0xf]
        %v10342 = vld [vmem:[#allocation2 + $0x54] sm:$0xf]
        %v10343 = vld [vmem:[#allocation2 + $0x58] sm:$0xf]
        %v10344 = vld [vmem:[#allocation2 + $0x5c] sm:$0xf]
        %v10345 = vld [vmem:[#allocation2 + $0x60] sm:$0xf]
        %v10346 = vld [vmem:[#allocation2 + $0x64] sm:$0xf]
        %v10347 = vld [vmem:[#allocation2 + $0x68] sm:$0xf]
        %v10348 = vld [vmem:[#allocation2 + $0x6c] sm:$0xf]
        %v10349 = vld [vmem:[#allocation2 + $0x70] sm:$0xf]
        %v10350 = vld [vmem:[#allocation2 + $0x74] sm:$0xf]
        %v10351 = vld [vmem:[#allocation2 + $0x78] sm:$0xf]
        %v10352 = vld [vmem:[#allocation2 + $0x7c] sm:$0xf]
        %v10353 = vld [vmem:[#allocation2 + $0x80] sm:$0xf]
        %v10354 = vld [vmem:[#allocation2 + $0x84] sm:$0xf]
        %v10355 = vld [vmem:[#allocation2 + $0x88] sm:$0xf]
        %v10356 = vld [vmem:[#allocation2 + $0x8c] sm:$0xf]
        %v10357 = vld [vmem:[#allocation2 + $0x90] sm:$0xf]
        %v10358 = vld [vmem:[#allocation2 + $0x94] sm:$0xf]
        %v10359 = vld [vmem:[#allocation2 + $0x98] sm:$0xf]
        %v10360 = vld [vmem:[#allocation2 + $0x9c] sm:$0xf]
        %v10361 = vld [vmem:[#allocation2 + $0xa0] sm:$0xf]
        %v10362 = vld [vmem:[#allocation2 + $0xa4] sm:$0xf]
        %v10363 = vld [vmem:[#allocation2 + $0xa8] sm:$0xf]
        %v10364 = vld [vmem:[#allocation2 + $0xac] sm:$0xf]
        %v10365 = vld [vmem:[#allocation2 + $0xb0] sm:$0xf]
        %v10366 = vld [vmem:[#allocation2 + $0xb4] sm:$0xf]
        %v10367 = vld [vmem:[#allocation2 + $0xb8] sm:$0xf]
        %v10368 = vld [vmem:[#allocation2 + $0xbc] sm:$0xf]
        %v10369 = vld [vmem:[#allocation2 + $0xc0] sm:$0xf]
        %v10370 = vld [vmem:[#allocation2 + $0xc4] sm:$0xf]
        %v10371 = vld [vmem:[#allocation2 + $0xc8] sm:$0xf]
        %v10372 = vld [vmem:[#allocation2 + $0xcc] sm:$0xf]
        %v10373 = vld [vmem:[#allocation2 + $0xd0] sm:$0xf]
        %v10374 = vld [vmem:[#allocation2 + $0xd4] sm:$0xf]
        %v10375 = vld [vmem:[#allocation2 + $0xd8] sm:$0x1]
        %s10376 = scalar_lea.vmem [#allocation8], 448
        %v10377 = vld [vmem:[%s10376] sm:$0xf]
        %v10378 = vld [vmem:[%s10376 + $0x4] sm:$0xf]
        %v10379 = vld [vmem:[%s10376 + $0x8] sm:$0xf]
        %v10380 = vld [vmem:[%s10376 + $0xc] sm:$0xf]
        %v10381 = vld [vmem:[%s10376 + $0x10] sm:$0xf]
        %v10382 = vld [vmem:[%s10376 + $0x14] sm:$0xf]
        %v10383 = vld [vmem:[%s10376 + $0x18] sm:$0xf]
        %v10384 = vld [vmem:[%s10376 + $0x1c] sm:$0xf]
        %v10385 = vld [vmem:[%s10376 + $0x20] sm:$0xf]
        %v10386 = vld [vmem:[%s10376 + $0x24] sm:$0xf]
        %v10387 = vld [vmem:[%s10376 + $0x28] sm:$0xf]
        %v10388 = vld [vmem:[%s10376 + $0x2c] sm:$0xf]
        %v10389 = vld [vmem:[%s10376 + $0x30] sm:$0xf]
        %v10390 = vld [vmem:[%s10376 + $0x34] sm:$0xf]
        %v10391 = vld [vmem:[%s10376 + $0x38] sm:$0xf]
        %v10392 = vld [vmem:[%s10376 + $0x3c] sm:$0xf]
        %v10442 = vunpack.c.l.b16 %v10327
        %v10443 = vunpack.c.l.b16 %v10328
        %v10444 = vunpack.c.l.b16 %v10329
        %v10445 = vunpack.c.l.b16 %v10330
        %v10446 = vunpack.c.l.b16 %v10331
        %v10447 = vunpack.c.l.b16 %v10332
        %v10448 = vunpack.c.l.b16 %v10333
        %v10449 = vunpack.c.l.b16 %v10334
        %v10450 = vunpack.c.l.b16 %v10335
        %v10451 = vunpack.c.l.b16 %v10336
        %v10452 = vunpack.c.l.b16 %v10337
        %v10453 = vunpack.c.l.b16 %v10338
        %v10454 = vunpack.c.l.b16 %v10339
        %v10455 = vunpack.c.l.b16 %v10340
        %v10456 = vunpack.c.l.b16 %v10341
        %v10457 = vunpack.c.l.b16 %v10342
        %v10458 = vunpack.c.l.b16 %v10343
        %v10459 = vunpack.c.l.b16 %v10344
        %v10460 = vunpack.c.l.b16 %v10345
        %v10461 = vunpack.c.l.b16 %v10346
        %v10462 = vunpack.c.l.b16 %v10347
        %v10463 = vunpack.c.l.b16 %v10348
        %v10464 = vunpack.c.l.b16 %v10349
        %v10465 = vunpack.c.l.b16 %v10350
        %v10466 = vunpack.c.l.b16 %v10351
        %v10467 = vunpack.c.l.b16 %v10352
        %v10468 = vunpack.c.l.b16 %v10353
        %v10469 = vunpack.c.l.b16 %v10354
        %v10470 = vunpack.c.l.b16 %v10355
        %v10471 = vunpack.c.l.b16 %v10356
        %v10472 = vunpack.c.l.b16 %v10357
        %v10473 = vunpack.c.l.b16 %v10358
        %v10474 = vunpack.c.l.b16 %v10359
        %v10475 = vunpack.c.l.b16 %v10360
        %v10476 = vunpack.c.l.b16 %v10361
        %v10477 = vunpack.c.l.b16 %v10362
        %v10478 = vunpack.c.l.b16 %v10363
        %v10479 = vunpack.c.l.b16 %v10364
        %v10480 = vunpack.c.l.b16 %v10365
        %v10481 = vunpack.c.l.b16 %v10366
        %v10482 = vunpack.c.l.b16 %v10367
        %v10483 = vunpack.c.l.b16 %v10368
        %v10484 = vunpack.c.l.b16 %v10369
        %v10485 = vunpack.c.l.b16 %v10370
        %v10486 = vunpack.c.l.b16 %v10371
        %v10487 = vunpack.c.l.b16 %v10372
        %v10488 = vunpack.c.l.b16 %v10373
        %v10489 = vunpack.c.l.b16 %v10374
        %v10490 = vunpack.c.l.b16 %v10375
        %v10491 = vpack.c.b16 %v10443, %v10442
        %v10492 = vpack.c.b16 %v10445, %v10444
        %v10493 = vpack.c.b16 %v10447, %v10446
        %v10494 = vpack.c.b16 %v10449, %v10448
        %v10495 = vpack.c.b16 %v10451, %v10450
        %v10496 = vpack.c.b16 %v10453, %v10452
        %v10497 = vpack.c.b16 %v10455, %v10454
        %v10498 = vpack.c.b16 %v10457, %v10456
        %v10499 = vpack.c.b16 %v10459, %v10458
        %v10500 = vpack.c.b16 %v10461, %v10460
        %v10501 = vpack.c.b16 %v10463, %v10462
        %v10502 = vpack.c.b16 %v10465, %v10464
        %v10503 = vpack.c.b16 %v10467, %v10466
        %v10504 = vpack.c.b16 %v10469, %v10468
        %v10505 = vpack.c.b16 %v10471, %v10470
        %v10506 = vpack.c.b16 %v10473, %v10472
        %v10507 = vpack.c.b16 %v10475, %v10474
        %v10508 = vpack.c.b16 %v10477, %v10476
        %v10509 = vpack.c.b16 %v10479, %v10478
        %v10510 = vpack.c.b16 %v10481, %v10480
        %v10511 = vpack.c.b16 %v10483, %v10482
        %v10512 = vpack.c.b16 %v10485, %v10484
        %v10513 = vpack.c.b16 %v10487, %v10486
        %v10514 = vpack.c.b16 %v10489, %v10488
        %v10515 = vpack.c.b16 %v10490, %v10490
        %v10517 = vshrl.u32 %v10491, 16
        %v10519 = vshll.u32 %v10491, 16
        %v10521 = vrot.slane %v10519, 1
        %v10522 = vor.u32 %v10517, %v10521
        %v10524 = vshll.u32 %v10492, 16
        %v10526 = vrot.slane %v10524, 1
        %v10527 = vsel %vm661, %v10522, %v10526
        %v10528 = vshrl.u32 %v10492, 16
        %v10530 = vor.u32 %v10528, %v10526
        %v10532 = vshll.u32 %v10493, 16
        %v10534 = vrot.slane %v10532, 1
        %v10535 = vsel %vm661, %v10530, %v10534
        %v10536 = vshrl.u32 %v10493, 16
        %v10538 = vor.u32 %v10536, %v10534
        %v10540 = vshll.u32 %v10494, 16
        %v10542 = vrot.slane %v10540, 1
        %v10543 = vsel %vm661, %v10538, %v10542
        %v10544 = vshrl.u32 %v10494, 16
        %v10546 = vor.u32 %v10544, %v10542
        %v10548 = vshll.u32 %v10495, 16
        %v10550 = vrot.slane %v10548, 1
        %v10551 = vsel %vm661, %v10546, %v10550
        %v10552 = vshrl.u32 %v10495, 16
        %v10554 = vor.u32 %v10552, %v10550
        %v10556 = vshll.u32 %v10496, 16
        %v10558 = vrot.slane %v10556, 1
        %v10559 = vsel %vm661, %v10554, %v10558
        %v10560 = vshrl.u32 %v10496, 16
        %v10562 = vor.u32 %v10560, %v10558
        %v10564 = vshll.u32 %v10497, 16
        %v10566 = vrot.slane %v10564, 1
        %v10567 = vsel %vm661, %v10562, %v10566
        %v10568 = vshrl.u32 %v10497, 16
        %v10570 = vor.u32 %v10568, %v10566
        %v10572 = vshll.u32 %v10498, 16
        %v10574 = vrot.slane %v10572, 1
        %v10575 = vsel %vm661, %v10570, %v10574
        %v10576 = vshrl.u32 %v10498, 16
        %v10578 = vor.u32 %v10576, %v10574
        %v10580 = vshll.u32 %v10499, 16
        %v10582 = vrot.slane %v10580, 1
        %v10583 = vsel %vm661, %v10578, %v10582
        %v10584 = vshrl.u32 %v10499, 16
        %v10586 = vor.u32 %v10584, %v10582
        %v10588 = vshll.u32 %v10500, 16
        %v10590 = vrot.slane %v10588, 1
        %v10591 = vsel %vm661, %v10586, %v10590
        %v10592 = vshrl.u32 %v10500, 16
        %v10594 = vor.u32 %v10592, %v10590
        %v10596 = vshll.u32 %v10501, 16
        %v10598 = vrot.slane %v10596, 1
        %v10599 = vsel %vm661, %v10594, %v10598
        %v10600 = vshrl.u32 %v10501, 16
        %v10602 = vor.u32 %v10600, %v10598
        %v10604 = vshll.u32 %v10502, 16
        %v10606 = vrot.slane %v10604, 1
        %v10607 = vsel %vm661, %v10602, %v10606
        %v10608 = vshrl.u32 %v10502, 16
        %v10610 = vor.u32 %v10608, %v10606
        %v10612 = vshll.u32 %v10503, 16
        %v10614 = vrot.slane %v10612, 1
        %v10615 = vsel %vm661, %v10610, %v10614
        %v10616 = vshrl.u32 %v10503, 16
        %v10618 = vor.u32 %v10616, %v10614
        %v10620 = vshll.u32 %v10504, 16
        %v10622 = vrot.slane %v10620, 1
        %v10623 = vsel %vm661, %v10618, %v10622
        %v10624 = vshrl.u32 %v10504, 16
        %v10626 = vor.u32 %v10624, %v10622
        %v10628 = vshll.u32 %v10505, 16
        %v10630 = vrot.slane %v10628, 1
        %v10631 = vsel %vm661, %v10626, %v10630
        %v10632 = vshrl.u32 %v10505, 16
        %v10634 = vor.u32 %v10632, %v10630
        %v10636 = vshll.u32 %v10506, 16
        %v10638 = vrot.slane %v10636, 1
        %v10639 = vsel %vm661, %v10634, %v10638
        %v10640 = vshrl.u32 %v10506, 16
        %v10642 = vor.u32 %v10640, %v10638
        %v10644 = vshll.u32 %v10507, 16
        %v10646 = vrot.slane %v10644, 1
        %v10647 = vsel %vm661, %v10642, %v10646
        %v10648 = vshrl.u32 %v10507, 16
        %v10650 = vor.u32 %v10648, %v10646
        %v10652 = vshll.u32 %v10508, 16
        %v10654 = vrot.slane %v10652, 1
        %v10655 = vsel %vm661, %v10650, %v10654
        %v10656 = vshrl.u32 %v10508, 16
        %v10658 = vor.u32 %v10656, %v10654
        %v10660 = vshll.u32 %v10509, 16
        %v10662 = vrot.slane %v10660, 1
        %v10663 = vsel %vm661, %v10658, %v10662
        %v10664 = vshrl.u32 %v10509, 16
        %v10666 = vor.u32 %v10664, %v10662
        %v10668 = vshll.u32 %v10510, 16
        %v10670 = vrot.slane %v10668, 1
        %v10671 = vsel %vm661, %v10666, %v10670
        %v10672 = vshrl.u32 %v10510, 16
        %v10674 = vor.u32 %v10672, %v10670
        %v10676 = vshll.u32 %v10511, 16
        %v10678 = vrot.slane %v10676, 1
        %v10679 = vsel %vm661, %v10674, %v10678
        %v10680 = vshrl.u32 %v10511, 16
        %v10682 = vor.u32 %v10680, %v10678
        %v10684 = vshll.u32 %v10512, 16
        %v10686 = vrot.slane %v10684, 1
        %v10687 = vsel %vm661, %v10682, %v10686
        %v10688 = vshrl.u32 %v10512, 16
        %v10690 = vor.u32 %v10688, %v10686
        %v10692 = vshll.u32 %v10513, 16
        %v10694 = vrot.slane %v10692, 1
        %v10695 = vsel %vm661, %v10690, %v10694
        %v10696 = vshrl.u32 %v10513, 16
        %v10698 = vor.u32 %v10696, %v10694
        %v10700 = vshll.u32 %v10514, 16
        %v10702 = vrot.slane %v10700, 1
        %v10703 = vsel %vm661, %v10698, %v10702
        %v10704 = vshrl.u32 %v10514, 16
        %v10706 = vor.u32 %v10704, %v10702
        %v10708 = vshll.u32 %v10515, 16
        %v10710 = vrot.slane %v10708, 1
        %v10711 = vsel %vm661, %v10706, %v10710
        %v10752 = vunpack.c.l.b16 %v10377
        %v10753 = vunpack.c.l.b16 %v10378
        %v10754 = vunpack.c.l.b16 %v10379
        %v10755 = vunpack.c.l.b16 %v10380
        %v10756 = vunpack.c.l.b16 %v10381
        %v10757 = vunpack.c.l.b16 %v10382
        %v10758 = vunpack.c.l.b16 %v10383
        %v10759 = vunpack.c.l.b16 %v10384
        %v10760 = vunpack.c.l.b16 %v10385
        %v10761 = vunpack.c.l.b16 %v10386
        %v10762 = vunpack.c.l.b16 %v10387
        %v10763 = vunpack.c.l.b16 %v10388
        %v10764 = vunpack.c.l.b16 %v10389
        %v10765 = vunpack.c.l.b16 %v10390
        %v10766 = vunpack.c.l.b16 %v10391
        %v10767 = vunpack.c.l.b16 %v10392
        %v10768 = vpack.c.b16 %v10753, %v10752
        %v10769 = vpack.c.b16 %v10755, %v10754
        %v10770 = vpack.c.b16 %v10757, %v10756
        %v10771 = vpack.c.b16 %v10759, %v10758
        %v10772 = vpack.c.b16 %v10761, %v10760
        %v10773 = vpack.c.b16 %v10763, %v10762
        %v10774 = vpack.c.b16 %v10765, %v10764
        %v10775 = vpack.c.b16 %v10767, %v10766
        %10784 = vmatprep.subr.bf16.mxu0 0
        %10785 = vmatpush1.bf16.msra.mxu0 %v10775
        %10786 = vmatprep.subr.bf16.mxu0 0
        %10787 = vmatpush1.bf16.msra.mxu0 %v10774
        %10788 = vmatprep.subr.bf16.mxu0 0
        %10789 = vmatpush1.bf16.msra.mxu0 %v10773
        %10790 = vmatprep.subr.bf16.mxu0 0
        %10791 = vmatpush1.bf16.msra.mxu0 %v10772
        %10792 = vmatprep.subr.bf16.mxu0 0
        %10793 = vmatpush1.bf16.msra.mxu0 %v10771
        %10794 = vmatprep.subr.bf16.mxu0 0
        %10795 = vmatpush1.bf16.msra.mxu0 %v10770
        %10796 = vmatprep.subr.bf16.mxu0 0
        %10797 = vmatpush1.bf16.msra.mxu0 %v10769
        %10798 = vmatprep.subr.bf16.mxu0 0
        %10799 = vmatpush1.bf16.msra.mxu0 %v10768
        %10800 = vmatprep.subr.bf16.mxu0 0
        %10801 = vmatpush2.bf16.msra.mxu0 0
        %10802 = vmatprep.subr.bf16.mxu0 0
        %10803 = vmatpush2.bf16.msra.mxu0 0
        %10804 = vmatprep.subr.bf16.mxu0 0
        %10805 = vmatpush2.bf16.msra.mxu0 0
        %10806 = vmatprep.subr.bf16.mxu0 0
        %10807 = vmatpush2.bf16.msra.mxu0 0
        %10808 = vmatprep.subr.bf16.mxu0 0
        %10809 = vmatpush2.bf16.msra.mxu0 0
        %10810 = vmatprep.subr.bf16.mxu0 0
        %10811 = vmatpush2.bf16.msra.mxu0 0
        %10812 = vmatprep.subr.bf16.mxu0 0
        %10813 = vmatpush2.bf16.msra.mxu0 0
        %10814 = vmatprep.subr.bf16.mxu0 0
        %10815 = vmatpush2.bf16.msra.mxu0 0
        %10816 = vmatprep.mubr.bf16.mxu0 0
        %10817 = vmatmul.mubr.bf16.gmra.mxu0 %v10527
        %v10818 = vpop.f32.mrf.mxu0
        %v10819 = vadd.f32 0.0, %v10818
        %v10820 = vpop.f32.mrf.mxu0
        %v10821 = vpop.f32.mrf.mxu0
        %v10822 = vadd.f32 0.0, %v10821
        %v10823 = vpop.f32.mrf.mxu0
        %10824 = vmatprep.mubr.bf16.mxu0 0
        %10825 = vmatmul.mubr.bf16.gmra.mxu0 %v10535
        %v10826 = vpop.f32.mrf.mxu0
        %v10827 = vadd.f32 0.0, %v10826
        %v10828 = vpop.f32.mrf.mxu0
        %v10829 = vpop.f32.mrf.mxu0
        %v10830 = vadd.f32 0.0, %v10829
        %v10831 = vpop.f32.mrf.mxu0
        %10832 = vmatprep.mubr.bf16.mxu0 0
        %10833 = vmatmul.mubr.bf16.gmra.mxu0 %v10543
        %v10834 = vpop.f32.mrf.mxu0
        %v10835 = vadd.f32 0.0, %v10834
        %v10836 = vpop.f32.mrf.mxu0
        %v10837 = vpop.f32.mrf.mxu0
        %v10838 = vadd.f32 0.0, %v10837
        %v10839 = vpop.f32.mrf.mxu0
        %10840 = vmatprep.mubr.bf16.mxu0 0
        %10841 = vmatmul.mubr.bf16.gmra.mxu0 %v10551
        %v10842 = vpop.f32.mrf.mxu0
        %v10843 = vadd.f32 0.0, %v10842
        %v10844 = vpop.f32.mrf.mxu0
        %v10845 = vpop.f32.mrf.mxu0
        %v10846 = vadd.f32 0.0, %v10845
        %v10847 = vpop.f32.mrf.mxu0
        %10848 = vmatprep.mubr.bf16.mxu0 0
        %10849 = vmatmul.mubr.bf16.gmra.mxu0 %v10559
        %v10850 = vpop.f32.mrf.mxu0
        %v10851 = vadd.f32 0.0, %v10850
        %v10852 = vpop.f32.mrf.mxu0
        %v10853 = vpop.f32.mrf.mxu0
        %v10854 = vadd.f32 0.0, %v10853
        %v10855 = vpop.f32.mrf.mxu0
        %10856 = vmatprep.mubr.bf16.mxu0 0
        %10857 = vmatmul.mubr.bf16.gmra.mxu0 %v10567
        %v10858 = vpop.f32.mrf.mxu0
        %v10859 = vadd.f32 0.0, %v10858
        %v10860 = vpop.f32.mrf.mxu0
        %v10861 = vpop.f32.mrf.mxu0
        %v10862 = vadd.f32 0.0, %v10861
        %v10863 = vpop.f32.mrf.mxu0
        %10864 = vmatprep.mubr.bf16.mxu0 0
        %10865 = vmatmul.mubr.bf16.gmra.mxu0 %v10575
        %v10866 = vpop.f32.mrf.mxu0
        %v10867 = vadd.f32 0.0, %v10866
        %v10868 = vpop.f32.mrf.mxu0
        %v10869 = vpop.f32.mrf.mxu0
        %v10870 = vadd.f32 0.0, %v10869
        %v10871 = vpop.f32.mrf.mxu0
        %10872 = vmatprep.mubr.bf16.mxu0 0
        %10873 = vmatmul.mubr.bf16.gmra.mxu0 %v10583
        %v10874 = vpop.f32.mrf.mxu0
        %v10875 = vadd.f32 0.0, %v10874
        %v10876 = vpop.f32.mrf.mxu0
        %v10877 = vpop.f32.mrf.mxu0
        %v10878 = vadd.f32 0.0, %v10877
        %v10879 = vpop.f32.mrf.mxu0
        %10880 = vmatprep.mubr.bf16.mxu0 0
        %10881 = vmatmul.mubr.bf16.gmra.mxu0 %v10591
        %v10882 = vpop.f32.mrf.mxu0
        %v10883 = vadd.f32 0.0, %v10882
        %v10884 = vpop.f32.mrf.mxu0
        %v10885 = vpop.f32.mrf.mxu0
        %v10886 = vadd.f32 0.0, %v10885
        %v10887 = vpop.f32.mrf.mxu0
        %10888 = vmatprep.mubr.bf16.mxu0 0
        %10889 = vmatmul.mubr.bf16.gmra.mxu0 %v10599
        %v10890 = vpop.f32.mrf.mxu0
        %v10891 = vadd.f32 0.0, %v10890
        %v10892 = vpop.f32.mrf.mxu0
        %v10893 = vpop.f32.mrf.mxu0
        %v10894 = vadd.f32 0.0, %v10893
        %v10895 = vpop.f32.mrf.mxu0
        %10896 = vmatprep.mubr.bf16.mxu0 0
        %10897 = vmatmul.mubr.bf16.gmra.mxu0 %v10607
        %v10898 = vpop.f32.mrf.mxu0
        %v10899 = vadd.f32 0.0, %v10898
        %v10900 = vpop.f32.mrf.mxu0
        %v10901 = vpop.f32.mrf.mxu0
        %v10902 = vadd.f32 0.0, %v10901
        %v10903 = vpop.f32.mrf.mxu0
        %10904 = vmatprep.mubr.bf16.mxu0 0
        %10905 = vmatmul.mubr.bf16.gmra.mxu0 %v10615
        %v10906 = vpop.f32.mrf.mxu0
        %v10907 = vadd.f32 0.0, %v10906
        %v10908 = vpop.f32.mrf.mxu0
        %v10909 = vpop.f32.mrf.mxu0
        %v10910 = vadd.f32 0.0, %v10909
        %v10911 = vpop.f32.mrf.mxu0
        %10912 = vmatprep.mubr.bf16.mxu0 0
        %10913 = vmatmul.mubr.bf16.gmra.mxu0 %v10623
        %v10914 = vpop.f32.mrf.mxu0
        %v10915 = vadd.f32 0.0, %v10914
        %v10916 = vpop.f32.mrf.mxu0
        %v10917 = vpop.f32.mrf.mxu0
        %v10918 = vadd.f32 0.0, %v10917
        %v10919 = vpop.f32.mrf.mxu0
        %10920 = vmatprep.mubr.bf16.mxu0 0
        %10921 = vmatmul.mubr.bf16.gmra.mxu0 %v10631
        %v10922 = vpop.f32.mrf.mxu0
        %v10923 = vadd.f32 0.0, %v10922
        %v10924 = vpop.f32.mrf.mxu0
        %v10925 = vpop.f32.mrf.mxu0
        %v10926 = vadd.f32 0.0, %v10925
        %v10927 = vpop.f32.mrf.mxu0
        %10928 = vmatprep.mubr.bf16.mxu0 0
        %10929 = vmatmul.mubr.bf16.gmra.mxu0 %v10639
        %v10930 = vpop.f32.mrf.mxu0
        %v10931 = vadd.f32 0.0, %v10930
        %v10932 = vpop.f32.mrf.mxu0
        %v10933 = vpop.f32.mrf.mxu0
        %v10934 = vadd.f32 0.0, %v10933
        %v10935 = vpop.f32.mrf.mxu0
        %10936 = vmatprep.mubr.bf16.mxu0 0
        %10937 = vmatmul.mubr.bf16.gmra.mxu0 %v10647
        %v10938 = vpop.f32.mrf.mxu0
        %v10939 = vadd.f32 0.0, %v10938
        %v10940 = vpop.f32.mrf.mxu0
        %v10941 = vpop.f32.mrf.mxu0
        %v10942 = vadd.f32 0.0, %v10941
        %v10943 = vpop.f32.mrf.mxu0
        %10944 = vmatprep.mubr.bf16.mxu0 0
        %10945 = vmatmul.mubr.bf16.gmra.mxu0 %v10655
        %v10946 = vpop.f32.mrf.mxu0
        %v10947 = vadd.f32 0.0, %v10946
        %v10948 = vpop.f32.mrf.mxu0
        %v10949 = vpop.f32.mrf.mxu0
        %v10950 = vadd.f32 0.0, %v10949
        %v10951 = vpop.f32.mrf.mxu0
        %10952 = vmatprep.mubr.bf16.mxu0 0
        %10953 = vmatmul.mubr.bf16.gmra.mxu0 %v10663
        %v10954 = vpop.f32.mrf.mxu0
        %v10955 = vadd.f32 0.0, %v10954
        %v10956 = vpop.f32.mrf.mxu0
        %v10957 = vpop.f32.mrf.mxu0
        %v10958 = vadd.f32 0.0, %v10957
        %v10959 = vpop.f32.mrf.mxu0
        %10960 = vmatprep.mubr.bf16.mxu0 0
        %10961 = vmatmul.mubr.bf16.gmra.mxu0 %v10671
        %v10962 = vpop.f32.mrf.mxu0
        %v10963 = vadd.f32 0.0, %v10962
        %v10964 = vpop.f32.mrf.mxu0
        %v10965 = vpop.f32.mrf.mxu0
        %v10966 = vadd.f32 0.0, %v10965
        %v10967 = vpop.f32.mrf.mxu0
        %10968 = vmatprep.mubr.bf16.mxu0 0
        %10969 = vmatmul.mubr.bf16.gmra.mxu0 %v10679
        %v10970 = vpop.f32.mrf.mxu0
        %v10971 = vadd.f32 0.0, %v10970
        %v10972 = vpop.f32.mrf.mxu0
        %v10973 = vpop.f32.mrf.mxu0
        %v10974 = vadd.f32 0.0, %v10973
        %v10975 = vpop.f32.mrf.mxu0
        %10976 = vmatprep.mubr.bf16.mxu0 0
        %10977 = vmatmul.mubr.bf16.gmra.mxu0 %v10687
        %v10978 = vpop.f32.mrf.mxu0
        %v10979 = vadd.f32 0.0, %v10978
        %v10980 = vpop.f32.mrf.mxu0
        %v10981 = vpop.f32.mrf.mxu0
        %v10982 = vadd.f32 0.0, %v10981
        %v10983 = vpop.f32.mrf.mxu0
        %10984 = vmatprep.mubr.bf16.mxu0 0
        %10985 = vmatmul.mubr.bf16.gmra.mxu0 %v10695
        %v10986 = vpop.f32.mrf.mxu0
        %v10987 = vadd.f32 0.0, %v10986
        %v10988 = vpop.f32.mrf.mxu0
        %v10989 = vpop.f32.mrf.mxu0
        %v10990 = vadd.f32 0.0, %v10989
        %v10991 = vpop.f32.mrf.mxu0
        %10992 = vmatprep.mubr.bf16.mxu0 0
        %10993 = vmatmul.mubr.bf16.gmra.mxu0 %v10703
        %v10994 = vpop.f32.mrf.mxu0
        %v10995 = vadd.f32 0.0, %v10994
        %v10996 = vpop.f32.mrf.mxu0
        %v10997 = vpop.f32.mrf.mxu0
        %v10998 = vadd.f32 0.0, %v10997
        %v10999 = vpop.f32.mrf.mxu0
        %11000 = vmatprep.mubr.bf16.mxu0 0
        %11001 = vmatmul.mubr.bf16.gmra.mxu0 %v10711
        %v11002 = vpop.f32.mrf.mxu0
        %v11003 = vadd.f32 0.0, %v11002
        %v11004 = vpop.f32.mrf.mxu0
        %v11005 = vpop.f32.mrf.mxu0
        %v11006 = vadd.f32 0.0, %v11005
        %v11007 = vpop.f32.mrf.mxu0
        %11008 = vdwg.mxu0
        %v11009 = vadd.f32 %v10279, %v10819
        %v11010 = vadd.f32 %v10280, %v10822
        %v11011 = vadd.f32 %v10281, %v10827
        %v11012 = vadd.f32 %v10282, %v10830
        %v11013 = vadd.f32 %v10283, %v10835
        %v11014 = vadd.f32 %v10284, %v10838
        %v11015 = vadd.f32 %v10285, %v10843
        %v11016 = vadd.f32 %v10286, %v10846
        %v11017 = vadd.f32 %v10287, %v10851
        %v11018 = vadd.f32 %v10288, %v10854
        %v11019 = vadd.f32 %v10289, %v10859
        %v11020 = vadd.f32 %v10290, %v10862
        %v11021 = vadd.f32 %v10291, %v10867
        %v11022 = vadd.f32 %v10292, %v10870
        %v11023 = vadd.f32 %v10293, %v10875
        %v11024 = vadd.f32 %v10294, %v10878
        %v11025 = vadd.f32 %v10295, %v10883
        %v11026 = vadd.f32 %v10296, %v10886
        %v11027 = vadd.f32 %v10297, %v10891
        %v11028 = vadd.f32 %v10298, %v10894
        %v11029 = vadd.f32 %v10299, %v10899
        %v11030 = vadd.f32 %v10300, %v10902
        %v11031 = vadd.f32 %v10301, %v10907
        %v11032 = vadd.f32 %v10302, %v10910
        %v11033 = vadd.f32 %v10303, %v10915
        %v11034 = vadd.f32 %v10304, %v10918
        %v11035 = vadd.f32 %v10305, %v10923
        %v11036 = vadd.f32 %v10306, %v10926
        %v11037 = vadd.f32 %v10307, %v10931
        %v11038 = vadd.f32 %v10308, %v10934
        %v11039 = vadd.f32 %v10309, %v10939
        %v11040 = vadd.f32 %v10310, %v10942
        %v11041 = vadd.f32 %v10311, %v10947
        %v11042 = vadd.f32 %v10312, %v10950
        %v11043 = vadd.f32 %v10313, %v10955
        %v11044 = vadd.f32 %v10314, %v10958
        %v11045 = vadd.f32 %v10315, %v10963
        %v11046 = vadd.f32 %v10316, %v10966
        %v11047 = vadd.f32 %v10317, %v10971
        %v11048 = vadd.f32 %v10318, %v10974
        %v11049 = vadd.f32 %v10319, %v10979
        %v11050 = vadd.f32 %v10320, %v10982
        %v11051 = vadd.f32 %v10321, %v10987
        %v11052 = vadd.f32 %v10322, %v10990
        %v11053 = vadd.f32 %v10323, %v10995
        %v11054 = vadd.f32 %v10324, %v10998
        %v11055 = vadd.f32 %v10325, %v11003
        %v11056 = vadd.f32 %v10326, %v11006
        %v11057 = vld [vmem:[#allocation2 + $0x18] sm:$0xe]
        %s11058 = scalar_lea.vmem [#allocation8], 512
        %v11059 = vld [vmem:[%s11058] sm:$0xf]
        %v11060 = vld [vmem:[%s11058 + $0x4] sm:$0xf]
        %v11061 = vld [vmem:[%s11058 + $0x8] sm:$0xf]
        %v11062 = vld [vmem:[%s11058 + $0xc] sm:$0xf]
        %v11063 = vld [vmem:[%s11058 + $0x10] sm:$0xf]
        %v11064 = vld [vmem:[%s11058 + $0x14] sm:$0xf]
        %v11065 = vld [vmem:[%s11058 + $0x18] sm:$0xf]
        %v11066 = vld [vmem:[%s11058 + $0x1c] sm:$0xf]
        %v11067 = vld [vmem:[%s11058 + $0x20] sm:$0xf]
        %v11068 = vld [vmem:[%s11058 + $0x24] sm:$0xf]
        %v11069 = vld [vmem:[%s11058 + $0x28] sm:$0xf]
        %v11070 = vld [vmem:[%s11058 + $0x2c] sm:$0xf]
        %v11071 = vld [vmem:[%s11058 + $0x30] sm:$0xf]
        %v11072 = vld [vmem:[%s11058 + $0x34] sm:$0xf]
        %v11073 = vld [vmem:[%s11058 + $0x38] sm:$0xf]
        %v11074 = vld [vmem:[%s11058 + $0x3c] sm:$0xf]
        %v11076 = vunpack.c.l.b16 %v11057
        %v11077 = vpack.c.b16 %v10443, %v11076
        %v11078 = vrot.slane %v11077, 1
        %v11079 = vrot.slane %v10492, 1
        %v11080 = vsel %vm1473, %v11078, %v11079
        %v11081 = vrot.slane %v10493, 1
        %v11082 = vsel %vm1473, %v11079, %v11081
        %v11083 = vrot.slane %v10494, 1
        %v11084 = vsel %vm1473, %v11081, %v11083
        %v11085 = vrot.slane %v10495, 1
        %v11086 = vsel %vm1473, %v11083, %v11085
        %v11087 = vrot.slane %v10496, 1
        %v11088 = vsel %vm1473, %v11085, %v11087
        %v11089 = vrot.slane %v10497, 1
        %v11090 = vsel %vm1473, %v11087, %v11089
        %v11091 = vrot.slane %v10498, 1
        %v11092 = vsel %vm1473, %v11089, %v11091
        %v11093 = vrot.slane %v10499, 1
        %v11094 = vsel %vm1473, %v11091, %v11093
        %v11095 = vrot.slane %v10500, 1
        %v11096 = vsel %vm1473, %v11093, %v11095
        %v11097 = vrot.slane %v10501, 1
        %v11098 = vsel %vm1473, %v11095, %v11097
        %v11099 = vrot.slane %v10502, 1
        %v11100 = vsel %vm1473, %v11097, %v11099
        %v11101 = vrot.slane %v10503, 1
        %v11102 = vsel %vm1473, %v11099, %v11101
        %v11103 = vrot.slane %v10504, 1
        %v11104 = vsel %vm1473, %v11101, %v11103
        %v11105 = vrot.slane %v10505, 1
        %v11106 = vsel %vm1473, %v11103, %v11105
        %v11107 = vrot.slane %v10506, 1
        %v11108 = vsel %vm1473, %v11105, %v11107
        %v11109 = vrot.slane %v10507, 1
        %v11110 = vsel %vm1473, %v11107, %v11109
        %v11111 = vrot.slane %v10508, 1
        %v11112 = vsel %vm1473, %v11109, %v11111
        %v11113 = vrot.slane %v10509, 1
        %v11114 = vsel %vm1473, %v11111, %v11113
        %v11115 = vrot.slane %v10510, 1
        %v11116 = vsel %vm1473, %v11113, %v11115
        %v11117 = vrot.slane %v10511, 1
        %v11118 = vsel %vm1473, %v11115, %v11117
        %v11119 = vrot.slane %v10512, 1
        %v11120 = vsel %vm1473, %v11117, %v11119
        %v11121 = vrot.slane %v10513, 1
        %v11122 = vsel %vm1473, %v11119, %v11121
        %v11123 = vrot.slane %v10514, 1
        %v11124 = vsel %vm1473, %v11121, %v11123
        %v11125 = vrot.slane %v10515, 1
        %v11126 = vsel %vm1473, %v11123, %v11125
        %v11167 = vunpack.c.l.b16 %v11059
        %v11168 = vunpack.c.l.b16 %v11060
        %v11169 = vunpack.c.l.b16 %v11061
        %v11170 = vunpack.c.l.b16 %v11062
        %v11171 = vunpack.c.l.b16 %v11063
        %v11172 = vunpack.c.l.b16 %v11064
        %v11173 = vunpack.c.l.b16 %v11065
        %v11174 = vunpack.c.l.b16 %v11066
        %v11175 = vunpack.c.l.b16 %v11067
        %v11176 = vunpack.c.l.b16 %v11068
        %v11177 = vunpack.c.l.b16 %v11069
        %v11178 = vunpack.c.l.b16 %v11070
        %v11179 = vunpack.c.l.b16 %v11071
        %v11180 = vunpack.c.l.b16 %v11072
        %v11181 = vunpack.c.l.b16 %v11073
        %v11182 = vunpack.c.l.b16 %v11074
        %v11183 = vpack.c.b16 %v11168, %v11167
        %v11184 = vpack.c.b16 %v11170, %v11169
        %v11185 = vpack.c.b16 %v11172, %v11171
        %v11186 = vpack.c.b16 %v11174, %v11173
        %v11187 = vpack.c.b16 %v11176, %v11175
        %v11188 = vpack.c.b16 %v11178, %v11177
        %v11189 = vpack.c.b16 %v11180, %v11179
        %v11190 = vpack.c.b16 %v11182, %v11181
        %11199 = vmatprep.subr.bf16.mxu0 0
        %11200 = vmatpush1.bf16.msra.mxu0 %v11190
        %11201 = vmatprep.subr.bf16.mxu0 0
        %11202 = vmatpush1.bf16.msra.mxu0 %v11189
        %11203 = vmatprep.subr.bf16.mxu0 0
        %11204 = vmatpush1.bf16.msra.mxu0 %v11188
        %11205 = vmatprep.subr.bf16.mxu0 0
        %11206 = vmatpush1.bf16.msra.mxu0 %v11187
        %11207 = vmatprep.subr.bf16.mxu0 0
        %11208 = vmatpush1.bf16.msra.mxu0 %v11186
        %11209 = vmatprep.subr.bf16.mxu0 0
        %11210 = vmatpush1.bf16.msra.mxu0 %v11185
        %11211 = vmatprep.subr.bf16.mxu0 0
        %11212 = vmatpush1.bf16.msra.mxu0 %v11184
        %11213 = vmatprep.subr.bf16.mxu0 0
        %11214 = vmatpush1.bf16.msra.mxu0 %v11183
        %11215 = vmatprep.subr.bf16.mxu0 0
        %11216 = vmatpush2.bf16.msra.mxu0 0
        %11217 = vmatprep.subr.bf16.mxu0 0
        %11218 = vmatpush2.bf16.msra.mxu0 0
        %11219 = vmatprep.subr.bf16.mxu0 0
        %11220 = vmatpush2.bf16.msra.mxu0 0
        %11221 = vmatprep.subr.bf16.mxu0 0
        %11222 = vmatpush2.bf16.msra.mxu0 0
        %11223 = vmatprep.subr.bf16.mxu0 0
        %11224 = vmatpush2.bf16.msra.mxu0 0
        %11225 = vmatprep.subr.bf16.mxu0 0
        %11226 = vmatpush2.bf16.msra.mxu0 0
        %11227 = vmatprep.subr.bf16.mxu0 0
        %11228 = vmatpush2.bf16.msra.mxu0 0
        %11229 = vmatprep.subr.bf16.mxu0 0
        %11230 = vmatpush2.bf16.msra.mxu0 0
        %11231 = vmatprep.mubr.bf16.mxu0 0
        %11232 = vmatmul.mubr.bf16.gmra.mxu0 %v11080
        %v11233 = vpop.f32.mrf.mxu0
        %v11234 = vadd.f32 0.0, %v11233
        %v11235 = vpop.f32.mrf.mxu0
        %v11236 = vpop.f32.mrf.mxu0
        %v11237 = vadd.f32 0.0, %v11236
        %v11238 = vpop.f32.mrf.mxu0
        %11239 = vmatprep.mubr.bf16.mxu0 0
        %11240 = vmatmul.mubr.bf16.gmra.mxu0 %v11082
        %v11241 = vpop.f32.mrf.mxu0
        %v11242 = vadd.f32 0.0, %v11241
        %v11243 = vpop.f32.mrf.mxu0
        %v11244 = vpop.f32.mrf.mxu0
        %v11245 = vadd.f32 0.0, %v11244
        %v11246 = vpop.f32.mrf.mxu0
        %11247 = vmatprep.mubr.bf16.mxu0 0
        %11248 = vmatmul.mubr.bf16.gmra.mxu0 %v11084
        %v11249 = vpop.f32.mrf.mxu0
        %v11250 = vadd.f32 0.0, %v11249
        %v11251 = vpop.f32.mrf.mxu0
        %v11252 = vpop.f32.mrf.mxu0
        %v11253 = vadd.f32 0.0, %v11252
        %v11254 = vpop.f32.mrf.mxu0
        %11255 = vmatprep.mubr.bf16.mxu0 0
        %11256 = vmatmul.mubr.bf16.gmra.mxu0 %v11086
        %v11257 = vpop.f32.mrf.mxu0
        %v11258 = vadd.f32 0.0, %v11257
        %v11259 = vpop.f32.mrf.mxu0
        %v11260 = vpop.f32.mrf.mxu0
        %v11261 = vadd.f32 0.0, %v11260
        %v11262 = vpop.f32.mrf.mxu0
        %11263 = vmatprep.mubr.bf16.mxu0 0
        %11264 = vmatmul.mubr.bf16.gmra.mxu0 %v11088
        %v11265 = vpop.f32.mrf.mxu0
        %v11266 = vadd.f32 0.0, %v11265
        %v11267 = vpop.f32.mrf.mxu0
        %v11268 = vpop.f32.mrf.mxu0
        %v11269 = vadd.f32 0.0, %v11268
        %v11270 = vpop.f32.mrf.mxu0
        %11271 = vmatprep.mubr.bf16.mxu0 0
        %11272 = vmatmul.mubr.bf16.gmra.mxu0 %v11090
        %v11273 = vpop.f32.mrf.mxu0
        %v11274 = vadd.f32 0.0, %v11273
        %v11275 = vpop.f32.mrf.mxu0
        %v11276 = vpop.f32.mrf.mxu0
        %v11277 = vadd.f32 0.0, %v11276
        %v11278 = vpop.f32.mrf.mxu0
        %11279 = vmatprep.mubr.bf16.mxu0 0
        %11280 = vmatmul.mubr.bf16.gmra.mxu0 %v11092
        %v11281 = vpop.f32.mrf.mxu0
        %v11282 = vadd.f32 0.0, %v11281
        %v11283 = vpop.f32.mrf.mxu0
        %v11284 = vpop.f32.mrf.mxu0
        %v11285 = vadd.f32 0.0, %v11284
        %v11286 = vpop.f32.mrf.mxu0
        %11287 = vmatprep.mubr.bf16.mxu0 0
        %11288 = vmatmul.mubr.bf16.gmra.mxu0 %v11094
        %v11289 = vpop.f32.mrf.mxu0
        %v11290 = vadd.f32 0.0, %v11289
        %v11291 = vpop.f32.mrf.mxu0
        %v11292 = vpop.f32.mrf.mxu0
        %v11293 = vadd.f32 0.0, %v11292
        %v11294 = vpop.f32.mrf.mxu0
        %11295 = vmatprep.mubr.bf16.mxu0 0
        %11296 = vmatmul.mubr.bf16.gmra.mxu0 %v11096
        %v11297 = vpop.f32.mrf.mxu0
        %v11298 = vadd.f32 0.0, %v11297
        %v11299 = vpop.f32.mrf.mxu0
        %v11300 = vpop.f32.mrf.mxu0
        %v11301 = vadd.f32 0.0, %v11300
        %v11302 = vpop.f32.mrf.mxu0
        %11303 = vmatprep.mubr.bf16.mxu0 0
        %11304 = vmatmul.mubr.bf16.gmra.mxu0 %v11098
        %v11305 = vpop.f32.mrf.mxu0
        %v11306 = vadd.f32 0.0, %v11305
        %v11307 = vpop.f32.mrf.mxu0
        %v11308 = vpop.f32.mrf.mxu0
        %v11309 = vadd.f32 0.0, %v11308
        %v11310 = vpop.f32.mrf.mxu0
        %11311 = vmatprep.mubr.bf16.mxu0 0
        %11312 = vmatmul.mubr.bf16.gmra.mxu0 %v11100
        %v11313 = vpop.f32.mrf.mxu0
        %v11314 = vadd.f32 0.0, %v11313
        %v11315 = vpop.f32.mrf.mxu0
        %v11316 = vpop.f32.mrf.mxu0
        %v11317 = vadd.f32 0.0, %v11316
        %v11318 = vpop.f32.mrf.mxu0
        %11319 = vmatprep.mubr.bf16.mxu0 0
        %11320 = vmatmul.mubr.bf16.gmra.mxu0 %v11102
        %v11321 = vpop.f32.mrf.mxu0
        %v11322 = vadd.f32 0.0, %v11321
        %v11323 = vpop.f32.mrf.mxu0
        %v11324 = vpop.f32.mrf.mxu0
        %v11325 = vadd.f32 0.0, %v11324
        %v11326 = vpop.f32.mrf.mxu0
        %11327 = vmatprep.mubr.bf16.mxu0 0
        %11328 = vmatmul.mubr.bf16.gmra.mxu0 %v11104
        %v11329 = vpop.f32.mrf.mxu0
        %v11330 = vadd.f32 0.0, %v11329
        %v11331 = vpop.f32.mrf.mxu0
        %v11332 = vpop.f32.mrf.mxu0
        %v11333 = vadd.f32 0.0, %v11332
        %v11334 = vpop.f32.mrf.mxu0
        %11335 = vmatprep.mubr.bf16.mxu0 0
        %11336 = vmatmul.mubr.bf16.gmra.mxu0 %v11106
        %v11337 = vpop.f32.mrf.mxu0
        %v11338 = vadd.f32 0.0, %v11337
        %v11339 = vpop.f32.mrf.mxu0
        %v11340 = vpop.f32.mrf.mxu0
        %v11341 = vadd.f32 0.0, %v11340
        %v11342 = vpop.f32.mrf.mxu0
        %11343 = vmatprep.mubr.bf16.mxu0 0
        %11344 = vmatmul.mubr.bf16.gmra.mxu0 %v11108
        %v11345 = vpop.f32.mrf.mxu0
        %v11346 = vadd.f32 0.0, %v11345
        %v11347 = vpop.f32.mrf.mxu0
        %v11348 = vpop.f32.mrf.mxu0
        %v11349 = vadd.f32 0.0, %v11348
        %v11350 = vpop.f32.mrf.mxu0
        %11351 = vmatprep.mubr.bf16.mxu0 0
        %11352 = vmatmul.mubr.bf16.gmra.mxu0 %v11110
        %v11353 = vpop.f32.mrf.mxu0
        %v11354 = vadd.f32 0.0, %v11353
        %v11355 = vpop.f32.mrf.mxu0
        %v11356 = vpop.f32.mrf.mxu0
        %v11357 = vadd.f32 0.0, %v11356
        %v11358 = vpop.f32.mrf.mxu0
        %11359 = vmatprep.mubr.bf16.mxu0 0
        %11360 = vmatmul.mubr.bf16.gmra.mxu0 %v11112
        %v11361 = vpop.f32.mrf.mxu0
        %v11362 = vadd.f32 0.0, %v11361
        %v11363 = vpop.f32.mrf.mxu0
        %v11364 = vpop.f32.mrf.mxu0
        %v11365 = vadd.f32 0.0, %v11364
        %v11366 = vpop.f32.mrf.mxu0
        %11367 = vmatprep.mubr.bf16.mxu0 0
        %11368 = vmatmul.mubr.bf16.gmra.mxu0 %v11114
        %v11369 = vpop.f32.mrf.mxu0
        %v11370 = vadd.f32 0.0, %v11369
        %v11371 = vpop.f32.mrf.mxu0
        %v11372 = vpop.f32.mrf.mxu0
        %v11373 = vadd.f32 0.0, %v11372
        %v11374 = vpop.f32.mrf.mxu0
        %11375 = vmatprep.mubr.bf16.mxu0 0
        %11376 = vmatmul.mubr.bf16.gmra.mxu0 %v11116
        %v11377 = vpop.f32.mrf.mxu0
        %v11378 = vadd.f32 0.0, %v11377
        %v11379 = vpop.f32.mrf.mxu0
        %v11380 = vpop.f32.mrf.mxu0
        %v11381 = vadd.f32 0.0, %v11380
        %v11382 = vpop.f32.mrf.mxu0
        %11383 = vmatprep.mubr.bf16.mxu0 0
        %11384 = vmatmul.mubr.bf16.gmra.mxu0 %v11118
        %v11385 = vpop.f32.mrf.mxu0
        %v11386 = vadd.f32 0.0, %v11385
        %v11387 = vpop.f32.mrf.mxu0
        %v11388 = vpop.f32.mrf.mxu0
        %v11389 = vadd.f32 0.0, %v11388
        %v11390 = vpop.f32.mrf.mxu0
        %11391 = vmatprep.mubr.bf16.mxu0 0
        %11392 = vmatmul.mubr.bf16.gmra.mxu0 %v11120
        %v11393 = vpop.f32.mrf.mxu0
        %v11394 = vadd.f32 0.0, %v11393
        %v11395 = vpop.f32.mrf.mxu0
        %v11396 = vpop.f32.mrf.mxu0
        %v11397 = vadd.f32 0.0, %v11396
        %v11398 = vpop.f32.mrf.mxu0
        %11399 = vmatprep.mubr.bf16.mxu0 0
        %11400 = vmatmul.mubr.bf16.gmra.mxu0 %v11122
        %v11401 = vpop.f32.mrf.mxu0
        %v11402 = vadd.f32 0.0, %v11401
        %v11403 = vpop.f32.mrf.mxu0
        %v11404 = vpop.f32.mrf.mxu0
        %v11405 = vadd.f32 0.0, %v11404
        %v11406 = vpop.f32.mrf.mxu0
        %11407 = vmatprep.mubr.bf16.mxu0 0
        %11408 = vmatmul.mubr.bf16.gmra.mxu0 %v11124
        %v11409 = vpop.f32.mrf.mxu0
        %v11410 = vadd.f32 0.0, %v11409
        %v11411 = vpop.f32.mrf.mxu0
        %v11412 = vpop.f32.mrf.mxu0
        %v11413 = vadd.f32 0.0, %v11412
        %v11414 = vpop.f32.mrf.mxu0
        %11415 = vmatprep.mubr.bf16.mxu0 0
        %11416 = vmatmul.mubr.bf16.gmra.mxu0 %v11126
        %v11417 = vpop.f32.mrf.mxu0
        %v11418 = vadd.f32 0.0, %v11417
        %v11419 = vpop.f32.mrf.mxu0
        %v11420 = vpop.f32.mrf.mxu0
        %v11421 = vadd.f32 0.0, %v11420
        %v11422 = vpop.f32.mrf.mxu0
        %11423 = vdwg.mxu0
        %v11424 = vadd.f32 %v11009, %v11234
        %v11425 = vadd.f32 %v11010, %v11237
        %v11426 = vadd.f32 %v11011, %v11242
        %v11427 = vadd.f32 %v11012, %v11245
        %v11428 = vadd.f32 %v11013, %v11250
        %v11429 = vadd.f32 %v11014, %v11253
        %v11430 = vadd.f32 %v11015, %v11258
        %v11431 = vadd.f32 %v11016, %v11261
        %v11432 = vadd.f32 %v11017, %v11266
        %v11433 = vadd.f32 %v11018, %v11269
        %v11434 = vadd.f32 %v11019, %v11274
        %v11435 = vadd.f32 %v11020, %v11277
        %v11436 = vadd.f32 %v11021, %v11282
        %v11437 = vadd.f32 %v11022, %v11285
        %v11438 = vadd.f32 %v11023, %v11290
        %v11439 = vadd.f32 %v11024, %v11293
        %v11440 = vadd.f32 %v11025, %v11298
        %v11441 = vadd.f32 %v11026, %v11301
        %v11442 = vadd.f32 %v11027, %v11306
        %v11443 = vadd.f32 %v11028, %v11309
        %v11444 = vadd.f32 %v11029, %v11314
        %v11445 = vadd.f32 %v11030, %v11317
        %v11446 = vadd.f32 %v11031, %v11322
        %v11447 = vadd.f32 %v11032, %v11325
        %v11448 = vadd.f32 %v11033, %v11330
        %v11449 = vadd.f32 %v11034, %v11333
        %v11450 = vadd.f32 %v11035, %v11338
        %v11451 = vadd.f32 %v11036, %v11341
        %v11452 = vadd.f32 %v11037, %v11346
        %v11453 = vadd.f32 %v11038, %v11349
        %v11454 = vadd.f32 %v11039, %v11354
        %v11455 = vadd.f32 %v11040, %v11357
        %v11456 = vadd.f32 %v11041, %v11362
        %v11457 = vadd.f32 %v11042, %v11365
        %v11458 = vadd.f32 %v11043, %v11370
        %v11459 = vadd.f32 %v11044, %v11373
        %v11460 = vadd.f32 %v11045, %v11378
        %v11461 = vadd.f32 %v11046, %v11381
        %v11462 = vadd.f32 %v11047, %v11386
        %v11463 = vadd.f32 %v11048, %v11389
        %v11464 = vadd.f32 %v11049, %v11394
        %v11465 = vadd.f32 %v11050, %v11397
        %v11466 = vadd.f32 %v11051, %v11402
        %v11467 = vadd.f32 %v11052, %v11405
        %v11468 = vadd.f32 %v11053, %v11410
        %v11469 = vadd.f32 %v11054, %v11413
        %v11470 = vadd.f32 %v11055, %v11418
        %v11471 = vadd.f32 %v11056, %v11421
        %v11472 = vld [vmem:[%s7] sm:$0x1]
        %v11474 = vlaneseq
        %v11475 = vshrl.u32 %v11474, 7
        %v11476 = vsub.s32 0, %v11475
        %v11477 = vrot.slane %v11472, %v11476
        %v11479 = vadd.f32 %v11424, %v11477
        %v11480 = vadd.f32 %v11425, %v11477
        %v11481 = vadd.f32 %v11426, %v11477
        %v11482 = vadd.f32 %v11427, %v11477
        %v11483 = vadd.f32 %v11428, %v11477
        %v11484 = vadd.f32 %v11429, %v11477
        %v11485 = vadd.f32 %v11430, %v11477
        %v11486 = vadd.f32 %v11431, %v11477
        %v11487 = vadd.f32 %v11432, %v11477
        %v11488 = vadd.f32 %v11433, %v11477
        %v11489 = vadd.f32 %v11434, %v11477
        %v11490 = vadd.f32 %v11435, %v11477
        %v11491 = vadd.f32 %v11436, %v11477
        %v11492 = vadd.f32 %v11437, %v11477
        %v11493 = vadd.f32 %v11438, %v11477
        %v11494 = vadd.f32 %v11439, %v11477
        %v11495 = vadd.f32 %v11440, %v11477
        %v11496 = vadd.f32 %v11441, %v11477
        %v11497 = vadd.f32 %v11442, %v11477
        %v11498 = vadd.f32 %v11443, %v11477
        %v11499 = vadd.f32 %v11444, %v11477
        %v11500 = vadd.f32 %v11445, %v11477
        %v11501 = vadd.f32 %v11446, %v11477
        %v11502 = vadd.f32 %v11447, %v11477
        %v11503 = vadd.f32 %v11448, %v11477
        %v11504 = vadd.f32 %v11449, %v11477
        %v11505 = vadd.f32 %v11450, %v11477
        %v11506 = vadd.f32 %v11451, %v11477
        %v11507 = vadd.f32 %v11452, %v11477
        %v11508 = vadd.f32 %v11453, %v11477
        %v11509 = vadd.f32 %v11454, %v11477
        %v11510 = vadd.f32 %v11455, %v11477
        %v11511 = vadd.f32 %v11456, %v11477
        %v11512 = vadd.f32 %v11457, %v11477
        %v11513 = vadd.f32 %v11458, %v11477
        %v11514 = vadd.f32 %v11459, %v11477
        %v11515 = vadd.f32 %v11460, %v11477
        %v11516 = vadd.f32 %v11461, %v11477
        %v11517 = vadd.f32 %v11462, %v11477
        %v11518 = vadd.f32 %v11463, %v11477
        %v11519 = vadd.f32 %v11464, %v11477
        %v11520 = vadd.f32 %v11465, %v11477
        %v11521 = vadd.f32 %v11466, %v11477
        %v11522 = vadd.f32 %v11467, %v11477
        %v11523 = vadd.f32 %v11468, %v11477
        %v11524 = vadd.f32 %v11469, %v11477
        %v11525 = vadd.f32 %v11470, %v11477
        %v11526 = vadd.f32 %v11471, %v11477
        %v11527 = vmax.f32 %v11479, 0.0
        %v11528 = vmax.f32 %v11480, 0.0
        %v11529 = vmax.f32 %v11481, 0.0
        %v11530 = vmax.f32 %v11482, 0.0
        %v11531 = vmax.f32 %v11483, 0.0
        %v11532 = vmax.f32 %v11484, 0.0
        %v11533 = vmax.f32 %v11485, 0.0
        %v11534 = vmax.f32 %v11486, 0.0
        %v11535 = vmax.f32 %v11487, 0.0
        %v11536 = vmax.f32 %v11488, 0.0
        %v11537 = vmax.f32 %v11489, 0.0
        %v11538 = vmax.f32 %v11490, 0.0
        %v11539 = vmax.f32 %v11491, 0.0
        %v11540 = vmax.f32 %v11492, 0.0
        %v11541 = vmax.f32 %v11493, 0.0
        %v11542 = vmax.f32 %v11494, 0.0
        %v11543 = vmax.f32 %v11495, 0.0
        %v11544 = vmax.f32 %v11496, 0.0
        %v11545 = vmax.f32 %v11497, 0.0
        %v11546 = vmax.f32 %v11498, 0.0
        %v11547 = vmax.f32 %v11499, 0.0
        %v11548 = vmax.f32 %v11500, 0.0
        %v11549 = vmax.f32 %v11501, 0.0
        %v11550 = vmax.f32 %v11502, 0.0
        %v11551 = vmax.f32 %v11503, 0.0
        %v11552 = vmax.f32 %v11504, 0.0
        %v11553 = vmax.f32 %v11505, 0.0
        %v11554 = vmax.f32 %v11506, 0.0
        %v11555 = vmax.f32 %v11507, 0.0
        %v11556 = vmax.f32 %v11508, 0.0
        %v11557 = vmax.f32 %v11509, 0.0
        %v11558 = vmax.f32 %v11510, 0.0
        %v11559 = vmax.f32 %v11511, 0.0
        %v11560 = vmax.f32 %v11512, 0.0
        %v11561 = vmax.f32 %v11513, 0.0
        %v11562 = vmax.f32 %v11514, 0.0
        %v11563 = vmax.f32 %v11515, 0.0
        %v11564 = vmax.f32 %v11516, 0.0
        %v11565 = vmax.f32 %v11517, 0.0
        %v11566 = vmax.f32 %v11518, 0.0
        %v11567 = vmax.f32 %v11519, 0.0
        %v11568 = vmax.f32 %v11520, 0.0
        %v11569 = vmax.f32 %v11521, 0.0
        %v11570 = vmax.f32 %v11522, 0.0
        %v11571 = vmax.f32 %v11523, 0.0
        %v11572 = vmax.f32 %v11524, 0.0
        %v11573 = vmax.f32 %v11525, 0.0
        %v11574 = vmax.f32 %v11526, 0.0
        %v11575 = vmul.f32 %v11527, %v5324
        %v11576 = vmul.f32 %v11528, %v5329
        %v11577 = vmul.f32 %v11529, %v5334
        %v11578 = vmul.f32 %v11530, %v5339
        %v11579 = vmul.f32 %v11531, %v5344
        %v11580 = vmul.f32 %v11532, %v5349
        %v11581 = vmul.f32 %v11533, %v5354
        %v11582 = vmul.f32 %v11534, %v5359
        %v11583 = vmul.f32 %v11535, %v5364
        %v11584 = vmul.f32 %v11536, %v5369
        %v11585 = vmul.f32 %v11537, %v5374
        %v11586 = vmul.f32 %v11538, %v5379
        %v11587 = vmul.f32 %v11539, %v5384
        %v11588 = vmul.f32 %v11540, %v5389
        %v11589 = vmul.f32 %v11541, %v5394
        %v11590 = vmul.f32 %v11542, %v5399
        %v11591 = vmul.f32 %v11543, %v5404
        %v11592 = vmul.f32 %v11544, %v5409
        %v11593 = vmul.f32 %v11545, %v5414
        %v11594 = vmul.f32 %v11546, %v5419
        %v11595 = vmul.f32 %v11547, %v5424
        %v11596 = vmul.f32 %v11548, %v5429
        %v11597 = vmul.f32 %v11549, %v5434
        %v11598 = vmul.f32 %v11550, %v5439
        %v11599 = vmul.f32 %v11551, %v5444
        %v11600 = vmul.f32 %v11552, %v5449
        %v11601 = vmul.f32 %v11553, %v5454
        %v11602 = vmul.f32 %v11554, %v5459
        %v11603 = vmul.f32 %v11555, %v5464
        %v11604 = vmul.f32 %v11556, %v5469
        %v11605 = vmul.f32 %v11557, %v5474
        %v11606 = vmul.f32 %v11558, %v5479
        %v11607 = vmul.f32 %v11559, %v5484
        %v11608 = vmul.f32 %v11560, %v5489
        %v11609 = vmul.f32 %v11561, %v5494
        %v11610 = vmul.f32 %v11562, %v5499
        %v11611 = vmul.f32 %v11563, %v5504
        %v11612 = vmul.f32 %v11564, %v5509
        %v11613 = vmul.f32 %v11565, %v5514
        %v11614 = vmul.f32 %v11566, %v5519
        %v11615 = vmul.f32 %v11567, %v5524
        %v11616 = vmul.f32 %v11568, %v5529
        %v11617 = vmul.f32 %v11569, %v5534
        %v11618 = vmul.f32 %v11570, %v5539
        %v11619 = vmul.f32 %v11571, %v5544
        %v11620 = vmul.f32 %v11572, %v5549
        %v11621 = vmul.f32 %v11573, %v5554
        %v11622 = vmul.f32 %v11574, %v5559
        %v11623 = vadd.f32 %v11575, %v11576
        %v11624 = vadd.f32 %v11623, %v11577
        %v11625 = vadd.f32 %v11624, %v11578
        %v11626 = vadd.f32 %v11625, %v11579
        %v11627 = vadd.f32 %v11626, %v11580
        %v11628 = vadd.f32 %v11627, %v11581
        %v11629 = vadd.f32 %v11628, %v11582
        %v11630 = vadd.f32 %v11629, %v11583
        %v11631 = vadd.f32 %v11630, %v11584
        %v11632 = vadd.f32 %v11631, %v11585
        %v11633 = vadd.f32 %v11632, %v11586
        %v11634 = vadd.f32 %v11633, %v11587
        %v11635 = vadd.f32 %v11634, %v11588
        %v11636 = vadd.f32 %v11635, %v11589
        %v11637 = vadd.f32 %v11636, %v11590
        %v11638 = vadd.f32 %v11637, %v11591
        %v11639 = vadd.f32 %v11638, %v11592
        %v11640 = vadd.f32 %v11639, %v11593
        %v11641 = vadd.f32 %v11640, %v11594
        %v11642 = vadd.f32 %v11641, %v11595
        %v11643 = vadd.f32 %v11642, %v11596
        %v11644 = vadd.f32 %v11643, %v11597
        %v11645 = vadd.f32 %v11644, %v11598
        %v11646 = vadd.f32 %v11645, %v11599
        %v11647 = vadd.f32 %v11646, %v11600
        %v11648 = vadd.f32 %v11647, %v11601
        %v11649 = vadd.f32 %v11648, %v11602
        %v11650 = vadd.f32 %v11649, %v11603
        %v11651 = vadd.f32 %v11650, %v11604
        %v11652 = vadd.f32 %v11651, %v11605
        %v11653 = vadd.f32 %v11652, %v11606
        %v11654 = vadd.f32 %v11653, %v11607
        %v11655 = vadd.f32 %v11654, %v11608
        %v11656 = vadd.f32 %v11655, %v11609
        %v11657 = vadd.f32 %v11656, %v11610
        %v11658 = vadd.f32 %v11657, %v11611
        %v11659 = vadd.f32 %v11658, %v11612
        %v11660 = vadd.f32 %v11659, %v11613
        %v11661 = vadd.f32 %v11660, %v11614
        %v11662 = vadd.f32 %v11661, %v11615
        %v11663 = vadd.f32 %v11662, %v11616
        %v11664 = vadd.f32 %v11663, %v11617
        %v11665 = vadd.f32 %v11664, %v11618
        %v11666 = vadd.f32 %v11665, %v11619
        %v11667 = vadd.f32 %v11666, %v11620
        %v11668 = vadd.f32 %v11667, %v11621
        %v11669 = vadd.f32 %v11668, %v11622
        %v11670 = vrot.slane %v11669, 4
        %v11671 = vadd.f32 %v11669, %v11670
        %v11672 = vrot.slane %v11671, 2
        %v11673 = vadd.f32 %v11671, %v11672
        %v11674 = vrot.slane %v11673, 1
        %v11675 = vadd.f32 %v11673, %v11674
        %v11676 = vmul.f32 %v11575, %v11527
        %v11677 = vmul.f32 %v11576, %v11528
        %v11678 = vmul.f32 %v11577, %v11529
        %v11679 = vmul.f32 %v11578, %v11530
        %v11680 = vmul.f32 %v11579, %v11531
        %v11681 = vmul.f32 %v11580, %v11532
        %v11682 = vmul.f32 %v11581, %v11533
        %v11683 = vmul.f32 %v11582, %v11534
        %v11684 = vmul.f32 %v11583, %v11535
        %v11685 = vmul.f32 %v11584, %v11536
        %v11686 = vmul.f32 %v11585, %v11537
        %v11687 = vmul.f32 %v11586, %v11538
        %v11688 = vmul.f32 %v11587, %v11539
        %v11689 = vmul.f32 %v11588, %v11540
        %v11690 = vmul.f32 %v11589, %v11541
        %v11691 = vmul.f32 %v11590, %v11542
        %v11692 = vmul.f32 %v11591, %v11543
        %v11693 = vmul.f32 %v11592, %v11544
        %v11694 = vmul.f32 %v11593, %v11545
        %v11695 = vmul.f32 %v11594, %v11546
        %v11696 = vmul.f32 %v11595, %v11547
        %v11697 = vmul.f32 %v11596, %v11548
        %v11698 = vmul.f32 %v11597, %v11549
        %v11699 = vmul.f32 %v11598, %v11550
        %v11700 = vmul.f32 %v11599, %v11551
        %v11701 = vmul.f32 %v11600, %v11552
        %v11702 = vmul.f32 %v11601, %v11553
        %v11703 = vmul.f32 %v11602, %v11554
        %v11704 = vmul.f32 %v11603, %v11555
        %v11705 = vmul.f32 %v11604, %v11556
        %v11706 = vmul.f32 %v11605, %v11557
        %v11707 = vmul.f32 %v11606, %v11558
        %v11708 = vmul.f32 %v11607, %v11559
        %v11709 = vmul.f32 %v11608, %v11560
        %v11710 = vmul.f32 %v11609, %v11561
        %v11711 = vmul.f32 %v11610, %v11562
        %v11712 = vmul.f32 %v11611, %v11563
        %v11713 = vmul.f32 %v11612, %v11564
        %v11714 = vmul.f32 %v11613, %v11565
        %v11715 = vmul.f32 %v11614, %v11566
        %v11716 = vmul.f32 %v11615, %v11567
        %v11717 = vmul.f32 %v11616, %v11568
        %v11718 = vmul.f32 %v11617, %v11569
        %v11719 = vmul.f32 %v11618, %v11570
        %v11720 = vmul.f32 %v11619, %v11571
        %v11721 = vmul.f32 %v11620, %v11572
        %v11722 = vmul.f32 %v11621, %v11573
        %v11723 = vmul.f32 %v11622, %v11574
        %v11724 = vadd.f32 %v11676, %v11677
        %v11725 = vadd.f32 %v11724, %v11678
        %v11726 = vadd.f32 %v11725, %v11679
        %v11727 = vadd.f32 %v11726, %v11680
        %v11728 = vadd.f32 %v11727, %v11681
        %v11729 = vadd.f32 %v11728, %v11682
        %v11730 = vadd.f32 %v11729, %v11683
        %v11731 = vadd.f32 %v11730, %v11684
        %v11732 = vadd.f32 %v11731, %v11685
        %v11733 = vadd.f32 %v11732, %v11686
        %v11734 = vadd.f32 %v11733, %v11687
        %v11735 = vadd.f32 %v11734, %v11688
        %v11736 = vadd.f32 %v11735, %v11689
        %v11737 = vadd.f32 %v11736, %v11690
        %v11738 = vadd.f32 %v11737, %v11691
        %v11739 = vadd.f32 %v11738, %v11692
        %v11740 = vadd.f32 %v11739, %v11693
        %v11741 = vadd.f32 %v11740, %v11694
        %v11742 = vadd.f32 %v11741, %v11695
        %v11743 = vadd.f32 %v11742, %v11696
        %v11744 = vadd.f32 %v11743, %v11697
        %v11745 = vadd.f32 %v11744, %v11698
        %v11746 = vadd.f32 %v11745, %v11699
        %v11747 = vadd.f32 %v11746, %v11700
        %v11748 = vadd.f32 %v11747, %v11701
        %v11749 = vadd.f32 %v11748, %v11702
        %v11750 = vadd.f32 %v11749, %v11703
        %v11751 = vadd.f32 %v11750, %v11704
        %v11752 = vadd.f32 %v11751, %v11705
        %v11753 = vadd.f32 %v11752, %v11706
        %v11754 = vadd.f32 %v11753, %v11707
        %v11755 = vadd.f32 %v11754, %v11708
        %v11756 = vadd.f32 %v11755, %v11709
        %v11757 = vadd.f32 %v11756, %v11710
        %v11758 = vadd.f32 %v11757, %v11711
        %v11759 = vadd.f32 %v11758, %v11712
        %v11760 = vadd.f32 %v11759, %v11713
        %v11761 = vadd.f32 %v11760, %v11714
        %v11762 = vadd.f32 %v11761, %v11715
        %v11763 = vadd.f32 %v11762, %v11716
        %v11764 = vadd.f32 %v11763, %v11717
        %v11765 = vadd.f32 %v11764, %v11718
        %v11766 = vadd.f32 %v11765, %v11719
        %v11767 = vadd.f32 %v11766, %v11720
        %v11768 = vadd.f32 %v11767, %v11721
        %v11769 = vadd.f32 %v11768, %v11722
        %v11770 = vadd.f32 %v11769, %v11723
        %v11771 = vrot.slane %v11770, 4
        %v11772 = vadd.f32 %v11770, %v11771
        %v11773 = vrot.slane %v11772, 2
        %v11774 = vadd.f32 %v11772, %v11773
        %v11775 = vrot.slane %v11774, 1
        %v11776 = vadd.f32 %v11774, %v11775
        %v11777 = vsel %vm5767, %v11675, 0.0
        %v11778 = vsel %vm5769, %v11777, 0.0
        %11779 = vadd.xlane.f32.xlu0 %v11778
        %v11780 = vpop.xlane.xlu0 %11779
        %v11781 = vrot.slane %v11780, 4
        %v11782 = vadd.f32 %v11780, %v11781
        %v11783 = vrot.slane %v11782, 2
        %v11784 = vadd.f32 %v11782, %v11783
        %v11785 = vrot.slane %v11784, 1
        %v11786 = vadd.f32 %v11784, %v11785
        %s11787 = vtos %v11786
        %v11788 = vrcp.pop 1024.0
        %s11789 = vtos %v11788
        %s11790 = smul.f32 %s11787, %s11789
        %v11791 = vsel %vm5767, %v11776, 0.0
        %v11792 = vsel %vm5769, %v11791, 0.0
        %11793 = vadd.xlane.f32.xlu0 %v11792
        %v11794 = vpop.xlane.xlu0 %11793
        %v11795 = vrot.slane %v11794, 4
        %v11796 = vadd.f32 %v11794, %v11795
        %v11797 = vrot.slane %v11796, 2
        %v11798 = vadd.f32 %v11796, %v11797
        %v11799 = vrot.slane %v11798, 1
        %v11800 = vadd.f32 %v11798, %v11799
        %s11801 = vtos %v11800
        %v11802 = vrcp.pop 1024.0
        %s11803 = vtos %v11802
        %s11804 = smul.f32 %s11801, %s11803
        %s11805 = smul.f32 %s11790, %s11790
        %s11806 = ssub.f32 %s11804, %s11805
        %s11807 = smax.f32 %s11806, 0.0
        %v11808 = vstv %s11790
        %v11809 = vsel %vm5767, %v11808, 0.0
        %s11810 = sadd.f32 %s11807, 1e-05
        %v11811 = vstv %s11810
        %v11812 = vrsqrt.pop %v11811
        %s11813 = vtos %v11812
        %v11814 = vstv %s11813
        %v11815 = vsel %vm5767, %v11814, 0.0
        %v11816 = vsub.f32 %v11527, %v11809
        %v11817 = vsub.f32 %v11528, %v11809
        %v11818 = vsub.f32 %v11529, %v11809
        %v11819 = vsub.f32 %v11530, %v11809
        %v11820 = vsub.f32 %v11531, %v11809
        %v11821 = vsub.f32 %v11532, %v11809
        %v11822 = vsub.f32 %v11533, %v11809
        %v11823 = vsub.f32 %v11534, %v11809
        %v11824 = vsub.f32 %v11535, %v11809
        %v11825 = vsub.f32 %v11536, %v11809
        %v11826 = vsub.f32 %v11537, %v11809
        %v11827 = vsub.f32 %v11538, %v11809
        %v11828 = vsub.f32 %v11539, %v11809
        %v11829 = vsub.f32 %v11540, %v11809
        %v11830 = vsub.f32 %v11541, %v11809
        %v11831 = vsub.f32 %v11542, %v11809
        %v11832 = vsub.f32 %v11543, %v11809
        %v11833 = vsub.f32 %v11544, %v11809
        %v11834 = vsub.f32 %v11545, %v11809
        %v11835 = vsub.f32 %v11546, %v11809
        %v11836 = vsub.f32 %v11547, %v11809
        %v11837 = vsub.f32 %v11548, %v11809
        %v11838 = vsub.f32 %v11549, %v11809
        %v11839 = vsub.f32 %v11550, %v11809
        %v11840 = vsub.f32 %v11551, %v11809
        %v11841 = vsub.f32 %v11552, %v11809
        %v11842 = vsub.f32 %v11553, %v11809
        %v11843 = vsub.f32 %v11554, %v11809
        %v11844 = vsub.f32 %v11555, %v11809
        %v11845 = vsub.f32 %v11556, %v11809
        %v11846 = vsub.f32 %v11557, %v11809
        %v11847 = vsub.f32 %v11558, %v11809
        %v11848 = vsub.f32 %v11559, %v11809
        %v11849 = vsub.f32 %v11560, %v11809
        %v11850 = vsub.f32 %v11561, %v11809
        %v11851 = vsub.f32 %v11562, %v11809
        %v11852 = vsub.f32 %v11563, %v11809
        %v11853 = vsub.f32 %v11564, %v11809
        %v11854 = vsub.f32 %v11565, %v11809
        %v11855 = vsub.f32 %v11566, %v11809
        %v11856 = vsub.f32 %v11567, %v11809
        %v11857 = vsub.f32 %v11568, %v11809
        %v11858 = vsub.f32 %v11569, %v11809
        %v11859 = vsub.f32 %v11570, %v11809
        %v11860 = vsub.f32 %v11571, %v11809
        %v11861 = vsub.f32 %v11572, %v11809
        %v11862 = vsub.f32 %v11573, %v11809
        %v11863 = vsub.f32 %v11574, %v11809
        %v11864 = vld [vmem:[%s8] sm:$0x1]
        %v11865 = vmul.f32 %v11815, %v11864
        %v11866 = vlaneseq
        %v11867 = vshrl.u32 %v11866, 7
        %v11868 = vsub.s32 0, %v11867
        %v11869 = vrot.slane %v11865, %v11868
        %v11870 = vmul.f32 %v11816, %v11869
        %v11871 = vmul.f32 %v11817, %v11869
        %v11872 = vmul.f32 %v11818, %v11869
        %v11873 = vmul.f32 %v11819, %v11869
        %v11874 = vmul.f32 %v11820, %v11869
        %v11875 = vmul.f32 %v11821, %v11869
        %v11876 = vmul.f32 %v11822, %v11869
        %v11877 = vmul.f32 %v11823, %v11869
        %v11878 = vmul.f32 %v11824, %v11869
        %v11879 = vmul.f32 %v11825, %v11869
        %v11880 = vmul.f32 %v11826, %v11869
        %v11881 = vmul.f32 %v11827, %v11869
        %v11882 = vmul.f32 %v11828, %v11869
        %v11883 = vmul.f32 %v11829, %v11869
        %v11884 = vmul.f32 %v11830, %v11869
        %v11885 = vmul.f32 %v11831, %v11869
        %v11886 = vmul.f32 %v11832, %v11869
        %v11887 = vmul.f32 %v11833, %v11869
        %v11888 = vmul.f32 %v11834, %v11869
        %v11889 = vmul.f32 %v11835, %v11869
        %v11890 = vmul.f32 %v11836, %v11869
        %v11891 = vmul.f32 %v11837, %v11869
        %v11892 = vmul.f32 %v11838, %v11869
        %v11893 = vmul.f32 %v11839, %v11869
        %v11894 = vmul.f32 %v11840, %v11869
        %v11895 = vmul.f32 %v11841, %v11869
        %v11896 = vmul.f32 %v11842, %v11869
        %v11897 = vmul.f32 %v11843, %v11869
        %v11898 = vmul.f32 %v11844, %v11869
        %v11899 = vmul.f32 %v11845, %v11869
        %v11900 = vmul.f32 %v11846, %v11869
        %v11901 = vmul.f32 %v11847, %v11869
        %v11902 = vmul.f32 %v11848, %v11869
        %v11903 = vmul.f32 %v11849, %v11869
        %v11904 = vmul.f32 %v11850, %v11869
        %v11905 = vmul.f32 %v11851, %v11869
        %v11906 = vmul.f32 %v11852, %v11869
        %v11907 = vmul.f32 %v11853, %v11869
        %v11908 = vmul.f32 %v11854, %v11869
        %v11909 = vmul.f32 %v11855, %v11869
        %v11910 = vmul.f32 %v11856, %v11869
        %v11911 = vmul.f32 %v11857, %v11869
        %v11912 = vmul.f32 %v11858, %v11869
        %v11913 = vmul.f32 %v11859, %v11869
        %v11914 = vmul.f32 %v11860, %v11869
        %v11915 = vmul.f32 %v11861, %v11869
        %v11916 = vmul.f32 %v11862, %v11869
        %v11917 = vmul.f32 %v11863, %v11869
        %v11918 = vld [vmem:[%s9] sm:$0x1]
        %v11920 = vlaneseq
        %v11921 = vshrl.u32 %v11920, 7
        %v11922 = vsub.s32 0, %v11921
        %v11923 = vrot.slane %v11918, %v11922
        %v11925 = vadd.f32 %v11870, %v11923
        %v11926 = vadd.f32 %v11871, %v11923
        %v11927 = vadd.f32 %v11872, %v11923
        %v11928 = vadd.f32 %v11873, %v11923
        %v11929 = vadd.f32 %v11874, %v11923
        %v11930 = vadd.f32 %v11875, %v11923
        %v11931 = vadd.f32 %v11876, %v11923
        %v11932 = vadd.f32 %v11877, %v11923
        %v11933 = vadd.f32 %v11878, %v11923
        %v11934 = vadd.f32 %v11879, %v11923
        %v11935 = vadd.f32 %v11880, %v11923
        %v11936 = vadd.f32 %v11881, %v11923
        %v11937 = vadd.f32 %v11882, %v11923
        %v11938 = vadd.f32 %v11883, %v11923
        %v11939 = vadd.f32 %v11884, %v11923
        %v11940 = vadd.f32 %v11885, %v11923
        %v11941 = vadd.f32 %v11886, %v11923
        %v11942 = vadd.f32 %v11887, %v11923
        %v11943 = vadd.f32 %v11888, %v11923
        %v11944 = vadd.f32 %v11889, %v11923
        %v11945 = vadd.f32 %v11890, %v11923
        %v11946 = vadd.f32 %v11891, %v11923
        %v11947 = vadd.f32 %v11892, %v11923
        %v11948 = vadd.f32 %v11893, %v11923
        %v11949 = vadd.f32 %v11894, %v11923
        %v11950 = vadd.f32 %v11895, %v11923
        %v11951 = vadd.f32 %v11896, %v11923
        %v11952 = vadd.f32 %v11897, %v11923
        %v11953 = vadd.f32 %v11898, %v11923
        %v11954 = vadd.f32 %v11899, %v11923
        %v11955 = vadd.f32 %v11900, %v11923
        %v11956 = vadd.f32 %v11901, %v11923
        %v11957 = vadd.f32 %v11902, %v11923
        %v11958 = vadd.f32 %v11903, %v11923
        %v11959 = vadd.f32 %v11904, %v11923
        %v11960 = vadd.f32 %v11905, %v11923
        %v11961 = vadd.f32 %v11906, %v11923
        %v11962 = vadd.f32 %v11907, %v11923
        %v11963 = vadd.f32 %v11908, %v11923
        %v11964 = vadd.f32 %v11909, %v11923
        %v11965 = vadd.f32 %v11910, %v11923
        %v11966 = vadd.f32 %v11911, %v11923
        %v11967 = vadd.f32 %v11912, %v11923
        %v11968 = vadd.f32 %v11913, %v11923
        %v11969 = vadd.f32 %v11914, %v11923
        %v11970 = vadd.f32 %v11915, %v11923
        %v11971 = vadd.f32 %v11916, %v11923
        %v11972 = vadd.f32 %v11917, %v11923
        %11973 = vst [vmem:[%s406] sm:$0xff] %v11925
        %11974 = vst [vmem:[%s406 + $0x8] sm:$0xff] %v11926
        %11975 = vst [vmem:[%s406 + $0x10] sm:$0xff] %v11927
        %11976 = vst [vmem:[%s406 + $0x18] sm:$0xff] %v11928
        %11977 = vst [vmem:[%s406 + $0x20] sm:$0xff] %v11929
        %11978 = vst [vmem:[%s406 + $0x28] sm:$0xff] %v11930
        %11979 = vst [vmem:[%s406 + $0x30] sm:$0xff] %v11931
        %11980 = vst [vmem:[%s406 + $0x38] sm:$0xff] %v11932
        %11981 = vst [vmem:[%s406 + $0x40] sm:$0xff] %v11933
        %11982 = vst [vmem:[%s406 + $0x48] sm:$0xff] %v11934
        %11983 = vst [vmem:[%s406 + $0x50] sm:$0xff] %v11935
        %11984 = vst [vmem:[%s406 + $0x58] sm:$0xff] %v11936
        %11985 = vst [vmem:[%s406 + $0x60] sm:$0xff] %v11937
        %11986 = vst [vmem:[%s406 + $0x68] sm:$0xff] %v11938
        %11987 = vst [vmem:[%s406 + $0x70] sm:$0xff] %v11939
        %11988 = vst [vmem:[%s406 + $0x78] sm:$0xff] %v11940
        %11989 = vst [vmem:[%s406 + $0x80] sm:$0xff] %v11941
        %11990 = vst [vmem:[%s406 + $0x88] sm:$0xff] %v11942
        %11991 = vst [vmem:[%s406 + $0x90] sm:$0xff] %v11943
        %11992 = vst [vmem:[%s406 + $0x98] sm:$0xff] %v11944
        %11993 = vst [vmem:[%s406 + $0xa0] sm:$0xff] %v11945
        %11994 = vst [vmem:[%s406 + $0xa8] sm:$0xff] %v11946
        %11995 = vst [vmem:[%s406 + $0xb0] sm:$0xff] %v11947
        %11996 = vst [vmem:[%s406 + $0xb8] sm:$0xff] %v11948
        %11997 = vst [vmem:[%s406 + $0xc0] sm:$0xff] %v11949
        %11998 = vst [vmem:[%s406 + $0xc8] sm:$0xff] %v11950
        %11999 = vst [vmem:[%s406 + $0xd0] sm:$0xff] %v11951
        %12000 = vst [vmem:[%s406 + $0xd8] sm:$0xff] %v11952
        %12001 = vst [vmem:[%s406 + $0xe0] sm:$0xff] %v11953
        %12002 = vst [vmem:[%s406 + $0xe8] sm:$0xff] %v11954
        %12003 = vst [vmem:[%s406 + $0xf0] sm:$0xff] %v11955
        %12004 = vst [vmem:[%s406 + $0xf8] sm:$0xff] %v11956
        %12005 = vst [vmem:[%s406 + $0x100] sm:$0xff] %v11957
        %12006 = vst [vmem:[%s406 + $0x108] sm:$0xff] %v11958
        %12007 = vst [vmem:[%s406 + $0x110] sm:$0xff] %v11959
        %12008 = vst [vmem:[%s406 + $0x118] sm:$0xff] %v11960
        %12009 = vst [vmem:[%s406 + $0x120] sm:$0xff] %v11961
        %12010 = vst [vmem:[%s406 + $0x128] sm:$0xff] %v11962
        %12011 = vst [vmem:[%s406 + $0x130] sm:$0xff] %v11963
        %12012 = vst [vmem:[%s406 + $0x138] sm:$0xff] %v11964
        %12013 = vst [vmem:[%s406 + $0x140] sm:$0xff] %v11965
        %12014 = vst [vmem:[%s406 + $0x148] sm:$0xff] %v11966
        %12015 = vst [vmem:[%s406 + $0x150] sm:$0xff] %v11967
        %12016 = vst [vmem:[%s406 + $0x158] sm:$0xff] %v11968
        %12017 = vst [vmem:[%s406 + $0x160] sm:$0xff] %v11969
        %12018 = vst [vmem:[%s406 + $0x168] sm:$0xff] %v11970
        %12019 = vst [vmem:[%s406 + $0x170] sm:$0xff] %v11971
        %12020 = vst [vmem:[%s406 + $0x178] sm:$0xff] %v11972
        %s12021 = sand.u32 %s251, 1
        %s12022 = scalar_lea.sflag [#allocation5], %s12021
        %s12023 = sand.u32 %s251, 1
        %s12024 = smul.addr %s12023, 384
        %s12025 = scalar_lea.vmem [#allocation9], %s12024
        // Predicated region
        $region73: #{tpu_custom_call.1} parent=59 // pred_check
          %p12026 = pneg %p261
        $region74: #{tpu_custom_call.1} parent=59 // pred_check_branch
          %12028 = sbr.rel (%p12026) target = $region76
        $region75: #{tpu_custom_call.1} parent=59 // pred_region
          %s12030 = ssub.s32 6144, 6144
          %12031 = vsyncadd %s12022, %s12030
          %s12032 = smul.addr %s28, 48
          %s12033 = smul.addr %s12032, 128
          %s12034 = scalar_lea.hbm %s10, %s12033
          %s12035 = sshll.u32 %s12025, 4
          %s12036 = int_to_ptr.vmem [resolvable:$true] %s12035
          %12041 = dma.vmem_to_hbm [thread:$0]  %s12036, 6144, %s12034, %s12022, 128, 128, 8
        $region76: #{tpu_custom_call.1} parent=59 // pred_fallthru
          _
      $region60: #{tpu_custom_call.1} parent=5 // pred_fallthru
        _
      %p12042 = scmp.le.s32.totalorder 2, %s23
      // Predicated region
      $region77: #{tpu_custom_call.1} parent=5 // pred_check
        %p12043 = pneg %p12042
      $region78: #{tpu_custom_call.1} parent=5 // pred_check_branch
        %12045 = sbr.rel (%p12043) target = $region80
      $region79: #{tpu_custom_call.1} parent=5 // pred_region
        %s12046 = ssub.s32 %s23, 2
        // Predicated region
        $region81: #{tpu_custom_call.1} parent=79 // pred_check
          %p12047 = pneg %p267
        $region82: #{tpu_custom_call.1} parent=79 // pred_check_branch
          %12049 = sbr.rel (%p12047) target = $region84
        $region83: #{tpu_custom_call.1} parent=79 // pred_region
          %s12050 = sand.u32 %s252, 1
          %s12051 = scalar_lea.sflag [#allocation5], %s12050
          %s12052 = sand.u32 %s252, 1
          %s12053 = smul.addr %s12052, 384
          %s12054 = scalar_lea.vmem [#allocation9], %s12053
          %12055 = dma.done %s12051, 6144
        $region84: #{tpu_custom_call.1} parent=79 // pred_fallthru
          _
      $region80: #{tpu_custom_call.1} parent=5 // pred_fallthru
        _
    $region6: #{tpu_custom_call.1} parent=1 // loop_footer
      %s27 = sadd.s32 1, %s23
    $region7: #{tpu_custom_call.1} parent=1 // loop_footer_branch
      %22 = sbr.rel target = $region3
    $region8: #{tpu_custom_call.1} parent=1 // loop_exit
      _
    %12056 = vsyncpa [#allocation4], 1
    %s12057 = scalar_lea.sflag [#allocation4], 1
    %12058 = vsyncpa %s12057, 1
    %12059 = vsyncpa [#allocation7], 1
    %12060 = vsyncpa [#allocation5], 1
    %s12061 = scalar_lea.sflag [#allocation5], 1
    %12062 = vsyncpa %s12061, 1

</llo_original>
